<compile_context>
chip_gen: v5e
topology: v5e:2x2
jax: 0.10.0
libtpu: 0.0.40
codegen_flags: <defaults>
</compile_context>

<pallas_src>
import functools

import jax
import jax.numpy as jnp
from jax.experimental import pallas as pl
from jax.experimental.pallas import tpu as pltpu

NUM_CONV = 3                   # num_conv_layers
EPS = 1e-5                     # BatchNorm1d eps
DP = 128                       # padded lane width (features / hidden / classes)
NEG_BIG = -1e30


def _pick_vmem_limit():
    """Generation-aware scoped-VMEM limit (safe fallback if query unavailable)."""
    try:
        cap = int(pltpu.get_tpu_info().vmem_capacity_bytes)
        return min((cap * 3) // 4, 96 * 1024 * 1024)
    except Exception:
        return 48 * 1024 * 1024


# ----------------------------- kernels -----------------------------

def xstats_kernel(x_ref, stats_ref):
    """Per-row-tile partial BN statistics of the raw input features x.
    Output row 0 = column sum, row 1 = column sum of squares (reduced downstream)."""
    x = x_ref[...].astype(jnp.float32)
    stats_ref[0, 0:1, :] = jnp.sum(x, axis=0, keepdims=True)
    stats_ref[0, 1:2, :] = jnp.sum(x * x, axis=0, keepdims=True)


def make_layer_kernel(n_nodes: int, tile_n: int, out_dtype):
    """One fused GCN layer (reassociated):
         h_out_row = ReLU((sum_k adj[i,k] @ BN(h[k])) @ W + b)
    plus, at the reduction finalize:
      * per-row-tile partial BN stats of h_out (consumed by the next layer), and
      * per-row-tile global_add_pool partials (pool_tile @ h_out).
    Grid = (row_tiles "parallel", col_tiles "arbitrary"); f32 VMEM accumulator;
    MXU operands in the compute dtype, accumulation / BN / ReLU in f32."""
    inv_n = 1.0 / float(n_nodes)

    def layer_kernel(stats_in_ref, h_ref, adj_ref, prm_ref, w_ref, pool_ref,
                     h_out_ref, stats_out_ref, pool_out_ref, acc_ref):
        i = pl.program_id(0)
        k = pl.program_id(1)

        @pl.when(k == 0)
        def _():
            acc_ref[...] = jnp.zeros_like(acc_ref)

        # mean / inv_std of this layer's input from the tiny per-tile partials.
        s = jnp.sum(stats_in_ref[...], axis=0)                   # (2, DP) f32
        mean = s[0:1, :] * inv_n
        var = s[1:2, :] * inv_n - mean * mean
        inv_std = jax.lax.rsqrt(var + EPS)
        scale = inv_std * prm_ref[0:1, :]                        # gamma
        shift = prm_ref[1:2, :] - mean * scale                   # beta - mean*scale

        hbn = (h_ref[...].astype(jnp.float32) * scale + shift).astype(adj_ref.dtype)
        acc_ref[...] += jnp.dot(adj_ref[...], hbn,
                                preferred_element_type=jnp.float32)

        @pl.when(k == pl.num_programs(1) - 1)
        def _():
            u = jnp.dot(acc_ref[...].astype(w_ref.dtype), w_ref[...],
                        preferred_element_type=jnp.float32) + prm_ref[2:3, :]
            u = jnp.maximum(u, 0.0)
            # Mask padded node rows so next-layer BN stats and the pooled sums stay exact.
            row = jax.lax.broadcasted_iota(jnp.int32, u.shape, 0) + i * tile_n
            u = jnp.where(row < n_nodes, u, 0.0)

            h_st = u.astype(out_dtype)
            h_out_ref[...] = h_st

            u32 = h_st.astype(jnp.float32)
            stats_out_ref[0, 0:1, :] = jnp.sum(u32, axis=0, keepdims=True)
            stats_out_ref[0, 1:2, :] = jnp.sum(u32 * u32, axis=0, keepdims=True)
            pool_out_ref[0] = jnp.dot(pool_ref[...], u32,
                                      preferred_element_type=jnp.float32)

    return layer_kernel


def make_head_kernel(num_graphs: int, num_classes: int):
    """FC head: reduce pool partials -> BN -> Linear -> ReLU -> BN -> lin_class ->
    log_softmax (all f32, tiny).  BN statistics use only the real graph rows."""
    inv_b = 1.0 / float(num_graphs)

    def head_kernel(gpart_ref, prm_ref, lw_ref, wc_ref, out_ref):
        g = jnp.sum(gpart_ref[...], axis=0)                      # (8, DP) f32
        row = jax.lax.broadcasted_iota(jnp.int32, g.shape, 0)
        rmask = row < num_graphs

        def bn(v, gamma, beta):
            vm = jnp.where(rmask, v, 0.0)
            mean = jnp.sum(vm, axis=0, keepdims=True) * inv_b
            var = jnp.sum(vm * vm, axis=0, keepdims=True) * inv_b - mean * mean
            sc = jax.lax.rsqrt(var + EPS) * gamma
            return v * sc + (beta - mean * sc)

        h = bn(g, prm_ref[0:1, :], prm_ref[1:2, :])
        h = jnp.dot(h, lw_ref[...], preferred_element_type=jnp.float32) + prm_ref[2:3, :]
        h = jnp.maximum(h, 0.0)
        h = bn(h, prm_ref[3:4, :], prm_ref[4:5, :])
        logits = jnp.dot(h, wc_ref[...], preferred_element_type=jnp.float32) + prm_ref[5:6, :]

        col = jax.lax.broadcasted_iota(jnp.int32, logits.shape, 1)
        logits = jnp.where(col < num_classes, logits, NEG_BIG)   # mask padded classes
        m = jnp.max(logits, axis=-1, keepdims=True)
        lse = m + jnp.log(jnp.sum(jnp.exp(logits - m), axis=-1, keepdims=True))
        out_ref[...] = logits - lse

    return head_kernel


# ----------------------------- wrapper -----------------------------

def resgcn_forward(x_pad, adj_pad, pool_pad, conv_w, conv_p, head_p, lw_pad, wc_pad,
                   *, n_nodes, tile_n, num_graphs, num_classes,
                   compute_dtype=jnp.bfloat16, vmem_limit_bytes=None):
    np_, dp = x_pad.shape
    assert np_ % tile_n == 0, "padded node count must be a multiple of the tile size"
    assert n_nodes <= np_
    assert num_graphs <= 8 and num_classes <= dp
    n_tiles = np_ // tile_n
    num_layers = conv_w.shape[0]

    if vmem_limit_bytes is None:
        vmem_limit_bytes = _pick_vmem_limit()

    adj_c = adj_pad.astype(compute_dtype)       # 2-byte adj stream in the bf16 path
    w_c = conv_w.astype(compute_dtype)

    # One-time BN stats over x (first layer only; later layers get stats from the
    # previous layer's fused finalize).
    stats = pl.pallas_call(
        xstats_kernel,
        out_shape=jax.ShapeDtypeStruct((n_tiles, 2, dp), jnp.float32),
        grid_spec=pltpu.PrefetchScalarGridSpec(
            num_scalar_prefetch=0,
            grid=(n_tiles,),
            in_specs=[pl.BlockSpec((tile_n, dp), lambda i: (i, 0))],
            out_specs=pl.BlockSpec((1, 2, dp), lambda i: (i, 0, 0))),
        compiler_params=pltpu.CompilerParams(
            dimension_semantics=("parallel",),
            vmem_limit_bytes=vmem_limit_bytes),
    )(x_pad)

    h = x_pad
    pool_partials = None
    for l in range(num_layers):
        h_item = jnp.dtype(h.dtype).itemsize
        c_item = jnp.dtype(compute_dtype).itemsize
        cost = pl.CostEstimate(
            flops=2 * np_ * np_ * dp + 2 * np_ * dp * dp + 2 * 8 * np_ * dp,
            transcendentals=0,
            bytes_accessed=(np_ * np_ * c_item              # adjacency
                            + n_tiles * np_ * dp * h_item   # h column tiles re-read
                            + np_ * dp * c_item             # h write-back
                            + dp * dp * c_item))

        layer_call = pl.pallas_call(
            make_layer_kernel(n_nodes, tile_n, compute_dtype),
            out_shape=(jax.ShapeDtypeStruct((np_, dp), compute_dtype),        # h_out
                       jax.ShapeDtypeStruct((n_tiles, 2, dp), jnp.float32),   # stats partials
                       jax.ShapeDtypeStruct((n_tiles, 8, dp), jnp.float32)),  # pool partials
            grid_spec=pltpu.PrefetchScalarGridSpec(
                num_scalar_prefetch=0,
                grid=(n_tiles, n_tiles),
                in_specs=[
                    pl.BlockSpec((n_tiles, 2, dp), lambda i, k: (0, 0, 0)),   # stats in
                    pl.BlockSpec((tile_n, dp), lambda i, k: (k, 0)),          # h column tile
                    pl.BlockSpec((tile_n, tile_n), lambda i, k: (i, k)),      # adj block
                    pl.BlockSpec((8, dp), lambda i, k: (0, 0)),               # gamma/beta/bias
                    pl.BlockSpec((dp, dp), lambda i, k: (0, 0)),              # layer weight
                    pl.BlockSpec((8, tile_n), lambda i, k: (0, i)),           # pool tile
                ],
                out_specs=[
                    pl.BlockSpec((tile_n, dp), lambda i, k: (i, 0)),
                    pl.BlockSpec((1, 2, dp), lambda i, k: (i, 0, 0)),
                    pl.BlockSpec((1, 8, dp), lambda i, k: (i, 0, 0)),
                ],
                scratch_shapes=[pltpu.VMEM((tile_n, dp), jnp.float32)]),
            compiler_params=pltpu.CompilerParams(
                dimension_semantics=("parallel", "arbitrary"),
                vmem_limit_bytes=vmem_limit_bytes),
            cost_estimate=cost,
        )
        h, stats, pool_partials = layer_call(stats, h, adj_c, conv_p[l], w_c[l], pool_pad)

    # FC head (gating is None -> gate == 1; dropout=0; fc_residual=False).
    out_pad = pl.pallas_call(
        make_head_kernel(num_graphs, num_classes),
        out_shape=jax.ShapeDtypeStruct((8, dp), jnp.float32),
        in_specs=[pl.BlockSpec(memory_space=pltpu.MemorySpace.VMEM)] * 4,
        out_specs=pl.BlockSpec(memory_space=pltpu.MemorySpace.VMEM),
        compiler_params=pltpu.CompilerParams(vmem_limit_bytes=vmem_limit_bytes),
    )(pool_partials, head_p, lw_pad, wc_pad)

    return out_pad[:num_graphs, :num_classes]


# ----------------------------- plain-JAX glue -----------------------------

def build_norm_adj(edge_index, edge_weight, num_nodes):
    """PyG gcn_norm: add self loops (weight 1), A_hat = D^-1/2 (A+I) D^-1/2,
    with A[dst, src] = edge_weight (source_to_target flow)."""
    src, dst = edge_index[0], edge_index[1]
    a = jnp.zeros((num_nodes, num_nodes), jnp.float32)
    a = a.at[dst, src].add(edge_weight)
    a = a + jnp.eye(num_nodes, dtype=jnp.float32)
    deg = jnp.sum(a, axis=1)
    dinv = jnp.where(deg > 0, 1.0 / jnp.sqrt(deg), 0.0)
    return a * dinv[:, None] * dinv[None, :]


def init_params(key, num_feat, hidden, num_classes, num_conv):
    ks = jax.random.split(key, 3 + num_conv)

    def lin(k, fan_in, fan_out):
        # deterministic stand-in for PyTorch/PyG default init; weights stored [in, out]
        return (jax.random.normal(k, (fan_in, fan_out), jnp.float32)
                / jnp.sqrt(jnp.float32(fan_in)))

    p = {}
    p["bnf_g"] = jnp.ones((num_feat,), jnp.float32)
    p["bnf_b"] = jnp.full((num_feat,), 1e-4, jnp.float32)
    p["w0"] = lin(ks[0], num_feat, hidden)
    p["b0"] = jnp.zeros((hidden,), jnp.float32)
    p["bng"] = jnp.ones((num_conv, hidden), jnp.float32)
    p["bnb"] = jnp.full((num_conv, hidden), 1e-4, jnp.float32)
    p["cw"] = jnp.stack([lin(ks[1 + i], hidden, hidden) for i in range(num_conv)])
    p["cb"] = jnp.zeros((num_conv, hidden), jnp.float32)
    p["bnfc_g"] = jnp.ones((hidden,), jnp.float32)
    p["bnfc_b"] = jnp.full((hidden,), 1e-4, jnp.float32)
    p["lw"] = lin(ks[1 + num_conv], hidden, hidden)
    p["lb"] = jnp.zeros((hidden,), jnp.float32)
    p["bnh_g"] = jnp.ones((hidden,), jnp.float32)
    p["bnh_b"] = jnp.full((hidden,), 1e-4, jnp.float32)
    p["wc"] = lin(ks[2 + num_conv], hidden, num_classes)
    p["bc"] = jnp.zeros((num_classes,), jnp.float32)
    return p


def pack_params(p, num_feat, hidden, num_classes, dp=DP):
    """Zero-pad everything to 128 lanes and pack the tiny BN/bias vectors."""
    num_conv = p["cw"].shape[0]
    num_layers = num_conv + 1

    conv_w = jnp.zeros((num_layers, dp, dp), jnp.float32)
    conv_w = conv_w.at[0, :num_feat, :hidden].set(p["w0"])
    conv_w = conv_w.at[1:, :hidden, :hidden].set(p["cw"])

    conv_p = jnp.zeros((num_layers, 8, dp), jnp.float32)   # rows: 0=gamma 1=beta 2=bias
    conv_p = conv_p.at[0, 0, :num_feat].set(p["bnf_g"])
    conv_p = conv_p.at[0, 1, :num_feat].set(p["bnf_b"])
    conv_p = conv_p.at[0, 2, :hidden].set(p["b0"])
    conv_p = conv_p.at[1:, 0, :hidden].set(p["bng"])
    conv_p = conv_p.at[1:, 1, :hidden].set(p["bnb"])
    conv_p = conv_p.at[1:, 2, :hidden].set(p["cb"])

    head_p = jnp.zeros((8, dp), jnp.float32)   # 0=bnfc_g 1=bnfc_b 2=lb 3=bnh_g 4=bnh_b 5=bc
    head_p = head_p.at[0, :hidden].set(p["bnfc_g"])
    head_p = head_p.at[1, :hidden].set(p["bnfc_b"])
    head_p = head_p.at[2, :hidden].set(p["lb"])
    head_p = head_p.at[3, :hidden].set(p["bnh_g"])
    head_p = head_p.at[4, :hidden].set(p["bnh_b"])
    head_p = head_p.at[5, :num_classes].set(p["bc"])

    lw_pad = jnp.zeros((dp, dp), jnp.float32).at[:hidden, :hidden].set(p["lw"])
    wc_pad = jnp.zeros((dp, dp), jnp.float32).at[:hidden, :num_classes].set(p["wc"])
    return conv_w, conv_p, head_p, lw_pad, wc_pad


def reference_forward(x, adj, pool, p, compute_dtype=jnp.float32):
    """Pure-JAX reference (unpadded). With compute_dtype=float32 this is exactly the
    module semantics; with bfloat16 it mimics the kernel's MXU-operand casts and the
    bf16 inter-layer activation storage."""
    cd = compute_dtype
    adj_c = adj.astype(cd)

    def bn(v, gamma, beta):
        mean = v.mean(0, keepdims=True)
        var = (v * v).mean(0, keepdims=True) - mean * mean
        scale = jax.lax.rsqrt(var + EPS) * gamma
        return v * scale + (beta - mean * scale)

    def layer(h, gamma, beta, w, b):
        hbn = bn(h, gamma, beta).astype(cd)
        u = jnp.dot(adj_c, hbn, preferred_element_type=jnp.float32)
        u = jnp.dot(u.astype(cd), w.astype(cd), preferred_element_type=jnp.float32) + b
        u = jnp.maximum(u, 0.0)
        return u.astype(cd).astype(jnp.float32)   # inter-layer storage round-trip

    h = layer(x, p["bnf_g"], p["bnf_b"], p["w0"], p["b0"])
    for i in range(p["cw"].shape[0]):
        h = layer(h, p["bng"][i], p["bnb"][i], p["cw"][i], p["cb"][i])

    g = jnp.dot(pool, h, preferred_element_type=jnp.float32)
    gx = bn(g, p["bnfc_g"], p["bnfc_b"])
    g = jnp.maximum(jnp.dot(gx, p["lw"], preferred_element_type=jnp.float32) + p["lb"], 0.0)
    g = bn(g, p["bnh_g"], p["bnh_b"])
    logits = jnp.dot(g, p["wc"], preferred_element_type=jnp.float32) + p["bc"]
    return jax.nn.log_softmax(logits, axis=-1)


# ----------------------------- demo -----------------------------

if __name__ == "__main__":
    N_NODES, F_IN, HID, C, B, E = 500, 16, 32, 4, 2, 1000
    TILE_N = 256
    NP = 512   # nodes padded to a tile multiple -> grid (2 row tiles, 2 col tiles)

    key = jax.random.PRNGKey(0)
    kx, ks, kd, kw, kp = jax.random.split(key, 5)

    x = jax.random.normal(kx, (N_NODES, F_IN), jnp.float32)
    src = jax.random.randint(ks, (E,), 0, N_NODES)
    dst = jax.random.randint(kd, (E,), 0, N_NODES)
    edge_index = jnp.stack([jnp.concatenate([src, dst]),
                            jnp.concatenate([dst, src])])          # undirected
    ew = jax.random.uniform(kw, (E,), jnp.float32, 0.5, 1.5)
    edge_weight = jnp.concatenate([ew, ew])
    batch = jnp.concatenate([jnp.zeros(300, jnp.int32), jnp.ones(200, jnp.int32)])

    adj = build_norm_adj(edge_index, edge_weight, N_NODES)          # [N, N] f32
    pool = jax.nn.one_hot(batch, B, dtype=jnp.float32).T            # [B, N] sum-pool

    params = init_params(kp, F_IN, HID, C, NUM_CONV)
    conv_w, conv_p, head_p, lw_pad, wc_pad = pack_params(params, F_IN, HID, C)

    x_pad = jnp.zeros((NP, DP), jnp.float32).at[:N_NODES, :F_IN].set(x)
    adj_pad = jnp.zeros((NP, NP), jnp.float32).at[:N_NODES, :N_NODES].set(adj)
    pool_pad = jnp.zeros((8, NP), jnp.float32).at[:B, :N_NODES].set(pool)

    @functools.partial(jax.jit, static_argnames=("compute_dtype",))
    def fwd(x_pad, adj_pad, pool_pad, conv_w, conv_p, head_p, lw_pad, wc_pad, compute_dtype):
        return resgcn_forward(x_pad, adj_pad, pool_pad, conv_w, conv_p, head_p, lw_pad,
                              wc_pad, n_nodes=N_NODES, tile_n=TILE_N, num_graphs=B,
                              num_classes=C, compute_dtype=compute_dtype)

    # f32 path: exact module semantics.
    out32 = jax.block_until_ready(
        fwd(x_pad, adj_pad, pool_pad, conv_w, conv_p, head_p, lw_pad, wc_pad,
            compute_dtype=jnp.float32))
    ref32 = reference_forward(x, adj, pool, params, jnp.float32)
    assert out32.shape == (B, C), out32.shape
    assert bool(jnp.all(jnp.isfinite(out32)))
    assert bool(jnp.allclose(out32, ref32, atol=5e-3, rtol=5e-3))

    # bf16 MXU / bf16-activation fast path: compare against a reference with matching casts.
    out16 = jax.block_until_ready(
        fwd(x_pad, adj_pad, pool_pad, conv_w, conv_p, head_p, lw_pad, wc_pad,
            compute_dtype=jnp.bfloat16))
    ref16 = reference_forward(x, adj, pool, params, jnp.bfloat16)
    assert out16.shape == (B, C), out16.shape
    assert bool(jnp.all(jnp.isfinite(out16)))
    assert bool(jnp.allclose(out16, ref16, atol=7.5e-2, rtol=7.5e-2))

    print("KERNEL_OK")
</pallas_src>

<mosaic_0001>
module attributes {stable_mosaic.version = 11 : i64} {
  func.func @layer_kernel(%arg0: i32, %arg1: i32, %arg2: memref<2x2x128xf32, #tpu.memory_space<vmem>>, %arg3: memref<256x128xf32, #tpu.memory_space<vmem>>, %arg4: memref<256x256xf32, #tpu.memory_space<vmem>>, %arg5: memref<8x128xf32, #tpu.memory_space<vmem>>, %arg6: memref<128x128xf32, #tpu.memory_space<vmem>>, %arg7: memref<8x256xf32, #tpu.memory_space<vmem>>, %arg8: memref<256x128xf32, #tpu.memory_space<vmem>>, %arg9: memref<1x2x128xf32, #tpu.memory_space<vmem>>, %arg10: memref<1x8x128xf32, #tpu.memory_space<vmem>>, %arg11: memref<256x128xf32, #tpu.memory_space<vmem>>) attributes {dimension_semantics = [#tpu.dimension_semantics<parallel>, #tpu.dimension_semantics<arbitrary>], iteration_bounds = array<i64: 2, 2>, scalar_prefetch = 0 : i64, scratch_operands = 1 : i64, tpu.core_type = #tpu.core_type<tc>, window_params = [{pipeline_mode = #tpu.pipeline_mode<synchronous>, transform_indices = @transform_0, window_bounds = array<i64: 2, 2, 128>}, {transform_indices = @transform_1, window_bounds = array<i64: 256, 128>}, {transform_indices = @transform_2, window_bounds = array<i64: 256, 256>}, {pipeline_mode = #tpu.pipeline_mode<synchronous>, transform_indices = @transform_3, window_bounds = array<i64: 8, 128>}, {pipeline_mode = #tpu.pipeline_mode<synchronous>, transform_indices = @transform_4, window_bounds = array<i64: 128, 128>}, {transform_indices = @transform_5, window_bounds = array<i64: 8, 256>}, {transform_indices = @transform_6, window_bounds = array<i64: 256, 128>}, {transform_indices = @transform_7, window_bounds = array<i64: 1, 2, 128>}, {transform_indices = @transform_8, window_bounds = array<i64: 1, 8, 128>}]} {
    %c0_i32 = arith.constant 0 : i32
    %0 = arith.cmpi eq, %arg1, %c0_i32 : i32
    %1 = arith.extui %0 : i1 to i32
    %c0_i32_0 = arith.constant 0 : i32
    %2 = arith.cmpi ne, %1, %c0_i32_0 : i32
    scf.if %2 {
      %cst_19 = arith.constant 0.000000e+00 : f32
      %34 = vector.broadcast %cst_19 : f32 to vector<256x128xf32>
      %c0_20 = arith.constant 0 : index
      %c0_21 = arith.constant 0 : index
      %35 = vector.load %arg11[%c0_20, %c0_21] : memref<256x128xf32, #tpu.memory_space<vmem>>, vector<256x128xf32>
      tpu.vector_store %arg11[%c0_20, %c0_21], %34 {strides = array<i32>} : memref<256x128xf32, #tpu.memory_space<vmem>>, vector<256x128xf32>,
    } else {
    }
    %c0 = arith.constant 0 : index
    %c0_1 = arith.constant 0 : index
    %c0_2 = arith.constant 0 : index
    %3 = vector.load %arg2[%c0, %c0_1, %c0_2] : memref<2x2x128xf32, #tpu.memory_space<vmem>>, vector<2x2x128xf32>
    %cst = arith.constant dense<0.000000e+00> : vector<2x128xf32>
    %4 = vector.multi_reduction <add>, %3, %cst [0] : vector<2x2x128xf32> to vector<2x128xf32>
    %5 = vector.extract_strided_slice %4 {offsets = [0, 0], sizes = [1, 128], strides = [1, 1]} : vector<2x128xf32> to vector<1x128xf32>
    %cst_3 = arith.constant 2.000000e-03 : f32
    %6 = vector.broadcast %cst_3 : f32 to vector<1x128xf32>
    %7 = arith.mulf %5, %6 : vector<1x128xf32>
    %8 = vector.extract_strided_slice %4 {offsets = [1, 0], sizes = [1, 128], strides = [1, 1]} : vector<2x128xf32> to vector<1x128xf32>
    %cst_4 = arith.constant 2.000000e-03 : f32
    %9 = vector.broadcast %cst_4 : f32 to vector<1x128xf32>
    %10 = arith.mulf %8, %9 : vector<1x128xf32>
    %11 = arith.mulf %7, %7 : vector<1x128xf32>
    %12 = arith.subf %10, %11 : vector<1x128xf32>
    %cst_5 = arith.constant 9.99999974E-6 : f32
    %13 = vector.broadcast %cst_5 : f32 to vector<1x128xf32>
    %14 = arith.addf %12, %13 : vector<1x128xf32>
    %15 = math.rsqrt %14 : vector<1x128xf32>
    %c0_6 = arith.constant 0 : index
    %c0_7 = arith.constant 0 : index
    %16 = vector.load %arg5[%c0_6, %c0_7] : memref<8x128xf32, #tpu.memory_space<vmem>>, vector<1x128xf32>
    %17 = arith.mulf %15, %16 : vector<1x128xf32>
    %c1 = arith.constant 1 : index
    %c0_8 = arith.constant 0 : index
    %18 = vector.load %arg5[%c1, %c0_8] : memref<8x128xf32, #tpu.memory_space<vmem>>, vector<1x128xf32>
    %19 = arith.mulf %7, %17 : vector<1x128xf32>
    %20 = arith.subf %18, %19 : vector<1x128xf32>
    %c0_9 = arith.constant 0 : index
    %c0_10 = arith.constant 0 : index
    %21 = vector.load %arg3[%c0_9, %c0_10] : memref<256x128xf32, #tpu.memory_space<vmem>>, vector<256x128xf32>
    %22 = vector.broadcast %17 : vector<1x128xf32> to vector<256x128xf32>
    %23 = arith.mulf %21, %22 : vector<256x128xf32>
    %24 = vector.broadcast %20 : vector<1x128xf32> to vector<256x128xf32>
    %25 = arith.addf %23, %24 : vector<256x128xf32>
    %c0_11 = arith.constant 0 : index
    %c0_12 = arith.constant 0 : index
    %26 = vector.load %arg11[%c0_11, %c0_12] : memref<256x128xf32, #tpu.memory_space<vmem>>, vector<256x128xf32>
    %c0_13 = arith.constant 0 : index
    %c0_14 = arith.constant 0 : index
    %27 = vector.load %arg4[%c0_13, %c0_14] : memref<256x256xf32, #tpu.memory_space<vmem>>, vector<256x256xf32>
    %cst_15 = arith.constant dense<0.000000e+00> : vector<256x128xf32>
    %28 = tpu.matmul %27, %25, %cst_15 {dimension_numbers = #tpu.dot_dimension_numbers<[1], [0], [0], [1], [0, 0, 1, 1], [], []>} : vector<256x256xf32>, vector<256x128xf32>, vector<256x128xf32> -> vector<256x128xf32>
    %29 = arith.addf %26, %28 : vector<256x128xf32>
    %c0_16 = arith.constant 0 : index
    %c0_17 = arith.constant 0 : index
    %30 = vector.load %arg11[%c0_16, %c0_17] : memref<256x128xf32, #tpu.memory_space<vmem>>, vector<256x128xf32>
    tpu.vector_store %arg11[%c0_16, %c0_17], %29 {strides = array<i32>} : memref<256x128xf32, #tpu.memory_space<vmem>>, vector<256x128xf32>,
    %c1_i32 = arith.constant 1 : i32
    %31 = arith.cmpi eq, %arg1, %c1_i32 : i32
    %32 = arith.extui %31 : i1 to i32
    %c0_i32_18 = arith.constant 0 : i32
    %33 = arith.cmpi ne, %32, %c0_i32_18 : i32
    scf.if %33 {
      %c0_19 = arith.constant 0 : index
      %c0_20 = arith.constant 0 : index
      %34 = vector.load %arg11[%c0_19, %c0_20] : memref<256x128xf32, #tpu.memory_space<vmem>>, vector<256x128xf32>
      %c0_21 = arith.constant 0 : index
      %c0_22 = arith.constant 0 : index
      %35 = vector.load %arg6[%c0_21, %c0_22] : memref<128x128xf32, #tpu.memory_space<vmem>>, vector<128x128xf32>
      %cst_23 = arith.constant dense<0.000000e+00> : vector<256x128xf32>
      %36 = tpu.matmul %34, %35, %cst_23 {dimension_numbers = #tpu.dot_dimension_numbers<[1], [0], [0], [1], [0, 0, 1, 1], [], []>} : vector<256x128xf32>, vector<128x128xf32>, vector<256x128xf32> -> vector<256x128xf32>
      %c2 = arith.constant 2 : index
      %c0_24 = arith.constant 0 : index
      %37 = vector.load %arg5[%c2, %c0_24] : memref<8x128xf32, #tpu.memory_space<vmem>>, vector<1x128xf32>
      %38 = vector.broadcast %37 : vector<1x128xf32> to vector<256x128xf32>
      %39 = arith.addf %36, %38 : vector<256x128xf32>
      %cst_25 = arith.constant 0.000000e+00 : f32
      %40 = vector.broadcast %cst_25 : f32 to vector<256x128xf32>
      %41 = arith.maximumf %39, %40 : vector<256x128xf32>
      %42 = tpu.iota {dimensions = array<i32: 0>} : vector<256x128xi32>
      %c256_i32 = arith.constant 256 : i32
      %43 = arith.muli %arg0, %c256_i32 : i32
      %44 = vector.broadcast %43 : i32 to vector<256x128xi32>
      %45 = arith.addi %42, %44 : vector<256x128xi32>
      %c500_i32 = arith.constant 500 : i32
      %46 = vector.broadcast %c500_i32 : i32 to vector<256x128xi32>
      %47 = arith.cmpi slt, %45, %46 : vector<256x128xi32>
      %cst_26 = arith.constant 0.000000e+00 : f32
      %48 = vector.broadcast %cst_26 : f32 to vector<256x128xf32>
      %49 = arith.select %47, %41, %48 : vector<256x128xi1>, vector<256x128xf32>
      %c0_27 = arith.constant 0 : index
      %c0_28 = arith.constant 0 : index
      %50 = vector.load %arg8[%c0_27, %c0_28] : memref<256x128xf32, #tpu.memory_space<vmem>>, vector<256x128xf32>
      tpu.vector_store %arg8[%c0_27, %c0_28], %49 {strides = array<i32>} : memref<256x128xf32, #tpu.memory_space<vmem>>, vector<256x128xf32>,
      %cst_29 = arith.constant dense<0.000000e+00> : vector<128xf32>
      %51 = vector.multi_reduction <add>, %49, %cst_29 [0] : vector<256x128xf32> to vector<128xf32>
      %52 = vector.shape_cast %51 : vector<128xf32> to vector<1x128xf32>
      %c0_30 = arith.constant 0 : index
      %c0_31 = arith.constant 0 : index
      %c0_32 = arith.constant 0 : index
      %53 = vector.load %arg9[%c0_30, %c0_31, %c0_32] : memref<1x2x128xf32, #tpu.memory_space<vmem>>, vector<1x1x128xf32>
      %54 = vector.shape_cast %53 : vector<1x1x128xf32> to vector<1x128xf32>
      %55 = vector.shape_cast %52 : vector<1x128xf32> to vector<1x1x128xf32>
      tpu.vector_store %arg9[%c0_30, %c0_31, %c0_32], %55 {strides = array<i32>} : memref<1x2x128xf32, #tpu.memory_space<vmem>>, vector<1x1x128xf32>,
      %56 = arith.mulf %49, %49 : vector<256x128xf32>
      %cst_33 = arith.constant dense<0.000000e+00> : vector<128xf32>
      %57 = vector.multi_reduction <add>, %56, %cst_33 [0] : vector<256x128xf32> to vector<128xf32>
      %58 = vector.shape_cast %57 : vector<128xf32> to vector<1x128xf32>
      %c0_34 = arith.constant 0 : index
      %c1_35 = arith.constant 1 : index
      %c0_36 = arith.constant 0 : index
      %59 = vector.load %arg9[%c0_34, %c1_35, %c0_36] : memref<1x2x128xf32, #tpu.memory_space<vmem>>, vector<1x1x128xf32>
      %60 = vector.shape_cast %59 : vector<1x1x128xf32> to vector<1x128xf32>
      %61 = vector.shape_cast %58 : vector<1x128xf32> to vector<1x1x128xf32>
      tpu.vector_store %arg9[%c0_34, %c1_35, %c0_36], %61 {strides = array<i32>} : memref<1x2x128xf32, #tpu.memory_space<vmem>>, vector<1x1x128xf32>,
      %c0_37 = arith.constant 0 : index
      %c0_38 = arith.constant 0 : index
      %62 = vector.load %arg7[%c0_37, %c0_38] : memref<8x256xf32, #tpu.memory_space<vmem>>, vector<8x256xf32>
      %cst_39 = arith.constant dense<0.000000e+00> : vector<8x128xf32>
      %63 = tpu.matmul %62, %49, %cst_39 {dimension_numbers = #tpu.dot_dimension_numbers<[1], [0], [0], [1], [0, 0, 1, 1], [], []>} : vector<8x256xf32>, vector<256x128xf32>, vector<8x128xf32> -> vector<8x128xf32>
      %c0_40 = arith.constant 0 : index
      %c0_41 = arith.constant 0 : index
      %c0_42 = arith.constant 0 : index
      %64 = vector.load %arg10[%c0_40, %c0_41, %c0_42] : memref<1x8x128xf32, #tpu.memory_space<vmem>>, vector<1x8x128xf32>
      %65 = vector.shape_cast %64 : vector<1x8x128xf32> to vector<8x128xf32>
      %66 = vector.shape_cast %63 : vector<8x128xf32> to vector<1x8x128xf32>
      tpu.vector_store %arg10[%c0_40, %c0_41, %c0_42], %66 {strides = array<i32>} : memref<1x8x128xf32, #tpu.memory_space<vmem>>, vector<1x8x128xf32>,
    } else {
    }
    return
  }
  func.func @transform_0(%arg0: i32, %arg1: i32) -> (i32, i32, i32) {
    %c0_i32 = arith.constant 0 : i32
    %c0_i32_0 = arith.constant 0 : i32
    %c0_i32_1 = arith.constant 0 : i32
    %c0_i32_2 = arith.constant 0 : i32
    return %c0_i32, %c0_i32_0, %c0_i32_1 : i32, i32, i32
  }
  func.func @transform_1(%arg0: i32, %arg1: i32) -> (i32, i32) {
    %c0_i32 = arith.constant 0 : i32
    %c0_i32_0 = arith.constant 0 : i32
    return %arg1, %c0_i32 : i32, i32
  }
  func.func @transform_2(%arg0: i32, %arg1: i32) -> (i32, i32) {
    %c0_i32 = arith.constant 0 : i32
    return %arg0, %arg1 : i32, i32
  }
  func.func @transform_3(%arg0: i32, %arg1: i32) -> (i32, i32) {
    %c0_i32 = arith.constant 0 : i32
    %c0_i32_0 = arith.constant 0 : i32
    %c0_i32_1 = arith.constant 0 : i32
    return %c0_i32, %c0_i32_0 : i32, i32
  }
  func.func @transform_4(%arg0: i32, %arg1: i32) -> (i32, i32) {
    %c0_i32 = arith.constant 0 : i32
    %c0_i32_0 = arith.constant 0 : i32
    %c0_i32_1 = arith.constant 0 : i32
    return %c0_i32, %c0_i32_0 : i32, i32
  }
  func.func @transform_5(%arg0: i32, %arg1: i32) -> (i32, i32) {
    %c0_i32 = arith.constant 0 : i32
    %c0_i32_0 = arith.constant 0 : i32
    return %c0_i32, %arg0 : i32, i32
  }
  func.func @transform_6(%arg0: i32, %arg1: i32) -> (i32, i32) {
    %c0_i32 = arith.constant 0 : i32
    %c0_i32_0 = arith.constant 0 : i32
    return %arg0, %c0_i32 : i32, i32
  }
  func.func @transform_7(%arg0: i32, %arg1: i32) -> (i32, i32, i32) {
    %c0_i32 = arith.constant 0 : i32
    %c0_i32_0 = arith.constant 0 : i32
    %c0_i32_1 = arith.constant 0 : i32
    return %arg0, %c0_i32, %c0_i32_0 : i32, i32, i32
  }
  func.func @transform_8(%arg0: i32, %arg1: i32) -> (i32, i32, i32) {
    %c0_i32 = arith.constant 0 : i32
    %c0_i32_0 = arith.constant 0 : i32
    %c0_i32_1 = arith.constant 0 : i32
    return %arg0, %c0_i32, %c0_i32_0 : i32, i32, i32
  }
}

module attributes {stable_mosaic.version = 11 : i64} {
  func.func @xstats_kernel(%arg0: i32, %arg1: memref<256x128xf32, #tpu.memory_space<vmem>>, %arg2: memref<1x2x128xf32, #tpu.memory_space<vmem>>) attributes {dimension_semantics = [#tpu.dimension_semantics<parallel>], iteration_bounds = array<i64: 2>, scalar_prefetch = 0 : i64, scratch_operands = 0 : i64, tpu.core_type = #tpu.core_type<tc>, window_params = [{transform_indices = @transform_0, window_bounds = array<i64: 256, 128>}, {transform_indices = @transform_1, window_bounds = array<i64: 1, 2, 128>}]} {
    %c0 = arith.constant 0 : index
    %c0_0 = arith.constant 0 : index
    %0 = vector.load %arg1[%c0, %c0_0] : memref<256x128xf32, #tpu.memory_space<vmem>>, vector<256x128xf32>
    %cst = arith.constant dense<0.000000e+00> : vector<128xf32>
    %1 = vector.multi_reduction <add>, %0, %cst [0] : vector<256x128xf32> to vector<128xf32>
    %2 = vector.shape_cast %1 : vector<128xf32> to vector<1x128xf32>
    %c0_1 = arith.constant 0 : index
    %c0_2 = arith.constant 0 : index
    %c0_3 = arith.constant 0 : index
    %3 = vector.load %arg2[%c0_1, %c0_2, %c0_3] : memref<1x2x128xf32, #tpu.memory_space<vmem>>, vector<1x1x128xf32>
    %4 = vector.shape_cast %3 : vector<1x1x128xf32> to vector<1x128xf32>
    %5 = vector.shape_cast %2 : vector<1x128xf32> to vector<1x1x128xf32>
    tpu.vector_store %arg2[%c0_1, %c0_2, %c0_3], %5 {strides = array<i32>} : memref<1x2x128xf32, #tpu.memory_space<vmem>>, vector<1x1x128xf32>,
    %6 = arith.mulf %0, %0 : vector<256x128xf32>
    %cst_4 = arith.constant dense<0.000000e+00> : vector<128xf32>
    %7 = vector.multi_reduction <add>, %6, %cst_4 [0] : vector<256x128xf32> to vector<128xf32>
    %8 = vector.shape_cast %7 : vector<128xf32> to vector<1x128xf32>
    %c0_5 = arith.constant 0 : index
    %c1 = arith.constant 1 : index
    %c0_6 = arith.constant 0 : index
    %9 = vector.load %arg2[%c0_5, %c1, %c0_6] : memref<1x2x128xf32, #tpu.memory_space<vmem>>, vector<1x1x128xf32>
    %10 = vector.shape_cast %9 : vector<1x1x128xf32> to vector<1x128xf32>
    %11 = vector.shape_cast %8 : vector<1x128xf32> to vector<1x1x128xf32>
    tpu.vector_store %arg2[%c0_5, %c1, %c0_6], %11 {strides = array<i32>} : memref<1x2x128xf32, #tpu.memory_space<vmem>>, vector<1x1x128xf32>,
    return
  }
  func.func @transform_0(%arg0: i32) -> (i32, i32) {
    %c0_i32 = arith.constant 0 : i32
    %c0_i32_0 = arith.constant 0 : i32
    return %arg0, %c0_i32 : i32, i32
  }
  func.func @transform_1(%arg0: i32) -> (i32, i32, i32) {
    %c0_i32 = arith.constant 0 : i32
    %c0_i32_0 = arith.constant 0 : i32
    %c0_i32_1 = arith.constant 0 : i32
    return %arg0, %c0_i32, %c0_i32_0 : i32, i32, i32
  }
}

module attributes {stable_mosaic.version = 11 : i64} {
  func.func @layer_kernel(%arg0: i32, %arg1: i32, %arg2: memref<2x2x128xf32, #tpu.memory_space<vmem>>, %arg3: memref<256x128xf32, #tpu.memory_space<vmem>>, %arg4: memref<256x256xf32, #tpu.memory_space<vmem>>, %arg5: memref<8x128xf32, #tpu.memory_space<vmem>>, %arg6: memref<128x128xf32, #tpu.memory_space<vmem>>, %arg7: memref<8x256xf32, #tpu.memory_space<vmem>>, %arg8: memref<256x128xf32, #tpu.memory_space<vmem>>, %arg9: memref<1x2x128xf32, #tpu.memory_space<vmem>>, %arg10: memref<1x8x128xf32, #tpu.memory_space<vmem>>, %arg11: memref<256x128xf32, #tpu.memory_space<vmem>>) attributes {dimension_semantics = [#tpu.dimension_semantics<parallel>, #tpu.dimension_semantics<arbitrary>], iteration_bounds = array<i64: 2, 2>, scalar_prefetch = 0 : i64, scratch_operands = 1 : i64, tpu.core_type = #tpu.core_type<tc>, window_params = [{pipeline_mode = #tpu.pipeline_mode<synchronous>, transform_indices = @transform_0, window_bounds = array<i64: 2, 2, 128>}, {transform_indices = @transform_1, window_bounds = array<i64: 256, 128>}, {transform_indices = @transform_2, window_bounds = array<i64: 256, 256>}, {pipeline_mode = #tpu.pipeline_mode<synchronous>, transform_indices = @transform_3, window_bounds = array<i64: 8, 128>}, {pipeline_mode = #tpu.pipeline_mode<synchronous>, transform_indices = @transform_4, window_bounds = array<i64: 128, 128>}, {transform_indices = @transform_5, window_bounds = array<i64: 8, 256>}, {transform_indices = @transform_6, window_bounds = array<i64: 256, 128>}, {transform_indices = @transform_7, window_bounds = array<i64: 1, 2, 128>}, {transform_indices = @transform_8, window_bounds = array<i64: 1, 8, 128>}]} {
    %c0_i32 = arith.constant 0 : i32
    %0 = arith.cmpi eq, %arg1, %c0_i32 : i32
    %1 = arith.extui %0 : i1 to i32
    %c0_i32_0 = arith.constant 0 : i32
    %2 = arith.cmpi ne, %1, %c0_i32_0 : i32
    scf.if %2 {
      %cst_19 = arith.constant 0.000000e+00 : f32
      %34 = vector.broadcast %cst_19 : f32 to vector<256x128xf32>
      %c0_20 = arith.constant 0 : index
      %c0_21 = arith.constant 0 : index
      %35 = vector.load %arg11[%c0_20, %c0_21] : memref<256x128xf32, #tpu.memory_space<vmem>>, vector<256x128xf32>
      tpu.vector_store %arg11[%c0_20, %c0_21], %34 {strides = array<i32>} : memref<256x128xf32, #tpu.memory_space<vmem>>, vector<256x128xf32>,
    } else {
    }
    %c0 = arith.constant 0 : index
    %c0_1 = arith.constant 0 : index
    %c0_2 = arith.constant 0 : index
    %3 = vector.load %arg2[%c0, %c0_1, %c0_2] : memref<2x2x128xf32, #tpu.memory_space<vmem>>, vector<2x2x128xf32>
    %cst = arith.constant dense<0.000000e+00> : vector<2x128xf32>
    %4 = vector.multi_reduction <add>, %3, %cst [0] : vector<2x2x128xf32> to vector<2x128xf32>
    %5 = vector.extract_strided_slice %4 {offsets = [0, 0], sizes = [1, 128], strides = [1, 1]} : vector<2x128xf32> to vector<1x128xf32>
    %cst_3 = arith.constant 2.000000e-03 : f32
    %6 = vector.broadcast %cst_3 : f32 to vector<1x128xf32>
    %7 = arith.mulf %5, %6 : vector<1x128xf32>
    %8 = vector.extract_strided_slice %4 {offsets = [1, 0], sizes = [1, 128], strides = [1, 1]} : vector<2x128xf32> to vector<1x128xf32>
    %cst_4 = arith.constant 2.000000e-03 : f32
    %9 = vector.broadcast %cst_4 : f32 to vector<1x128xf32>
    %10 = arith.mulf %8, %9 : vector<1x128xf32>
    %11 = arith.mulf %7, %7 : vector<1x128xf32>
    %12 = arith.subf %10, %11 : vector<1x128xf32>
    %cst_5 = arith.constant 9.99999974E-6 : f32
    %13 = vector.broadcast %cst_5 : f32 to vector<1x128xf32>
    %14 = arith.addf %12, %13 : vector<1x128xf32>
    %15 = math.rsqrt %14 : vector<1x128xf32>
    %c0_6 = arith.constant 0 : index
    %c0_7 = arith.constant 0 : index
    %16 = vector.load %arg5[%c0_6, %c0_7] : memref<8x128xf32, #tpu.memory_space<vmem>>, vector<1x128xf32>
    %17 = arith.mulf %15, %16 : vector<1x128xf32>
    %c1 = arith.constant 1 : index
    %c0_8 = arith.constant 0 : index
    %18 = vector.load %arg5[%c1, %c0_8] : memref<8x128xf32, #tpu.memory_space<vmem>>, vector<1x128xf32>
    %19 = arith.mulf %7, %17 : vector<1x128xf32>
    %20 = arith.subf %18, %19 : vector<1x128xf32>
    %c0_9 = arith.constant 0 : index
    %c0_10 = arith.constant 0 : index
    %21 = vector.load %arg3[%c0_9, %c0_10] : memref<256x128xf32, #tpu.memory_space<vmem>>, vector<256x128xf32>
    %22 = vector.broadcast %17 : vector<1x128xf32> to vector<256x128xf32>
    %23 = arith.mulf %21, %22 : vector<256x128xf32>
    %24 = vector.broadcast %20 : vector<1x128xf32> to vector<256x128xf32>
    %25 = arith.addf %23, %24 : vector<256x128xf32>
    %c0_11 = arith.constant 0 : index
    %c0_12 = arith.constant 0 : index
    %26 = vector.load %arg11[%c0_11, %c0_12] : memref<256x128xf32, #tpu.memory_space<vmem>>, vector<256x128xf32>
    %c0_13 = arith.constant 0 : index
    %c0_14 = arith.constant 0 : index
    %27 = vector.load %arg4[%c0_13, %c0_14] : memref<256x256xf32, #tpu.memory_space<vmem>>, vector<256x256xf32>
    %cst_15 = arith.constant dense<0.000000e+00> : vector<256x128xf32>
    %28 = tpu.matmul %27, %25, %cst_15 {dimension_numbers = #tpu.dot_dimension_numbers<[1], [0], [0], [1], [0, 0, 1, 1], [], []>} : vector<256x256xf32>, vector<256x128xf32>, vector<256x128xf32> -> vector<256x128xf32>
    %29 = arith.addf %26, %28 : vector<256x128xf32>
    %c0_16 = arith.constant 0 : index
    %c0_17 = arith.constant 0 : index
    %30 = vector.load %arg11[%c0_16, %c0_17] : memref<256x128xf32, #tpu.memory_space<vmem>>, vector<256x128xf32>
    tpu.vector_store %arg11[%c0_16, %c0_17], %29 {strides = array<i32>} : memref<256x128xf32, #tpu.memory_space<vmem>>, vector<256x128xf32>,
    %c1_i32 = arith.constant 1 : i32
    %31 = arith.cmpi eq, %arg1, %c1_i32 : i32
    %32 = arith.extui %31 : i1 to i32
    %c0_i32_18 = arith.constant 0 : i32
    %33 = arith.cmpi ne, %32, %c0_i32_18 : i32
    scf.if %33 {
      %c0_19 = arith.constant 0 : index
      %c0_20 = arith.constant 0 : index
      %34 = vector.load %arg11[%c0_19, %c0_20] : memref<256x128xf32, #tpu.memory_space<vmem>>, vector<256x128xf32>
      %c0_21 = arith.constant 0 : index
      %c0_22 = arith.constant 0 : index
      %35 = vector.load %arg6[%c0_21, %c0_22] : memref<128x128xf32, #tpu.memory_space<vmem>>, vector<128x128xf32>
      %cst_23 = arith.constant dense<0.000000e+00> : vector<256x128xf32>
      %36 = tpu.matmul %34, %35, %cst_23 {dimension_numbers = #tpu.dot_dimension_numbers<[1], [0], [0], [1], [0, 0, 1, 1], [], []>} : vector<256x128xf32>, vector<128x128xf32>, vector<256x128xf32> -> vector<256x128xf32>
      %c2 = arith.constant 2 : index
      %c0_24 = arith.constant 0 : index
      %37 = vector.load %arg5[%c2, %c0_24] : memref<8x128xf32, #tpu.memory_space<vmem>>, vector<1x128xf32>
      %38 = vector.broadcast %37 : vector<1x128xf32> to vector<256x128xf32>
      %39 = arith.addf %36, %38 : vector<256x128xf32>
      %cst_25 = arith.constant 0.000000e+00 : f32
      %40 = vector.broadcast %cst_25 : f32 to vector<256x128xf32>
      %41 = arith.maximumf %39, %40 : vector<256x128xf32>
      %42 = tpu.iota {dimensions = array<i32: 0>} : vector<256x128xi32>
      %c256_i32 = arith.constant 256 : i32
      %43 = arith.muli %arg0, %c256_i32 : i32
      %44 = vector.broadcast %43 : i32 to vector<256x128xi32>
      %45 = arith.addi %42, %44 : vector<256x128xi32>
      %c500_i32 = arith.constant 500 : i32
      %46 = vector.broadcast %c500_i32 : i32 to vector<256x128xi32>
      %47 = arith.cmpi slt, %45, %46 : vector<256x128xi32>
      %cst_26 = arith.constant 0.000000e+00 : f32
      %48 = vector.broadcast %cst_26 : f32 to vector<256x128xf32>
      %49 = arith.select %47, %41, %48 : vector<256x128xi1>, vector<256x128xf32>
      %c0_27 = arith.constant 0 : index
      %c0_28 = arith.constant 0 : index
      %50 = vector.load %arg8[%c0_27, %c0_28] : memref<256x128xf32, #tpu.memory_space<vmem>>, vector<256x128xf32>
      tpu.vector_store %arg8[%c0_27, %c0_28], %49 {strides = array<i32>} : memref<256x128xf32, #tpu.memory_space<vmem>>, vector<256x128xf32>,
      %cst_29 = arith.constant dense<0.000000e+00> : vector<128xf32>
      %51 = vector.multi_reduction <add>, %49, %cst_29 [0] : vector<256x128xf32> to vector<128xf32>
      %52 = vector.shape_cast %51 : vector<128xf32> to vector<1x128xf32>
      %c0_30 = arith.constant 0 : index
      %c0_31 = arith.constant 0 : index
      %c0_32 = arith.constant 0 : index
      %53 = vector.load %arg9[%c0_30, %c0_31, %c0_32] : memref<1x2x128xf32, #tpu.memory_space<vmem>>, vector<1x1x128xf32>
      %54 = vector.shape_cast %53 : vector<1x1x128xf32> to vector<1x128xf32>
      %55 = vector.shape_cast %52 : vector<1x128xf32> to vector<1x1x128xf32>
      tpu.vector_store %arg9[%c0_30, %c0_31, %c0_32], %55 {strides = array<i32>} : memref<1x2x128xf32, #tpu.memory_space<vmem>>, vector<1x1x128xf32>,
      %56 = arith.mulf %49, %49 : vector<256x128xf32>
      %cst_33 = arith.constant dense<0.000000e+00> : vector<128xf32>
      %57 = vector.multi_reduction <add>, %56, %cst_33 [0] : vector<256x128xf32> to vector<128xf32>
      %58 = vector.shape_cast %57 : vector<128xf32> to vector<1x128xf32>
      %c0_34 = arith.constant 0 : index
      %c1_35 = arith.constant 1 : index
      %c0_36 = arith.constant 0 : index
      %59 = vector.load %arg9[%c0_34, %c1_35, %c0_36] : memref<1x2x128xf32, #tpu.memory_space<vmem>>, vector<1x1x128xf32>
      %60 = vector.shape_cast %59 : vector<1x1x128xf32> to vector<1x128xf32>
      %61 = vector.shape_cast %58 : vector<1x128xf32> to vector<1x1x128xf32>
      tpu.vector_store %arg9[%c0_34, %c1_35, %c0_36], %61 {strides = array<i32>} : memref<1x2x128xf32, #tpu.memory_space<vmem>>, vector<1x1x128xf32>,
      %c0_37 = arith.constant 0 : index
      %c0_38 = arith.constant 0 : index
      %62 = vector.load %arg7[%c0_37, %c0_38] : memref<8x256xf32, #tpu.memory_space<vmem>>, vector<8x256xf32>
      %cst_39 = arith.constant dense<0.000000e+00> : vector<8x128xf32>
      %63 = tpu.matmul %62, %49, %cst_39 {dimension_numbers = #tpu.dot_dimension_numbers<[1], [0], [0], [1], [0, 0, 1, 1], [], []>} : vector<8x256xf32>, vector<256x128xf32>, vector<8x128xf32> -> vector<8x128xf32>
      %c0_40 = arith.constant 0 : index
      %c0_41 = arith.constant 0 : index
      %c0_42 = arith.constant 0 : index
      %64 = vector.load %arg10[%c0_40, %c0_41, %c0_42] : memref<1x8x128xf32, #tpu.memory_space<vmem>>, vector<1x8x128xf32>
      %65 = vector.shape_cast %64 : vector<1x8x128xf32> to vector<8x128xf32>
      %66 = vector.shape_cast %63 : vector<8x128xf32> to vector<1x8x128xf32>
      tpu.vector_store %arg10[%c0_40, %c0_41, %c0_42], %66 {strides = array<i32>} : memref<1x8x128xf32, #tpu.memory_space<vmem>>, vector<1x8x128xf32>,
    } else {
    }
    return
  }
  func.func @transform_0(%arg0: i32, %arg1: i32) -> (i32, i32, i32) {
    %c0_i32 = arith.constant 0 : i32
    %c0_i32_0 = arith.constant 0 : i32
    %c0_i32_1 = arith.constant 0 : i32
    %c0_i32_2 = arith.constant 0 : i32
    return %c0_i32, %c0_i32_0, %c0_i32_1 : i32, i32, i32
  }
  func.func @transform_1(%arg0: i32, %arg1: i32) -> (i32, i32) {
    %c0_i32 = arith.constant 0 : i32
    %c0_i32_0 = arith.constant 0 : i32
    return %arg1, %c0_i32 : i32, i32
  }
  func.func @transform_2(%arg0: i32, %arg1: i32) -> (i32, i32) {
    %c0_i32 = arith.constant 0 : i32
    return %arg0, %arg1 : i32, i32
  }
  func.func @transform_3(%arg0: i32, %arg1: i32) -> (i32, i32) {
    %c0_i32 = arith.constant 0 : i32
    %c0_i32_0 = arith.constant 0 : i32
    %c0_i32_1 = arith.constant 0 : i32
    return %c0_i32, %c0_i32_0 : i32, i32
  }
  func.func @transform_4(%arg0: i32, %arg1: i32) -> (i32, i32) {
    %c0_i32 = arith.constant 0 : i32
    %c0_i32_0 = arith.constant 0 : i32
    %c0_i32_1 = arith.constant 0 : i32
    return %c0_i32, %c0_i32_0 : i32, i32
  }
  func.func @transform_5(%arg0: i32, %arg1: i32) -> (i32, i32) {
    %c0_i32 = arith.constant 0 : i32
    %c0_i32_0 = arith.constant 0 : i32
    return %c0_i32, %arg0 : i32, i32
  }
  func.func @transform_6(%arg0: i32, %arg1: i32) -> (i32, i32) {
    %c0_i32 = arith.constant 0 : i32
    %c0_i32_0 = arith.constant 0 : i32
    return %arg0, %c0_i32 : i32, i32
  }
  func.func @transform_7(%arg0: i32, %arg1: i32) -> (i32, i32, i32) {
    %c0_i32 = arith.constant 0 : i32
    %c0_i32_0 = arith.constant 0 : i32
    %c0_i32_1 = arith.constant 0 : i32
    return %arg0, %c0_i32, %c0_i32_0 : i32, i32, i32
  }
  func.func @transform_8(%arg0: i32, %arg1: i32) -> (i32, i32, i32) {
    %c0_i32 = arith.constant 0 : i32
    %c0_i32_0 = arith.constant 0 : i32
    %c0_i32_1 = arith.constant 0 : i32
    return %arg0, %c0_i32, %c0_i32_0 : i32, i32, i32
  }
}

module attributes {stable_mosaic.version = 11 : i64} {
  func.func @layer_kernel(%arg0: i32, %arg1: i32, %arg2: memref<2x2x128xf32, #tpu.memory_space<vmem>>, %arg3: memref<256x128xf32, #tpu.memory_space<vmem>>, %arg4: memref<256x256xf32, #tpu.memory_space<vmem>>, %arg5: memref<8x128xf32, #tpu.memory_space<vmem>>, %arg6: memref<128x128xf32, #tpu.memory_space<vmem>>, %arg7: memref<8x256xf32, #tpu.memory_space<vmem>>, %arg8: memref<256x128xf32, #tpu.memory_space<vmem>>, %arg9: memref<1x2x128xf32, #tpu.memory_space<vmem>>, %arg10: memref<1x8x128xf32, #tpu.memory_space<vmem>>, %arg11: memref<256x128xf32, #tpu.memory_space<vmem>>) attributes {dimension_semantics = [#tpu.dimension_semantics<parallel>, #tpu.dimension_semantics<arbitrary>], iteration_bounds = array<i64: 2, 2>, scalar_prefetch = 0 : i64, scratch_operands = 1 : i64, tpu.core_type = #tpu.core_type<tc>, window_params = [{pipeline_mode = #tpu.pipeline_mode<synchronous>, transform_indices = @transform_0, window_bounds = array<i64: 2, 2, 128>}, {transform_indices = @transform_1, window_bounds = array<i64: 256, 128>}, {transform_indices = @transform_2, window_bounds = array<i64: 256, 256>}, {pipeline_mode = #tpu.pipeline_mode<synchronous>, transform_indices = @transform_3, window_bounds = array<i64: 8, 128>}, {pipeline_mode = #tpu.pipeline_mode<synchronous>, transform_indices = @transform_4, window_bounds = array<i64: 128, 128>}, {transform_indices = @transform_5, window_bounds = array<i64: 8, 256>}, {transform_indices = @transform_6, window_bounds = array<i64: 256, 128>}, {transform_indices = @transform_7, window_bounds = array<i64: 1, 2, 128>}, {transform_indices = @transform_8, window_bounds = array<i64: 1, 8, 128>}]} {
    %c0_i32 = arith.constant 0 : i32
    %0 = arith.cmpi eq, %arg1, %c0_i32 : i32
    %1 = arith.extui %0 : i1 to i32
    %c0_i32_0 = arith.constant 0 : i32
    %2 = arith.cmpi ne, %1, %c0_i32_0 : i32
    scf.if %2 {
      %cst_19 = arith.constant 0.000000e+00 : f32
      %34 = vector.broadcast %cst_19 : f32 to vector<256x128xf32>
      %c0_20 = arith.constant 0 : index
      %c0_21 = arith.constant 0 : index
      %35 = vector.load %arg11[%c0_20, %c0_21] : memref<256x128xf32, #tpu.memory_space<vmem>>, vector<256x128xf32>
      tpu.vector_store %arg11[%c0_20, %c0_21], %34 {strides = array<i32>} : memref<256x128xf32, #tpu.memory_space<vmem>>, vector<256x128xf32>,
    } else {
    }
    %c0 = arith.constant 0 : index
    %c0_1 = arith.constant 0 : index
    %c0_2 = arith.constant 0 : index
    %3 = vector.load %arg2[%c0, %c0_1, %c0_2] : memref<2x2x128xf32, #tpu.memory_space<vmem>>, vector<2x2x128xf32>
    %cst = arith.constant dense<0.000000e+00> : vector<2x128xf32>
    %4 = vector.multi_reduction <add>, %3, %cst [0] : vector<2x2x128xf32> to vector<2x128xf32>
    %5 = vector.extract_strided_slice %4 {offsets = [0, 0], sizes = [1, 128], strides = [1, 1]} : vector<2x128xf32> to vector<1x128xf32>
    %cst_3 = arith.constant 2.000000e-03 : f32
    %6 = vector.broadcast %cst_3 : f32 to vector<1x128xf32>
    %7 = arith.mulf %5, %6 : vector<1x128xf32>
    %8 = vector.extract_strided_slice %4 {offsets = [1, 0], sizes = [1, 128], strides = [1, 1]} : vector<2x128xf32> to vector<1x128xf32>
    %cst_4 = arith.constant 2.000000e-03 : f32
    %9 = vector.broadcast %cst_4 : f32 to vector<1x128xf32>
    %10 = arith.mulf %8, %9 : vector<1x128xf32>
    %11 = arith.mulf %7, %7 : vector<1x128xf32>
    %12 = arith.subf %10, %11 : vector<1x128xf32>
    %cst_5 = arith.constant 9.99999974E-6 : f32
    %13 = vector.broadcast %cst_5 : f32 to vector<1x128xf32>
    %14 = arith.addf %12, %13 : vector<1x128xf32>
    %15 = math.rsqrt %14 : vector<1x128xf32>
    %c0_6 = arith.constant 0 : index
    %c0_7 = arith.constant 0 : index
    %16 = vector.load %arg5[%c0_6, %c0_7] : memref<8x128xf32, #tpu.memory_space<vmem>>, vector<1x128xf32>
    %17 = arith.mulf %15, %16 : vector<1x128xf32>
    %c1 = arith.constant 1 : index
    %c0_8 = arith.constant 0 : index
    %18 = vector.load %arg5[%c1, %c0_8] : memref<8x128xf32, #tpu.memory_space<vmem>>, vector<1x128xf32>
    %19 = arith.mulf %7, %17 : vector<1x128xf32>
    %20 = arith.subf %18, %19 : vector<1x128xf32>
    %c0_9 = arith.constant 0 : index
    %c0_10 = arith.constant 0 : index
    %21 = vector.load %arg3[%c0_9, %c0_10] : memref<256x128xf32, #tpu.memory_space<vmem>>, vector<256x128xf32>
    %22 = vector.broadcast %17 : vector<1x128xf32> to vector<256x128xf32>
    %23 = arith.mulf %21, %22 : vector<256x128xf32>
    %24 = vector.broadcast %20 : vector<1x128xf32> to vector<256x128xf32>
    %25 = arith.addf %23, %24 : vector<256x128xf32>
    %c0_11 = arith.constant 0 : index
    %c0_12 = arith.constant 0 : index
    %26 = vector.load %arg11[%c0_11, %c0_12] : memref<256x128xf32, #tpu.memory_space<vmem>>, vector<256x128xf32>
    %c0_13 = arith.constant 0 : index
    %c0_14 = arith.constant 0 : index
    %27 = vector.load %arg4[%c0_13, %c0_14] : memref<256x256xf32, #tpu.memory_space<vmem>>, vector<256x256xf32>
    %cst_15 = arith.constant dense<0.000000e+00> : vector<256x128xf32>
    %28 = tpu.matmul %27, %25, %cst_15 {dimension_numbers = #tpu.dot_dimension_numbers<[1], [0], [0], [1], [0, 0, 1, 1], [], []>} : vector<256x256xf32>, vector<256x128xf32>, vector<256x128xf32> -> vector<256x128xf32>
    %29 = arith.addf %26, %28 : vector<256x128xf32>
    %c0_16 = arith.constant 0 : index
    %c0_17 = arith.constant 0 : index
    %30 = vector.load %arg11[%c0_16, %c0_17] : memref<256x128xf32, #tpu.memory_space<vmem>>, vector<256x128xf32>
    tpu.vector_store %arg11[%c0_16, %c0_17], %29 {strides = array<i32>} : memref<256x128xf32, #tpu.memory_space<vmem>>, vector<256x128xf32>,
    %c1_i32 = arith.constant 1 : i32
    %31 = arith.cmpi eq, %arg1, %c1_i32 : i32
    %32 = arith.extui %31 : i1 to i32
    %c0_i32_18 = arith.constant 0 : i32
    %33 = arith.cmpi ne, %32, %c0_i32_18 : i32
    scf.if %33 {
      %c0_19 = arith.constant 0 : index
      %c0_20 = arith.constant 0 : index
      %34 = vector.load %arg11[%c0_19, %c0_20] : memref<256x128xf32, #tpu.memory_space<vmem>>, vector<256x128xf32>
      %c0_21 = arith.constant 0 : index
      %c0_22 = arith.constant 0 : index
      %35 = vector.load %arg6[%c0_21, %c0_22] : memref<128x128xf32, #tpu.memory_space<vmem>>, vector<128x128xf32>
      %cst_23 = arith.constant dense<0.000000e+00> : vector<256x128xf32>
      %36 = tpu.matmul %34, %35, %cst_23 {dimension_numbers = #tpu.dot_dimension_numbers<[1], [0], [0], [1], [0, 0, 1, 1], [], []>} : vector<256x128xf32>, vector<128x128xf32>, vector<256x128xf32> -> vector<256x128xf32>
      %c2 = arith.constant 2 : index
      %c0_24 = arith.constant 0 : index
      %37 = vector.load %arg5[%c2, %c0_24] : memref<8x128xf32, #tpu.memory_space<vmem>>, vector<1x128xf32>
      %38 = vector.broadcast %37 : vector<1x128xf32> to vector<256x128xf32>
      %39 = arith.addf %36, %38 : vector<256x128xf32>
      %cst_25 = arith.constant 0.000000e+00 : f32
      %40 = vector.broadcast %cst_25 : f32 to vector<256x128xf32>
      %41 = arith.maximumf %39, %40 : vector<256x128xf32>
      %42 = tpu.iota {dimensions = array<i32: 0>} : vector<256x128xi32>
      %c256_i32 = arith.constant 256 : i32
      %43 = arith.muli %arg0, %c256_i32 : i32
      %44 = vector.broadcast %43 : i32 to vector<256x128xi32>
      %45 = arith.addi %42, %44 : vector<256x128xi32>
      %c500_i32 = arith.constant 500 : i32
      %46 = vector.broadcast %c500_i32 : i32 to vector<256x128xi32>
      %47 = arith.cmpi slt, %45, %46 : vector<256x128xi32>
      %cst_26 = arith.constant 0.000000e+00 : f32
      %48 = vector.broadcast %cst_26 : f32 to vector<256x128xf32>
      %49 = arith.select %47, %41, %48 : vector<256x128xi1>, vector<256x128xf32>
      %c0_27 = arith.constant 0 : index
      %c0_28 = arith.constant 0 : index
      %50 = vector.load %arg8[%c0_27, %c0_28] : memref<256x128xf32, #tpu.memory_space<vmem>>, vector<256x128xf32>
      tpu.vector_store %arg8[%c0_27, %c0_28], %49 {strides = array<i32>} : memref<256x128xf32, #tpu.memory_space<vmem>>, vector<256x128xf32>,
      %cst_29 = arith.constant dense<0.000000e+00> : vector<128xf32>
      %51 = vector.multi_reduction <add>, %49, %cst_29 [0] : vector<256x128xf32> to vector<128xf32>
      %52 = vector.shape_cast %51 : vector<128xf32> to vector<1x128xf32>
      %c0_30 = arith.constant 0 : index
      %c0_31 = arith.constant 0 : index
      %c0_32 = arith.constant 0 : index
      %53 = vector.load %arg9[%c0_30, %c0_31, %c0_32] : memref<1x2x128xf32, #tpu.memory_space<vmem>>, vector<1x1x128xf32>
      %54 = vector.shape_cast %53 : vector<1x1x128xf32> to vector<1x128xf32>
      %55 = vector.shape_cast %52 : vector<1x128xf32> to vector<1x1x128xf32>
      tpu.vector_store %arg9[%c0_30, %c0_31, %c0_32], %55 {strides = array<i32>} : memref<1x2x128xf32, #tpu.memory_space<vmem>>, vector<1x1x128xf32>,
      %56 = arith.mulf %49, %49 : vector<256x128xf32>
      %cst_33 = arith.constant dense<0.000000e+00> : vector<128xf32>
      %57 = vector.multi_reduction <add>, %56, %cst_33 [0] : vector<256x128xf32> to vector<128xf32>
      %58 = vector.shape_cast %57 : vector<128xf32> to vector<1x128xf32>
      %c0_34 = arith.constant 0 : index
      %c1_35 = arith.constant 1 : index
      %c0_36 = arith.constant 0 : index
      %59 = vector.load %arg9[%c0_34, %c1_35, %c0_36] : memref<1x2x128xf32, #tpu.memory_space<vmem>>, vector<1x1x128xf32>
      %60 = vector.shape_cast %59 : vector<1x1x128xf32> to vector<1x128xf32>
      %61 = vector.shape_cast %58 : vector<1x128xf32> to vector<1x1x128xf32>
      tpu.vector_store %arg9[%c0_34, %c1_35, %c0_36], %61 {strides = array<i32>} : memref<1x2x128xf32, #tpu.memory_space<vmem>>, vector<1x1x128xf32>,
      %c0_37 = arith.constant 0 : index
      %c0_38 = arith.constant 0 : index
      %62 = vector.load %arg7[%c0_37, %c0_38] : memref<8x256xf32, #tpu.memory_space<vmem>>, vector<8x256xf32>
      %cst_39 = arith.constant dense<0.000000e+00> : vector<8x128xf32>
      %63 = tpu.matmul %62, %49, %cst_39 {dimension_numbers = #tpu.dot_dimension_numbers<[1], [0], [0], [1], [0, 0, 1, 1], [], []>} : vector<8x256xf32>, vector<256x128xf32>, vector<8x128xf32> -> vector<8x128xf32>
      %c0_40 = arith.constant 0 : index
      %c0_41 = arith.constant 0 : index
      %c0_42 = arith.constant 0 : index
      %64 = vector.load %arg10[%c0_40, %c0_41, %c0_42] : memref<1x8x128xf32, #tpu.memory_space<vmem>>, vector<1x8x128xf32>
      %65 = vector.shape_cast %64 : vector<1x8x128xf32> to vector<8x128xf32>
      %66 = vector.shape_cast %63 : vector<8x128xf32> to vector<1x8x128xf32>
      tpu.vector_store %arg10[%c0_40, %c0_41, %c0_42], %66 {strides = array<i32>} : memref<1x8x128xf32, #tpu.memory_space<vmem>>, vector<1x8x128xf32>,
    } else {
    }
    return
  }
  func.func @transform_0(%arg0: i32, %arg1: i32) -> (i32, i32, i32) {
    %c0_i32 = arith.constant 0 : i32
    %c0_i32_0 = arith.constant 0 : i32
    %c0_i32_1 = arith.constant 0 : i32
    %c0_i32_2 = arith.constant 0 : i32
    return %c0_i32, %c0_i32_0, %c0_i32_1 : i32, i32, i32
  }
  func.func @transform_1(%arg0: i32, %arg1: i32) -> (i32, i32) {
    %c0_i32 = arith.constant 0 : i32
    %c0_i32_0 = arith.constant 0 : i32
    return %arg1, %c0_i32 : i32, i32
  }
  func.func @transform_2(%arg0: i32, %arg1: i32) -> (i32, i32) {
    %c0_i32 = arith.constant 0 : i32
    return %arg0, %arg1 : i32, i32
  }
  func.func @transform_3(%arg0: i32, %arg1: i32) -> (i32, i32) {
    %c0_i32 = arith.constant 0 : i32
    %c0_i32_0 = arith.constant 0 : i32
    %c0_i32_1 = arith.constant 0 : i32
    return %c0_i32, %c0_i32_0 : i32, i32
  }
  func.func @transform_4(%arg0: i32, %arg1: i32) -> (i32, i32) {
    %c0_i32 = arith.constant 0 : i32
    %c0_i32_0 = arith.constant 0 : i32
    %c0_i32_1 = arith.constant 0 : i32
    return %c0_i32, %c0_i32_0 : i32, i32
  }
  func.func @transform_5(%arg0: i32, %arg1: i32) -> (i32, i32) {
    %c0_i32 = arith.constant 0 : i32
    %c0_i32_0 = arith.constant 0 : i32
    return %c0_i32, %arg0 : i32, i32
  }
  func.func @transform_6(%arg0: i32, %arg1: i32) -> (i32, i32) {
    %c0_i32 = arith.constant 0 : i32
    %c0_i32_0 = arith.constant 0 : i32
    return %arg0, %c0_i32 : i32, i32
  }
  func.func @transform_7(%arg0: i32, %arg1: i32) -> (i32, i32, i32) {
    %c0_i32 = arith.constant 0 : i32
    %c0_i32_0 = arith.constant 0 : i32
    %c0_i32_1 = arith.constant 0 : i32
    return %arg0, %c0_i32, %c0_i32_0 : i32, i32, i32
  }
  func.func @transform_8(%arg0: i32, %arg1: i32) -> (i32, i32, i32) {
    %c0_i32 = arith.constant 0 : i32
    %c0_i32_0 = arith.constant 0 : i32
    %c0_i32_1 = arith.constant 0 : i32
    return %arg0, %c0_i32, %c0_i32_0 : i32, i32, i32
  }
}

module attributes {stable_mosaic.version = 11 : i64} {
  func.func @head_kernel(%arg0: memref<2x8x128xf32, #tpu.memory_space<vmem>>, %arg1: memref<8x128xf32, #tpu.memory_space<vmem>>, %arg2: memref<128x128xf32, #tpu.memory_space<vmem>>, %arg3: memref<128x128xf32, #tpu.memory_space<vmem>>, %arg4: memref<8x128xf32, #tpu.memory_space<vmem>>) attributes {dimension_semantics = [], scalar_prefetch = 0 : i64, scratch_operands = 0 : i64, tpu.core_type = #tpu.core_type<tc>} {
    %c0 = arith.constant 0 : index
    %c0_0 = arith.constant 0 : index
    %c0_1 = arith.constant 0 : index
    %0 = vector.load %arg0[%c0, %c0_0, %c0_1] : memref<2x8x128xf32, #tpu.memory_space<vmem>>, vector<2x8x128xf32>
    %cst = arith.constant dense<0.000000e+00> : vector<8x128xf32>
    %1 = vector.multi_reduction <add>, %0, %cst [0] : vector<2x8x128xf32> to vector<8x128xf32>
    %2 = tpu.iota {dimensions = array<i32: 0>} : vector<8x128xi32>
    %c2_i32 = arith.constant 2 : i32
    %3 = vector.broadcast %c2_i32 : i32 to vector<8x128xi32>
    %4 = arith.cmpi slt, %2, %3 : vector<8x128xi32>
    %c0_2 = arith.constant 0 : index
    %c0_3 = arith.constant 0 : index
    %5 = vector.load %arg1[%c0_2, %c0_3] : memref<8x128xf32, #tpu.memory_space<vmem>>, vector<1x128xf32>
    %c1 = arith.constant 1 : index
    %c0_4 = arith.constant 0 : index
    %6 = vector.load %arg1[%c1, %c0_4] : memref<8x128xf32, #tpu.memory_space<vmem>>, vector<1x128xf32>
    %cst_5 = arith.constant 0.000000e+00 : f32
    %7 = vector.broadcast %cst_5 : f32 to vector<8x128xf32>
    %8 = arith.select %4, %1, %7 : vector<8x128xi1>, vector<8x128xf32>
    %cst_6 = arith.constant dense<0.000000e+00> : vector<128xf32>
    %9 = vector.multi_reduction <add>, %8, %cst_6 [0] : vector<8x128xf32> to vector<128xf32>
    %10 = vector.shape_cast %9 : vector<128xf32> to vector<1x128xf32>
    %cst_7 = arith.constant 5.000000e-01 : f32
    %11 = vector.broadcast %cst_7 : f32 to vector<1x128xf32>
    %12 = arith.mulf %10, %11 : vector<1x128xf32>
    %13 = arith.mulf %8, %8 : vector<8x128xf32>
    %cst_8 = arith.constant dense<0.000000e+00> : vector<128xf32>
    %14 = vector.multi_reduction <add>, %13, %cst_8 [0] : vector<8x128xf32> to vector<128xf32>
    %15 = vector.shape_cast %14 : vector<128xf32> to vector<1x128xf32>
    %cst_9 = arith.constant 5.000000e-01 : f32
    %16 = vector.broadcast %cst_9 : f32 to vector<1x128xf32>
    %17 = arith.mulf %15, %16 : vector<1x128xf32>
    %18 = arith.mulf %12, %12 : vector<1x128xf32>
    %19 = arith.subf %17, %18 : vector<1x128xf32>
    %cst_10 = arith.constant 9.99999974E-6 : f32
    %20 = vector.broadcast %cst_10 : f32 to vector<1x128xf32>
    %21 = arith.addf %19, %20 : vector<1x128xf32>
    %22 = math.rsqrt %21 : vector<1x128xf32>
    %23 = arith.mulf %22, %5 : vector<1x128xf32>
    %24 = vector.broadcast %23 : vector<1x128xf32> to vector<8x128xf32>
    %25 = arith.mulf %1, %24 : vector<8x128xf32>
    %26 = arith.mulf %12, %23 : vector<1x128xf32>
    %27 = arith.subf %6, %26 : vector<1x128xf32>
    %28 = vector.broadcast %27 : vector<1x128xf32> to vector<8x128xf32>
    %29 = arith.addf %25, %28 : vector<8x128xf32>
    %c0_11 = arith.constant 0 : index
    %c0_12 = arith.constant 0 : index
    %30 = vector.load %arg2[%c0_11, %c0_12] : memref<128x128xf32, #tpu.memory_space<vmem>>, vector<128x128xf32>
    %cst_13 = arith.constant dense<0.000000e+00> : vector<8x128xf32>
    %31 = tpu.matmul %29, %30, %cst_13 {dimension_numbers = #tpu.dot_dimension_numbers<[1], [0], [0], [1], [0, 0, 1, 1], [], []>} : vector<8x128xf32>, vector<128x128xf32>, vector<8x128xf32> -> vector<8x128xf32>
    %c2 = arith.constant 2 : index
    %c0_14 = arith.constant 0 : index
    %32 = vector.load %arg1[%c2, %c0_14] : memref<8x128xf32, #tpu.memory_space<vmem>>, vector<1x128xf32>
    %33 = vector.broadcast %32 : vector<1x128xf32> to vector<8x128xf32>
    %34 = arith.addf %31, %33 : vector<8x128xf32>
    %cst_15 = arith.constant 0.000000e+00 : f32
    %35 = vector.broadcast %cst_15 : f32 to vector<8x128xf32>
    %36 = arith.maximumf %34, %35 : vector<8x128xf32>
    %c3 = arith.constant 3 : index
    %c0_16 = arith.constant 0 : index
    %37 = vector.load %arg1[%c3, %c0_16] : memref<8x128xf32, #tpu.memory_space<vmem>>, vector<1x128xf32>
    %c4 = arith.constant 4 : index
    %c0_17 = arith.constant 0 : index
    %38 = vector.load %arg1[%c4, %c0_17] : memref<8x128xf32, #tpu.memory_space<vmem>>, vector<1x128xf32>
    %cst_18 = arith.constant 0.000000e+00 : f32
    %39 = vector.broadcast %cst_18 : f32 to vector<8x128xf32>
    %40 = arith.select %4, %36, %39 : vector<8x128xi1>, vector<8x128xf32>
    %cst_19 = arith.constant dense<0.000000e+00> : vector<128xf32>
    %41 = vector.multi_reduction <add>, %40, %cst_19 [0] : vector<8x128xf32> to vector<128xf32>
    %42 = vector.shape_cast %41 : vector<128xf32> to vector<1x128xf32>
    %cst_20 = arith.constant 5.000000e-01 : f32
    %43 = vector.broadcast %cst_20 : f32 to vector<1x128xf32>
    %44 = arith.mulf %42, %43 : vector<1x128xf32>
    %45 = arith.mulf %40, %40 : vector<8x128xf32>
    %cst_21 = arith.constant dense<0.000000e+00> : vector<128xf32>
    %46 = vector.multi_reduction <add>, %45, %cst_21 [0] : vector<8x128xf32> to vector<128xf32>
    %47 = vector.shape_cast %46 : vector<128xf32> to vector<1x128xf32>
    %cst_22 = arith.constant 5.000000e-01 : f32
    %48 = vector.broadcast %cst_22 : f32 to vector<1x128xf32>
    %49 = arith.mulf %47, %48 : vector<1x128xf32>
    %50 = arith.mulf %44, %44 : vector<1x128xf32>
    %51 = arith.subf %49, %50 : vector<1x128xf32>
    %cst_23 = arith.constant 9.99999974E-6 : f32
    %52 = vector.broadcast %cst_23 : f32 to vector<1x128xf32>
    %53 = arith.addf %51, %52 : vector<1x128xf32>
    %54 = math.rsqrt %53 : vector<1x128xf32>
    %55 = arith.mulf %54, %37 : vector<1x128xf32>
    %56 = vector.broadcast %55 : vector<1x128xf32> to vector<8x128xf32>
    %57 = arith.mulf %36, %56 : vector<8x128xf32>
    %58 = arith.mulf %44, %55 : vector<1x128xf32>
    %59 = arith.subf %38, %58 : vector<1x128xf32>
    %60 = vector.broadcast %59 : vector<1x128xf32> to vector<8x128xf32>
    %61 = arith.addf %57, %60 : vector<8x128xf32>
    %c0_24 = arith.constant 0 : index
    %c0_25 = arith.constant 0 : index
    %62 = vector.load %arg3[%c0_24, %c0_25] : memref<128x128xf32, #tpu.memory_space<vmem>>, vector<128x128xf32>
    %cst_26 = arith.constant dense<0.000000e+00> : vector<8x128xf32>
    %63 = tpu.matmul %61, %62, %cst_26 {dimension_numbers = #tpu.dot_dimension_numbers<[1], [0], [0], [1], [0, 0, 1, 1], [], []>} : vector<8x128xf32>, vector<128x128xf32>, vector<8x128xf32> -> vector<8x128xf32>
    %c5 = arith.constant 5 : index
    %c0_27 = arith.constant 0 : index
    %64 = vector.load %arg1[%c5, %c0_27] : memref<8x128xf32, #tpu.memory_space<vmem>>, vector<1x128xf32>
    %65 = vector.broadcast %64 : vector<1x128xf32> to vector<8x128xf32>
    %66 = arith.addf %63, %65 : vector<8x128xf32>
    %67 = tpu.iota {dimensions = array<i32: 1>} : vector<8x128xi32>
    %c4_i32 = arith.constant 4 : i32
    %68 = vector.broadcast %c4_i32 : i32 to vector<8x128xi32>
    %69 = arith.cmpi slt, %67, %68 : vector<8x128xi32>
    %cst_28 = arith.constant -1.000000e+30 : f32
    %70 = vector.broadcast %cst_28 : f32 to vector<8x128xf32>
    %71 = arith.select %69, %66, %70 : vector<8x128xi1>, vector<8x128xf32>
    %cst_29 = arith.constant dense<0xFF800000> : vector<8xf32>
    %72 = vector.multi_reduction <maximumf>, %71, %cst_29 [1] : vector<8x128xf32> to vector<8xf32>
    %73 = vector.shape_cast %72 : vector<8xf32> to vector<8x1xf32>
    %74 = vector.broadcast %73 : vector<8x1xf32> to vector<8x128xf32>
    %75 = arith.subf %71, %74 : vector<8x128xf32>
    %76 = math.exp %75 : vector<8x128xf32>
    %cst_30 = arith.constant dense<0.000000e+00> : vector<8xf32>
    %77 = vector.multi_reduction <add>, %76, %cst_30 [1] : vector<8x128xf32> to vector<8xf32>
    %78 = vector.shape_cast %77 : vector<8xf32> to vector<8x1xf32>
    %79 = math.log %78 : vector<8x1xf32>
    %80 = arith.addf %73, %79 : vector<8x1xf32>
    %81 = vector.broadcast %80 : vector<8x1xf32> to vector<8x128xf32>
    %82 = arith.subf %71, %81 : vector<8x128xf32>
    %c0_31 = arith.constant 0 : index
    %c0_32 = arith.constant 0 : index
    %83 = vector.load %arg4[%c0_31, %c0_32] : memref<8x128xf32, #tpu.memory_space<vmem>>, vector<8x128xf32>
    tpu.vector_store %arg4[%c0_31, %c0_32], %82 {strides = array<i32>} : memref<8x128xf32, #tpu.memory_space<vmem>>, vector<8x128xf32>,
    return
  }
}

</mosaic_0001>

<llo_original>
// kernel: fwd.6
$region0: #{fwd.6}
  #allocation0 [shape = 'u32[]', space=smem, size = 0x4, offset = 0x4, fixed_abs, tag = 'smem constant byte address 0x4 - core index']
  #allocation1 [shape = 'u32[72,128]{1,0:T(1,128)}', space=vmem, size = 0x9000, scoped, tag = 'internal scratch']
  %s0 = inlined_call_operand.hbm [shape: f32[512,128], index: 0, kind: input, shape index: {}]
  %s1 = inlined_call_operand.vmem [shape: f32[2,2,128], index: 1, kind: output, shape index: {}]
  %s2 = sld [smem:[#allocation0]]
  $region41: #{fwd.6} parent=0
    _
  %s4 = ssub.s32 1, %s2
  %s5 = scalar_select 0, %s4, %s2
  $region1: #{fwd.6} parent=0
    #allocation2 [shape = 'u8[262144]{0}', space=vmem, size = 0x40000, scoped, tag = 'input window, operand 0']
    #allocation3 [shape = 's32[2]{0}', space=sflag, size = 0x8, scoped, tag = 'scoped memory for fwd.6']
    %6 = vsyncpa [#allocation3], 0
    %s7 = scalar_lea.sflag [#allocation3], 1
    %8 = vsyncpa %s7, 0
    loop: start=0, step=1, limit=4
    $region2: #{fwd.6} parent=1 // loop_pre_header
      _
    $region3: #{fwd.6} parent=1 // loop_header
      %s10 = sphi 0, %s14
      %p11 = scmp.ge.s32.totalorder %s10, 4
      %s20 = sphi 0, %s22
      %s23 = sphi 0, %s20
      %s24 = sphi 0, %s23
      %s40 = sphi 0, %s24
      %s46 = sphi 0, %s48
      %s49 = sphi 0, %s46
      %s50 = sphi 0, %s49
      %s66 = sphi 0, %s50
    $region4: #{fwd.6} parent=1 // loop_header_branch
      %13 = sbr.rel (%p11) target = $region8
    $region5: #{fwd.6} parent=1 // loop_body
      %s15 = ssub.s32 %s10, 1
      %s16 = ssub.s32 %s10, 2
      %s17 = sadd.s32 %s10, 1
      %s18 = ssub.s32 %s10, %s17
      %p19 = scmp.eq.s32.totalorder %s18, 0
      %s21 = sadd.s32 %s20, 1
      %s22 = scalar_select %p19, %s20, %s21
      %p25 = pneg %p19
      %p26 = scmp.eq.s32.totalorder %s10, 1
      %p27 = por %p25, %p26
      %p28 = scmp.ne.s32.totalorder %s20, %s23
      %p29 = scmp.eq.s32.totalorder %s10, 0
      %p30 = por %p28, %p29
      %p31 = scmp.ne.s32.totalorder %s20, %s23
      %p32 = scmp.eq.s32.totalorder %s15, 1
      %p33 = por %p31, %p32
      %p34 = scmp.ne.s32.totalorder %s23, %s24
      %p35 = scmp.eq.s32.totalorder %s15, 0
      %p36 = por %p34, %p35
      %p37 = scmp.ne.s32.totalorder %s23, %s24
      %p38 = scmp.eq.s32.totalorder %s16, 1
      %p39 = por %p37, %p38
      %p41 = scmp.ne.s32.totalorder %s24, %s40
      %p42 = scmp.eq.s32.totalorder %s16, 0
      %p43 = por %p41, %p42
      %s44 = ssub.s32 %s10, %s17
      %p45 = scmp.eq.s32.totalorder %s44, 0
      %s47 = sadd.s32 %s46, 1
      %s48 = scalar_select %p45, %s46, %s47
      %p51 = pneg %p45
      %p52 = scmp.eq.s32.totalorder %s10, 1
      %p53 = por %p51, %p52
      %p54 = scmp.ne.s32.totalorder %s46, %s49
      %p55 = scmp.eq.s32.totalorder %s10, 0
      %p56 = por %p54, %p55
      %p57 = scmp.ne.s32.totalorder %s46, %s49
      %p58 = scmp.eq.s32.totalorder %s15, 1
      %p59 = por %p57, %p58
      %p60 = scmp.ne.s32.totalorder %s49, %s50
      %p61 = scmp.eq.s32.totalorder %s15, 0
      %p62 = por %p60, %p61
      %p63 = scmp.ne.s32.totalorder %s49, %s50
      %p64 = scmp.eq.s32.totalorder %s16, 1
      %p65 = por %p63, %p64
      %p67 = scmp.ne.s32.totalorder %s50, %s66
      %p68 = scmp.eq.s32.totalorder %s16, 0
      %p69 = por %p67, %p68
      %p70 = scmp.le.s32.totalorder 1, %s10
      %p71 = scmp.lt.s32.totalorder %s10, 3
      %p72 = pnand %p70, %p71
      %p73 = pneg %p72
      // Predicated region
      $region9: #{fwd.6} parent=5 // pred_check
        _
      $region10: #{fwd.6} parent=5 // pred_check_branch
        %75 = sbr.rel (%p72) target = $region12
      $region11: #{fwd.6} parent=5 // pred_region
        %s76 = ssub.s32 %s10, 1
      $region12: #{fwd.6} parent=5 // pred_fallthru
        _
      %p77 = scmp.lt.s32.totalorder %s10, 2
      // Predicated region
      $region13: #{fwd.6} parent=5 // pred_check
        %p78 = pneg %p77
      $region14: #{fwd.6} parent=5 // pred_check_branch
        %80 = sbr.rel (%p78) target = $region16
      $region15: #{fwd.6} parent=5 // pred_region
        // Predicated region
        $region17: #{fwd.6} parent=15 // pred_check
          %p81 = pneg %p30
        $region18: #{fwd.6} parent=15 // pred_check_branch
          %83 = sbr.rel (%p81) target = $region20
        $region19: #{fwd.6} parent=15 // pred_region
          %s84 = sand.u32 %s20, 1
          %s85 = scalar_lea.sflag [#allocation3], %s84
          %s86 = sand.u32 %s20, 1
          %s87 = smul.addr %s86, 256
          %s88 = scalar_lea.vmem [#allocation2], %s87
          %s89 = smul.u32 32, %s10
          %91 = vsyncadd %s85, 0
          %s92 = smul.addr %s89, 8
          %s93 = scalar_lea.hbm %s0, %s92
          %s94 = sshll.u32 %s93, 4
          %s95 = int_to_ptr.hbm [resolvable:$true] %s94
          %s96 = sshll.u32 %s88, 4
          %s97 = int_to_ptr.vmem [resolvable:$true] %s96
          %102 = dma.hbm_to_vmem [thread:$0]  %s95, 4096, %s97, %s85, 128, 128, 8
        $region20: #{fwd.6} parent=15 // pred_fallthru
          _
      $region16: #{fwd.6} parent=5 // pred_fallthru
        _
      %p103 = scmp.le.s32.totalorder 1, %s10
      %p104 = scmp.lt.s32.totalorder %s10, 3
      %p105 = pnand %p103, %p104
      %p106 = pneg %p105
      // Predicated region
      $region21: #{fwd.6} parent=5 // pred_check
        _
      $region22: #{fwd.6} parent=5 // pred_check_branch
        %108 = sbr.rel (%p105) target = $region24
      $region23: #{fwd.6} parent=5 // pred_region
        %s109 = ssub.s32 %s10, 1
        %s110 = sand.u32 %s23, 1
        %s111 = scalar_lea.sflag [#allocation3], %s110
        %s112 = sand.u32 %s23, 1
        %s113 = smul.addr %s112, 256
        %s114 = scalar_lea.vmem [#allocation2], %s113
        // Predicated region
        $region25: #{fwd.6} parent=23 // pred_check
          %p115 = pneg %p36
        $region26: #{fwd.6} parent=23 // pred_check_branch
          %117 = sbr.rel (%p115) target = $region28
        $region27: #{fwd.6} parent=23 // pred_region
          %119 = dma.done %s111, 4096
        $region28: #{fwd.6} parent=23 // pred_fallthru
          _
        %s120 = sand.u32 %s23, 1
        %s121 = scalar_lea.sflag [#allocation3], %s120
        %s122 = sand.u32 %s23, 1
        %s123 = smul.addr %s122, 256
        %s124 = scalar_lea.vmem [#allocation2], %s123
        %p125 = pneg %p36
        %p126 = pneg %p33
        %p127 = pneg %p62
        %p128 = pneg %p59
        %p129 = scmp.lt.s32.totalorder %s15, 1
        %s130 = scalar_select %p129, %s15, 1
        %s131 = smul.addr %s130, 2
        %s132 = scalar_lea.vmem %s1, %s131
        %s133 = smul.u32 32, %s15
        %p134 = scmp.lt.s32.totalorder %s15, 1
        %s135 = scalar_select %p134, %s15, 1
        %s136 = smul.addr %s135, 2
        %s137 = scalar_lea.vmem %s1, %s136
        %v138 = vld [vmem:[%s114] sm:$0xff]
        %v139 = vld [vmem:[%s114 + $0x8] sm:$0xff]
        %v140 = vld [vmem:[%s114 + $0x10] sm:$0xff]
        %v141 = vld [vmem:[%s114 + $0x18] sm:$0xff]
        %v142 = vld [vmem:[%s114 + $0x20] sm:$0xff]
        %v143 = vld [vmem:[%s114 + $0x28] sm:$0xff]
        %v144 = vld [vmem:[%s114 + $0x30] sm:$0xff]
        %v145 = vld [vmem:[%s114 + $0x38] sm:$0xff]
        %v146 = vld [vmem:[%s114 + $0x40] sm:$0xff]
        %v147 = vld [vmem:[%s114 + $0x48] sm:$0xff]
        %v148 = vld [vmem:[%s114 + $0x50] sm:$0xff]
        %v149 = vld [vmem:[%s114 + $0x58] sm:$0xff]
        %v150 = vld [vmem:[%s114 + $0x60] sm:$0xff]
        %v151 = vld [vmem:[%s114 + $0x68] sm:$0xff]
        %v152 = vld [vmem:[%s114 + $0x70] sm:$0xff]
        %v153 = vld [vmem:[%s114 + $0x78] sm:$0xff]
        %v154 = vld [vmem:[%s114 + $0x80] sm:$0xff]
        %v155 = vld [vmem:[%s114 + $0x88] sm:$0xff]
        %v156 = vld [vmem:[%s114 + $0x90] sm:$0xff]
        %v157 = vld [vmem:[%s114 + $0x98] sm:$0xff]
        %v158 = vld [vmem:[%s114 + $0xa0] sm:$0xff]
        %v159 = vld [vmem:[%s114 + $0xa8] sm:$0xff]
        %v160 = vld [vmem:[%s114 + $0xb0] sm:$0xff]
        %v161 = vld [vmem:[%s114 + $0xb8] sm:$0xff]
        %v162 = vld [vmem:[%s114 + $0xc0] sm:$0xff]
        %v163 = vld [vmem:[%s114 + $0xc8] sm:$0xff]
        %v164 = vld [vmem:[%s114 + $0xd0] sm:$0xff]
        %v165 = vld [vmem:[%s114 + $0xd8] sm:$0xff]
        %v166 = vld [vmem:[%s114 + $0xe0] sm:$0xff]
        %v167 = vld [vmem:[%s114 + $0xe8] sm:$0xff]
        %v168 = vld [vmem:[%s114 + $0xf0] sm:$0xff]
        %v169 = vld [vmem:[%s114 + $0xf8] sm:$0xff]
        %v170 = vadd.f32 %v138, %v139
        %v171 = vadd.f32 %v170, %v140
        %v172 = vadd.f32 %v171, %v141
        %v173 = vadd.f32 %v172, %v142
        %v174 = vadd.f32 %v173, %v143
        %v175 = vadd.f32 %v174, %v144
        %v176 = vadd.f32 %v175, %v145
        %v177 = vadd.f32 %v176, %v146
        %v178 = vadd.f32 %v177, %v147
        %v179 = vadd.f32 %v178, %v148
        %v180 = vadd.f32 %v179, %v149
        %v181 = vadd.f32 %v180, %v150
        %v182 = vadd.f32 %v181, %v151
        %v183 = vadd.f32 %v182, %v152
        %v184 = vadd.f32 %v183, %v153
        %v185 = vadd.f32 %v184, %v154
        %v186 = vadd.f32 %v185, %v155
        %v187 = vadd.f32 %v186, %v156
        %v188 = vadd.f32 %v187, %v157
        %v189 = vadd.f32 %v188, %v158
        %v190 = vadd.f32 %v189, %v159
        %v191 = vadd.f32 %v190, %v160
        %v192 = vadd.f32 %v191, %v161
        %v193 = vadd.f32 %v192, %v162
        %v194 = vadd.f32 %v193, %v163
        %v195 = vadd.f32 %v194, %v164
        %v196 = vadd.f32 %v195, %v165
        %v197 = vadd.f32 %v196, %v166
        %v198 = vadd.f32 %v197, %v167
        %v199 = vadd.f32 %v198, %v168
        %v200 = vadd.f32 %v199, %v169
        %v201 = vrot.slane %v200, 4
        %v202 = vadd.f32 %v200, %v201
        %v203 = vrot.slane %v202, 2
        %v204 = vadd.f32 %v202, %v203
        %v205 = vrot.slane %v204, 1
        %v206 = vadd.f32 %v204, %v205
        %207 = vst [vmem:[%s137] sm:$0x1] %v206
        %v208 = vmul.f32 %v138, %v138
        %v209 = vmul.f32 %v139, %v139
        %v210 = vmul.f32 %v140, %v140
        %v211 = vmul.f32 %v141, %v141
        %v212 = vmul.f32 %v142, %v142
        %v213 = vmul.f32 %v143, %v143
        %v214 = vmul.f32 %v144, %v144
        %v215 = vmul.f32 %v145, %v145
        %v216 = vmul.f32 %v146, %v146
        %v217 = vmul.f32 %v147, %v147
        %v218 = vmul.f32 %v148, %v148
        %v219 = vmul.f32 %v149, %v149
        %v220 = vmul.f32 %v150, %v150
        %v221 = vmul.f32 %v151, %v151
        %v222 = vmul.f32 %v152, %v152
        %v223 = vmul.f32 %v153, %v153
        %v224 = vmul.f32 %v154, %v154
        %v225 = vmul.f32 %v155, %v155
        %v226 = vmul.f32 %v156, %v156
        %v227 = vmul.f32 %v157, %v157
        %v228 = vmul.f32 %v158, %v158
        %v229 = vmul.f32 %v159, %v159
        %v230 = vmul.f32 %v160, %v160
        %v231 = vmul.f32 %v161, %v161
        %v232 = vmul.f32 %v162, %v162
        %v233 = vmul.f32 %v163, %v163
        %v234 = vmul.f32 %v164, %v164
        %v235 = vmul.f32 %v165, %v165
        %v236 = vmul.f32 %v166, %v166
        %v237 = vmul.f32 %v167, %v167
        %v238 = vmul.f32 %v168, %v168
        %v239 = vmul.f32 %v169, %v169
        %v240 = vadd.f32 %v208, %v209
        %v241 = vadd.f32 %v240, %v210
        %v242 = vadd.f32 %v241, %v211
        %v243 = vadd.f32 %v242, %v212
        %v244 = vadd.f32 %v243, %v213
        %v245 = vadd.f32 %v244, %v214
        %v246 = vadd.f32 %v245, %v215
        %v247 = vadd.f32 %v246, %v216
        %v248 = vadd.f32 %v247, %v217
        %v249 = vadd.f32 %v248, %v218
        %v250 = vadd.f32 %v249, %v219
        %v251 = vadd.f32 %v250, %v220
        %v252 = vadd.f32 %v251, %v221
        %v253 = vadd.f32 %v252, %v222
        %v254 = vadd.f32 %v253, %v223
        %v255 = vadd.f32 %v254, %v224
        %v256 = vadd.f32 %v255, %v225
        %v257 = vadd.f32 %v256, %v226
        %v258 = vadd.f32 %v257, %v227
        %v259 = vadd.f32 %v258, %v228
        %v260 = vadd.f32 %v259, %v229
        %v261 = vadd.f32 %v260, %v230
        %v262 = vadd.f32 %v261, %v231
        %v263 = vadd.f32 %v262, %v232
        %v264 = vadd.f32 %v263, %v233
        %v265 = vadd.f32 %v264, %v234
        %v266 = vadd.f32 %v265, %v235
        %v267 = vadd.f32 %v266, %v236
        %v268 = vadd.f32 %v267, %v237
        %v269 = vadd.f32 %v268, %v238
        %v270 = vadd.f32 %v269, %v239
        %v271 = vrot.slane %v270, 4
        %v272 = vadd.f32 %v270, %v271
        %v273 = vrot.slane %v272, 2
        %v274 = vadd.f32 %v272, %v273
        %v275 = vrot.slane %v274, 1
        %v276 = vadd.f32 %v274, %v275
        %277 = vst [vmem:[%s137 + $0x1] sm:$0x1] %v276
        %p278 = scmp.lt.s32.totalorder %s15, 1
        %s279 = scalar_select %p278, %s15, 1
        %s280 = smul.addr %s279, 2
        %s281 = scalar_lea.vmem %s1, %s280
        // Predicated region
        $region29: #{fwd.6} parent=23 // pred_check
          %p282 = pneg %p59
        $region30: #{fwd.6} parent=23 // pred_check_branch
          %284 = sbr.rel (%p282) target = $region32
        $region31: #{fwd.6} parent=23 // pred_region
          _
        $region32: #{fwd.6} parent=23 // pred_fallthru
          _
      $region24: #{fwd.6} parent=5 // pred_fallthru
        _
      %p285 = scmp.le.s32.totalorder 2, %s10
      // Predicated region
      $region33: #{fwd.6} parent=5 // pred_check
        %p286 = pneg %p285
      $region34: #{fwd.6} parent=5 // pred_check_branch
        %288 = sbr.rel (%p286) target = $region36
      $region35: #{fwd.6} parent=5 // pred_region
        %s289 = ssub.s32 %s10, 2
        // Predicated region
        $region37: #{fwd.6} parent=35 // pred_check
          %p290 = pneg %p65
        $region38: #{fwd.6} parent=35 // pred_check_branch
          %292 = sbr.rel (%p290) target = $region40
        $region39: #{fwd.6} parent=35 // pred_region
          %p293 = scmp.lt.s32.totalorder %s16, 1
          %s294 = scalar_select %p293, %s16, 1
          %s295 = smul.addr %s294, 2
          %s296 = scalar_lea.vmem %s1, %s295
        $region40: #{fwd.6} parent=35 // pred_fallthru
          _
      $region36: #{fwd.6} parent=5 // pred_fallthru
        _
    $region6: #{fwd.6} parent=1 // loop_footer
      %s14 = sadd.s32 1, %s10
    $region7: #{fwd.6} parent=1 // loop_footer_branch
      %9 = sbr.rel target = $region3
    $region8: #{fwd.6} parent=1 // loop_exit
      _
    %297 = vsyncpa [#allocation3], 1
    %s298 = scalar_lea.sflag [#allocation3], 1
    %299 = vsyncpa %s298, 1

// kernel: fwd.7
$region0: #{fwd.7}
  #allocation0 [shape = 'u32[]', space=smem, size = 0x4, offset = 0x4, fixed_abs, tag = 'smem constant byte address 0x4 - core index']
  #allocation1 [shape = 'u32[72,128]{1,0:T(1,128)}', space=vmem, size = 0x9000, scoped, tag = 'internal scratch']
  #allocation2 [shape = 'f32[256,128]{1,0:T(8,128)}', space=vmem, size = 0x20000, scoped, tag = 'scratch operand']
  %s0 = inlined_call_operand.vmem [shape: f32[2,2,128], index: 0, kind: input, shape index: {}]
  %s1 = inlined_call_operand.vmem [shape: f32[512,128], index: 1, kind: input, shape index: {}]
  %s2 = inlined_call_operand.hbm [shape: f32[512,512], index: 2, kind: input, shape index: {}]
  %s3 = inlined_call_operand.vmem [shape: f32[8,128], index: 3, kind: input, shape index: {}]
  %s4 = inlined_call_operand.vmem [shape: f32[128,128], index: 4, kind: input, shape index: {}]
  %s5 = inlined_call_operand.vmem [shape: f32[8,512], index: 5, kind: input, shape index: {}]
  %s6 = inlined_call_operand.vmem [shape: f32[512,128], index: 6, kind: output, shape index: {0}]
  %s7 = inlined_call_operand.vmem [shape: f32[2,2,128], index: 7, kind: output, shape index: {1}]
  %s8 = inlined_call_operand.hbm [shape: f32[2,8,128], index: 8, kind: output, shape index: {2}]
  %9 = xla_tuple %s6, %s7, %s8
  %s10 = sld [smem:[#allocation0]]
  $region85: #{fwd.7} parent=0
    _
  %s12 = ssub.s32 1, %s10
  %s13 = scalar_select 0, %s12, %s10
  $region1: #{fwd.7} parent=0
    #allocation3 [shape = 'u8[524288]{0}', space=vmem, size = 0x80000, scoped, tag = 'input window, operand 2']
    #allocation4 [shape = 's32[2]{0}', space=sflag, size = 0x8, scoped, tag = 'scoped memory for fwd.7']
    #allocation5 [shape = 's32[2]{0}', space=sflag, size = 0x8, scoped, tag = 'scoped memory for fwd.7']
    #allocation6 [shape = 'u8[8192]{0}', space=vmem, size = 0x2000, scoped, tag = 'output window, operand 2']
    %14 = vsyncpa [#allocation4], 0
    %s15 = scalar_lea.sflag [#allocation4], 1
    %16 = vsyncpa %s15, 0
    %17 = vsyncpa [#allocation5], 0
    %s18 = scalar_lea.sflag [#allocation5], 1
    %19 = vsyncpa %s18, 0
    loop: start=0, step=1, limit=6
    $region2: #{fwd.7} parent=1 // loop_pre_header
      _
    $region3: #{fwd.7} parent=1 // loop_header
      %s21 = sphi 0, %s25
      %p22 = scmp.ge.s32.totalorder %s21, 6
      %s28 = sphi 0, %s40
      %s29 = sphi 0, %s36
      %s30 = sphi 0, %s28
      %s31 = sphi 0, %s29
      %s32 = sphi 0, %s30
      %s33 = sphi 0, %s31
      %s41 = sphi 0, %s41
      %s43 = sphi 0, %s41
      %s44 = sphi 0, %s43
      %s58 = sphi 0, %s44
      %s64 = sphi 0, %s66
      %s67 = sphi 0, %s64
      %s68 = sphi 0, %s67
      %s84 = sphi 0, %s68
      %s92 = sphi 0, %s94
      %s95 = sphi 0, %s92
      %s96 = sphi 0, %s95
      %s112 = sphi 0, %s96
      %s116 = sphi 0, %s116
      %s118 = sphi 0, %s116
      %s119 = sphi 0, %s118
      %s133 = sphi 0, %s119
      %s137 = sphi 0, %s137
      %s139 = sphi 0, %s137
      %s140 = sphi 0, %s139
      %s154 = sphi 0, %s140
      %s160 = sphi 0, %s162
      %s163 = sphi 0, %s160
      %s164 = sphi 0, %s163
      %s180 = sphi 0, %s164
      %s186 = sphi 0, %s188
      %s189 = sphi 0, %s186
      %s190 = sphi 0, %s189
      %s206 = sphi 0, %s190
      %s212 = sphi 0, %s214
      %s215 = sphi 0, %s212
      %s216 = sphi 0, %s215
      %s232 = sphi 0, %s216
      %s238 = sphi 0, %s240
      %s241 = sphi 0, %s238
      %s242 = sphi 0, %s241
      %s258 = sphi 0, %s242
    $region4: #{fwd.7} parent=1 // loop_header_branch
      %24 = sbr.rel (%p22) target = $region8
    $region5: #{fwd.7} parent=1 // loop_body
      %s26 = ssub.s32 %s21, 1
      %s27 = ssub.s32 %s21, 2
      %s34 = sadd.s32 1, %s29
      %p35 = scmp.ge.s32.totalorder %s34, 2
      %s36 = scalar_select %p35, 0, %s34
      %s37 = sadd.s32 1, %s28
      %s38 = scalar_select %p35, %s37, %s28
      %p39 = scmp.ge.s32.totalorder %s38, 2
      %s40 = scalar_select %p39, 0, %s38
      %s42 = sadd.s32 %s41, 1
      %p45 = scmp.eq.s32.totalorder %s21, 3
      %p46 = scmp.ne.s32.totalorder %s41, %s43
      %p47 = scmp.eq.s32.totalorder %s21, 0
      %p48 = por %p46, %p47
      %p49 = scmp.ne.s32.totalorder %s41, %s43
      %p50 = scmp.eq.s32.totalorder %s26, 3
      %p51 = por %p49, %p50
      %p52 = scmp.ne.s32.totalorder %s43, %s44
      %p53 = scmp.eq.s32.totalorder %s26, 0
      %p54 = por %p52, %p53
      %p55 = scmp.ne.s32.totalorder %s43, %s44
      %p56 = scmp.eq.s32.totalorder %s27, 3
      %p57 = por %p55, %p56
      %p59 = scmp.ne.s32.totalorder %s44, %s58
      %p60 = scmp.eq.s32.totalorder %s27, 0
      %p61 = por %p59, %p60
      %s62 = ssub.s32 %s29, %s36
      %p63 = scmp.eq.s32.totalorder %s62, 0
      %s65 = sadd.s32 %s64, 1
      %s66 = scalar_select %p63, %s64, %s65
      %p69 = pneg %p63
      %p70 = scmp.eq.s32.totalorder %s21, 3
      %p71 = por %p69, %p70
      %p72 = scmp.ne.s32.totalorder %s64, %s67
      %p73 = scmp.eq.s32.totalorder %s21, 0
      %p74 = por %p72, %p73
      %p75 = scmp.ne.s32.totalorder %s64, %s67
      %p76 = scmp.eq.s32.totalorder %s26, 3
      %p77 = por %p75, %p76
      %p78 = scmp.ne.s32.totalorder %s67, %s68
      %p79 = scmp.eq.s32.totalorder %s26, 0
      %p80 = por %p78, %p79
      %p81 = scmp.ne.s32.totalorder %s67, %s68
      %p82 = scmp.eq.s32.totalorder %s27, 3
      %p83 = por %p81, %p82
      %p85 = scmp.ne.s32.totalorder %s68, %s84
      %p86 = scmp.eq.s32.totalorder %s27, 0
      %p87 = por %p85, %p86
      %s88 = ssub.s32 %s28, %s40
      %s89 = ssub.s32 %s29, %s36
      %s90 = sor.u32 %s88, %s89
      %p91 = scmp.eq.s32.totalorder %s90, 0
      %s93 = sadd.s32 %s92, 1
      %s94 = scalar_select %p91, %s92, %s93
      %p97 = pneg %p91
      %p98 = scmp.eq.s32.totalorder %s21, 3
      %p99 = por %p97, %p98
      %p100 = scmp.ne.s32.totalorder %s92, %s95
      %p101 = scmp.eq.s32.totalorder %s21, 0
      %p102 = por %p100, %p101
      %p103 = scmp.ne.s32.totalorder %s92, %s95
      %p104 = scmp.eq.s32.totalorder %s26, 3
      %p105 = por %p103, %p104
      %p106 = scmp.ne.s32.totalorder %s95, %s96
      %p107 = scmp.eq.s32.totalorder %s26, 0
      %p108 = por %p106, %p107
      %p109 = scmp.ne.s32.totalorder %s95, %s96
      %p110 = scmp.eq.s32.totalorder %s27, 3
      %p111 = por %p109, %p110
      %p113 = scmp.ne.s32.totalorder %s96, %s112
      %p114 = scmp.eq.s32.totalorder %s27, 0
      %p115 = por %p113, %p114
      %s117 = sadd.s32 %s116, 1
      %p120 = scmp.eq.s32.totalorder %s21, 3
      %p121 = scmp.ne.s32.totalorder %s116, %s118
      %p122 = scmp.eq.s32.totalorder %s21, 0
      %p123 = por %p121, %p122
      %p124 = scmp.ne.s32.totalorder %s116, %s118
      %p125 = scmp.eq.s32.totalorder %s26, 3
      %p126 = por %p124, %p125
      %p127 = scmp.ne.s32.totalorder %s118, %s119
      %p128 = scmp.eq.s32.totalorder %s26, 0
      %p129 = por %p127, %p128
      %p130 = scmp.ne.s32.totalorder %s118, %s119
      %p131 = scmp.eq.s32.totalorder %s27, 3
      %p132 = por %p130, %p131
      %p134 = scmp.ne.s32.totalorder %s119, %s133
      %p135 = scmp.eq.s32.totalorder %s27, 0
      %p136 = por %p134, %p135
      %s138 = sadd.s32 %s137, 1
      %p141 = scmp.eq.s32.totalorder %s21, 3
      %p142 = scmp.ne.s32.totalorder %s137, %s139
      %p143 = scmp.eq.s32.totalorder %s21, 0
      %p144 = por %p142, %p143
      %p145 = scmp.ne.s32.totalorder %s137, %s139
      %p146 = scmp.eq.s32.totalorder %s26, 3
      %p147 = por %p145, %p146
      %p148 = scmp.ne.s32.totalorder %s139, %s140
      %p149 = scmp.eq.s32.totalorder %s26, 0
      %p150 = por %p148, %p149
      %p151 = scmp.ne.s32.totalorder %s139, %s140
      %p152 = scmp.eq.s32.totalorder %s27, 3
      %p153 = por %p151, %p152
      %p155 = scmp.ne.s32.totalorder %s140, %s154
      %p156 = scmp.eq.s32.totalorder %s27, 0
      %p157 = por %p155, %p156
      %s158 = ssub.s32 %s28, %s40
      %p159 = scmp.eq.s32.totalorder %s158, 0
      %s161 = sadd.s32 %s160, 1
      %s162 = scalar_select %p159, %s160, %s161
      %p165 = pneg %p159
      %p166 = scmp.eq.s32.totalorder %s21, 3
      %p167 = por %p165, %p166
      %p168 = scmp.ne.s32.totalorder %s160, %s163
      %p169 = scmp.eq.s32.totalorder %s21, 0
      %p170 = por %p168, %p169
      %p171 = scmp.ne.s32.totalorder %s160, %s163
      %p172 = scmp.eq.s32.totalorder %s26, 3
      %p173 = por %p171, %p172
      %p174 = scmp.ne.s32.totalorder %s163, %s164
      %p175 = scmp.eq.s32.totalorder %s26, 0
      %p176 = por %p174, %p175
      %p177 = scmp.ne.s32.totalorder %s163, %s164
      %p178 = scmp.eq.s32.totalorder %s27, 3
      %p179 = por %p177, %p178
      %p181 = scmp.ne.s32.totalorder %s164, %s180
      %p182 = scmp.eq.s32.totalorder %s27, 0
      %p183 = por %p181, %p182
      %s184 = ssub.s32 %s28, %s40
      %p185 = scmp.eq.s32.totalorder %s184, 0
      %s187 = sadd.s32 %s186, 1
      %s188 = scalar_select %p185, %s186, %s187
      %p191 = pneg %p185
      %p192 = scmp.eq.s32.totalorder %s21, 3
      %p193 = por %p191, %p192
      %p194 = scmp.ne.s32.totalorder %s186, %s189
      %p195 = scmp.eq.s32.totalorder %s21, 0
      %p196 = por %p194, %p195
      %p197 = scmp.ne.s32.totalorder %s186, %s189
      %p198 = scmp.eq.s32.totalorder %s26, 3
      %p199 = por %p197, %p198
      %p200 = scmp.ne.s32.totalorder %s189, %s190
      %p201 = scmp.eq.s32.totalorder %s26, 0
      %p202 = por %p200, %p201
      %p203 = scmp.ne.s32.totalorder %s189, %s190
      %p204 = scmp.eq.s32.totalorder %s27, 3
      %p205 = por %p203, %p204
      %p207 = scmp.ne.s32.totalorder %s190, %s206
      %p208 = scmp.eq.s32.totalorder %s27, 0
      %p209 = por %p207, %p208
      %s210 = ssub.s32 %s28, %s40
      %p211 = scmp.eq.s32.totalorder %s210, 0
      %s213 = sadd.s32 %s212, 1
      %s214 = scalar_select %p211, %s212, %s213
      %p217 = pneg %p211
      %p218 = scmp.eq.s32.totalorder %s21, 3
      %p219 = por %p217, %p218
      %p220 = scmp.ne.s32.totalorder %s212, %s215
      %p221 = scmp.eq.s32.totalorder %s21, 0
      %p222 = por %p220, %p221
      %p223 = scmp.ne.s32.totalorder %s212, %s215
      %p224 = scmp.eq.s32.totalorder %s26, 3
      %p225 = por %p223, %p224
      %p226 = scmp.ne.s32.totalorder %s215, %s216
      %p227 = scmp.eq.s32.totalorder %s26, 0
      %p228 = por %p226, %p227
      %p229 = scmp.ne.s32.totalorder %s215, %s216
      %p230 = scmp.eq.s32.totalorder %s27, 3
      %p231 = por %p229, %p230
      %p233 = scmp.ne.s32.totalorder %s216, %s232
      %p234 = scmp.eq.s32.totalorder %s27, 0
      %p235 = por %p233, %p234
      %s236 = ssub.s32 %s28, %s40
      %p237 = scmp.eq.s32.totalorder %s236, 0
      %s239 = sadd.s32 %s238, 1
      %s240 = scalar_select %p237, %s238, %s239
      %p243 = pneg %p237
      %p244 = scmp.eq.s32.totalorder %s21, 3
      %p245 = por %p243, %p244
      %p246 = scmp.ne.s32.totalorder %s238, %s241
      %p247 = scmp.eq.s32.totalorder %s21, 0
      %p248 = por %p246, %p247
      %p249 = scmp.ne.s32.totalorder %s238, %s241
      %p250 = scmp.eq.s32.totalorder %s26, 3
      %p251 = por %p249, %p250
      %p252 = scmp.ne.s32.totalorder %s241, %s242
      %p253 = scmp.eq.s32.totalorder %s26, 0
      %p254 = por %p252, %p253
      %p255 = scmp.ne.s32.totalorder %s241, %s242
      %p256 = scmp.eq.s32.totalorder %s27, 3
      %p257 = por %p255, %p256
      %p259 = scmp.ne.s32.totalorder %s242, %s258
      %p260 = scmp.eq.s32.totalorder %s27, 0
      %p261 = por %p259, %p260
      %p262 = scmp.le.s32.totalorder 1, %s21
      %p263 = scmp.lt.s32.totalorder %s21, 5
      %p264 = pnand %p262, %p263
      %p265 = pneg %p264
      // Predicated region
      $region9: #{fwd.7} parent=5 // pred_check
        _
      $region10: #{fwd.7} parent=5 // pred_check_branch
        %267 = sbr.rel (%p264) target = $region12
      $region11: #{fwd.7} parent=5 // pred_region
        %s268 = ssub.s32 %s21, 1
        // Predicated region
        $region13: #{fwd.7} parent=11 // pred_check
          %p269 = pneg %p54
        $region14: #{fwd.7} parent=11 // pred_check_branch
          %271 = sbr.rel (%p269) target = $region16
        $region15: #{fwd.7} parent=11 // pred_region
          _
        $region16: #{fwd.7} parent=11 // pred_fallthru
          _
        // Predicated region
        $region17: #{fwd.7} parent=11 // pred_check
          %p272 = pneg %p129
        $region18: #{fwd.7} parent=11 // pred_check_branch
          %274 = sbr.rel (%p272) target = $region20
        $region19: #{fwd.7} parent=11 // pred_region
          _
        $region20: #{fwd.7} parent=11 // pred_fallthru
          _
        // Predicated region
        $region21: #{fwd.7} parent=11 // pred_check
          %p275 = pneg %p150
        $region22: #{fwd.7} parent=11 // pred_check_branch
          %277 = sbr.rel (%p275) target = $region24
        $region23: #{fwd.7} parent=11 // pred_region
          _
        $region24: #{fwd.7} parent=11 // pred_fallthru
          _
      $region12: #{fwd.7} parent=5 // pred_fallthru
        _
      %p278 = scmp.lt.s32.totalorder %s21, 4
      // Predicated region
      $region25: #{fwd.7} parent=5 // pred_check
        %p279 = pneg %p278
      $region26: #{fwd.7} parent=5 // pred_check_branch
        %281 = sbr.rel (%p279) target = $region28
      $region27: #{fwd.7} parent=5 // pred_region
        // Predicated region
        $region29: #{fwd.7} parent=27 // pred_check
          %p282 = pneg %p74
        $region30: #{fwd.7} parent=27 // pred_check_branch
          %284 = sbr.rel (%p282) target = $region32
        $region31: #{fwd.7} parent=27 // pred_region
          %s285 = smul.u32 32, %s29
          %p286 = scmp.lt.s32.totalorder %s285, 63
          %s287 = scalar_select %p286, %s285, 63
          %s288 = smul.addr %s287, 8
          %s289 = scalar_lea.vmem %s1, %s288
          %s290 = smul.u32 32, %s29
        $region32: #{fwd.7} parent=27 // pred_fallthru
          _
        // Predicated region
        $region33: #{fwd.7} parent=27 // pred_check
          %p291 = pneg %p102
        $region34: #{fwd.7} parent=27 // pred_check_branch
          %293 = sbr.rel (%p291) target = $region36
        $region35: #{fwd.7} parent=27 // pred_region
          %s294 = sand.u32 %s92, 1
          %s295 = scalar_lea.sflag [#allocation4], %s294
          %s296 = sand.u32 %s92, 1
          %s297 = smul.addr %s296, 512
          %s298 = scalar_lea.vmem [#allocation3], %s297
          %s299 = smul.u32 32, %s28
          %s300 = smul.u32 2, %s29
          %302 = vsyncadd %s295, 0
          %s303 = smul.addr %s299, 4
          %s304 = sadd.s32 %s300, %s303
          %s305 = smul.addr %s304, 8
          %s306 = scalar_lea.hbm %s2, %s305
          %s307 = sshll.u32 %s306, 4
          %s308 = int_to_ptr.hbm [resolvable:$true] %s307
          %s309 = sshll.u32 %s298, 4
          %s310 = int_to_ptr.vmem [resolvable:$true] %s309
          %315 = dma.hbm_to_vmem [thread:$0]  %s308, 8192, %s310, %s295, 512, 256, 16
        $region36: #{fwd.7} parent=27 // pred_fallthru
          _
        // Predicated region
        $region37: #{fwd.7} parent=27 // pred_check
          %p316 = pneg %p170
        $region38: #{fwd.7} parent=27 // pred_check_branch
          %318 = sbr.rel (%p316) target = $region40
        $region39: #{fwd.7} parent=27 // pred_region
          %s319 = smul.u32 2, %s28
          %p320 = scmp.lt.s32.totalorder %s319, 3
          %s321 = scalar_select %p320, %s319, 3
          %s322 = smul.addr %s321, 8
          %s323 = scalar_lea.vmem %s5, %s322
          %s324 = smul.u32 2, %s28
        $region40: #{fwd.7} parent=27 // pred_fallthru
          _
      $region28: #{fwd.7} parent=5 // pred_fallthru
        _
      %p325 = scmp.le.s32.totalorder 1, %s21
      %p326 = scmp.lt.s32.totalorder %s21, 5
      %p327 = pnand %p325, %p326
      %p328 = pneg %p327
      // Predicated region
      $region41: #{fwd.7} parent=5 // pred_check
        _
      $region42: #{fwd.7} parent=5 // pred_check_branch
        %330 = sbr.rel (%p327) target = $region44
      $region43: #{fwd.7} parent=5 // pred_region
        %s331 = ssub.s32 %s21, 1
        %s332 = sand.u32 %s95, 1
        %s333 = scalar_lea.sflag [#allocation4], %s332
        %s334 = sand.u32 %s95, 1
        %s335 = smul.addr %s334, 512
        %s336 = scalar_lea.vmem [#allocation3], %s335
        // Predicated region
        $region45: #{fwd.7} parent=43 // pred_check
          %p337 = pneg %p108
        $region46: #{fwd.7} parent=43 // pred_check_branch
          %339 = sbr.rel (%p337) target = $region48
        $region47: #{fwd.7} parent=43 // pred_region
          %341 = dma.done %s333, 8192
        $region48: #{fwd.7} parent=43 // pred_fallthru
          _
        %p342 = pneg %p54
        %p343 = pneg %p51
        %s344 = smul.u32 32, %s31
        %p345 = scmp.lt.s32.totalorder %s344, 63
        %s346 = scalar_select %p345, %s344, 63
        %s347 = smul.addr %s346, 8
        %s348 = scalar_lea.vmem %s1, %s347
        %p349 = pneg %p80
        %p350 = pneg %p77
        %s351 = sand.u32 %s95, 1
        %s352 = scalar_lea.sflag [#allocation4], %s351
        %s353 = sand.u32 %s95, 1
        %s354 = smul.addr %s353, 512
        %s355 = scalar_lea.vmem [#allocation3], %s354
        %p356 = pneg %p108
        %p357 = pneg %p105
        %p358 = pneg %p129
        %p359 = pneg %p126
        %p360 = pneg %p150
        %p361 = pneg %p147
        %s362 = smul.u32 2, %s30
        %p363 = scmp.lt.s32.totalorder %s362, 3
        %s364 = scalar_select %p363, %s362, 3
        %s365 = smul.addr %s364, 8
        %s366 = scalar_lea.vmem %s5, %s365
        %p367 = pneg %p176
        %p368 = pneg %p173
        %p369 = pneg %p202
        %p370 = pneg %p199
        %s371 = smul.u32 32, %s30
        %p372 = scmp.lt.s32.totalorder %s371, 63
        %s373 = scalar_select %p372, %s371, 63
        %s374 = smul.addr %s373, 8
        %s375 = scalar_lea.vmem %s6, %s374
        %p376 = pneg %p228
        %p377 = pneg %p225
        %p378 = scmp.lt.s32.totalorder %s30, 1
        %s379 = scalar_select %p378, %s30, 1
        %s380 = smul.addr %s379, 2
        %s381 = scalar_lea.vmem %s7, %s380
        %p382 = pneg %p254
        %p383 = pneg %p251
        %s384 = sand.u32 %s241, 1
        %s385 = scalar_lea.sflag [#allocation5], %s384
        %s386 = sand.u32 %s241, 1
        %s387 = smul.addr %s386, 8
        %s388 = scalar_lea.vmem [#allocation6], %s387
        %s389 = smul.u32 32, %s31
        %p390 = scmp.lt.s32.totalorder %s389, 63
        %s391 = scalar_select %p390, %s389, 63
        %s392 = smul.addr %s391, 8
        %s393 = scalar_lea.vmem %s1, %s392
        %s394 = smul.u32 32, %s31
        %s395 = smul.u32 32, %s30
        %s396 = smul.u32 2, %s31
        %s397 = smul.u32 2, %s30
        %p398 = scmp.lt.s32.totalorder %s397, 3
        %s399 = scalar_select %p398, %s397, 3
        %s400 = smul.addr %s399, 8
        %s401 = scalar_lea.vmem %s5, %s400
        %s402 = smul.u32 2, %s30
        %s403 = smul.u32 32, %s30
        %p404 = scmp.lt.s32.totalorder %s403, 63
        %s405 = scalar_select %p404, %s403, 63
        %s406 = smul.addr %s405, 8
        %s407 = scalar_lea.vmem %s6, %s406
        %s408 = smul.u32 32, %s30
        %p409 = scmp.lt.s32.totalorder %s30, 1
        %s410 = scalar_select %p409, %s30, 1
        %s411 = smul.addr %s410, 2
        %s412 = scalar_lea.vmem %s7, %s411
        %p413 = scmp.eq.s32.totalorder %s31, 0
        // Predicated region
        $region49: #{fwd.7} parent=43 // pred_check
          %p414 = pneg %p413
        $region50: #{fwd.7} parent=43 // pred_check_branch
          %416 = sbr.rel (%p414) target = $region52
        $region51: #{fwd.7} parent=43 // pred_region
          %417 = vst [vmem:[#allocation2] sm:$0xff] 0.0
          %418 = vst [vmem:[#allocation2 + $0x8] sm:$0xff] 0.0
          %419 = vst [vmem:[#allocation2 + $0x10] sm:$0xff] 0.0
          %420 = vst [vmem:[#allocation2 + $0x18] sm:$0xff] 0.0
          %421 = vst [vmem:[#allocation2 + $0x20] sm:$0xff] 0.0
          %422 = vst [vmem:[#allocation2 + $0x28] sm:$0xff] 0.0
          %423 = vst [vmem:[#allocation2 + $0x30] sm:$0xff] 0.0
          %424 = vst [vmem:[#allocation2 + $0x38] sm:$0xff] 0.0
          %425 = vst [vmem:[#allocation2 + $0x40] sm:$0xff] 0.0
          %426 = vst [vmem:[#allocation2 + $0x48] sm:$0xff] 0.0
          %427 = vst [vmem:[#allocation2 + $0x50] sm:$0xff] 0.0
          %428 = vst [vmem:[#allocation2 + $0x58] sm:$0xff] 0.0
          %429 = vst [vmem:[#allocation2 + $0x60] sm:$0xff] 0.0
          %430 = vst [vmem:[#allocation2 + $0x68] sm:$0xff] 0.0
          %431 = vst [vmem:[#allocation2 + $0x70] sm:$0xff] 0.0
          %432 = vst [vmem:[#allocation2 + $0x78] sm:$0xff] 0.0
          %433 = vst [vmem:[#allocation2 + $0x80] sm:$0xff] 0.0
          %434 = vst [vmem:[#allocation2 + $0x88] sm:$0xff] 0.0
          %435 = vst [vmem:[#allocation2 + $0x90] sm:$0xff] 0.0
          %436 = vst [vmem:[#allocation2 + $0x98] sm:$0xff] 0.0
          %437 = vst [vmem:[#allocation2 + $0xa0] sm:$0xff] 0.0
          %438 = vst [vmem:[#allocation2 + $0xa8] sm:$0xff] 0.0
          %439 = vst [vmem:[#allocation2 + $0xb0] sm:$0xff] 0.0
          %440 = vst [vmem:[#allocation2 + $0xb8] sm:$0xff] 0.0
          %441 = vst [vmem:[#allocation2 + $0xc0] sm:$0xff] 0.0
          %442 = vst [vmem:[#allocation2 + $0xc8] sm:$0xff] 0.0
          %443 = vst [vmem:[#allocation2 + $0xd0] sm:$0xff] 0.0
          %444 = vst [vmem:[#allocation2 + $0xd8] sm:$0xff] 0.0
          %445 = vst [vmem:[#allocation2 + $0xe0] sm:$0xff] 0.0
          %446 = vst [vmem:[#allocation2 + $0xe8] sm:$0xff] 0.0
          %447 = vst [vmem:[#allocation2 + $0xf0] sm:$0xff] 0.0
          %448 = vst [vmem:[#allocation2 + $0xf8] sm:$0xff] 0.0
        $region52: #{fwd.7} parent=43 // pred_fallthru
          _
        %v449 = vld [vmem:[%s0] sm:$0x3]
        %v450 = vld [vmem:[%s0 + $0x2] sm:$0x3]
        %vm451 = vcmask 1041408
        %v452 = vsel %vm451, %v449, 0.0
        %v453 = vsel %vm451, %v450, 0.0
        %v454 = vadd.f32 %v452, %v453
        %v455 = vmul.f32 %v454, 0.002
        %v456 = vmul.f32 %v455, %v455
        %v458 = vrot.slane %v456, 7
        %v460 = vsub.f32 %v455, %v458
        %v461 = vadd.f32 %v460, 1e-05
        %v462 = vrsqrt.pop %v461
        %v463 = vmul.f32 %v462, %v461
        %v464 = vmul.f32 %v463, %v462
        %v465 = vmul.f32 0.5, %v464
        %v466 = vsub.f32 1.5, %v465
        %v467 = vmul.f32 %v462, %v466
        %vm468 = vweird.f32 %v461
        %vm469 = vweird.f32 %v462
        %vm470 = vmor %vm468, %vm469
        %v471 = vsel %vm470, %v462, %v467
        %v472 = vld [vmem:[%s3] sm:$0x1]
        %v474 = vrot.slane %v472, 7
        %v476 = vmul.f32 %v471, %v474
        %v477 = vld [vmem:[%s3 + $0x1] sm:$0x1]
        %v479 = vrot.slane %v476, 1
        %v481 = vmul.f32 %v455, %v479
        %v482 = vsub.f32 %v477, %v481
        %v483 = vld [vmem:[%s393] sm:$0xff]
        %v484 = vld [vmem:[%s393 + $0x8] sm:$0xff]
        %v485 = vld [vmem:[%s393 + $0x10] sm:$0xff]
        %v486 = vld [vmem:[%s393 + $0x18] sm:$0xff]
        %v487 = vld [vmem:[%s393 + $0x20] sm:$0xff]
        %v488 = vld [vmem:[%s393 + $0x28] sm:$0xff]
        %v489 = vld [vmem:[%s393 + $0x30] sm:$0xff]
        %v490 = vld [vmem:[%s393 + $0x38] sm:$0xff]
        %v491 = vld [vmem:[%s393 + $0x40] sm:$0xff]
        %v492 = vld [vmem:[%s393 + $0x48] sm:$0xff]
        %v493 = vld [vmem:[%s393 + $0x50] sm:$0xff]
        %v494 = vld [vmem:[%s393 + $0x58] sm:$0xff]
        %v495 = vld [vmem:[%s393 + $0x60] sm:$0xff]
        %v496 = vld [vmem:[%s393 + $0x68] sm:$0xff]
        %v497 = vld [vmem:[%s393 + $0x70] sm:$0xff]
        %v498 = vld [vmem:[%s393 + $0x78] sm:$0xff]
        %v499 = vld [vmem:[%s393 + $0x80] sm:$0xff]
        %v500 = vld [vmem:[%s393 + $0x88] sm:$0xff]
        %v501 = vld [vmem:[%s393 + $0x90] sm:$0xff]
        %v502 = vld [vmem:[%s393 + $0x98] sm:$0xff]
        %v503 = vld [vmem:[%s393 + $0xa0] sm:$0xff]
        %v504 = vld [vmem:[%s393 + $0xa8] sm:$0xff]
        %v505 = vld [vmem:[%s393 + $0xb0] sm:$0xff]
        %v506 = vld [vmem:[%s393 + $0xb8] sm:$0xff]
        %v507 = vld [vmem:[%s393 + $0xc0] sm:$0xff]
        %v508 = vld [vmem:[%s393 + $0xc8] sm:$0xff]
        %v509 = vld [vmem:[%s393 + $0xd0] sm:$0xff]
        %v510 = vld [vmem:[%s393 + $0xd8] sm:$0xff]
        %v511 = vld [vmem:[%s393 + $0xe0] sm:$0xff]
        %v512 = vld [vmem:[%s393 + $0xe8] sm:$0xff]
        %v513 = vld [vmem:[%s393 + $0xf0] sm:$0xff]
        %v514 = vld [vmem:[%s393 + $0xf8] sm:$0xff]
        %v515 = vperm.slane %v476, 1
        %v516 = vmul.f32 %v483, %v515
        %v517 = vmul.f32 %v484, %v515
        %v518 = vmul.f32 %v485, %v515
        %v519 = vmul.f32 %v486, %v515
        %v520 = vmul.f32 %v487, %v515
        %v521 = vmul.f32 %v488, %v515
        %v522 = vmul.f32 %v489, %v515
        %v523 = vmul.f32 %v490, %v515
        %v524 = vmul.f32 %v491, %v515
        %v525 = vmul.f32 %v492, %v515
        %v526 = vmul.f32 %v493, %v515
        %v527 = vmul.f32 %v494, %v515
        %v528 = vmul.f32 %v495, %v515
        %v529 = vmul.f32 %v496, %v515
        %v530 = vmul.f32 %v497, %v515
        %v531 = vmul.f32 %v498, %v515
        %v532 = vmul.f32 %v499, %v515
        %v533 = vmul.f32 %v500, %v515
        %v534 = vmul.f32 %v501, %v515
        %v535 = vmul.f32 %v502, %v515
        %v536 = vmul.f32 %v503, %v515
        %v537 = vmul.f32 %v504, %v515
        %v538 = vmul.f32 %v505, %v515
        %v539 = vmul.f32 %v506, %v515
        %v540 = vmul.f32 %v507, %v515
        %v541 = vmul.f32 %v508, %v515
        %v542 = vmul.f32 %v509, %v515
        %v543 = vmul.f32 %v510, %v515
        %v544 = vmul.f32 %v511, %v515
        %v545 = vmul.f32 %v512, %v515
        %v546 = vmul.f32 %v513, %v515
        %v547 = vmul.f32 %v514, %v515
        %v548 = vperm.slane %v482, 0
        %v549 = vadd.f32 %v516, %v548
        %v550 = vadd.f32 %v517, %v548
        %v551 = vadd.f32 %v518, %v548
        %v552 = vadd.f32 %v519, %v548
        %v553 = vadd.f32 %v520, %v548
        %v554 = vadd.f32 %v521, %v548
        %v555 = vadd.f32 %v522, %v548
        %v556 = vadd.f32 %v523, %v548
        %v557 = vadd.f32 %v524, %v548
        %v558 = vadd.f32 %v525, %v548
        %v559 = vadd.f32 %v526, %v548
        %v560 = vadd.f32 %v527, %v548
        %v561 = vadd.f32 %v528, %v548
        %v562 = vadd.f32 %v529, %v548
        %v563 = vadd.f32 %v530, %v548
        %v564 = vadd.f32 %v531, %v548
        %v565 = vadd.f32 %v532, %v548
        %v566 = vadd.f32 %v533, %v548
        %v567 = vadd.f32 %v534, %v548
        %v568 = vadd.f32 %v535, %v548
        %v569 = vadd.f32 %v536, %v548
        %v570 = vadd.f32 %v537, %v548
        %v571 = vadd.f32 %v538, %v548
        %v572 = vadd.f32 %v539, %v548
        %v573 = vadd.f32 %v540, %v548
        %v574 = vadd.f32 %v541, %v548
        %v575 = vadd.f32 %v542, %v548
        %v576 = vadd.f32 %v543, %v548
        %v577 = vadd.f32 %v544, %v548
        %v578 = vadd.f32 %v545, %v548
        %v579 = vadd.f32 %v546, %v548
        %v580 = vadd.f32 %v547, %v548
        %v581 = vld [vmem:[#allocation2] sm:$0xff]
        %v582 = vld [vmem:[#allocation2 + $0x8] sm:$0xff]
        %v583 = vld [vmem:[#allocation2 + $0x10] sm:$0xff]
        %v584 = vld [vmem:[#allocation2 + $0x18] sm:$0xff]
        %v585 = vld [vmem:[#allocation2 + $0x20] sm:$0xff]
        %v586 = vld [vmem:[#allocation2 + $0x28] sm:$0xff]
        %v587 = vld [vmem:[#allocation2 + $0x30] sm:$0xff]
        %v588 = vld [vmem:[#allocation2 + $0x38] sm:$0xff]
        %v589 = vld [vmem:[#allocation2 + $0x40] sm:$0xff]
        %v590 = vld [vmem:[#allocation2 + $0x48] sm:$0xff]
        %v591 = vld [vmem:[#allocation2 + $0x50] sm:$0xff]
        %v592 = vld [vmem:[#allocation2 + $0x58] sm:$0xff]
        %v593 = vld [vmem:[#allocation2 + $0x60] sm:$0xff]
        %v594 = vld [vmem:[#allocation2 + $0x68] sm:$0xff]
        %v595 = vld [vmem:[#allocation2 + $0x70] sm:$0xff]
        %v596 = vld [vmem:[#allocation2 + $0x78] sm:$0xff]
        %v597 = vld [vmem:[#allocation2 + $0x80] sm:$0xff]
        %v598 = vld [vmem:[#allocation2 + $0x88] sm:$0xff]
        %v599 = vld [vmem:[#allocation2 + $0x90] sm:$0xff]
        %v600 = vld [vmem:[#allocation2 + $0x98] sm:$0xff]
        %v601 = vld [vmem:[#allocation2 + $0xa0] sm:$0xff]
        %v602 = vld [vmem:[#allocation2 + $0xa8] sm:$0xff]
        %v603 = vld [vmem:[#allocation2 + $0xb0] sm:$0xff]
        %v604 = vld [vmem:[#allocation2 + $0xb8] sm:$0xff]
        %v605 = vld [vmem:[#allocation2 + $0xc0] sm:$0xff]
        %v606 = vld [vmem:[#allocation2 + $0xc8] sm:$0xff]
        %v607 = vld [vmem:[#allocation2 + $0xd0] sm:$0xff]
        %v608 = vld [vmem:[#allocation2 + $0xd8] sm:$0xff]
        %v609 = vld [vmem:[#allocation2 + $0xe0] sm:$0xff]
        %v610 = vld [vmem:[#allocation2 + $0xe8] sm:$0xff]
        %v611 = vld [vmem:[#allocation2 + $0xf0] sm:$0xff]
        %v612 = vld [vmem:[#allocation2 + $0xf8] sm:$0xff]
        %v613 = vld [vmem:[%s336] sm:$0xff]
        %v614 = vld [vmem:[%s336 + $0x8] sm:$0xff]
        %v615 = vld [vmem:[%s336 + $0x10] sm:$0xff]
        %v616 = vld [vmem:[%s336 + $0x18] sm:$0xff]
        %v617 = vld [vmem:[%s336 + $0x20] sm:$0xff]
        %v618 = vld [vmem:[%s336 + $0x28] sm:$0xff]
        %v619 = vld [vmem:[%s336 + $0x30] sm:$0xff]
        %v620 = vld [vmem:[%s336 + $0x38] sm:$0xff]
        %v621 = vld [vmem:[%s336 + $0x40] sm:$0xff]
        %v622 = vld [vmem:[%s336 + $0x48] sm:$0xff]
        %v623 = vld [vmem:[%s336 + $0x50] sm:$0xff]
        %v624 = vld [vmem:[%s336 + $0x58] sm:$0xff]
        %v625 = vld [vmem:[%s336 + $0x60] sm:$0xff]
        %v626 = vld [vmem:[%s336 + $0x68] sm:$0xff]
        %v627 = vld [vmem:[%s336 + $0x70] sm:$0xff]
        %v628 = vld [vmem:[%s336 + $0x78] sm:$0xff]
        %v629 = vld [vmem:[%s336 + $0x80] sm:$0xff]
        %v630 = vld [vmem:[%s336 + $0x88] sm:$0xff]
        %v631 = vld [vmem:[%s336 + $0x90] sm:$0xff]
        %v632 = vld [vmem:[%s336 + $0x98] sm:$0xff]
        %v633 = vld [vmem:[%s336 + $0xa0] sm:$0xff]
        %v634 = vld [vmem:[%s336 + $0xa8] sm:$0xff]
        %v635 = vld [vmem:[%s336 + $0xb0] sm:$0xff]
        %v636 = vld [vmem:[%s336 + $0xb8] sm:$0xff]
        %v637 = vld [vmem:[%s336 + $0xc0] sm:$0xff]
        %v638 = vld [vmem:[%s336 + $0xc8] sm:$0xff]
        %v639 = vld [vmem:[%s336 + $0xd0] sm:$0xff]
        %v640 = vld [vmem:[%s336 + $0xd8] sm:$0xff]
        %v641 = vld [vmem:[%s336 + $0xe0] sm:$0xff]
        %v642 = vld [vmem:[%s336 + $0xe8] sm:$0xff]
        %v643 = vld [vmem:[%s336 + $0xf0] sm:$0xff]
        %v644 = vld [vmem:[%s336 + $0xf8] sm:$0xff]
        %v645 = vld [vmem:[%s336 + $0x100] sm:$0xff]
        %v646 = vld [vmem:[%s336 + $0x108] sm:$0xff]
        %v647 = vld [vmem:[%s336 + $0x110] sm:$0xff]
        %v648 = vld [vmem:[%s336 + $0x118] sm:$0xff]
        %v649 = vld [vmem:[%s336 + $0x120] sm:$0xff]
        %v650 = vld [vmem:[%s336 + $0x128] sm:$0xff]
        %v651 = vld [vmem:[%s336 + $0x130] sm:$0xff]
        %v652 = vld [vmem:[%s336 + $0x138] sm:$0xff]
        %v653 = vld [vmem:[%s336 + $0x140] sm:$0xff]
        %v654 = vld [vmem:[%s336 + $0x148] sm:$0xff]
        %v655 = vld [vmem:[%s336 + $0x150] sm:$0xff]
        %v656 = vld [vmem:[%s336 + $0x158] sm:$0xff]
        %v657 = vld [vmem:[%s336 + $0x160] sm:$0xff]
        %v658 = vld [vmem:[%s336 + $0x168] sm:$0xff]
        %v659 = vld [vmem:[%s336 + $0x170] sm:$0xff]
        %v660 = vld [vmem:[%s336 + $0x178] sm:$0xff]
        %v661 = vld [vmem:[%s336 + $0x180] sm:$0xff]
        %v662 = vld [vmem:[%s336 + $0x188] sm:$0xff]
        %v663 = vld [vmem:[%s336 + $0x190] sm:$0xff]
        %v664 = vld [vmem:[%s336 + $0x198] sm:$0xff]
        %v665 = vld [vmem:[%s336 + $0x1a0] sm:$0xff]
        %v666 = vld [vmem:[%s336 + $0x1a8] sm:$0xff]
        %v667 = vld [vmem:[%s336 + $0x1b0] sm:$0xff]
        %v668 = vld [vmem:[%s336 + $0x1b8] sm:$0xff]
        %v669 = vld [vmem:[%s336 + $0x1c0] sm:$0xff]
        %v670 = vld [vmem:[%s336 + $0x1c8] sm:$0xff]
        %v671 = vld [vmem:[%s336 + $0x1d0] sm:$0xff]
        %v672 = vld [vmem:[%s336 + $0x1d8] sm:$0xff]
        %v673 = vld [vmem:[%s336 + $0x1e0] sm:$0xff]
        %v674 = vld [vmem:[%s336 + $0x1e8] sm:$0xff]
        %v675 = vld [vmem:[%s336 + $0x1f0] sm:$0xff]
        %v676 = vld [vmem:[%s336 + $0x1f8] sm:$0xff]
        %677 = vmatpush.msra.mxu0 %v564
        %678 = vmatpush.msra.mxu0 %v563
        %679 = vmatpush.msra.mxu0 %v562
        %680 = vmatpush.msra.mxu0 %v561
        %681 = vmatpush.msra.mxu0 %v560
        %682 = vmatpush.msra.mxu0 %v559
        %683 = vmatpush.msra.mxu0 %v558
        %684 = vmatpush.msra.mxu0 %v557
        %685 = vmatpush.msra.mxu0 %v556
        %686 = vmatpush.msra.mxu0 %v555
        %687 = vmatpush.msra.mxu0 %v554
        %688 = vmatpush.msra.mxu0 %v553
        %689 = vmatpush.msra.mxu0 %v552
        %690 = vmatpush.msra.mxu0 %v551
        %691 = vmatpush.msra.mxu0 %v550
        %692 = vmatpush.msra.mxu0 %v549
        %693 = vmatmul.f32.gmra.mxu0 %v613
        %v694 = vpop.f32.mrf.mxu0
        %v695 = vadd.f32 0.0, %v694
        %696 = vmatmul.f32.gmra.mxu0 %v615
        %v697 = vpop.f32.mrf.mxu0
        %v698 = vadd.f32 0.0, %v697
        %699 = vmatmul.f32.gmra.mxu0 %v617
        %v700 = vpop.f32.mrf.mxu0
        %v701 = vadd.f32 0.0, %v700
        %702 = vmatmul.f32.gmra.mxu0 %v619
        %v703 = vpop.f32.mrf.mxu0
        %v704 = vadd.f32 0.0, %v703
        %705 = vmatmul.f32.gmra.mxu0 %v621
        %v706 = vpop.f32.mrf.mxu0
        %v707 = vadd.f32 0.0, %v706
        %708 = vmatmul.f32.gmra.mxu0 %v623
        %v709 = vpop.f32.mrf.mxu0
        %v710 = vadd.f32 0.0, %v709
        %711 = vmatmul.f32.gmra.mxu0 %v625
        %v712 = vpop.f32.mrf.mxu0
        %v713 = vadd.f32 0.0, %v712
        %714 = vmatmul.f32.gmra.mxu0 %v627
        %v715 = vpop.f32.mrf.mxu0
        %v716 = vadd.f32 0.0, %v715
        %717 = vmatmul.f32.gmra.mxu0 %v629
        %v718 = vpop.f32.mrf.mxu0
        %v719 = vadd.f32 0.0, %v718
        %720 = vmatmul.f32.gmra.mxu0 %v631
        %v721 = vpop.f32.mrf.mxu0
        %v722 = vadd.f32 0.0, %v721
        %723 = vmatmul.f32.gmra.mxu0 %v633
        %v724 = vpop.f32.mrf.mxu0
        %v725 = vadd.f32 0.0, %v724
        %726 = vmatmul.f32.gmra.mxu0 %v635
        %v727 = vpop.f32.mrf.mxu0
        %v728 = vadd.f32 0.0, %v727
        %729 = vmatmul.f32.gmra.mxu0 %v637
        %v730 = vpop.f32.mrf.mxu0
        %v731 = vadd.f32 0.0, %v730
        %732 = vmatmul.f32.gmra.mxu0 %v639
        %v733 = vpop.f32.mrf.mxu0
        %v734 = vadd.f32 0.0, %v733
        %735 = vmatmul.f32.gmra.mxu0 %v641
        %v736 = vpop.f32.mrf.mxu0
        %v737 = vadd.f32 0.0, %v736
        %738 = vmatmul.f32.gmra.mxu0 %v643
        %v739 = vpop.f32.mrf.mxu0
        %v740 = vadd.f32 0.0, %v739
        %741 = vmatmul.f32.gmra.mxu0 %v645
        %v742 = vpop.f32.mrf.mxu0
        %v743 = vadd.f32 0.0, %v742
        %744 = vmatmul.f32.gmra.mxu0 %v647
        %v745 = vpop.f32.mrf.mxu0
        %v746 = vadd.f32 0.0, %v745
        %747 = vmatmul.f32.gmra.mxu0 %v649
        %v748 = vpop.f32.mrf.mxu0
        %v749 = vadd.f32 0.0, %v748
        %750 = vmatmul.f32.gmra.mxu0 %v651
        %v751 = vpop.f32.mrf.mxu0
        %v752 = vadd.f32 0.0, %v751
        %753 = vmatmul.f32.gmra.mxu0 %v653
        %v754 = vpop.f32.mrf.mxu0
        %v755 = vadd.f32 0.0, %v754
        %756 = vmatmul.f32.gmra.mxu0 %v655
        %v757 = vpop.f32.mrf.mxu0
        %v758 = vadd.f32 0.0, %v757
        %759 = vmatmul.f32.gmra.mxu0 %v657
        %v760 = vpop.f32.mrf.mxu0
        %v761 = vadd.f32 0.0, %v760
        %762 = vmatmul.f32.gmra.mxu0 %v659
        %v763 = vpop.f32.mrf.mxu0
        %v764 = vadd.f32 0.0, %v763
        %765 = vmatmul.f32.gmra.mxu0 %v661
        %v766 = vpop.f32.mrf.mxu0
        %v767 = vadd.f32 0.0, %v766
        %768 = vmatmul.f32.gmra.mxu0 %v663
        %v769 = vpop.f32.mrf.mxu0
        %v770 = vadd.f32 0.0, %v769
        %771 = vmatmul.f32.gmra.mxu0 %v665
        %v772 = vpop.f32.mrf.mxu0
        %v773 = vadd.f32 0.0, %v772
        %774 = vmatmul.f32.gmra.mxu0 %v667
        %v775 = vpop.f32.mrf.mxu0
        %v776 = vadd.f32 0.0, %v775
        %777 = vmatmul.f32.gmra.mxu0 %v669
        %v778 = vpop.f32.mrf.mxu0
        %v779 = vadd.f32 0.0, %v778
        %780 = vmatmul.f32.gmra.mxu0 %v671
        %v781 = vpop.f32.mrf.mxu0
        %v782 = vadd.f32 0.0, %v781
        %783 = vmatmul.f32.gmra.mxu0 %v673
        %v784 = vpop.f32.mrf.mxu0
        %v785 = vadd.f32 0.0, %v784
        %786 = vmatmul.f32.gmra.mxu0 %v675
        %v787 = vpop.f32.mrf.mxu0
        %v788 = vadd.f32 0.0, %v787
        %789 = vdwg.mxu0
        %790 = vmatpush.msra.mxu0 %v580
        %791 = vmatpush.msra.mxu0 %v579
        %792 = vmatpush.msra.mxu0 %v578
        %793 = vmatpush.msra.mxu0 %v577
        %794 = vmatpush.msra.mxu0 %v576
        %795 = vmatpush.msra.mxu0 %v575
        %796 = vmatpush.msra.mxu0 %v574
        %797 = vmatpush.msra.mxu0 %v573
        %798 = vmatpush.msra.mxu0 %v572
        %799 = vmatpush.msra.mxu0 %v571
        %800 = vmatpush.msra.mxu0 %v570
        %801 = vmatpush.msra.mxu0 %v569
        %802 = vmatpush.msra.mxu0 %v568
        %803 = vmatpush.msra.mxu0 %v567
        %804 = vmatpush.msra.mxu0 %v566
        %805 = vmatpush.msra.mxu0 %v565
        %806 = vmatmul.f32.gmra.mxu0 %v614
        %v807 = vpop.f32.mrf.mxu0
        %v808 = vadd.f32 %v695, %v807
        %809 = vmatmul.f32.gmra.mxu0 %v616
        %v810 = vpop.f32.mrf.mxu0
        %v811 = vadd.f32 %v698, %v810
        %812 = vmatmul.f32.gmra.mxu0 %v618
        %v813 = vpop.f32.mrf.mxu0
        %v814 = vadd.f32 %v701, %v813
        %815 = vmatmul.f32.gmra.mxu0 %v620
        %v816 = vpop.f32.mrf.mxu0
        %v817 = vadd.f32 %v704, %v816
        %818 = vmatmul.f32.gmra.mxu0 %v622
        %v819 = vpop.f32.mrf.mxu0
        %v820 = vadd.f32 %v707, %v819
        %821 = vmatmul.f32.gmra.mxu0 %v624
        %v822 = vpop.f32.mrf.mxu0
        %v823 = vadd.f32 %v710, %v822
        %824 = vmatmul.f32.gmra.mxu0 %v626
        %v825 = vpop.f32.mrf.mxu0
        %v826 = vadd.f32 %v713, %v825
        %827 = vmatmul.f32.gmra.mxu0 %v628
        %v828 = vpop.f32.mrf.mxu0
        %v829 = vadd.f32 %v716, %v828
        %830 = vmatmul.f32.gmra.mxu0 %v630
        %v831 = vpop.f32.mrf.mxu0
        %v832 = vadd.f32 %v719, %v831
        %833 = vmatmul.f32.gmra.mxu0 %v632
        %v834 = vpop.f32.mrf.mxu0
        %v835 = vadd.f32 %v722, %v834
        %836 = vmatmul.f32.gmra.mxu0 %v634
        %v837 = vpop.f32.mrf.mxu0
        %v838 = vadd.f32 %v725, %v837
        %839 = vmatmul.f32.gmra.mxu0 %v636
        %v840 = vpop.f32.mrf.mxu0
        %v841 = vadd.f32 %v728, %v840
        %842 = vmatmul.f32.gmra.mxu0 %v638
        %v843 = vpop.f32.mrf.mxu0
        %v844 = vadd.f32 %v731, %v843
        %845 = vmatmul.f32.gmra.mxu0 %v640
        %v846 = vpop.f32.mrf.mxu0
        %v847 = vadd.f32 %v734, %v846
        %848 = vmatmul.f32.gmra.mxu0 %v642
        %v849 = vpop.f32.mrf.mxu0
        %v850 = vadd.f32 %v737, %v849
        %851 = vmatmul.f32.gmra.mxu0 %v644
        %v852 = vpop.f32.mrf.mxu0
        %v853 = vadd.f32 %v740, %v852
        %854 = vmatmul.f32.gmra.mxu0 %v646
        %v855 = vpop.f32.mrf.mxu0
        %v856 = vadd.f32 %v743, %v855
        %857 = vmatmul.f32.gmra.mxu0 %v648
        %v858 = vpop.f32.mrf.mxu0
        %v859 = vadd.f32 %v746, %v858
        %860 = vmatmul.f32.gmra.mxu0 %v650
        %v861 = vpop.f32.mrf.mxu0
        %v862 = vadd.f32 %v749, %v861
        %863 = vmatmul.f32.gmra.mxu0 %v652
        %v864 = vpop.f32.mrf.mxu0
        %v865 = vadd.f32 %v752, %v864
        %866 = vmatmul.f32.gmra.mxu0 %v654
        %v867 = vpop.f32.mrf.mxu0
        %v868 = vadd.f32 %v755, %v867
        %869 = vmatmul.f32.gmra.mxu0 %v656
        %v870 = vpop.f32.mrf.mxu0
        %v871 = vadd.f32 %v758, %v870
        %872 = vmatmul.f32.gmra.mxu0 %v658
        %v873 = vpop.f32.mrf.mxu0
        %v874 = vadd.f32 %v761, %v873
        %875 = vmatmul.f32.gmra.mxu0 %v660
        %v876 = vpop.f32.mrf.mxu0
        %v877 = vadd.f32 %v764, %v876
        %878 = vmatmul.f32.gmra.mxu0 %v662
        %v879 = vpop.f32.mrf.mxu0
        %v880 = vadd.f32 %v767, %v879
        %881 = vmatmul.f32.gmra.mxu0 %v664
        %v882 = vpop.f32.mrf.mxu0
        %v883 = vadd.f32 %v770, %v882
        %884 = vmatmul.f32.gmra.mxu0 %v666
        %v885 = vpop.f32.mrf.mxu0
        %v886 = vadd.f32 %v773, %v885
        %887 = vmatmul.f32.gmra.mxu0 %v668
        %v888 = vpop.f32.mrf.mxu0
        %v889 = vadd.f32 %v776, %v888
        %890 = vmatmul.f32.gmra.mxu0 %v670
        %v891 = vpop.f32.mrf.mxu0
        %v892 = vadd.f32 %v779, %v891
        %893 = vmatmul.f32.gmra.mxu0 %v672
        %v894 = vpop.f32.mrf.mxu0
        %v895 = vadd.f32 %v782, %v894
        %896 = vmatmul.f32.gmra.mxu0 %v674
        %v897 = vpop.f32.mrf.mxu0
        %v898 = vadd.f32 %v785, %v897
        %899 = vmatmul.f32.gmra.mxu0 %v676
        %v900 = vpop.f32.mrf.mxu0
        %v901 = vadd.f32 %v788, %v900
        %902 = vdwg.mxu0
        %v903 = vadd.f32 %v581, %v808
        %v904 = vadd.f32 %v582, %v811
        %v905 = vadd.f32 %v583, %v814
        %v906 = vadd.f32 %v584, %v817
        %v907 = vadd.f32 %v585, %v820
        %v908 = vadd.f32 %v586, %v823
        %v909 = vadd.f32 %v587, %v826
        %v910 = vadd.f32 %v588, %v829
        %v911 = vadd.f32 %v589, %v832
        %v912 = vadd.f32 %v590, %v835
        %v913 = vadd.f32 %v591, %v838
        %v914 = vadd.f32 %v592, %v841
        %v915 = vadd.f32 %v593, %v844
        %v916 = vadd.f32 %v594, %v847
        %v917 = vadd.f32 %v595, %v850
        %v918 = vadd.f32 %v596, %v853
        %v919 = vadd.f32 %v597, %v856
        %v920 = vadd.f32 %v598, %v859
        %v921 = vadd.f32 %v599, %v862
        %v922 = vadd.f32 %v600, %v865
        %v923 = vadd.f32 %v601, %v868
        %v924 = vadd.f32 %v602, %v871
        %v925 = vadd.f32 %v603, %v874
        %v926 = vadd.f32 %v604, %v877
        %v927 = vadd.f32 %v605, %v880
        %v928 = vadd.f32 %v606, %v883
        %v929 = vadd.f32 %v607, %v886
        %v930 = vadd.f32 %v608, %v889
        %v931 = vadd.f32 %v609, %v892
        %v932 = vadd.f32 %v610, %v895
        %v933 = vadd.f32 %v611, %v898
        %v934 = vadd.f32 %v612, %v901
        %935 = vst [vmem:[#allocation2] sm:$0xff] %v903
        %936 = vst [vmem:[#allocation2 + $0x8] sm:$0xff] %v904
        %937 = vst [vmem:[#allocation2 + $0x10] sm:$0xff] %v905
        %938 = vst [vmem:[#allocation2 + $0x18] sm:$0xff] %v906
        %939 = vst [vmem:[#allocation2 + $0x20] sm:$0xff] %v907
        %940 = vst [vmem:[#allocation2 + $0x28] sm:$0xff] %v908
        %941 = vst [vmem:[#allocation2 + $0x30] sm:$0xff] %v909
        %942 = vst [vmem:[#allocation2 + $0x38] sm:$0xff] %v910
        %943 = vst [vmem:[#allocation2 + $0x40] sm:$0xff] %v911
        %944 = vst [vmem:[#allocation2 + $0x48] sm:$0xff] %v912
        %945 = vst [vmem:[#allocation2 + $0x50] sm:$0xff] %v913
        %946 = vst [vmem:[#allocation2 + $0x58] sm:$0xff] %v914
        %947 = vst [vmem:[#allocation2 + $0x60] sm:$0xff] %v915
        %948 = vst [vmem:[#allocation2 + $0x68] sm:$0xff] %v916
        %949 = vst [vmem:[#allocation2 + $0x70] sm:$0xff] %v917
        %950 = vst [vmem:[#allocation2 + $0x78] sm:$0xff] %v918
        %951 = vst [vmem:[#allocation2 + $0x80] sm:$0xff] %v919
        %952 = vst [vmem:[#allocation2 + $0x88] sm:$0xff] %v920
        %953 = vst [vmem:[#allocation2 + $0x90] sm:$0xff] %v921
        %954 = vst [vmem:[#allocation2 + $0x98] sm:$0xff] %v922
        %955 = vst [vmem:[#allocation2 + $0xa0] sm:$0xff] %v923
        %956 = vst [vmem:[#allocation2 + $0xa8] sm:$0xff] %v924
        %957 = vst [vmem:[#allocation2 + $0xb0] sm:$0xff] %v925
        %958 = vst [vmem:[#allocation2 + $0xb8] sm:$0xff] %v926
        %959 = vst [vmem:[#allocation2 + $0xc0] sm:$0xff] %v927
        %960 = vst [vmem:[#allocation2 + $0xc8] sm:$0xff] %v928
        %961 = vst [vmem:[#allocation2 + $0xd0] sm:$0xff] %v929
        %962 = vst [vmem:[#allocation2 + $0xd8] sm:$0xff] %v930
        %963 = vst [vmem:[#allocation2 + $0xe0] sm:$0xff] %v931
        %964 = vst [vmem:[#allocation2 + $0xe8] sm:$0xff] %v932
        %965 = vst [vmem:[#allocation2 + $0xf0] sm:$0xff] %v933
        %966 = vst [vmem:[#allocation2 + $0xf8] sm:$0xff] %v934
        %p967 = scmp.eq.s32.totalorder %s31, 1
        // Predicated region
        $region53: #{fwd.7} parent=43 // pred_check
          %p968 = pneg %p967
        $region54: #{fwd.7} parent=43 // pred_check_branch
          %970 = sbr.rel (%p968) target = $region56
        $region55: #{fwd.7} parent=43 // pred_region
          %v971 = vld [vmem:[#allocation2] sm:$0xff]
          %v972 = vld [vmem:[#allocation2 + $0x8] sm:$0xff]
          %v973 = vld [vmem:[#allocation2 + $0x10] sm:$0xff]
          %v974 = vld [vmem:[#allocation2 + $0x18] sm:$0xff]
          %v975 = vld [vmem:[#allocation2 + $0x20] sm:$0xff]
          %v976 = vld [vmem:[#allocation2 + $0x28] sm:$0xff]
          %v977 = vld [vmem:[#allocation2 + $0x30] sm:$0xff]
          %v978 = vld [vmem:[#allocation2 + $0x38] sm:$0xff]
          %v979 = vld [vmem:[#allocation2 + $0x40] sm:$0xff]
          %v980 = vld [vmem:[#allocation2 + $0x48] sm:$0xff]
          %v981 = vld [vmem:[#allocation2 + $0x50] sm:$0xff]
          %v982 = vld [vmem:[#allocation2 + $0x58] sm:$0xff]
          %v983 = vld [vmem:[#allocation2 + $0x60] sm:$0xff]
          %v984 = vld [vmem:[#allocation2 + $0x68] sm:$0xff]
          %v985 = vld [vmem:[#allocation2 + $0x70] sm:$0xff]
          %v986 = vld [vmem:[#allocation2 + $0x78] sm:$0xff]
          %v987 = vld [vmem:[#allocation2 + $0x80] sm:$0xff]
          %v988 = vld [vmem:[#allocation2 + $0x88] sm:$0xff]
          %v989 = vld [vmem:[#allocation2 + $0x90] sm:$0xff]
          %v990 = vld [vmem:[#allocation2 + $0x98] sm:$0xff]
          %v991 = vld [vmem:[#allocation2 + $0xa0] sm:$0xff]
          %v992 = vld [vmem:[#allocation2 + $0xa8] sm:$0xff]
          %v993 = vld [vmem:[#allocation2 + $0xb0] sm:$0xff]
          %v994 = vld [vmem:[#allocation2 + $0xb8] sm:$0xff]
          %v995 = vld [vmem:[#allocation2 + $0xc0] sm:$0xff]
          %v996 = vld [vmem:[#allocation2 + $0xc8] sm:$0xff]
          %v997 = vld [vmem:[#allocation2 + $0xd0] sm:$0xff]
          %v998 = vld [vmem:[#allocation2 + $0xd8] sm:$0xff]
          %v999 = vld [vmem:[#allocation2 + $0xe0] sm:$0xff]
          %v1000 = vld [vmem:[#allocation2 + $0xe8] sm:$0xff]
          %v1001 = vld [vmem:[#allocation2 + $0xf0] sm:$0xff]
          %v1002 = vld [vmem:[#allocation2 + $0xf8] sm:$0xff]
          %v1003 = vld [vmem:[%s4] sm:$0xff]
          %v1004 = vld [vmem:[%s4 + $0x8] sm:$0xff]
          %v1005 = vld [vmem:[%s4 + $0x10] sm:$0xff]
          %v1006 = vld [vmem:[%s4 + $0x18] sm:$0xff]
          %v1007 = vld [vmem:[%s4 + $0x20] sm:$0xff]
          %v1008 = vld [vmem:[%s4 + $0x28] sm:$0xff]
          %v1009 = vld [vmem:[%s4 + $0x30] sm:$0xff]
          %v1010 = vld [vmem:[%s4 + $0x38] sm:$0xff]
          %v1011 = vld [vmem:[%s4 + $0x40] sm:$0xff]
          %v1012 = vld [vmem:[%s4 + $0x48] sm:$0xff]
          %v1013 = vld [vmem:[%s4 + $0x50] sm:$0xff]
          %v1014 = vld [vmem:[%s4 + $0x58] sm:$0xff]
          %v1015 = vld [vmem:[%s4 + $0x60] sm:$0xff]
          %v1016 = vld [vmem:[%s4 + $0x68] sm:$0xff]
          %v1017 = vld [vmem:[%s4 + $0x70] sm:$0xff]
          %v1018 = vld [vmem:[%s4 + $0x78] sm:$0xff]
          %v1019 = vld [vmem:[%s3 + $0x2] sm:$0x1]
          %v1020 = vperm.slane %v1019, 0
          %1021 = vmatpush.msra.mxu0 %v1018
          %1022 = vmatpush.msra.mxu0 %v1017
          %1023 = vmatpush.msra.mxu0 %v1016
          %1024 = vmatpush.msra.mxu0 %v1015
          %1025 = vmatpush.msra.mxu0 %v1014
          %1026 = vmatpush.msra.mxu0 %v1013
          %1027 = vmatpush.msra.mxu0 %v1012
          %1028 = vmatpush.msra.mxu0 %v1011
          %1029 = vmatpush.msra.mxu0 %v1010
          %1030 = vmatpush.msra.mxu0 %v1009
          %1031 = vmatpush.msra.mxu0 %v1008
          %1032 = vmatpush.msra.mxu0 %v1007
          %1033 = vmatpush.msra.mxu0 %v1006
          %1034 = vmatpush.msra.mxu0 %v1005
          %1035 = vmatpush.msra.mxu0 %v1004
          %1036 = vmatpush.msra.mxu0 %v1003
          %1037 = vmatmul.f32.gmra.mxu0 %v971
          %v1038 = vpop.f32.mrf.mxu0
          %v1039 = vadd.f32 %v1020, %v1038
          %1040 = vmatmul.f32.gmra.mxu0 %v972
          %v1041 = vpop.f32.mrf.mxu0
          %v1042 = vadd.f32 %v1020, %v1041
          %1043 = vmatmul.f32.gmra.mxu0 %v973
          %v1044 = vpop.f32.mrf.mxu0
          %v1045 = vadd.f32 %v1020, %v1044
          %1046 = vmatmul.f32.gmra.mxu0 %v974
          %v1047 = vpop.f32.mrf.mxu0
          %v1048 = vadd.f32 %v1020, %v1047
          %1049 = vmatmul.f32.gmra.mxu0 %v975
          %v1050 = vpop.f32.mrf.mxu0
          %v1051 = vadd.f32 %v1020, %v1050
          %1052 = vmatmul.f32.gmra.mxu0 %v976
          %v1053 = vpop.f32.mrf.mxu0
          %v1054 = vadd.f32 %v1020, %v1053
          %1055 = vmatmul.f32.gmra.mxu0 %v977
          %v1056 = vpop.f32.mrf.mxu0
          %v1057 = vadd.f32 %v1020, %v1056
          %1058 = vmatmul.f32.gmra.mxu0 %v978
          %v1059 = vpop.f32.mrf.mxu0
          %v1060 = vadd.f32 %v1020, %v1059
          %1061 = vmatmul.f32.gmra.mxu0 %v979
          %v1062 = vpop.f32.mrf.mxu0
          %v1063 = vadd.f32 %v1020, %v1062
          %1064 = vmatmul.f32.gmra.mxu0 %v980
          %v1065 = vpop.f32.mrf.mxu0
          %v1066 = vadd.f32 %v1020, %v1065
          %1067 = vmatmul.f32.gmra.mxu0 %v981
          %v1068 = vpop.f32.mrf.mxu0
          %v1069 = vadd.f32 %v1020, %v1068
          %1070 = vmatmul.f32.gmra.mxu0 %v982
          %v1071 = vpop.f32.mrf.mxu0
          %v1072 = vadd.f32 %v1020, %v1071
          %1073 = vmatmul.f32.gmra.mxu0 %v983
          %v1074 = vpop.f32.mrf.mxu0
          %v1075 = vadd.f32 %v1020, %v1074
          %1076 = vmatmul.f32.gmra.mxu0 %v984
          %v1077 = vpop.f32.mrf.mxu0
          %v1078 = vadd.f32 %v1020, %v1077
          %1079 = vmatmul.f32.gmra.mxu0 %v985
          %v1080 = vpop.f32.mrf.mxu0
          %v1081 = vadd.f32 %v1020, %v1080
          %1082 = vmatmul.f32.gmra.mxu0 %v986
          %v1083 = vpop.f32.mrf.mxu0
          %v1084 = vadd.f32 %v1020, %v1083
          %1085 = vmatmul.f32.gmra.mxu0 %v987
          %v1086 = vpop.f32.mrf.mxu0
          %v1087 = vadd.f32 %v1020, %v1086
          %1088 = vmatmul.f32.gmra.mxu0 %v988
          %v1089 = vpop.f32.mrf.mxu0
          %v1090 = vadd.f32 %v1020, %v1089
          %1091 = vmatmul.f32.gmra.mxu0 %v989
          %v1092 = vpop.f32.mrf.mxu0
          %v1093 = vadd.f32 %v1020, %v1092
          %1094 = vmatmul.f32.gmra.mxu0 %v990
          %v1095 = vpop.f32.mrf.mxu0
          %v1096 = vadd.f32 %v1020, %v1095
          %1097 = vmatmul.f32.gmra.mxu0 %v991
          %v1098 = vpop.f32.mrf.mxu0
          %v1099 = vadd.f32 %v1020, %v1098
          %1100 = vmatmul.f32.gmra.mxu0 %v992
          %v1101 = vpop.f32.mrf.mxu0
          %v1102 = vadd.f32 %v1020, %v1101
          %1103 = vmatmul.f32.gmra.mxu0 %v993
          %v1104 = vpop.f32.mrf.mxu0
          %v1105 = vadd.f32 %v1020, %v1104
          %1106 = vmatmul.f32.gmra.mxu0 %v994
          %v1107 = vpop.f32.mrf.mxu0
          %v1108 = vadd.f32 %v1020, %v1107
          %1109 = vmatmul.f32.gmra.mxu0 %v995
          %v1110 = vpop.f32.mrf.mxu0
          %v1111 = vadd.f32 %v1020, %v1110
          %1112 = vmatmul.f32.gmra.mxu0 %v996
          %v1113 = vpop.f32.mrf.mxu0
          %v1114 = vadd.f32 %v1020, %v1113
          %1115 = vmatmul.f32.gmra.mxu0 %v997
          %v1116 = vpop.f32.mrf.mxu0
          %v1117 = vadd.f32 %v1020, %v1116
          %1118 = vmatmul.f32.gmra.mxu0 %v998
          %v1119 = vpop.f32.mrf.mxu0
          %v1120 = vadd.f32 %v1020, %v1119
          %1121 = vmatmul.f32.gmra.mxu0 %v999
          %v1122 = vpop.f32.mrf.mxu0
          %v1123 = vadd.f32 %v1020, %v1122
          %1124 = vmatmul.f32.gmra.mxu0 %v1000
          %v1125 = vpop.f32.mrf.mxu0
          %v1126 = vadd.f32 %v1020, %v1125
          %1127 = vmatmul.f32.gmra.mxu0 %v1001
          %v1128 = vpop.f32.mrf.mxu0
          %v1129 = vadd.f32 %v1020, %v1128
          %1130 = vmatmul.f32.gmra.mxu0 %v1002
          %v1131 = vpop.f32.mrf.mxu0
          %v1132 = vadd.f32 %v1020, %v1131
          %1133 = vdwg.mxu0
          %v1134 = vmax.f32 %v1039, 0.0
          %v1135 = vmax.f32 %v1042, 0.0
          %v1136 = vmax.f32 %v1045, 0.0
          %v1137 = vmax.f32 %v1048, 0.0
          %v1138 = vmax.f32 %v1051, 0.0
          %v1139 = vmax.f32 %v1054, 0.0
          %v1140 = vmax.f32 %v1057, 0.0
          %v1141 = vmax.f32 %v1060, 0.0
          %v1142 = vmax.f32 %v1063, 0.0
          %v1143 = vmax.f32 %v1066, 0.0
          %v1144 = vmax.f32 %v1069, 0.0
          %v1145 = vmax.f32 %v1072, 0.0
          %v1146 = vmax.f32 %v1075, 0.0
          %v1147 = vmax.f32 %v1078, 0.0
          %v1148 = vmax.f32 %v1081, 0.0
          %v1149 = vmax.f32 %v1084, 0.0
          %v1150 = vmax.f32 %v1087, 0.0
          %v1151 = vmax.f32 %v1090, 0.0
          %v1152 = vmax.f32 %v1093, 0.0
          %v1153 = vmax.f32 %v1096, 0.0
          %v1154 = vmax.f32 %v1099, 0.0
          %v1155 = vmax.f32 %v1102, 0.0
          %v1156 = vmax.f32 %v1105, 0.0
          %v1157 = vmax.f32 %v1108, 0.0
          %v1158 = vmax.f32 %v1111, 0.0
          %v1159 = vmax.f32 %v1114, 0.0
          %v1160 = vmax.f32 %v1117, 0.0
          %v1161 = vmax.f32 %v1120, 0.0
          %v1162 = vmax.f32 %v1123, 0.0
          %v1163 = vmax.f32 %v1126, 0.0
          %v1164 = vmax.f32 %v1129, 0.0
          %v1165 = vmax.f32 %v1132, 0.0
          %v1166 = vlaneseq
          %v1167 = vshrl.u32 %v1166, 7
          %v1168 = vadd.s32 %v1167, 8
          %v1169 = vadd.s32 %v1167, 16
          %v1170 = vadd.s32 %v1167, 24
          %v1171 = vadd.s32 %v1167, 32
          %v1172 = vadd.s32 %v1167, 40
          %v1173 = vadd.s32 %v1167, 48
          %v1174 = vadd.s32 %v1167, 56
          %v1175 = vadd.s32 %v1167, 64
          %v1176 = vadd.s32 %v1167, 72
          %v1177 = vadd.s32 %v1167, 80
          %v1178 = vadd.s32 %v1167, 88
          %v1179 = vadd.s32 %v1167, 96
          %v1180 = vadd.s32 %v1167, 104
          %v1181 = vadd.s32 %v1167, 112
          %v1182 = vadd.s32 %v1167, 120
          %v1183 = vadd.s32 %v1167, 128
          %v1184 = vadd.s32 %v1167, 136
          %v1185 = vadd.s32 %v1167, 144
          %v1186 = vadd.s32 %v1167, 152
          %v1187 = vadd.s32 %v1167, 160
          %v1188 = vadd.s32 %v1167, 168
          %v1189 = vadd.s32 %v1167, 176
          %v1190 = vadd.s32 %v1167, 184
          %v1191 = vadd.s32 %v1167, 192
          %v1192 = vadd.s32 %v1167, 200
          %v1193 = vadd.s32 %v1167, 208
          %v1194 = vadd.s32 %v1167, 216
          %v1195 = vadd.s32 %v1167, 224
          %v1196 = vadd.s32 %v1167, 232
          %v1197 = vadd.s32 %v1167, 240
          %v1198 = vadd.s32 %v1167, 248
          %s1199 = smul.u32 %s30, 256
          %v1200 = vstv %s1199
          %v1201 = vadd.s32 %v1167, %v1200
          %v1202 = vadd.s32 %v1168, %v1200
          %v1203 = vadd.s32 %v1169, %v1200
          %v1204 = vadd.s32 %v1170, %v1200
          %v1205 = vadd.s32 %v1171, %v1200
          %v1206 = vadd.s32 %v1172, %v1200
          %v1207 = vadd.s32 %v1173, %v1200
          %v1208 = vadd.s32 %v1174, %v1200
          %v1209 = vadd.s32 %v1175, %v1200
          %v1210 = vadd.s32 %v1176, %v1200
          %v1211 = vadd.s32 %v1177, %v1200
          %v1212 = vadd.s32 %v1178, %v1200
          %v1213 = vadd.s32 %v1179, %v1200
          %v1214 = vadd.s32 %v1180, %v1200
          %v1215 = vadd.s32 %v1181, %v1200
          %v1216 = vadd.s32 %v1182, %v1200
          %v1217 = vadd.s32 %v1183, %v1200
          %v1218 = vadd.s32 %v1184, %v1200
          %v1219 = vadd.s32 %v1185, %v1200
          %v1220 = vadd.s32 %v1186, %v1200
          %v1221 = vadd.s32 %v1187, %v1200
          %v1222 = vadd.s32 %v1188, %v1200
          %v1223 = vadd.s32 %v1189, %v1200
          %v1224 = vadd.s32 %v1190, %v1200
          %v1225 = vadd.s32 %v1191, %v1200
          %v1226 = vadd.s32 %v1192, %v1200
          %v1227 = vadd.s32 %v1193, %v1200
          %v1228 = vadd.s32 %v1194, %v1200
          %v1229 = vadd.s32 %v1195, %v1200
          %v1230 = vadd.s32 %v1196, %v1200
          %v1231 = vadd.s32 %v1197, %v1200
          %v1232 = vadd.s32 %v1198, %v1200
          %vm1233 = vcmp.lt.s32.totalorder %v1201, 500
          %vm1234 = vcmp.lt.s32.totalorder %v1202, 500
          %vm1235 = vcmp.lt.s32.totalorder %v1203, 500
          %vm1236 = vcmp.lt.s32.totalorder %v1204, 500
          %vm1237 = vcmp.lt.s32.totalorder %v1205, 500
          %vm1238 = vcmp.lt.s32.totalorder %v1206, 500
          %vm1239 = vcmp.lt.s32.totalorder %v1207, 500
          %vm1240 = vcmp.lt.s32.totalorder %v1208, 500
          %vm1241 = vcmp.lt.s32.totalorder %v1209, 500
          %vm1242 = vcmp.lt.s32.totalorder %v1210, 500
          %vm1243 = vcmp.lt.s32.totalorder %v1211, 500
          %vm1244 = vcmp.lt.s32.totalorder %v1212, 500
          %vm1245 = vcmp.lt.s32.totalorder %v1213, 500
          %vm1246 = vcmp.lt.s32.totalorder %v1214, 500
          %vm1247 = vcmp.lt.s32.totalorder %v1215, 500
          %vm1248 = vcmp.lt.s32.totalorder %v1216, 500
          %vm1249 = vcmp.lt.s32.totalorder %v1217, 500
          %vm1250 = vcmp.lt.s32.totalorder %v1218, 500
          %vm1251 = vcmp.lt.s32.totalorder %v1219, 500
          %vm1252 = vcmp.lt.s32.totalorder %v1220, 500
          %vm1253 = vcmp.lt.s32.totalorder %v1221, 500
          %vm1254 = vcmp.lt.s32.totalorder %v1222, 500
          %vm1255 = vcmp.lt.s32.totalorder %v1223, 500
          %vm1256 = vcmp.lt.s32.totalorder %v1224, 500
          %vm1257 = vcmp.lt.s32.totalorder %v1225, 500
          %vm1258 = vcmp.lt.s32.totalorder %v1226, 500
          %vm1259 = vcmp.lt.s32.totalorder %v1227, 500
          %vm1260 = vcmp.lt.s32.totalorder %v1228, 500
          %vm1261 = vcmp.lt.s32.totalorder %v1229, 500
          %vm1262 = vcmp.lt.s32.totalorder %v1230, 500
          %vm1263 = vcmp.lt.s32.totalorder %v1231, 500
          %vm1264 = vcmp.lt.s32.totalorder %v1232, 500
          %v1265 = vsel %vm1233, %v1134, 0.0
          %v1266 = vsel %vm1234, %v1135, 0.0
          %v1267 = vsel %vm1235, %v1136, 0.0
          %v1268 = vsel %vm1236, %v1137, 0.0
          %v1269 = vsel %vm1237, %v1138, 0.0
          %v1270 = vsel %vm1238, %v1139, 0.0
          %v1271 = vsel %vm1239, %v1140, 0.0
          %v1272 = vsel %vm1240, %v1141, 0.0
          %v1273 = vsel %vm1241, %v1142, 0.0
          %v1274 = vsel %vm1242, %v1143, 0.0
          %v1275 = vsel %vm1243, %v1144, 0.0
          %v1276 = vsel %vm1244, %v1145, 0.0
          %v1277 = vsel %vm1245, %v1146, 0.0
          %v1278 = vsel %vm1246, %v1147, 0.0
          %v1279 = vsel %vm1247, %v1148, 0.0
          %v1280 = vsel %vm1248, %v1149, 0.0
          %v1281 = vsel %vm1249, %v1150, 0.0
          %v1282 = vsel %vm1250, %v1151, 0.0
          %v1283 = vsel %vm1251, %v1152, 0.0
          %v1284 = vsel %vm1252, %v1153, 0.0
          %v1285 = vsel %vm1253, %v1154, 0.0
          %v1286 = vsel %vm1254, %v1155, 0.0
          %v1287 = vsel %vm1255, %v1156, 0.0
          %v1288 = vsel %vm1256, %v1157, 0.0
          %v1289 = vsel %vm1257, %v1158, 0.0
          %v1290 = vsel %vm1258, %v1159, 0.0
          %v1291 = vsel %vm1259, %v1160, 0.0
          %v1292 = vsel %vm1260, %v1161, 0.0
          %v1293 = vsel %vm1261, %v1162, 0.0
          %v1294 = vsel %vm1262, %v1163, 0.0
          %v1295 = vsel %vm1263, %v1164, 0.0
          %v1296 = vsel %vm1264, %v1165, 0.0
          %1297 = vst [vmem:[%s407] sm:$0xff] %v1265
          %1298 = vst [vmem:[%s407 + $0x8] sm:$0xff] %v1266
          %1299 = vst [vmem:[%s407 + $0x10] sm:$0xff] %v1267
          %1300 = vst [vmem:[%s407 + $0x18] sm:$0xff] %v1268
          %1301 = vst [vmem:[%s407 + $0x20] sm:$0xff] %v1269
          %1302 = vst [vmem:[%s407 + $0x28] sm:$0xff] %v1270
          %1303 = vst [vmem:[%s407 + $0x30] sm:$0xff] %v1271
          %1304 = vst [vmem:[%s407 + $0x38] sm:$0xff] %v1272
          %1305 = vst [vmem:[%s407 + $0x40] sm:$0xff] %v1273
          %1306 = vst [vmem:[%s407 + $0x48] sm:$0xff] %v1274
          %1307 = vst [vmem:[%s407 + $0x50] sm:$0xff] %v1275
          %1308 = vst [vmem:[%s407 + $0x58] sm:$0xff] %v1276
          %1309 = vst [vmem:[%s407 + $0x60] sm:$0xff] %v1277
          %1310 = vst [vmem:[%s407 + $0x68] sm:$0xff] %v1278
          %1311 = vst [vmem:[%s407 + $0x70] sm:$0xff] %v1279
          %1312 = vst [vmem:[%s407 + $0x78] sm:$0xff] %v1280
          %1313 = vst [vmem:[%s407 + $0x80] sm:$0xff] %v1281
          %1314 = vst [vmem:[%s407 + $0x88] sm:$0xff] %v1282
          %1315 = vst [vmem:[%s407 + $0x90] sm:$0xff] %v1283
          %1316 = vst [vmem:[%s407 + $0x98] sm:$0xff] %v1284
          %1317 = vst [vmem:[%s407 + $0xa0] sm:$0xff] %v1285
          %1318 = vst [vmem:[%s407 + $0xa8] sm:$0xff] %v1286
          %1319 = vst [vmem:[%s407 + $0xb0] sm:$0xff] %v1287
          %1320 = vst [vmem:[%s407 + $0xb8] sm:$0xff] %v1288
          %1321 = vst [vmem:[%s407 + $0xc0] sm:$0xff] %v1289
          %1322 = vst [vmem:[%s407 + $0xc8] sm:$0xff] %v1290
          %1323 = vst [vmem:[%s407 + $0xd0] sm:$0xff] %v1291
          %1324 = vst [vmem:[%s407 + $0xd8] sm:$0xff] %v1292
          %1325 = vst [vmem:[%s407 + $0xe0] sm:$0xff] %v1293
          %1326 = vst [vmem:[%s407 + $0xe8] sm:$0xff] %v1294
          %1327 = vst [vmem:[%s407 + $0xf0] sm:$0xff] %v1295
          %1328 = vst [vmem:[%s407 + $0xf8] sm:$0xff] %v1296
          %v1329 = vadd.f32 %v1265, %v1266
          %v1330 = vadd.f32 %v1329, %v1267
          %v1331 = vadd.f32 %v1330, %v1268
          %v1332 = vadd.f32 %v1331, %v1269
          %v1333 = vadd.f32 %v1332, %v1270
          %v1334 = vadd.f32 %v1333, %v1271
          %v1335 = vadd.f32 %v1334, %v1272
          %v1336 = vadd.f32 %v1335, %v1273
          %v1337 = vadd.f32 %v1336, %v1274
          %v1338 = vadd.f32 %v1337, %v1275
          %v1339 = vadd.f32 %v1338, %v1276
          %v1340 = vadd.f32 %v1339, %v1277
          %v1341 = vadd.f32 %v1340, %v1278
          %v1342 = vadd.f32 %v1341, %v1279
          %v1343 = vadd.f32 %v1342, %v1280
          %v1344 = vadd.f32 %v1343, %v1281
          %v1345 = vadd.f32 %v1344, %v1282
          %v1346 = vadd.f32 %v1345, %v1283
          %v1347 = vadd.f32 %v1346, %v1284
          %v1348 = vadd.f32 %v1347, %v1285
          %v1349 = vadd.f32 %v1348, %v1286
          %v1350 = vadd.f32 %v1349, %v1287
          %v1351 = vadd.f32 %v1350, %v1288
          %v1352 = vadd.f32 %v1351, %v1289
          %v1353 = vadd.f32 %v1352, %v1290
          %v1354 = vadd.f32 %v1353, %v1291
          %v1355 = vadd.f32 %v1354, %v1292
          %v1356 = vadd.f32 %v1355, %v1293
          %v1357 = vadd.f32 %v1356, %v1294
          %v1358 = vadd.f32 %v1357, %v1295
          %v1359 = vadd.f32 %v1358, %v1296
          %v1360 = vrot.slane %v1359, 4
          %v1361 = vadd.f32 %v1359, %v1360
          %v1362 = vrot.slane %v1361, 2
          %v1363 = vadd.f32 %v1361, %v1362
          %v1364 = vrot.slane %v1363, 1
          %v1365 = vadd.f32 %v1363, %v1364
          %1366 = vst [vmem:[%s412] sm:$0x1] %v1365
          %v1367 = vmul.f32 %v1265, %v1265
          %v1368 = vmul.f32 %v1266, %v1266
          %v1369 = vmul.f32 %v1267, %v1267
          %v1370 = vmul.f32 %v1268, %v1268
          %v1371 = vmul.f32 %v1269, %v1269
          %v1372 = vmul.f32 %v1270, %v1270
          %v1373 = vmul.f32 %v1271, %v1271
          %v1374 = vmul.f32 %v1272, %v1272
          %v1375 = vmul.f32 %v1273, %v1273
          %v1376 = vmul.f32 %v1274, %v1274
          %v1377 = vmul.f32 %v1275, %v1275
          %v1378 = vmul.f32 %v1276, %v1276
          %v1379 = vmul.f32 %v1277, %v1277
          %v1380 = vmul.f32 %v1278, %v1278
          %v1381 = vmul.f32 %v1279, %v1279
          %v1382 = vmul.f32 %v1280, %v1280
          %v1383 = vmul.f32 %v1281, %v1281
          %v1384 = vmul.f32 %v1282, %v1282
          %v1385 = vmul.f32 %v1283, %v1283
          %v1386 = vmul.f32 %v1284, %v1284
          %v1387 = vmul.f32 %v1285, %v1285
          %v1388 = vmul.f32 %v1286, %v1286
          %v1389 = vmul.f32 %v1287, %v1287
          %v1390 = vmul.f32 %v1288, %v1288
          %v1391 = vmul.f32 %v1289, %v1289
          %v1392 = vmul.f32 %v1290, %v1290
          %v1393 = vmul.f32 %v1291, %v1291
          %v1394 = vmul.f32 %v1292, %v1292
          %v1395 = vmul.f32 %v1293, %v1293
          %v1396 = vmul.f32 %v1294, %v1294
          %v1397 = vmul.f32 %v1295, %v1295
          %v1398 = vmul.f32 %v1296, %v1296
          %v1399 = vadd.f32 %v1367, %v1368
          %v1400 = vadd.f32 %v1399, %v1369
          %v1401 = vadd.f32 %v1400, %v1370
          %v1402 = vadd.f32 %v1401, %v1371
          %v1403 = vadd.f32 %v1402, %v1372
          %v1404 = vadd.f32 %v1403, %v1373
          %v1405 = vadd.f32 %v1404, %v1374
          %v1406 = vadd.f32 %v1405, %v1375
          %v1407 = vadd.f32 %v1406, %v1376
          %v1408 = vadd.f32 %v1407, %v1377
          %v1409 = vadd.f32 %v1408, %v1378
          %v1410 = vadd.f32 %v1409, %v1379
          %v1411 = vadd.f32 %v1410, %v1380
          %v1412 = vadd.f32 %v1411, %v1381
          %v1413 = vadd.f32 %v1412, %v1382
          %v1414 = vadd.f32 %v1413, %v1383
          %v1415 = vadd.f32 %v1414, %v1384
          %v1416 = vadd.f32 %v1415, %v1385
          %v1417 = vadd.f32 %v1416, %v1386
          %v1418 = vadd.f32 %v1417, %v1387
          %v1419 = vadd.f32 %v1418, %v1388
          %v1420 = vadd.f32 %v1419, %v1389
          %v1421 = vadd.f32 %v1420, %v1390
          %v1422 = vadd.f32 %v1421, %v1391
          %v1423 = vadd.f32 %v1422, %v1392
          %v1424 = vadd.f32 %v1423, %v1393
          %v1425 = vadd.f32 %v1424, %v1394
          %v1426 = vadd.f32 %v1425, %v1395
          %v1427 = vadd.f32 %v1426, %v1396
          %v1428 = vadd.f32 %v1427, %v1397
          %v1429 = vadd.f32 %v1428, %v1398
          %v1430 = vrot.slane %v1429, 4
          %v1431 = vadd.f32 %v1429, %v1430
          %v1432 = vrot.slane %v1431, 2
          %v1433 = vadd.f32 %v1431, %v1432
          %v1434 = vrot.slane %v1433, 1
          %v1435 = vadd.f32 %v1433, %v1434
          %1436 = vst [vmem:[%s412 + $0x1] sm:$0x1] %v1435
          %v1437 = vld [vmem:[%s401] sm:$0xff]
          %v1438 = vld [vmem:[%s401 + $0x8] sm:$0xff]
          %1439 = vmatpush.msra.mxu0 %v1280
          %1440 = vmatpush.msra.mxu0 %v1279
          %1441 = vmatpush.msra.mxu0 %v1278
          %1442 = vmatpush.msra.mxu0 %v1277
          %1443 = vmatpush.msra.mxu0 %v1276
          %1444 = vmatpush.msra.mxu0 %v1275
          %1445 = vmatpush.msra.mxu0 %v1274
          %1446 = vmatpush.msra.mxu0 %v1273
          %1447 = vmatpush.msra.mxu0 %v1272
          %1448 = vmatpush.msra.mxu0 %v1271
          %1449 = vmatpush.msra.mxu0 %v1270
          %1450 = vmatpush.msra.mxu0 %v1269
          %1451 = vmatpush.msra.mxu0 %v1268
          %1452 = vmatpush.msra.mxu0 %v1267
          %1453 = vmatpush.msra.mxu0 %v1266
          %1454 = vmatpush.msra.mxu0 %v1265
          %1455 = vmatmul.f32.gmra.mxu0 %v1437
          %v1456 = vpop.f32.mrf.mxu0
          %v1457 = vadd.f32 0.0, %v1456
          %1458 = vdwg.mxu0
          %1459 = vmatpush.msra.mxu0 %v1296
          %1460 = vmatpush.msra.mxu0 %v1295
          %1461 = vmatpush.msra.mxu0 %v1294
          %1462 = vmatpush.msra.mxu0 %v1293
          %1463 = vmatpush.msra.mxu0 %v1292
          %1464 = vmatpush.msra.mxu0 %v1291
          %1465 = vmatpush.msra.mxu0 %v1290
          %1466 = vmatpush.msra.mxu0 %v1289
          %1467 = vmatpush.msra.mxu0 %v1288
          %1468 = vmatpush.msra.mxu0 %v1287
          %1469 = vmatpush.msra.mxu0 %v1286
          %1470 = vmatpush.msra.mxu0 %v1285
          %1471 = vmatpush.msra.mxu0 %v1284
          %1472 = vmatpush.msra.mxu0 %v1283
          %1473 = vmatpush.msra.mxu0 %v1282
          %1474 = vmatpush.msra.mxu0 %v1281
          %1475 = vmatmul.f32.gmra.mxu0 %v1438
          %v1476 = vpop.f32.mrf.mxu0
          %v1477 = vadd.f32 %v1457, %v1476
          %1478 = vdwg.mxu0
          %1479 = vst [vmem:[%s388] sm:$0xff] %v1477
        $region56: #{fwd.7} parent=43 // pred_fallthru
          _
        %s1480 = smul.u32 32, %s30
        %p1481 = scmp.lt.s32.totalorder %s1480, 63
        %s1482 = scalar_select %p1481, %s1480, 63
        %s1483 = smul.addr %s1482, 8
        %s1484 = scalar_lea.vmem %s6, %s1483
        %p1485 = scmp.lt.s32.totalorder %s30, 1
        %s1486 = scalar_select %p1485, %s30, 1
        %s1487 = smul.addr %s1486, 2
        %s1488 = scalar_lea.vmem %s7, %s1487
        %s1489 = sand.u32 %s241, 1
        %s1490 = scalar_lea.sflag [#allocation5], %s1489
        %s1491 = sand.u32 %s241, 1
        %s1492 = smul.addr %s1491, 8
        %s1493 = scalar_lea.vmem [#allocation6], %s1492
        // Predicated region
        $region57: #{fwd.7} parent=43 // pred_check
          %p1494 = pneg %p199
        $region58: #{fwd.7} parent=43 // pred_check_branch
          %1496 = sbr.rel (%p1494) target = $region60
        $region59: #{fwd.7} parent=43 // pred_region
          %s1497 = smul.u32 32, %s30
        $region60: #{fwd.7} parent=43 // pred_fallthru
          _
        // Predicated region
        $region61: #{fwd.7} parent=43 // pred_check
          %p1498 = pneg %p225
        $region62: #{fwd.7} parent=43 // pred_check_branch
          %1500 = sbr.rel (%p1498) target = $region64
        $region63: #{fwd.7} parent=43 // pred_region
          _
        $region64: #{fwd.7} parent=43 // pred_fallthru
          _
        // Predicated region
        $region65: #{fwd.7} parent=43 // pred_check
          %p1501 = pneg %p251
        $region66: #{fwd.7} parent=43 // pred_check_branch
          %1503 = sbr.rel (%p1501) target = $region68
        $region67: #{fwd.7} parent=43 // pred_region
          %1505 = vsyncadd %s1490, 0
          %s1506 = smul.addr %s30, 8
          %s1507 = scalar_lea.hbm %s8, %s1506
          %s1509 = sshll.u32 %s1493, 4
          %s1510 = int_to_ptr.vmem [resolvable:$true] %s1509
          %s1511 = sshll.u32 %s1507, 4
          %s1512 = int_to_ptr.hbm [resolvable:$true] %s1511
          %1514 = dma.vmem_to_hbm [thread:$0]  %s1510, 128, %s1512, %s1490
        $region68: #{fwd.7} parent=43 // pred_fallthru
          _
      $region44: #{fwd.7} parent=5 // pred_fallthru
        _
      %p1515 = scmp.le.s32.totalorder 2, %s21
      // Predicated region
      $region69: #{fwd.7} parent=5 // pred_check
        %p1516 = pneg %p1515
      $region70: #{fwd.7} parent=5 // pred_check_branch
        %1518 = sbr.rel (%p1516) target = $region72
      $region71: #{fwd.7} parent=5 // pred_region
        %s1519 = ssub.s32 %s21, 2
        // Predicated region
        $region73: #{fwd.7} parent=71 // pred_check
          %p1520 = pneg %p205
        $region74: #{fwd.7} parent=71 // pred_check_branch
          %1522 = sbr.rel (%p1520) target = $region76
        $region75: #{fwd.7} parent=71 // pred_region
          %s1523 = smul.u32 32, %s32
          %p1524 = scmp.lt.s32.totalorder %s1523, 63
          %s1525 = scalar_select %p1524, %s1523, 63
          %s1526 = smul.addr %s1525, 8
          %s1527 = scalar_lea.vmem %s6, %s1526
        $region76: #{fwd.7} parent=71 // pred_fallthru
          _
        // Predicated region
        $region77: #{fwd.7} parent=71 // pred_check
          %p1528 = pneg %p231
        $region78: #{fwd.7} parent=71 // pred_check_branch
          %1530 = sbr.rel (%p1528) target = $region80
        $region79: #{fwd.7} parent=71 // pred_region
          %p1531 = scmp.lt.s32.totalorder %s32, 1
          %s1532 = scalar_select %p1531, %s32, 1
          %s1533 = smul.addr %s1532, 2
          %s1534 = scalar_lea.vmem %s7, %s1533
        $region80: #{fwd.7} parent=71 // pred_fallthru
          _
        // Predicated region
        $region81: #{fwd.7} parent=71 // pred_check
          %p1535 = pneg %p257
        $region82: #{fwd.7} parent=71 // pred_check_branch
          %1537 = sbr.rel (%p1535) target = $region84
        $region83: #{fwd.7} parent=71 // pred_region
          %s1538 = sand.u32 %s242, 1
          %s1539 = scalar_lea.sflag [#allocation5], %s1538
          %s1540 = sand.u32 %s242, 1
          %s1541 = smul.addr %s1540, 8
          %s1542 = scalar_lea.vmem [#allocation6], %s1541
          %1544 = dma.done %s1539, 128
        $region84: #{fwd.7} parent=71 // pred_fallthru
          _
      $region72: #{fwd.7} parent=5 // pred_fallthru
        _
    $region6: #{fwd.7} parent=1 // loop_footer
      %s25 = sadd.s32 1, %s21
    $region7: #{fwd.7} parent=1 // loop_footer_branch
      %20 = sbr.rel target = $region3
    $region8: #{fwd.7} parent=1 // loop_exit
      _
    %1545 = vsyncpa [#allocation4], 1
    %s1546 = scalar_lea.sflag [#allocation4], 1
    %1547 = vsyncpa %s1546, 1
    %1548 = vsyncpa [#allocation5], 1
    %s1549 = scalar_lea.sflag [#allocation5], 1
    %1550 = vsyncpa %s1549, 1

// kernel: fwd.8
$region0: #{fwd.8}
  #allocation0 [shape = 'u32[]', space=smem, size = 0x4, offset = 0x4, fixed_abs, tag = 'smem constant byte address 0x4 - core index']
  #allocation1 [shape = 'u32[72,128]{1,0:T(1,128)}', space=vmem, size = 0x9000, scoped, tag = 'internal scratch']
  #allocation2 [shape = 'f32[256,128]{1,0:T(8,128)}', space=vmem, size = 0x20000, scoped, tag = 'scratch operand']
  %s0 = inlined_call_operand.vmem [shape: f32[2,2,128], index: 0, kind: input, shape index: {}]
  %s1 = inlined_call_operand.vmem [shape: f32[512,128], index: 1, kind: input, shape index: {}]
  %s2 = inlined_call_operand.vmem [shape: f32[512,512], index: 2, kind: input, shape index: {}]
  %s3 = inlined_call_operand.vmem [shape: f32[8,128], index: 3, kind: input, shape index: {}]
  %s4 = inlined_call_operand.vmem [shape: f32[128,128], index: 4, kind: input, shape index: {}]
  %s5 = inlined_call_operand.vmem [shape: f32[8,512], index: 5, kind: input, shape index: {}]
  %s6 = inlined_call_operand.vmem [shape: f32[512,128], index: 6, kind: output, shape index: {0}]
  %s7 = inlined_call_operand.vmem [shape: f32[2,2,128], index: 7, kind: output, shape index: {1}]
  %s8 = inlined_call_operand.hbm [shape: f32[2,8,128], index: 8, kind: output, shape index: {2}]
  %9 = xla_tuple %s6, %s7, %s8
  %s10 = sld [smem:[#allocation0]]
  $region104: #{fwd.8} parent=0
    _
  %s12 = ssub.s32 1, %s10
  %s13 = scalar_select 0, %s12, %s10
  $region1: #{fwd.8} parent=0
    #allocation3 [shape = 'u8[524288]{0}', space=vmem, size = 0x80000, scoped, tag = 'input window, operand 2']
    #allocation4 [shape = 'u8[8192]{0}', space=vmem, size = 0x2000, scoped, tag = 'output window, operand 2']
    #allocation5 [shape = 's32[2]{0}', space=sflag, size = 0x8, scoped, tag = 'scoped memory for fwd.8']
    %14 = vsyncpa [#allocation5], 0
    %s15 = scalar_lea.sflag [#allocation5], 1
    %16 = vsyncpa %s15, 0
    loop: start=0, step=1, limit=6
    $region2: #{fwd.8} parent=1 // loop_pre_header
      _
    $region3: #{fwd.8} parent=1 // loop_header
      %s18 = sphi 0, %s22
      %p19 = scmp.ge.s32.totalorder %s18, 6
      %s25 = sphi 0, %s37
      %s26 = sphi 0, %s33
      %s27 = sphi 0, %s25
      %s28 = sphi 0, %s26
      %s29 = sphi 0, %s27
      %s30 = sphi 0, %s28
      %s38 = sphi 0, %s38
      %s40 = sphi 0, %s38
      %s41 = sphi 0, %s40
      %s55 = sphi 0, %s41
      %s61 = sphi 0, %s63
      %s64 = sphi 0, %s61
      %s65 = sphi 0, %s64
      %s81 = sphi 0, %s65
      %s89 = sphi 0, %s91
      %s92 = sphi 0, %s89
      %s93 = sphi 0, %s92
      %s109 = sphi 0, %s93
      %s113 = sphi 0, %s113
      %s115 = sphi 0, %s113
      %s116 = sphi 0, %s115
      %s130 = sphi 0, %s116
      %s134 = sphi 0, %s134
      %s136 = sphi 0, %s134
      %s137 = sphi 0, %s136
      %s151 = sphi 0, %s137
      %s157 = sphi 0, %s159
      %s160 = sphi 0, %s157
      %s161 = sphi 0, %s160
      %s177 = sphi 0, %s161
      %s183 = sphi 0, %s185
      %s186 = sphi 0, %s183
      %s187 = sphi 0, %s186
      %s203 = sphi 0, %s187
      %s209 = sphi 0, %s211
      %s212 = sphi 0, %s209
      %s213 = sphi 0, %s212
      %s229 = sphi 0, %s213
      %s235 = sphi 0, %s237
      %s238 = sphi 0, %s235
      %s239 = sphi 0, %s238
      %s255 = sphi 0, %s239
    $region4: #{fwd.8} parent=1 // loop_header_branch
      %21 = sbr.rel (%p19) target = $region8
    $region5: #{fwd.8} parent=1 // loop_body
      %s23 = ssub.s32 %s18, 1
      %s24 = ssub.s32 %s18, 2
      %s31 = sadd.s32 1, %s26
      %p32 = scmp.ge.s32.totalorder %s31, 2
      %s33 = scalar_select %p32, 0, %s31
      %s34 = sadd.s32 1, %s25
      %s35 = scalar_select %p32, %s34, %s25
      %p36 = scmp.ge.s32.totalorder %s35, 2
      %s37 = scalar_select %p36, 0, %s35
      %s39 = sadd.s32 %s38, 1
      %p42 = scmp.eq.s32.totalorder %s18, 3
      %p43 = scmp.ne.s32.totalorder %s38, %s40
      %p44 = scmp.eq.s32.totalorder %s18, 0
      %p45 = por %p43, %p44
      %p46 = scmp.ne.s32.totalorder %s38, %s40
      %p47 = scmp.eq.s32.totalorder %s23, 3
      %p48 = por %p46, %p47
      %p49 = scmp.ne.s32.totalorder %s40, %s41
      %p50 = scmp.eq.s32.totalorder %s23, 0
      %p51 = por %p49, %p50
      %p52 = scmp.ne.s32.totalorder %s40, %s41
      %p53 = scmp.eq.s32.totalorder %s24, 3
      %p54 = por %p52, %p53
      %p56 = scmp.ne.s32.totalorder %s41, %s55
      %p57 = scmp.eq.s32.totalorder %s24, 0
      %p58 = por %p56, %p57
      %s59 = ssub.s32 %s26, %s33
      %p60 = scmp.eq.s32.totalorder %s59, 0
      %s62 = sadd.s32 %s61, 1
      %s63 = scalar_select %p60, %s61, %s62
      %p66 = pneg %p60
      %p67 = scmp.eq.s32.totalorder %s18, 3
      %p68 = por %p66, %p67
      %p69 = scmp.ne.s32.totalorder %s61, %s64
      %p70 = scmp.eq.s32.totalorder %s18, 0
      %p71 = por %p69, %p70
      %p72 = scmp.ne.s32.totalorder %s61, %s64
      %p73 = scmp.eq.s32.totalorder %s23, 3
      %p74 = por %p72, %p73
      %p75 = scmp.ne.s32.totalorder %s64, %s65
      %p76 = scmp.eq.s32.totalorder %s23, 0
      %p77 = por %p75, %p76
      %p78 = scmp.ne.s32.totalorder %s64, %s65
      %p79 = scmp.eq.s32.totalorder %s24, 3
      %p80 = por %p78, %p79
      %p82 = scmp.ne.s32.totalorder %s65, %s81
      %p83 = scmp.eq.s32.totalorder %s24, 0
      %p84 = por %p82, %p83
      %s85 = ssub.s32 %s25, %s37
      %s86 = ssub.s32 %s26, %s33
      %s87 = sor.u32 %s85, %s86
      %p88 = scmp.eq.s32.totalorder %s87, 0
      %s90 = sadd.s32 %s89, 1
      %s91 = scalar_select %p88, %s89, %s90
      %p94 = pneg %p88
      %p95 = scmp.eq.s32.totalorder %s18, 3
      %p96 = por %p94, %p95
      %p97 = scmp.ne.s32.totalorder %s89, %s92
      %p98 = scmp.eq.s32.totalorder %s18, 0
      %p99 = por %p97, %p98
      %p100 = scmp.ne.s32.totalorder %s89, %s92
      %p101 = scmp.eq.s32.totalorder %s23, 3
      %p102 = por %p100, %p101
      %p103 = scmp.ne.s32.totalorder %s92, %s93
      %p104 = scmp.eq.s32.totalorder %s23, 0
      %p105 = por %p103, %p104
      %p106 = scmp.ne.s32.totalorder %s92, %s93
      %p107 = scmp.eq.s32.totalorder %s24, 3
      %p108 = por %p106, %p107
      %p110 = scmp.ne.s32.totalorder %s93, %s109
      %p111 = scmp.eq.s32.totalorder %s24, 0
      %p112 = por %p110, %p111
      %s114 = sadd.s32 %s113, 1
      %p117 = scmp.eq.s32.totalorder %s18, 3
      %p118 = scmp.ne.s32.totalorder %s113, %s115
      %p119 = scmp.eq.s32.totalorder %s18, 0
      %p120 = por %p118, %p119
      %p121 = scmp.ne.s32.totalorder %s113, %s115
      %p122 = scmp.eq.s32.totalorder %s23, 3
      %p123 = por %p121, %p122
      %p124 = scmp.ne.s32.totalorder %s115, %s116
      %p125 = scmp.eq.s32.totalorder %s23, 0
      %p126 = por %p124, %p125
      %p127 = scmp.ne.s32.totalorder %s115, %s116
      %p128 = scmp.eq.s32.totalorder %s24, 3
      %p129 = por %p127, %p128
      %p131 = scmp.ne.s32.totalorder %s116, %s130
      %p132 = scmp.eq.s32.totalorder %s24, 0
      %p133 = por %p131, %p132
      %s135 = sadd.s32 %s134, 1
      %p138 = scmp.eq.s32.totalorder %s18, 3
      %p139 = scmp.ne.s32.totalorder %s134, %s136
      %p140 = scmp.eq.s32.totalorder %s18, 0
      %p141 = por %p139, %p140
      %p142 = scmp.ne.s32.totalorder %s134, %s136
      %p143 = scmp.eq.s32.totalorder %s23, 3
      %p144 = por %p142, %p143
      %p145 = scmp.ne.s32.totalorder %s136, %s137
      %p146 = scmp.eq.s32.totalorder %s23, 0
      %p147 = por %p145, %p146
      %p148 = scmp.ne.s32.totalorder %s136, %s137
      %p149 = scmp.eq.s32.totalorder %s24, 3
      %p150 = por %p148, %p149
      %p152 = scmp.ne.s32.totalorder %s137, %s151
      %p153 = scmp.eq.s32.totalorder %s24, 0
      %p154 = por %p152, %p153
      %s155 = ssub.s32 %s25, %s37
      %p156 = scmp.eq.s32.totalorder %s155, 0
      %s158 = sadd.s32 %s157, 1
      %s159 = scalar_select %p156, %s157, %s158
      %p162 = pneg %p156
      %p163 = scmp.eq.s32.totalorder %s18, 3
      %p164 = por %p162, %p163
      %p165 = scmp.ne.s32.totalorder %s157, %s160
      %p166 = scmp.eq.s32.totalorder %s18, 0
      %p167 = por %p165, %p166
      %p168 = scmp.ne.s32.totalorder %s157, %s160
      %p169 = scmp.eq.s32.totalorder %s23, 3
      %p170 = por %p168, %p169
      %p171 = scmp.ne.s32.totalorder %s160, %s161
      %p172 = scmp.eq.s32.totalorder %s23, 0
      %p173 = por %p171, %p172
      %p174 = scmp.ne.s32.totalorder %s160, %s161
      %p175 = scmp.eq.s32.totalorder %s24, 3
      %p176 = por %p174, %p175
      %p178 = scmp.ne.s32.totalorder %s161, %s177
      %p179 = scmp.eq.s32.totalorder %s24, 0
      %p180 = por %p178, %p179
      %s181 = ssub.s32 %s25, %s37
      %p182 = scmp.eq.s32.totalorder %s181, 0
      %s184 = sadd.s32 %s183, 1
      %s185 = scalar_select %p182, %s183, %s184
      %p188 = pneg %p182
      %p189 = scmp.eq.s32.totalorder %s18, 3
      %p190 = por %p188, %p189
      %p191 = scmp.ne.s32.totalorder %s183, %s186
      %p192 = scmp.eq.s32.totalorder %s18, 0
      %p193 = por %p191, %p192
      %p194 = scmp.ne.s32.totalorder %s183, %s186
      %p195 = scmp.eq.s32.totalorder %s23, 3
      %p196 = por %p194, %p195
      %p197 = scmp.ne.s32.totalorder %s186, %s187
      %p198 = scmp.eq.s32.totalorder %s23, 0
      %p199 = por %p197, %p198
      %p200 = scmp.ne.s32.totalorder %s186, %s187
      %p201 = scmp.eq.s32.totalorder %s24, 3
      %p202 = por %p200, %p201
      %p204 = scmp.ne.s32.totalorder %s187, %s203
      %p205 = scmp.eq.s32.totalorder %s24, 0
      %p206 = por %p204, %p205
      %s207 = ssub.s32 %s25, %s37
      %p208 = scmp.eq.s32.totalorder %s207, 0
      %s210 = sadd.s32 %s209, 1
      %s211 = scalar_select %p208, %s209, %s210
      %p214 = pneg %p208
      %p215 = scmp.eq.s32.totalorder %s18, 3
      %p216 = por %p214, %p215
      %p217 = scmp.ne.s32.totalorder %s209, %s212
      %p218 = scmp.eq.s32.totalorder %s18, 0
      %p219 = por %p217, %p218
      %p220 = scmp.ne.s32.totalorder %s209, %s212
      %p221 = scmp.eq.s32.totalorder %s23, 3
      %p222 = por %p220, %p221
      %p223 = scmp.ne.s32.totalorder %s212, %s213
      %p224 = scmp.eq.s32.totalorder %s23, 0
      %p225 = por %p223, %p224
      %p226 = scmp.ne.s32.totalorder %s212, %s213
      %p227 = scmp.eq.s32.totalorder %s24, 3
      %p228 = por %p226, %p227
      %p230 = scmp.ne.s32.totalorder %s213, %s229
      %p231 = scmp.eq.s32.totalorder %s24, 0
      %p232 = por %p230, %p231
      %s233 = ssub.s32 %s25, %s37
      %p234 = scmp.eq.s32.totalorder %s233, 0
      %s236 = sadd.s32 %s235, 1
      %s237 = scalar_select %p234, %s235, %s236
      %p240 = pneg %p234
      %p241 = scmp.eq.s32.totalorder %s18, 3
      %p242 = por %p240, %p241
      %p243 = scmp.ne.s32.totalorder %s235, %s238
      %p244 = scmp.eq.s32.totalorder %s18, 0
      %p245 = por %p243, %p244
      %p246 = scmp.ne.s32.totalorder %s235, %s238
      %p247 = scmp.eq.s32.totalorder %s23, 3
      %p248 = por %p246, %p247
      %p249 = scmp.ne.s32.totalorder %s238, %s239
      %p250 = scmp.eq.s32.totalorder %s23, 0
      %p251 = por %p249, %p250
      %p252 = scmp.ne.s32.totalorder %s238, %s239
      %p253 = scmp.eq.s32.totalorder %s24, 3
      %p254 = por %p252, %p253
      %p256 = scmp.ne.s32.totalorder %s239, %s255
      %p257 = scmp.eq.s32.totalorder %s24, 0
      %p258 = por %p256, %p257
      %p259 = scmp.le.s32.totalorder 1, %s18
      %p260 = scmp.lt.s32.totalorder %s18, 5
      %p261 = pnand %p259, %p260
      %p262 = pneg %p261
      // Predicated region
      $region9: #{fwd.8} parent=5 // pred_check
        _
      $region10: #{fwd.8} parent=5 // pred_check_branch
        %264 = sbr.rel (%p261) target = $region12
      $region11: #{fwd.8} parent=5 // pred_region
        %s265 = ssub.s32 %s18, 1
        // Predicated region
        $region13: #{fwd.8} parent=11 // pred_check
          %p266 = pneg %p51
        $region14: #{fwd.8} parent=11 // pred_check_branch
          %268 = sbr.rel (%p266) target = $region16
        $region15: #{fwd.8} parent=11 // pred_region
          _
        $region16: #{fwd.8} parent=11 // pred_fallthru
          _
        // Predicated region
        $region17: #{fwd.8} parent=11 // pred_check
          %p269 = pneg %p126
        $region18: #{fwd.8} parent=11 // pred_check_branch
          %271 = sbr.rel (%p269) target = $region20
        $region19: #{fwd.8} parent=11 // pred_region
          _
        $region20: #{fwd.8} parent=11 // pred_fallthru
          _
        // Predicated region
        $region21: #{fwd.8} parent=11 // pred_check
          %p272 = pneg %p147
        $region22: #{fwd.8} parent=11 // pred_check_branch
          %274 = sbr.rel (%p272) target = $region24
        $region23: #{fwd.8} parent=11 // pred_region
          _
        $region24: #{fwd.8} parent=11 // pred_fallthru
          _
      $region12: #{fwd.8} parent=5 // pred_fallthru
        _
      %p275 = scmp.lt.s32.totalorder %s18, 4
      // Predicated region
      $region25: #{fwd.8} parent=5 // pred_check
        %p276 = pneg %p275
      $region26: #{fwd.8} parent=5 // pred_check_branch
        %278 = sbr.rel (%p276) target = $region28
      $region27: #{fwd.8} parent=5 // pred_region
        // Predicated region
        $region29: #{fwd.8} parent=27 // pred_check
          %p279 = pneg %p71
        $region30: #{fwd.8} parent=27 // pred_check_branch
          %281 = sbr.rel (%p279) target = $region32
        $region31: #{fwd.8} parent=27 // pred_region
          %s282 = smul.u32 32, %s26
          %p283 = scmp.lt.s32.totalorder %s282, 63
          %s284 = scalar_select %p283, %s282, 63
          %s285 = smul.addr %s284, 8
          %s286 = scalar_lea.vmem %s1, %s285
          %s287 = smul.u32 32, %s26
        $region32: #{fwd.8} parent=27 // pred_fallthru
          _
        // Predicated region
        $region33: #{fwd.8} parent=27 // pred_check
          %p288 = pneg %p99
        $region34: #{fwd.8} parent=27 // pred_check_branch
          %290 = sbr.rel (%p288) target = $region36
        $region35: #{fwd.8} parent=27 // pred_region
          %s291 = sand.u32 %s89, 1
          %s292 = sand.u32 %s89, 1
          %s293 = smul.addr %s292, 512
          %s294 = scalar_lea.vmem [#allocation3], %s293
          %s295 = smul.u32 32, %s25
          %s296 = smul.u32 2, %s26
          %s297 = smul.addr %s295, 4
          %s298 = sadd.s32 %s296, %s297
          %s299 = smul.addr %s298, 8
          %s300 = scalar_lea.vmem %s2, %s299
          // Predicated region
          $region37: #{fwd.8} parent=35 // pred_check
            _
          $region38: #{fwd.8} parent=35 // pred_check_branch
            %302 = sbr.rel (0) target = $region40
          $region39: #{fwd.8} parent=35 // pred_region
            // Predicated region
            $region41: #{fwd.8} parent=39 // pred_check
              _
            $region42: #{fwd.8} parent=39 // pred_check_branch
              %304 = sbr.rel (0) target = $region44
            $region43: #{fwd.8} parent=39 // pred_region
              loop: start=0, step=1, limit=1
              $region45: #{fwd.8} parent=43 // loop_pre_header
                _
              $region46: #{fwd.8} parent=43 // loop_header
                %s306 = sphi 0, %s310
                %p307 = scmp.ge.s32.totalorder %s306, 1
                %s311 = sphi %s300, %s300
                %s312 = sphi %s294, %s294
              $region47: #{fwd.8} parent=43 // loop_header_branch
                %309 = sbr.rel (%p307) target = $region51
              $region48: #{fwd.8} parent=43 // loop_body
                %v313 = vld [vmem:[%s311] sm:$0xff]
                %314 = vst [vmem:[%s312] sm:$0xff] %v313
                %v315 = vld [vmem:[%s311 + $0x8] sm:$0xff]
                %316 = vst [vmem:[%s312 + $0x8] sm:$0xff] %v315
                %v317 = vld [vmem:[%s311 + $0x20] sm:$0xff]
                %318 = vst [vmem:[%s312 + $0x10] sm:$0xff] %v317
                %v319 = vld [vmem:[%s311 + $0x28] sm:$0xff]
                %320 = vst [vmem:[%s312 + $0x18] sm:$0xff] %v319
                %v321 = vld [vmem:[%s311 + $0x40] sm:$0xff]
                %322 = vst [vmem:[%s312 + $0x20] sm:$0xff] %v321
                %v323 = vld [vmem:[%s311 + $0x48] sm:$0xff]
                %324 = vst [vmem:[%s312 + $0x28] sm:$0xff] %v323
                %v325 = vld [vmem:[%s311 + $0x60] sm:$0xff]
                %326 = vst [vmem:[%s312 + $0x30] sm:$0xff] %v325
                %v327 = vld [vmem:[%s311 + $0x68] sm:$0xff]
                %328 = vst [vmem:[%s312 + $0x38] sm:$0xff] %v327
                %v329 = vld [vmem:[%s311 + $0x80] sm:$0xff]
                %330 = vst [vmem:[%s312 + $0x40] sm:$0xff] %v329
                %v331 = vld [vmem:[%s311 + $0x88] sm:$0xff]
                %332 = vst [vmem:[%s312 + $0x48] sm:$0xff] %v331
                %v333 = vld [vmem:[%s311 + $0xa0] sm:$0xff]
                %334 = vst [vmem:[%s312 + $0x50] sm:$0xff] %v333
                %v335 = vld [vmem:[%s311 + $0xa8] sm:$0xff]
                %336 = vst [vmem:[%s312 + $0x58] sm:$0xff] %v335
                %v337 = vld [vmem:[%s311 + $0xc0] sm:$0xff]
                %338 = vst [vmem:[%s312 + $0x60] sm:$0xff] %v337
                %v339 = vld [vmem:[%s311 + $0xc8] sm:$0xff]
                %340 = vst [vmem:[%s312 + $0x68] sm:$0xff] %v339
                %v341 = vld [vmem:[%s311 + $0xe0] sm:$0xff]
                %342 = vst [vmem:[%s312 + $0x70] sm:$0xff] %v341
                %v343 = vld [vmem:[%s311 + $0xe8] sm:$0xff]
                %344 = vst [vmem:[%s312 + $0x78] sm:$0xff] %v343
                %v345 = vld [vmem:[%s311 + $0x100] sm:$0xff]
                %346 = vst [vmem:[%s312 + $0x80] sm:$0xff] %v345
                %v347 = vld [vmem:[%s311 + $0x108] sm:$0xff]
                %348 = vst [vmem:[%s312 + $0x88] sm:$0xff] %v347
                %v349 = vld [vmem:[%s311 + $0x120] sm:$0xff]
                %350 = vst [vmem:[%s312 + $0x90] sm:$0xff] %v349
                %v351 = vld [vmem:[%s311 + $0x128] sm:$0xff]
                %352 = vst [vmem:[%s312 + $0x98] sm:$0xff] %v351
                %v353 = vld [vmem:[%s311 + $0x140] sm:$0xff]
                %354 = vst [vmem:[%s312 + $0xa0] sm:$0xff] %v353
                %v355 = vld [vmem:[%s311 + $0x148] sm:$0xff]
                %356 = vst [vmem:[%s312 + $0xa8] sm:$0xff] %v355
                %v357 = vld [vmem:[%s311 + $0x160] sm:$0xff]
                %358 = vst [vmem:[%s312 + $0xb0] sm:$0xff] %v357
                %v359 = vld [vmem:[%s311 + $0x168] sm:$0xff]
                %360 = vst [vmem:[%s312 + $0xb8] sm:$0xff] %v359
                %v361 = vld [vmem:[%s311 + $0x180] sm:$0xff]
                %362 = vst [vmem:[%s312 + $0xc0] sm:$0xff] %v361
                %v363 = vld [vmem:[%s311 + $0x188] sm:$0xff]
                %364 = vst [vmem:[%s312 + $0xc8] sm:$0xff] %v363
                %v365 = vld [vmem:[%s311 + $0x1a0] sm:$0xff]
                %366 = vst [vmem:[%s312 + $0xd0] sm:$0xff] %v365
                %v367 = vld [vmem:[%s311 + $0x1a8] sm:$0xff]
                %368 = vst [vmem:[%s312 + $0xd8] sm:$0xff] %v367
                %v369 = vld [vmem:[%s311 + $0x1c0] sm:$0xff]
                %370 = vst [vmem:[%s312 + $0xe0] sm:$0xff] %v369
                %v371 = vld [vmem:[%s311 + $0x1c8] sm:$0xff]
                %372 = vst [vmem:[%s312 + $0xe8] sm:$0xff] %v371
                %v373 = vld [vmem:[%s311 + $0x1e0] sm:$0xff]
                %374 = vst [vmem:[%s312 + $0xf0] sm:$0xff] %v373
                %v375 = vld [vmem:[%s311 + $0x1e8] sm:$0xff]
                %376 = vst [vmem:[%s312 + $0xf8] sm:$0xff] %v375
                %v377 = vld [vmem:[%s311 + $0x200] sm:$0xff]
                %378 = vst [vmem:[%s312 + $0x100] sm:$0xff] %v377
                %v379 = vld [vmem:[%s311 + $0x208] sm:$0xff]
                %380 = vst [vmem:[%s312 + $0x108] sm:$0xff] %v379
                %v381 = vld [vmem:[%s311 + $0x220] sm:$0xff]
                %382 = vst [vmem:[%s312 + $0x110] sm:$0xff] %v381
                %v383 = vld [vmem:[%s311 + $0x228] sm:$0xff]
                %384 = vst [vmem:[%s312 + $0x118] sm:$0xff] %v383
                %v385 = vld [vmem:[%s311 + $0x240] sm:$0xff]
                %386 = vst [vmem:[%s312 + $0x120] sm:$0xff] %v385
                %v387 = vld [vmem:[%s311 + $0x248] sm:$0xff]
                %388 = vst [vmem:[%s312 + $0x128] sm:$0xff] %v387
                %v389 = vld [vmem:[%s311 + $0x260] sm:$0xff]
                %390 = vst [vmem:[%s312 + $0x130] sm:$0xff] %v389
                %v391 = vld [vmem:[%s311 + $0x268] sm:$0xff]
                %392 = vst [vmem:[%s312 + $0x138] sm:$0xff] %v391
                %v393 = vld [vmem:[%s311 + $0x280] sm:$0xff]
                %394 = vst [vmem:[%s312 + $0x140] sm:$0xff] %v393
                %v395 = vld [vmem:[%s311 + $0x288] sm:$0xff]
                %396 = vst [vmem:[%s312 + $0x148] sm:$0xff] %v395
                %v397 = vld [vmem:[%s311 + $0x2a0] sm:$0xff]
                %398 = vst [vmem:[%s312 + $0x150] sm:$0xff] %v397
                %v399 = vld [vmem:[%s311 + $0x2a8] sm:$0xff]
                %400 = vst [vmem:[%s312 + $0x158] sm:$0xff] %v399
                %v401 = vld [vmem:[%s311 + $0x2c0] sm:$0xff]
                %402 = vst [vmem:[%s312 + $0x160] sm:$0xff] %v401
                %v403 = vld [vmem:[%s311 + $0x2c8] sm:$0xff]
                %404 = vst [vmem:[%s312 + $0x168] sm:$0xff] %v403
                %v405 = vld [vmem:[%s311 + $0x2e0] sm:$0xff]
                %406 = vst [vmem:[%s312 + $0x170] sm:$0xff] %v405
                %v407 = vld [vmem:[%s311 + $0x2e8] sm:$0xff]
                %408 = vst [vmem:[%s312 + $0x178] sm:$0xff] %v407
                %v409 = vld [vmem:[%s311 + $0x300] sm:$0xff]
                %410 = vst [vmem:[%s312 + $0x180] sm:$0xff] %v409
                %v411 = vld [vmem:[%s311 + $0x308] sm:$0xff]
                %412 = vst [vmem:[%s312 + $0x188] sm:$0xff] %v411
                %v413 = vld [vmem:[%s311 + $0x320] sm:$0xff]
                %414 = vst [vmem:[%s312 + $0x190] sm:$0xff] %v413
                %v415 = vld [vmem:[%s311 + $0x328] sm:$0xff]
                %416 = vst [vmem:[%s312 + $0x198] sm:$0xff] %v415
                %v417 = vld [vmem:[%s311 + $0x340] sm:$0xff]
                %418 = vst [vmem:[%s312 + $0x1a0] sm:$0xff] %v417
                %v419 = vld [vmem:[%s311 + $0x348] sm:$0xff]
                %420 = vst [vmem:[%s312 + $0x1a8] sm:$0xff] %v419
                %v421 = vld [vmem:[%s311 + $0x360] sm:$0xff]
                %422 = vst [vmem:[%s312 + $0x1b0] sm:$0xff] %v421
                %v423 = vld [vmem:[%s311 + $0x368] sm:$0xff]
                %424 = vst [vmem:[%s312 + $0x1b8] sm:$0xff] %v423
                %v425 = vld [vmem:[%s311 + $0x380] sm:$0xff]
                %426 = vst [vmem:[%s312 + $0x1c0] sm:$0xff] %v425
                %v427 = vld [vmem:[%s311 + $0x388] sm:$0xff]
                %428 = vst [vmem:[%s312 + $0x1c8] sm:$0xff] %v427
                %v429 = vld [vmem:[%s311 + $0x3a0] sm:$0xff]
                %430 = vst [vmem:[%s312 + $0x1d0] sm:$0xff] %v429
                %v431 = vld [vmem:[%s311 + $0x3a8] sm:$0xff]
                %432 = vst [vmem:[%s312 + $0x1d8] sm:$0xff] %v431
                %v433 = vld [vmem:[%s311 + $0x3c0] sm:$0xff]
                %434 = vst [vmem:[%s312 + $0x1e0] sm:$0xff] %v433
                %v435 = vld [vmem:[%s311 + $0x3c8] sm:$0xff]
                %436 = vst [vmem:[%s312 + $0x1e8] sm:$0xff] %v435
                %v437 = vld [vmem:[%s311 + $0x3e0] sm:$0xff]
                %438 = vst [vmem:[%s312 + $0x1f0] sm:$0xff] %v437
                %v439 = vld [vmem:[%s311 + $0x3e8] sm:$0xff]
                %440 = vst [vmem:[%s312 + $0x1f8] sm:$0xff] %v439
              $region49: #{fwd.8} parent=43 // loop_footer
                %s310 = sadd.s32 1, %s306
              $region50: #{fwd.8} parent=43 // loop_footer_branch
                %305 = sbr.rel target = $region46
              $region51: #{fwd.8} parent=43 // loop_exit
                _
            $region44: #{fwd.8} parent=39 // pred_fallthru
              _
            // Predicated region
            $region52: #{fwd.8} parent=39 // pred_check
              _
            $region53: #{fwd.8} parent=39 // pred_check_branch
              %442 = sbr.rel target = $region55
            $region54: #{fwd.8} parent=39 // pred_region
              _
            $region55: #{fwd.8} parent=39 // pred_fallthru
              _
          $region40: #{fwd.8} parent=35 // pred_fallthru
            _
          %443 = vnop
        $region36: #{fwd.8} parent=27 // pred_fallthru
          _
        // Predicated region
        $region56: #{fwd.8} parent=27 // pred_check
          %p444 = pneg %p167
        $region57: #{fwd.8} parent=27 // pred_check_branch
          %446 = sbr.rel (%p444) target = $region59
        $region58: #{fwd.8} parent=27 // pred_region
          %s447 = smul.u32 2, %s25
          %p448 = scmp.lt.s32.totalorder %s447, 3
          %s449 = scalar_select %p448, %s447, 3
          %s450 = smul.addr %s449, 8
          %s451 = scalar_lea.vmem %s5, %s450
          %s452 = smul.u32 2, %s25
        $region59: #{fwd.8} parent=27 // pred_fallthru
          _
      $region28: #{fwd.8} parent=5 // pred_fallthru
        _
      %p453 = scmp.le.s32.totalorder 1, %s18
      %p454 = scmp.lt.s32.totalorder %s18, 5
      %p455 = pnand %p453, %p454
      %p456 = pneg %p455
      // Predicated region
      $region60: #{fwd.8} parent=5 // pred_check
        _
      $region61: #{fwd.8} parent=5 // pred_check_branch
        %458 = sbr.rel (%p455) target = $region63
      $region62: #{fwd.8} parent=5 // pred_region
        %s459 = ssub.s32 %s18, 1
        %s460 = sand.u32 %s92, 1
        %s461 = sand.u32 %s92, 1
        %s462 = smul.addr %s461, 512
        %s463 = scalar_lea.vmem [#allocation3], %s462
        // Predicated region
        $region64: #{fwd.8} parent=62 // pred_check
          %p464 = pneg %p105
        $region65: #{fwd.8} parent=62 // pred_check_branch
          %466 = sbr.rel (%p464) target = $region67
        $region66: #{fwd.8} parent=62 // pred_region
          _
        $region67: #{fwd.8} parent=62 // pred_fallthru
          _
        %p467 = pneg %p51
        %p468 = pneg %p48
        %s469 = smul.u32 32, %s28
        %p470 = scmp.lt.s32.totalorder %s469, 63
        %s471 = scalar_select %p470, %s469, 63
        %s472 = smul.addr %s471, 8
        %s473 = scalar_lea.vmem %s1, %s472
        %p474 = pneg %p77
        %p475 = pneg %p74
        %s476 = sand.u32 %s92, 1
        %s477 = sand.u32 %s92, 1
        %s478 = smul.addr %s477, 512
        %s479 = scalar_lea.vmem [#allocation3], %s478
        %p480 = pneg %p105
        %p481 = pneg %p102
        %p482 = pneg %p126
        %p483 = pneg %p123
        %p484 = pneg %p147
        %p485 = pneg %p144
        %s486 = smul.u32 2, %s27
        %p487 = scmp.lt.s32.totalorder %s486, 3
        %s488 = scalar_select %p487, %s486, 3
        %s489 = smul.addr %s488, 8
        %s490 = scalar_lea.vmem %s5, %s489
        %p491 = pneg %p173
        %p492 = pneg %p170
        %p493 = pneg %p199
        %p494 = pneg %p196
        %s495 = smul.u32 32, %s27
        %p496 = scmp.lt.s32.totalorder %s495, 63
        %s497 = scalar_select %p496, %s495, 63
        %s498 = smul.addr %s497, 8
        %s499 = scalar_lea.vmem %s6, %s498
        %p500 = pneg %p225
        %p501 = pneg %p222
        %p502 = scmp.lt.s32.totalorder %s27, 1
        %s503 = scalar_select %p502, %s27, 1
        %s504 = smul.addr %s503, 2
        %s505 = scalar_lea.vmem %s7, %s504
        %p506 = pneg %p251
        %p507 = pneg %p248
        %s508 = sand.u32 %s238, 1
        %s509 = scalar_lea.sflag [#allocation5], %s508
        %s510 = sand.u32 %s238, 1
        %s511 = smul.addr %s510, 8
        %s512 = scalar_lea.vmem [#allocation4], %s511
        %s513 = smul.u32 32, %s28
        %p514 = scmp.lt.s32.totalorder %s513, 63
        %s515 = scalar_select %p514, %s513, 63
        %s516 = smul.addr %s515, 8
        %s517 = scalar_lea.vmem %s1, %s516
        %s518 = smul.u32 32, %s28
        %s519 = smul.u32 32, %s27
        %s520 = smul.u32 2, %s28
        %s521 = smul.u32 2, %s27
        %p522 = scmp.lt.s32.totalorder %s521, 3
        %s523 = scalar_select %p522, %s521, 3
        %s524 = smul.addr %s523, 8
        %s525 = scalar_lea.vmem %s5, %s524
        %s526 = smul.u32 2, %s27
        %s527 = smul.u32 32, %s27
        %p528 = scmp.lt.s32.totalorder %s527, 63
        %s529 = scalar_select %p528, %s527, 63
        %s530 = smul.addr %s529, 8
        %s531 = scalar_lea.vmem %s6, %s530
        %s532 = smul.u32 32, %s27
        %p533 = scmp.lt.s32.totalorder %s27, 1
        %s534 = scalar_select %p533, %s27, 1
        %s535 = smul.addr %s534, 2
        %s536 = scalar_lea.vmem %s7, %s535
        %p537 = scmp.eq.s32.totalorder %s28, 0
        // Predicated region
        $region68: #{fwd.8} parent=62 // pred_check
          %p538 = pneg %p537
        $region69: #{fwd.8} parent=62 // pred_check_branch
          %540 = sbr.rel (%p538) target = $region71
        $region70: #{fwd.8} parent=62 // pred_region
          %541 = vst [vmem:[#allocation2] sm:$0xff] 0.0
          %542 = vst [vmem:[#allocation2 + $0x8] sm:$0xff] 0.0
          %543 = vst [vmem:[#allocation2 + $0x10] sm:$0xff] 0.0
          %544 = vst [vmem:[#allocation2 + $0x18] sm:$0xff] 0.0
          %545 = vst [vmem:[#allocation2 + $0x20] sm:$0xff] 0.0
          %546 = vst [vmem:[#allocation2 + $0x28] sm:$0xff] 0.0
          %547 = vst [vmem:[#allocation2 + $0x30] sm:$0xff] 0.0
          %548 = vst [vmem:[#allocation2 + $0x38] sm:$0xff] 0.0
          %549 = vst [vmem:[#allocation2 + $0x40] sm:$0xff] 0.0
          %550 = vst [vmem:[#allocation2 + $0x48] sm:$0xff] 0.0
          %551 = vst [vmem:[#allocation2 + $0x50] sm:$0xff] 0.0
          %552 = vst [vmem:[#allocation2 + $0x58] sm:$0xff] 0.0
          %553 = vst [vmem:[#allocation2 + $0x60] sm:$0xff] 0.0
          %554 = vst [vmem:[#allocation2 + $0x68] sm:$0xff] 0.0
          %555 = vst [vmem:[#allocation2 + $0x70] sm:$0xff] 0.0
          %556 = vst [vmem:[#allocation2 + $0x78] sm:$0xff] 0.0
          %557 = vst [vmem:[#allocation2 + $0x80] sm:$0xff] 0.0
          %558 = vst [vmem:[#allocation2 + $0x88] sm:$0xff] 0.0
          %559 = vst [vmem:[#allocation2 + $0x90] sm:$0xff] 0.0
          %560 = vst [vmem:[#allocation2 + $0x98] sm:$0xff] 0.0
          %561 = vst [vmem:[#allocation2 + $0xa0] sm:$0xff] 0.0
          %562 = vst [vmem:[#allocation2 + $0xa8] sm:$0xff] 0.0
          %563 = vst [vmem:[#allocation2 + $0xb0] sm:$0xff] 0.0
          %564 = vst [vmem:[#allocation2 + $0xb8] sm:$0xff] 0.0
          %565 = vst [vmem:[#allocation2 + $0xc0] sm:$0xff] 0.0
          %566 = vst [vmem:[#allocation2 + $0xc8] sm:$0xff] 0.0
          %567 = vst [vmem:[#allocation2 + $0xd0] sm:$0xff] 0.0
          %568 = vst [vmem:[#allocation2 + $0xd8] sm:$0xff] 0.0
          %569 = vst [vmem:[#allocation2 + $0xe0] sm:$0xff] 0.0
          %570 = vst [vmem:[#allocation2 + $0xe8] sm:$0xff] 0.0
          %571 = vst [vmem:[#allocation2 + $0xf0] sm:$0xff] 0.0
          %572 = vst [vmem:[#allocation2 + $0xf8] sm:$0xff] 0.0
        $region71: #{fwd.8} parent=62 // pred_fallthru
          _
        %v573 = vld [vmem:[%s0] sm:$0x3]
        %v574 = vld [vmem:[%s0 + $0x2] sm:$0x3]
        %vm575 = vcmask 1041408
        %v576 = vsel %vm575, %v573, 0.0
        %v577 = vsel %vm575, %v574, 0.0
        %v578 = vadd.f32 %v576, %v577
        %v579 = vmul.f32 %v578, 0.002
        %v580 = vmul.f32 %v579, %v579
        %v582 = vrot.slane %v580, 7
        %v584 = vsub.f32 %v579, %v582
        %v585 = vadd.f32 %v584, 1e-05
        %v586 = vrsqrt.pop %v585
        %v587 = vmul.f32 %v586, %v585
        %v588 = vmul.f32 %v587, %v586
        %v589 = vmul.f32 0.5, %v588
        %v590 = vsub.f32 1.5, %v589
        %v591 = vmul.f32 %v586, %v590
        %vm592 = vweird.f32 %v585
        %vm593 = vweird.f32 %v586
        %vm594 = vmor %vm592, %vm593
        %v595 = vsel %vm594, %v586, %v591
        %v596 = vld [vmem:[%s3] sm:$0x1]
        %v598 = vrot.slane %v596, 7
        %v600 = vmul.f32 %v595, %v598
        %v601 = vld [vmem:[%s3 + $0x1] sm:$0x1]
        %v603 = vrot.slane %v600, 1
        %v605 = vmul.f32 %v579, %v603
        %v606 = vsub.f32 %v601, %v605
        %v607 = vld [vmem:[%s517] sm:$0xff]
        %v608 = vld [vmem:[%s517 + $0x8] sm:$0xff]
        %v609 = vld [vmem:[%s517 + $0x10] sm:$0xff]
        %v610 = vld [vmem:[%s517 + $0x18] sm:$0xff]
        %v611 = vld [vmem:[%s517 + $0x20] sm:$0xff]
        %v612 = vld [vmem:[%s517 + $0x28] sm:$0xff]
        %v613 = vld [vmem:[%s517 + $0x30] sm:$0xff]
        %v614 = vld [vmem:[%s517 + $0x38] sm:$0xff]
        %v615 = vld [vmem:[%s517 + $0x40] sm:$0xff]
        %v616 = vld [vmem:[%s517 + $0x48] sm:$0xff]
        %v617 = vld [vmem:[%s517 + $0x50] sm:$0xff]
        %v618 = vld [vmem:[%s517 + $0x58] sm:$0xff]
        %v619 = vld [vmem:[%s517 + $0x60] sm:$0xff]
        %v620 = vld [vmem:[%s517 + $0x68] sm:$0xff]
        %v621 = vld [vmem:[%s517 + $0x70] sm:$0xff]
        %v622 = vld [vmem:[%s517 + $0x78] sm:$0xff]
        %v623 = vld [vmem:[%s517 + $0x80] sm:$0xff]
        %v624 = vld [vmem:[%s517 + $0x88] sm:$0xff]
        %v625 = vld [vmem:[%s517 + $0x90] sm:$0xff]
        %v626 = vld [vmem:[%s517 + $0x98] sm:$0xff]
        %v627 = vld [vmem:[%s517 + $0xa0] sm:$0xff]
        %v628 = vld [vmem:[%s517 + $0xa8] sm:$0xff]
        %v629 = vld [vmem:[%s517 + $0xb0] sm:$0xff]
        %v630 = vld [vmem:[%s517 + $0xb8] sm:$0xff]
        %v631 = vld [vmem:[%s517 + $0xc0] sm:$0xff]
        %v632 = vld [vmem:[%s517 + $0xc8] sm:$0xff]
        %v633 = vld [vmem:[%s517 + $0xd0] sm:$0xff]
        %v634 = vld [vmem:[%s517 + $0xd8] sm:$0xff]
        %v635 = vld [vmem:[%s517 + $0xe0] sm:$0xff]
        %v636 = vld [vmem:[%s517 + $0xe8] sm:$0xff]
        %v637 = vld [vmem:[%s517 + $0xf0] sm:$0xff]
        %v638 = vld [vmem:[%s517 + $0xf8] sm:$0xff]
        %v639 = vperm.slane %v600, 1
        %v640 = vmul.f32 %v607, %v639
        %v641 = vmul.f32 %v608, %v639
        %v642 = vmul.f32 %v609, %v639
        %v643 = vmul.f32 %v610, %v639
        %v644 = vmul.f32 %v611, %v639
        %v645 = vmul.f32 %v612, %v639
        %v646 = vmul.f32 %v613, %v639
        %v647 = vmul.f32 %v614, %v639
        %v648 = vmul.f32 %v615, %v639
        %v649 = vmul.f32 %v616, %v639
        %v650 = vmul.f32 %v617, %v639
        %v651 = vmul.f32 %v618, %v639
        %v652 = vmul.f32 %v619, %v639
        %v653 = vmul.f32 %v620, %v639
        %v654 = vmul.f32 %v621, %v639
        %v655 = vmul.f32 %v622, %v639
        %v656 = vmul.f32 %v623, %v639
        %v657 = vmul.f32 %v624, %v639
        %v658 = vmul.f32 %v625, %v639
        %v659 = vmul.f32 %v626, %v639
        %v660 = vmul.f32 %v627, %v639
        %v661 = vmul.f32 %v628, %v639
        %v662 = vmul.f32 %v629, %v639
        %v663 = vmul.f32 %v630, %v639
        %v664 = vmul.f32 %v631, %v639
        %v665 = vmul.f32 %v632, %v639
        %v666 = vmul.f32 %v633, %v639
        %v667 = vmul.f32 %v634, %v639
        %v668 = vmul.f32 %v635, %v639
        %v669 = vmul.f32 %v636, %v639
        %v670 = vmul.f32 %v637, %v639
        %v671 = vmul.f32 %v638, %v639
        %v672 = vperm.slane %v606, 0
        %v673 = vadd.f32 %v640, %v672
        %v674 = vadd.f32 %v641, %v672
        %v675 = vadd.f32 %v642, %v672
        %v676 = vadd.f32 %v643, %v672
        %v677 = vadd.f32 %v644, %v672
        %v678 = vadd.f32 %v645, %v672
        %v679 = vadd.f32 %v646, %v672
        %v680 = vadd.f32 %v647, %v672
        %v681 = vadd.f32 %v648, %v672
        %v682 = vadd.f32 %v649, %v672
        %v683 = vadd.f32 %v650, %v672
        %v684 = vadd.f32 %v651, %v672
        %v685 = vadd.f32 %v652, %v672
        %v686 = vadd.f32 %v653, %v672
        %v687 = vadd.f32 %v654, %v672
        %v688 = vadd.f32 %v655, %v672
        %v689 = vadd.f32 %v656, %v672
        %v690 = vadd.f32 %v657, %v672
        %v691 = vadd.f32 %v658, %v672
        %v692 = vadd.f32 %v659, %v672
        %v693 = vadd.f32 %v660, %v672
        %v694 = vadd.f32 %v661, %v672
        %v695 = vadd.f32 %v662, %v672
        %v696 = vadd.f32 %v663, %v672
        %v697 = vadd.f32 %v664, %v672
        %v698 = vadd.f32 %v665, %v672
        %v699 = vadd.f32 %v666, %v672
        %v700 = vadd.f32 %v667, %v672
        %v701 = vadd.f32 %v668, %v672
        %v702 = vadd.f32 %v669, %v672
        %v703 = vadd.f32 %v670, %v672
        %v704 = vadd.f32 %v671, %v672
        %v705 = vld [vmem:[#allocation2] sm:$0xff]
        %v706 = vld [vmem:[#allocation2 + $0x8] sm:$0xff]
        %v707 = vld [vmem:[#allocation2 + $0x10] sm:$0xff]
        %v708 = vld [vmem:[#allocation2 + $0x18] sm:$0xff]
        %v709 = vld [vmem:[#allocation2 + $0x20] sm:$0xff]
        %v710 = vld [vmem:[#allocation2 + $0x28] sm:$0xff]
        %v711 = vld [vmem:[#allocation2 + $0x30] sm:$0xff]
        %v712 = vld [vmem:[#allocation2 + $0x38] sm:$0xff]
        %v713 = vld [vmem:[#allocation2 + $0x40] sm:$0xff]
        %v714 = vld [vmem:[#allocation2 + $0x48] sm:$0xff]
        %v715 = vld [vmem:[#allocation2 + $0x50] sm:$0xff]
        %v716 = vld [vmem:[#allocation2 + $0x58] sm:$0xff]
        %v717 = vld [vmem:[#allocation2 + $0x60] sm:$0xff]
        %v718 = vld [vmem:[#allocation2 + $0x68] sm:$0xff]
        %v719 = vld [vmem:[#allocation2 + $0x70] sm:$0xff]
        %v720 = vld [vmem:[#allocation2 + $0x78] sm:$0xff]
        %v721 = vld [vmem:[#allocation2 + $0x80] sm:$0xff]
        %v722 = vld [vmem:[#allocation2 + $0x88] sm:$0xff]
        %v723 = vld [vmem:[#allocation2 + $0x90] sm:$0xff]
        %v724 = vld [vmem:[#allocation2 + $0x98] sm:$0xff]
        %v725 = vld [vmem:[#allocation2 + $0xa0] sm:$0xff]
        %v726 = vld [vmem:[#allocation2 + $0xa8] sm:$0xff]
        %v727 = vld [vmem:[#allocation2 + $0xb0] sm:$0xff]
        %v728 = vld [vmem:[#allocation2 + $0xb8] sm:$0xff]
        %v729 = vld [vmem:[#allocation2 + $0xc0] sm:$0xff]
        %v730 = vld [vmem:[#allocation2 + $0xc8] sm:$0xff]
        %v731 = vld [vmem:[#allocation2 + $0xd0] sm:$0xff]
        %v732 = vld [vmem:[#allocation2 + $0xd8] sm:$0xff]
        %v733 = vld [vmem:[#allocation2 + $0xe0] sm:$0xff]
        %v734 = vld [vmem:[#allocation2 + $0xe8] sm:$0xff]
        %v735 = vld [vmem:[#allocation2 + $0xf0] sm:$0xff]
        %v736 = vld [vmem:[#allocation2 + $0xf8] sm:$0xff]
        %v737 = vld [vmem:[%s463] sm:$0xff]
        %v738 = vld [vmem:[%s463 + $0x8] sm:$0xff]
        %v739 = vld [vmem:[%s463 + $0x10] sm:$0xff]
        %v740 = vld [vmem:[%s463 + $0x18] sm:$0xff]
        %v741 = vld [vmem:[%s463 + $0x20] sm:$0xff]
        %v742 = vld [vmem:[%s463 + $0x28] sm:$0xff]
        %v743 = vld [vmem:[%s463 + $0x30] sm:$0xff]
        %v744 = vld [vmem:[%s463 + $0x38] sm:$0xff]
        %v745 = vld [vmem:[%s463 + $0x40] sm:$0xff]
        %v746 = vld [vmem:[%s463 + $0x48] sm:$0xff]
        %v747 = vld [vmem:[%s463 + $0x50] sm:$0xff]
        %v748 = vld [vmem:[%s463 + $0x58] sm:$0xff]
        %v749 = vld [vmem:[%s463 + $0x60] sm:$0xff]
        %v750 = vld [vmem:[%s463 + $0x68] sm:$0xff]
        %v751 = vld [vmem:[%s463 + $0x70] sm:$0xff]
        %v752 = vld [vmem:[%s463 + $0x78] sm:$0xff]
        %v753 = vld [vmem:[%s463 + $0x80] sm:$0xff]
        %v754 = vld [vmem:[%s463 + $0x88] sm:$0xff]
        %v755 = vld [vmem:[%s463 + $0x90] sm:$0xff]
        %v756 = vld [vmem:[%s463 + $0x98] sm:$0xff]
        %v757 = vld [vmem:[%s463 + $0xa0] sm:$0xff]
        %v758 = vld [vmem:[%s463 + $0xa8] sm:$0xff]
        %v759 = vld [vmem:[%s463 + $0xb0] sm:$0xff]
        %v760 = vld [vmem:[%s463 + $0xb8] sm:$0xff]
        %v761 = vld [vmem:[%s463 + $0xc0] sm:$0xff]
        %v762 = vld [vmem:[%s463 + $0xc8] sm:$0xff]
        %v763 = vld [vmem:[%s463 + $0xd0] sm:$0xff]
        %v764 = vld [vmem:[%s463 + $0xd8] sm:$0xff]
        %v765 = vld [vmem:[%s463 + $0xe0] sm:$0xff]
        %v766 = vld [vmem:[%s463 + $0xe8] sm:$0xff]
        %v767 = vld [vmem:[%s463 + $0xf0] sm:$0xff]
        %v768 = vld [vmem:[%s463 + $0xf8] sm:$0xff]
        %v769 = vld [vmem:[%s463 + $0x100] sm:$0xff]
        %v770 = vld [vmem:[%s463 + $0x108] sm:$0xff]
        %v771 = vld [vmem:[%s463 + $0x110] sm:$0xff]
        %v772 = vld [vmem:[%s463 + $0x118] sm:$0xff]
        %v773 = vld [vmem:[%s463 + $0x120] sm:$0xff]
        %v774 = vld [vmem:[%s463 + $0x128] sm:$0xff]
        %v775 = vld [vmem:[%s463 + $0x130] sm:$0xff]
        %v776 = vld [vmem:[%s463 + $0x138] sm:$0xff]
        %v777 = vld [vmem:[%s463 + $0x140] sm:$0xff]
        %v778 = vld [vmem:[%s463 + $0x148] sm:$0xff]
        %v779 = vld [vmem:[%s463 + $0x150] sm:$0xff]
        %v780 = vld [vmem:[%s463 + $0x158] sm:$0xff]
        %v781 = vld [vmem:[%s463 + $0x160] sm:$0xff]
        %v782 = vld [vmem:[%s463 + $0x168] sm:$0xff]
        %v783 = vld [vmem:[%s463 + $0x170] sm:$0xff]
        %v784 = vld [vmem:[%s463 + $0x178] sm:$0xff]
        %v785 = vld [vmem:[%s463 + $0x180] sm:$0xff]
        %v786 = vld [vmem:[%s463 + $0x188] sm:$0xff]
        %v787 = vld [vmem:[%s463 + $0x190] sm:$0xff]
        %v788 = vld [vmem:[%s463 + $0x198] sm:$0xff]
        %v789 = vld [vmem:[%s463 + $0x1a0] sm:$0xff]
        %v790 = vld [vmem:[%s463 + $0x1a8] sm:$0xff]
        %v791 = vld [vmem:[%s463 + $0x1b0] sm:$0xff]
        %v792 = vld [vmem:[%s463 + $0x1b8] sm:$0xff]
        %v793 = vld [vmem:[%s463 + $0x1c0] sm:$0xff]
        %v794 = vld [vmem:[%s463 + $0x1c8] sm:$0xff]
        %v795 = vld [vmem:[%s463 + $0x1d0] sm:$0xff]
        %v796 = vld [vmem:[%s463 + $0x1d8] sm:$0xff]
        %v797 = vld [vmem:[%s463 + $0x1e0] sm:$0xff]
        %v798 = vld [vmem:[%s463 + $0x1e8] sm:$0xff]
        %v799 = vld [vmem:[%s463 + $0x1f0] sm:$0xff]
        %v800 = vld [vmem:[%s463 + $0x1f8] sm:$0xff]
        %801 = vmatpush.msra.mxu0 %v688
        %802 = vmatpush.msra.mxu0 %v687
        %803 = vmatpush.msra.mxu0 %v686
        %804 = vmatpush.msra.mxu0 %v685
        %805 = vmatpush.msra.mxu0 %v684
        %806 = vmatpush.msra.mxu0 %v683
        %807 = vmatpush.msra.mxu0 %v682
        %808 = vmatpush.msra.mxu0 %v681
        %809 = vmatpush.msra.mxu0 %v680
        %810 = vmatpush.msra.mxu0 %v679
        %811 = vmatpush.msra.mxu0 %v678
        %812 = vmatpush.msra.mxu0 %v677
        %813 = vmatpush.msra.mxu0 %v676
        %814 = vmatpush.msra.mxu0 %v675
        %815 = vmatpush.msra.mxu0 %v674
        %816 = vmatpush.msra.mxu0 %v673
        %817 = vmatmul.f32.gmra.mxu0 %v737
        %v818 = vpop.f32.mrf.mxu0
        %v819 = vadd.f32 0.0, %v818
        %820 = vmatmul.f32.gmra.mxu0 %v739
        %v821 = vpop.f32.mrf.mxu0
        %v822 = vadd.f32 0.0, %v821
        %823 = vmatmul.f32.gmra.mxu0 %v741
        %v824 = vpop.f32.mrf.mxu0
        %v825 = vadd.f32 0.0, %v824
        %826 = vmatmul.f32.gmra.mxu0 %v743
        %v827 = vpop.f32.mrf.mxu0
        %v828 = vadd.f32 0.0, %v827
        %829 = vmatmul.f32.gmra.mxu0 %v745
        %v830 = vpop.f32.mrf.mxu0
        %v831 = vadd.f32 0.0, %v830
        %832 = vmatmul.f32.gmra.mxu0 %v747
        %v833 = vpop.f32.mrf.mxu0
        %v834 = vadd.f32 0.0, %v833
        %835 = vmatmul.f32.gmra.mxu0 %v749
        %v836 = vpop.f32.mrf.mxu0
        %v837 = vadd.f32 0.0, %v836
        %838 = vmatmul.f32.gmra.mxu0 %v751
        %v839 = vpop.f32.mrf.mxu0
        %v840 = vadd.f32 0.0, %v839
        %841 = vmatmul.f32.gmra.mxu0 %v753
        %v842 = vpop.f32.mrf.mxu0
        %v843 = vadd.f32 0.0, %v842
        %844 = vmatmul.f32.gmra.mxu0 %v755
        %v845 = vpop.f32.mrf.mxu0
        %v846 = vadd.f32 0.0, %v845
        %847 = vmatmul.f32.gmra.mxu0 %v757
        %v848 = vpop.f32.mrf.mxu0
        %v849 = vadd.f32 0.0, %v848
        %850 = vmatmul.f32.gmra.mxu0 %v759
        %v851 = vpop.f32.mrf.mxu0
        %v852 = vadd.f32 0.0, %v851
        %853 = vmatmul.f32.gmra.mxu0 %v761
        %v854 = vpop.f32.mrf.mxu0
        %v855 = vadd.f32 0.0, %v854
        %856 = vmatmul.f32.gmra.mxu0 %v763
        %v857 = vpop.f32.mrf.mxu0
        %v858 = vadd.f32 0.0, %v857
        %859 = vmatmul.f32.gmra.mxu0 %v765
        %v860 = vpop.f32.mrf.mxu0
        %v861 = vadd.f32 0.0, %v860
        %862 = vmatmul.f32.gmra.mxu0 %v767
        %v863 = vpop.f32.mrf.mxu0
        %v864 = vadd.f32 0.0, %v863
        %865 = vmatmul.f32.gmra.mxu0 %v769
        %v866 = vpop.f32.mrf.mxu0
        %v867 = vadd.f32 0.0, %v866
        %868 = vmatmul.f32.gmra.mxu0 %v771
        %v869 = vpop.f32.mrf.mxu0
        %v870 = vadd.f32 0.0, %v869
        %871 = vmatmul.f32.gmra.mxu0 %v773
        %v872 = vpop.f32.mrf.mxu0
        %v873 = vadd.f32 0.0, %v872
        %874 = vmatmul.f32.gmra.mxu0 %v775
        %v875 = vpop.f32.mrf.mxu0
        %v876 = vadd.f32 0.0, %v875
        %877 = vmatmul.f32.gmra.mxu0 %v777
        %v878 = vpop.f32.mrf.mxu0
        %v879 = vadd.f32 0.0, %v878
        %880 = vmatmul.f32.gmra.mxu0 %v779
        %v881 = vpop.f32.mrf.mxu0
        %v882 = vadd.f32 0.0, %v881
        %883 = vmatmul.f32.gmra.mxu0 %v781
        %v884 = vpop.f32.mrf.mxu0
        %v885 = vadd.f32 0.0, %v884
        %886 = vmatmul.f32.gmra.mxu0 %v783
        %v887 = vpop.f32.mrf.mxu0
        %v888 = vadd.f32 0.0, %v887
        %889 = vmatmul.f32.gmra.mxu0 %v785
        %v890 = vpop.f32.mrf.mxu0
        %v891 = vadd.f32 0.0, %v890
        %892 = vmatmul.f32.gmra.mxu0 %v787
        %v893 = vpop.f32.mrf.mxu0
        %v894 = vadd.f32 0.0, %v893
        %895 = vmatmul.f32.gmra.mxu0 %v789
        %v896 = vpop.f32.mrf.mxu0
        %v897 = vadd.f32 0.0, %v896
        %898 = vmatmul.f32.gmra.mxu0 %v791
        %v899 = vpop.f32.mrf.mxu0
        %v900 = vadd.f32 0.0, %v899
        %901 = vmatmul.f32.gmra.mxu0 %v793
        %v902 = vpop.f32.mrf.mxu0
        %v903 = vadd.f32 0.0, %v902
        %904 = vmatmul.f32.gmra.mxu0 %v795
        %v905 = vpop.f32.mrf.mxu0
        %v906 = vadd.f32 0.0, %v905
        %907 = vmatmul.f32.gmra.mxu0 %v797
        %v908 = vpop.f32.mrf.mxu0
        %v909 = vadd.f32 0.0, %v908
        %910 = vmatmul.f32.gmra.mxu0 %v799
        %v911 = vpop.f32.mrf.mxu0
        %v912 = vadd.f32 0.0, %v911
        %913 = vdwg.mxu0
        %914 = vmatpush.msra.mxu0 %v704
        %915 = vmatpush.msra.mxu0 %v703
        %916 = vmatpush.msra.mxu0 %v702
        %917 = vmatpush.msra.mxu0 %v701
        %918 = vmatpush.msra.mxu0 %v700
        %919 = vmatpush.msra.mxu0 %v699
        %920 = vmatpush.msra.mxu0 %v698
        %921 = vmatpush.msra.mxu0 %v697
        %922 = vmatpush.msra.mxu0 %v696
        %923 = vmatpush.msra.mxu0 %v695
        %924 = vmatpush.msra.mxu0 %v694
        %925 = vmatpush.msra.mxu0 %v693
        %926 = vmatpush.msra.mxu0 %v692
        %927 = vmatpush.msra.mxu0 %v691
        %928 = vmatpush.msra.mxu0 %v690
        %929 = vmatpush.msra.mxu0 %v689
        %930 = vmatmul.f32.gmra.mxu0 %v738
        %v931 = vpop.f32.mrf.mxu0
        %v932 = vadd.f32 %v819, %v931
        %933 = vmatmul.f32.gmra.mxu0 %v740
        %v934 = vpop.f32.mrf.mxu0
        %v935 = vadd.f32 %v822, %v934
        %936 = vmatmul.f32.gmra.mxu0 %v742
        %v937 = vpop.f32.mrf.mxu0
        %v938 = vadd.f32 %v825, %v937
        %939 = vmatmul.f32.gmra.mxu0 %v744
        %v940 = vpop.f32.mrf.mxu0
        %v941 = vadd.f32 %v828, %v940
        %942 = vmatmul.f32.gmra.mxu0 %v746
        %v943 = vpop.f32.mrf.mxu0
        %v944 = vadd.f32 %v831, %v943
        %945 = vmatmul.f32.gmra.mxu0 %v748
        %v946 = vpop.f32.mrf.mxu0
        %v947 = vadd.f32 %v834, %v946
        %948 = vmatmul.f32.gmra.mxu0 %v750
        %v949 = vpop.f32.mrf.mxu0
        %v950 = vadd.f32 %v837, %v949
        %951 = vmatmul.f32.gmra.mxu0 %v752
        %v952 = vpop.f32.mrf.mxu0
        %v953 = vadd.f32 %v840, %v952
        %954 = vmatmul.f32.gmra.mxu0 %v754
        %v955 = vpop.f32.mrf.mxu0
        %v956 = vadd.f32 %v843, %v955
        %957 = vmatmul.f32.gmra.mxu0 %v756
        %v958 = vpop.f32.mrf.mxu0
        %v959 = vadd.f32 %v846, %v958
        %960 = vmatmul.f32.gmra.mxu0 %v758
        %v961 = vpop.f32.mrf.mxu0
        %v962 = vadd.f32 %v849, %v961
        %963 = vmatmul.f32.gmra.mxu0 %v760
        %v964 = vpop.f32.mrf.mxu0
        %v965 = vadd.f32 %v852, %v964
        %966 = vmatmul.f32.gmra.mxu0 %v762
        %v967 = vpop.f32.mrf.mxu0
        %v968 = vadd.f32 %v855, %v967
        %969 = vmatmul.f32.gmra.mxu0 %v764
        %v970 = vpop.f32.mrf.mxu0
        %v971 = vadd.f32 %v858, %v970
        %972 = vmatmul.f32.gmra.mxu0 %v766
        %v973 = vpop.f32.mrf.mxu0
        %v974 = vadd.f32 %v861, %v973
        %975 = vmatmul.f32.gmra.mxu0 %v768
        %v976 = vpop.f32.mrf.mxu0
        %v977 = vadd.f32 %v864, %v976
        %978 = vmatmul.f32.gmra.mxu0 %v770
        %v979 = vpop.f32.mrf.mxu0
        %v980 = vadd.f32 %v867, %v979
        %981 = vmatmul.f32.gmra.mxu0 %v772
        %v982 = vpop.f32.mrf.mxu0
        %v983 = vadd.f32 %v870, %v982
        %984 = vmatmul.f32.gmra.mxu0 %v774
        %v985 = vpop.f32.mrf.mxu0
        %v986 = vadd.f32 %v873, %v985
        %987 = vmatmul.f32.gmra.mxu0 %v776
        %v988 = vpop.f32.mrf.mxu0
        %v989 = vadd.f32 %v876, %v988
        %990 = vmatmul.f32.gmra.mxu0 %v778
        %v991 = vpop.f32.mrf.mxu0
        %v992 = vadd.f32 %v879, %v991
        %993 = vmatmul.f32.gmra.mxu0 %v780
        %v994 = vpop.f32.mrf.mxu0
        %v995 = vadd.f32 %v882, %v994
        %996 = vmatmul.f32.gmra.mxu0 %v782
        %v997 = vpop.f32.mrf.mxu0
        %v998 = vadd.f32 %v885, %v997
        %999 = vmatmul.f32.gmra.mxu0 %v784
        %v1000 = vpop.f32.mrf.mxu0
        %v1001 = vadd.f32 %v888, %v1000
        %1002 = vmatmul.f32.gmra.mxu0 %v786
        %v1003 = vpop.f32.mrf.mxu0
        %v1004 = vadd.f32 %v891, %v1003
        %1005 = vmatmul.f32.gmra.mxu0 %v788
        %v1006 = vpop.f32.mrf.mxu0
        %v1007 = vadd.f32 %v894, %v1006
        %1008 = vmatmul.f32.gmra.mxu0 %v790
        %v1009 = vpop.f32.mrf.mxu0
        %v1010 = vadd.f32 %v897, %v1009
        %1011 = vmatmul.f32.gmra.mxu0 %v792
        %v1012 = vpop.f32.mrf.mxu0
        %v1013 = vadd.f32 %v900, %v1012
        %1014 = vmatmul.f32.gmra.mxu0 %v794
        %v1015 = vpop.f32.mrf.mxu0
        %v1016 = vadd.f32 %v903, %v1015
        %1017 = vmatmul.f32.gmra.mxu0 %v796
        %v1018 = vpop.f32.mrf.mxu0
        %v1019 = vadd.f32 %v906, %v1018
        %1020 = vmatmul.f32.gmra.mxu0 %v798
        %v1021 = vpop.f32.mrf.mxu0
        %v1022 = vadd.f32 %v909, %v1021
        %1023 = vmatmul.f32.gmra.mxu0 %v800
        %v1024 = vpop.f32.mrf.mxu0
        %v1025 = vadd.f32 %v912, %v1024
        %1026 = vdwg.mxu0
        %v1027 = vadd.f32 %v705, %v932
        %v1028 = vadd.f32 %v706, %v935
        %v1029 = vadd.f32 %v707, %v938
        %v1030 = vadd.f32 %v708, %v941
        %v1031 = vadd.f32 %v709, %v944
        %v1032 = vadd.f32 %v710, %v947
        %v1033 = vadd.f32 %v711, %v950
        %v1034 = vadd.f32 %v712, %v953
        %v1035 = vadd.f32 %v713, %v956
        %v1036 = vadd.f32 %v714, %v959
        %v1037 = vadd.f32 %v715, %v962
        %v1038 = vadd.f32 %v716, %v965
        %v1039 = vadd.f32 %v717, %v968
        %v1040 = vadd.f32 %v718, %v971
        %v1041 = vadd.f32 %v719, %v974
        %v1042 = vadd.f32 %v720, %v977
        %v1043 = vadd.f32 %v721, %v980
        %v1044 = vadd.f32 %v722, %v983
        %v1045 = vadd.f32 %v723, %v986
        %v1046 = vadd.f32 %v724, %v989
        %v1047 = vadd.f32 %v725, %v992
        %v1048 = vadd.f32 %v726, %v995
        %v1049 = vadd.f32 %v727, %v998
        %v1050 = vadd.f32 %v728, %v1001
        %v1051 = vadd.f32 %v729, %v1004
        %v1052 = vadd.f32 %v730, %v1007
        %v1053 = vadd.f32 %v731, %v1010
        %v1054 = vadd.f32 %v732, %v1013
        %v1055 = vadd.f32 %v733, %v1016
        %v1056 = vadd.f32 %v734, %v1019
        %v1057 = vadd.f32 %v735, %v1022
        %v1058 = vadd.f32 %v736, %v1025
        %1059 = vst [vmem:[#allocation2] sm:$0xff] %v1027
        %1060 = vst [vmem:[#allocation2 + $0x8] sm:$0xff] %v1028
        %1061 = vst [vmem:[#allocation2 + $0x10] sm:$0xff] %v1029
        %1062 = vst [vmem:[#allocation2 + $0x18] sm:$0xff] %v1030
        %1063 = vst [vmem:[#allocation2 + $0x20] sm:$0xff] %v1031
        %1064 = vst [vmem:[#allocation2 + $0x28] sm:$0xff] %v1032
        %1065 = vst [vmem:[#allocation2 + $0x30] sm:$0xff] %v1033
        %1066 = vst [vmem:[#allocation2 + $0x38] sm:$0xff] %v1034
        %1067 = vst [vmem:[#allocation2 + $0x40] sm:$0xff] %v1035
        %1068 = vst [vmem:[#allocation2 + $0x48] sm:$0xff] %v1036
        %1069 = vst [vmem:[#allocation2 + $0x50] sm:$0xff] %v1037
        %1070 = vst [vmem:[#allocation2 + $0x58] sm:$0xff] %v1038
        %1071 = vst [vmem:[#allocation2 + $0x60] sm:$0xff] %v1039
        %1072 = vst [vmem:[#allocation2 + $0x68] sm:$0xff] %v1040
        %1073 = vst [vmem:[#allocation2 + $0x70] sm:$0xff] %v1041
        %1074 = vst [vmem:[#allocation2 + $0x78] sm:$0xff] %v1042
        %1075 = vst [vmem:[#allocation2 + $0x80] sm:$0xff] %v1043
        %1076 = vst [vmem:[#allocation2 + $0x88] sm:$0xff] %v1044
        %1077 = vst [vmem:[#allocation2 + $0x90] sm:$0xff] %v1045
        %1078 = vst [vmem:[#allocation2 + $0x98] sm:$0xff] %v1046
        %1079 = vst [vmem:[#allocation2 + $0xa0] sm:$0xff] %v1047
        %1080 = vst [vmem:[#allocation2 + $0xa8] sm:$0xff] %v1048
        %1081 = vst [vmem:[#allocation2 + $0xb0] sm:$0xff] %v1049
        %1082 = vst [vmem:[#allocation2 + $0xb8] sm:$0xff] %v1050
        %1083 = vst [vmem:[#allocation2 + $0xc0] sm:$0xff] %v1051
        %1084 = vst [vmem:[#allocation2 + $0xc8] sm:$0xff] %v1052
        %1085 = vst [vmem:[#allocation2 + $0xd0] sm:$0xff] %v1053
        %1086 = vst [vmem:[#allocation2 + $0xd8] sm:$0xff] %v1054
        %1087 = vst [vmem:[#allocation2 + $0xe0] sm:$0xff] %v1055
        %1088 = vst [vmem:[#allocation2 + $0xe8] sm:$0xff] %v1056
        %1089 = vst [vmem:[#allocation2 + $0xf0] sm:$0xff] %v1057
        %1090 = vst [vmem:[#allocation2 + $0xf8] sm:$0xff] %v1058
        %p1091 = scmp.eq.s32.totalorder %s28, 1
        // Predicated region
        $region72: #{fwd.8} parent=62 // pred_check
          %p1092 = pneg %p1091
        $region73: #{fwd.8} parent=62 // pred_check_branch
          %1094 = sbr.rel (%p1092) target = $region75
        $region74: #{fwd.8} parent=62 // pred_region
          %v1095 = vld [vmem:[#allocation2] sm:$0xff]
          %v1096 = vld [vmem:[#allocation2 + $0x8] sm:$0xff]
          %v1097 = vld [vmem:[#allocation2 + $0x10] sm:$0xff]
          %v1098 = vld [vmem:[#allocation2 + $0x18] sm:$0xff]
          %v1099 = vld [vmem:[#allocation2 + $0x20] sm:$0xff]
          %v1100 = vld [vmem:[#allocation2 + $0x28] sm:$0xff]
          %v1101 = vld [vmem:[#allocation2 + $0x30] sm:$0xff]
          %v1102 = vld [vmem:[#allocation2 + $0x38] sm:$0xff]
          %v1103 = vld [vmem:[#allocation2 + $0x40] sm:$0xff]
          %v1104 = vld [vmem:[#allocation2 + $0x48] sm:$0xff]
          %v1105 = vld [vmem:[#allocation2 + $0x50] sm:$0xff]
          %v1106 = vld [vmem:[#allocation2 + $0x58] sm:$0xff]
          %v1107 = vld [vmem:[#allocation2 + $0x60] sm:$0xff]
          %v1108 = vld [vmem:[#allocation2 + $0x68] sm:$0xff]
          %v1109 = vld [vmem:[#allocation2 + $0x70] sm:$0xff]
          %v1110 = vld [vmem:[#allocation2 + $0x78] sm:$0xff]
          %v1111 = vld [vmem:[#allocation2 + $0x80] sm:$0xff]
          %v1112 = vld [vmem:[#allocation2 + $0x88] sm:$0xff]
          %v1113 = vld [vmem:[#allocation2 + $0x90] sm:$0xff]
          %v1114 = vld [vmem:[#allocation2 + $0x98] sm:$0xff]
          %v1115 = vld [vmem:[#allocation2 + $0xa0] sm:$0xff]
          %v1116 = vld [vmem:[#allocation2 + $0xa8] sm:$0xff]
          %v1117 = vld [vmem:[#allocation2 + $0xb0] sm:$0xff]
          %v1118 = vld [vmem:[#allocation2 + $0xb8] sm:$0xff]
          %v1119 = vld [vmem:[#allocation2 + $0xc0] sm:$0xff]
          %v1120 = vld [vmem:[#allocation2 + $0xc8] sm:$0xff]
          %v1121 = vld [vmem:[#allocation2 + $0xd0] sm:$0xff]
          %v1122 = vld [vmem:[#allocation2 + $0xd8] sm:$0xff]
          %v1123 = vld [vmem:[#allocation2 + $0xe0] sm:$0xff]
          %v1124 = vld [vmem:[#allocation2 + $0xe8] sm:$0xff]
          %v1125 = vld [vmem:[#allocation2 + $0xf0] sm:$0xff]
          %v1126 = vld [vmem:[#allocation2 + $0xf8] sm:$0xff]
          %v1127 = vld [vmem:[%s4] sm:$0xff]
          %v1128 = vld [vmem:[%s4 + $0x8] sm:$0xff]
          %v1129 = vld [vmem:[%s4 + $0x10] sm:$0xff]
          %v1130 = vld [vmem:[%s4 + $0x18] sm:$0xff]
          %v1131 = vld [vmem:[%s4 + $0x20] sm:$0xff]
          %v1132 = vld [vmem:[%s4 + $0x28] sm:$0xff]
          %v1133 = vld [vmem:[%s4 + $0x30] sm:$0xff]
          %v1134 = vld [vmem:[%s4 + $0x38] sm:$0xff]
          %v1135 = vld [vmem:[%s4 + $0x40] sm:$0xff]
          %v1136 = vld [vmem:[%s4 + $0x48] sm:$0xff]
          %v1137 = vld [vmem:[%s4 + $0x50] sm:$0xff]
          %v1138 = vld [vmem:[%s4 + $0x58] sm:$0xff]
          %v1139 = vld [vmem:[%s4 + $0x60] sm:$0xff]
          %v1140 = vld [vmem:[%s4 + $0x68] sm:$0xff]
          %v1141 = vld [vmem:[%s4 + $0x70] sm:$0xff]
          %v1142 = vld [vmem:[%s4 + $0x78] sm:$0xff]
          %v1143 = vld [vmem:[%s3 + $0x2] sm:$0x1]
          %v1144 = vperm.slane %v1143, 0
          %1145 = vmatpush.msra.mxu0 %v1142
          %1146 = vmatpush.msra.mxu0 %v1141
          %1147 = vmatpush.msra.mxu0 %v1140
          %1148 = vmatpush.msra.mxu0 %v1139
          %1149 = vmatpush.msra.mxu0 %v1138
          %1150 = vmatpush.msra.mxu0 %v1137
          %1151 = vmatpush.msra.mxu0 %v1136
          %1152 = vmatpush.msra.mxu0 %v1135
          %1153 = vmatpush.msra.mxu0 %v1134
          %1154 = vmatpush.msra.mxu0 %v1133
          %1155 = vmatpush.msra.mxu0 %v1132
          %1156 = vmatpush.msra.mxu0 %v1131
          %1157 = vmatpush.msra.mxu0 %v1130
          %1158 = vmatpush.msra.mxu0 %v1129
          %1159 = vmatpush.msra.mxu0 %v1128
          %1160 = vmatpush.msra.mxu0 %v1127
          %1161 = vmatmul.f32.gmra.mxu0 %v1095
          %v1162 = vpop.f32.mrf.mxu0
          %v1163 = vadd.f32 %v1144, %v1162
          %1164 = vmatmul.f32.gmra.mxu0 %v1096
          %v1165 = vpop.f32.mrf.mxu0
          %v1166 = vadd.f32 %v1144, %v1165
          %1167 = vmatmul.f32.gmra.mxu0 %v1097
          %v1168 = vpop.f32.mrf.mxu0
          %v1169 = vadd.f32 %v1144, %v1168
          %1170 = vmatmul.f32.gmra.mxu0 %v1098
          %v1171 = vpop.f32.mrf.mxu0
          %v1172 = vadd.f32 %v1144, %v1171
          %1173 = vmatmul.f32.gmra.mxu0 %v1099
          %v1174 = vpop.f32.mrf.mxu0
          %v1175 = vadd.f32 %v1144, %v1174
          %1176 = vmatmul.f32.gmra.mxu0 %v1100
          %v1177 = vpop.f32.mrf.mxu0
          %v1178 = vadd.f32 %v1144, %v1177
          %1179 = vmatmul.f32.gmra.mxu0 %v1101
          %v1180 = vpop.f32.mrf.mxu0
          %v1181 = vadd.f32 %v1144, %v1180
          %1182 = vmatmul.f32.gmra.mxu0 %v1102
          %v1183 = vpop.f32.mrf.mxu0
          %v1184 = vadd.f32 %v1144, %v1183
          %1185 = vmatmul.f32.gmra.mxu0 %v1103
          %v1186 = vpop.f32.mrf.mxu0
          %v1187 = vadd.f32 %v1144, %v1186
          %1188 = vmatmul.f32.gmra.mxu0 %v1104
          %v1189 = vpop.f32.mrf.mxu0
          %v1190 = vadd.f32 %v1144, %v1189
          %1191 = vmatmul.f32.gmra.mxu0 %v1105
          %v1192 = vpop.f32.mrf.mxu0
          %v1193 = vadd.f32 %v1144, %v1192
          %1194 = vmatmul.f32.gmra.mxu0 %v1106
          %v1195 = vpop.f32.mrf.mxu0
          %v1196 = vadd.f32 %v1144, %v1195
          %1197 = vmatmul.f32.gmra.mxu0 %v1107
          %v1198 = vpop.f32.mrf.mxu0
          %v1199 = vadd.f32 %v1144, %v1198
          %1200 = vmatmul.f32.gmra.mxu0 %v1108
          %v1201 = vpop.f32.mrf.mxu0
          %v1202 = vadd.f32 %v1144, %v1201
          %1203 = vmatmul.f32.gmra.mxu0 %v1109
          %v1204 = vpop.f32.mrf.mxu0
          %v1205 = vadd.f32 %v1144, %v1204
          %1206 = vmatmul.f32.gmra.mxu0 %v1110
          %v1207 = vpop.f32.mrf.mxu0
          %v1208 = vadd.f32 %v1144, %v1207
          %1209 = vmatmul.f32.gmra.mxu0 %v1111
          %v1210 = vpop.f32.mrf.mxu0
          %v1211 = vadd.f32 %v1144, %v1210
          %1212 = vmatmul.f32.gmra.mxu0 %v1112
          %v1213 = vpop.f32.mrf.mxu0
          %v1214 = vadd.f32 %v1144, %v1213
          %1215 = vmatmul.f32.gmra.mxu0 %v1113
          %v1216 = vpop.f32.mrf.mxu0
          %v1217 = vadd.f32 %v1144, %v1216
          %1218 = vmatmul.f32.gmra.mxu0 %v1114
          %v1219 = vpop.f32.mrf.mxu0
          %v1220 = vadd.f32 %v1144, %v1219
          %1221 = vmatmul.f32.gmra.mxu0 %v1115
          %v1222 = vpop.f32.mrf.mxu0
          %v1223 = vadd.f32 %v1144, %v1222
          %1224 = vmatmul.f32.gmra.mxu0 %v1116
          %v1225 = vpop.f32.mrf.mxu0
          %v1226 = vadd.f32 %v1144, %v1225
          %1227 = vmatmul.f32.gmra.mxu0 %v1117
          %v1228 = vpop.f32.mrf.mxu0
          %v1229 = vadd.f32 %v1144, %v1228
          %1230 = vmatmul.f32.gmra.mxu0 %v1118
          %v1231 = vpop.f32.mrf.mxu0
          %v1232 = vadd.f32 %v1144, %v1231
          %1233 = vmatmul.f32.gmra.mxu0 %v1119
          %v1234 = vpop.f32.mrf.mxu0
          %v1235 = vadd.f32 %v1144, %v1234
          %1236 = vmatmul.f32.gmra.mxu0 %v1120
          %v1237 = vpop.f32.mrf.mxu0
          %v1238 = vadd.f32 %v1144, %v1237
          %1239 = vmatmul.f32.gmra.mxu0 %v1121
          %v1240 = vpop.f32.mrf.mxu0
          %v1241 = vadd.f32 %v1144, %v1240
          %1242 = vmatmul.f32.gmra.mxu0 %v1122
          %v1243 = vpop.f32.mrf.mxu0
          %v1244 = vadd.f32 %v1144, %v1243
          %1245 = vmatmul.f32.gmra.mxu0 %v1123
          %v1246 = vpop.f32.mrf.mxu0
          %v1247 = vadd.f32 %v1144, %v1246
          %1248 = vmatmul.f32.gmra.mxu0 %v1124
          %v1249 = vpop.f32.mrf.mxu0
          %v1250 = vadd.f32 %v1144, %v1249
          %1251 = vmatmul.f32.gmra.mxu0 %v1125
          %v1252 = vpop.f32.mrf.mxu0
          %v1253 = vadd.f32 %v1144, %v1252
          %1254 = vmatmul.f32.gmra.mxu0 %v1126
          %v1255 = vpop.f32.mrf.mxu0
          %v1256 = vadd.f32 %v1144, %v1255
          %1257 = vdwg.mxu0
          %v1258 = vmax.f32 %v1163, 0.0
          %v1259 = vmax.f32 %v1166, 0.0
          %v1260 = vmax.f32 %v1169, 0.0
          %v1261 = vmax.f32 %v1172, 0.0
          %v1262 = vmax.f32 %v1175, 0.0
          %v1263 = vmax.f32 %v1178, 0.0
          %v1264 = vmax.f32 %v1181, 0.0
          %v1265 = vmax.f32 %v1184, 0.0
          %v1266 = vmax.f32 %v1187, 0.0
          %v1267 = vmax.f32 %v1190, 0.0
          %v1268 = vmax.f32 %v1193, 0.0
          %v1269 = vmax.f32 %v1196, 0.0
          %v1270 = vmax.f32 %v1199, 0.0
          %v1271 = vmax.f32 %v1202, 0.0
          %v1272 = vmax.f32 %v1205, 0.0
          %v1273 = vmax.f32 %v1208, 0.0
          %v1274 = vmax.f32 %v1211, 0.0
          %v1275 = vmax.f32 %v1214, 0.0
          %v1276 = vmax.f32 %v1217, 0.0
          %v1277 = vmax.f32 %v1220, 0.0
          %v1278 = vmax.f32 %v1223, 0.0
          %v1279 = vmax.f32 %v1226, 0.0
          %v1280 = vmax.f32 %v1229, 0.0
          %v1281 = vmax.f32 %v1232, 0.0
          %v1282 = vmax.f32 %v1235, 0.0
          %v1283 = vmax.f32 %v1238, 0.0
          %v1284 = vmax.f32 %v1241, 0.0
          %v1285 = vmax.f32 %v1244, 0.0
          %v1286 = vmax.f32 %v1247, 0.0
          %v1287 = vmax.f32 %v1250, 0.0
          %v1288 = vmax.f32 %v1253, 0.0
          %v1289 = vmax.f32 %v1256, 0.0
          %v1290 = vlaneseq
          %v1291 = vshrl.u32 %v1290, 7
          %v1292 = vadd.s32 %v1291, 8
          %v1293 = vadd.s32 %v1291, 16
          %v1294 = vadd.s32 %v1291, 24
          %v1295 = vadd.s32 %v1291, 32
          %v1296 = vadd.s32 %v1291, 40
          %v1297 = vadd.s32 %v1291, 48
          %v1298 = vadd.s32 %v1291, 56
          %v1299 = vadd.s32 %v1291, 64
          %v1300 = vadd.s32 %v1291, 72
          %v1301 = vadd.s32 %v1291, 80
          %v1302 = vadd.s32 %v1291, 88
          %v1303 = vadd.s32 %v1291, 96
          %v1304 = vadd.s32 %v1291, 104
          %v1305 = vadd.s32 %v1291, 112
          %v1306 = vadd.s32 %v1291, 120
          %v1307 = vadd.s32 %v1291, 128
          %v1308 = vadd.s32 %v1291, 136
          %v1309 = vadd.s32 %v1291, 144
          %v1310 = vadd.s32 %v1291, 152
          %v1311 = vadd.s32 %v1291, 160
          %v1312 = vadd.s32 %v1291, 168
          %v1313 = vadd.s32 %v1291, 176
          %v1314 = vadd.s32 %v1291, 184
          %v1315 = vadd.s32 %v1291, 192
          %v1316 = vadd.s32 %v1291, 200
          %v1317 = vadd.s32 %v1291, 208
          %v1318 = vadd.s32 %v1291, 216
          %v1319 = vadd.s32 %v1291, 224
          %v1320 = vadd.s32 %v1291, 232
          %v1321 = vadd.s32 %v1291, 240
          %v1322 = vadd.s32 %v1291, 248
          %s1323 = smul.u32 %s27, 256
          %v1324 = vstv %s1323
          %v1325 = vadd.s32 %v1291, %v1324
          %v1326 = vadd.s32 %v1292, %v1324
          %v1327 = vadd.s32 %v1293, %v1324
          %v1328 = vadd.s32 %v1294, %v1324
          %v1329 = vadd.s32 %v1295, %v1324
          %v1330 = vadd.s32 %v1296, %v1324
          %v1331 = vadd.s32 %v1297, %v1324
          %v1332 = vadd.s32 %v1298, %v1324
          %v1333 = vadd.s32 %v1299, %v1324
          %v1334 = vadd.s32 %v1300, %v1324
          %v1335 = vadd.s32 %v1301, %v1324
          %v1336 = vadd.s32 %v1302, %v1324
          %v1337 = vadd.s32 %v1303, %v1324
          %v1338 = vadd.s32 %v1304, %v1324
          %v1339 = vadd.s32 %v1305, %v1324
          %v1340 = vadd.s32 %v1306, %v1324
          %v1341 = vadd.s32 %v1307, %v1324
          %v1342 = vadd.s32 %v1308, %v1324
          %v1343 = vadd.s32 %v1309, %v1324
          %v1344 = vadd.s32 %v1310, %v1324
          %v1345 = vadd.s32 %v1311, %v1324
          %v1346 = vadd.s32 %v1312, %v1324
          %v1347 = vadd.s32 %v1313, %v1324
          %v1348 = vadd.s32 %v1314, %v1324
          %v1349 = vadd.s32 %v1315, %v1324
          %v1350 = vadd.s32 %v1316, %v1324
          %v1351 = vadd.s32 %v1317, %v1324
          %v1352 = vadd.s32 %v1318, %v1324
          %v1353 = vadd.s32 %v1319, %v1324
          %v1354 = vadd.s32 %v1320, %v1324
          %v1355 = vadd.s32 %v1321, %v1324
          %v1356 = vadd.s32 %v1322, %v1324
          %vm1357 = vcmp.lt.s32.totalorder %v1325, 500
          %vm1358 = vcmp.lt.s32.totalorder %v1326, 500
          %vm1359 = vcmp.lt.s32.totalorder %v1327, 500
          %vm1360 = vcmp.lt.s32.totalorder %v1328, 500
          %vm1361 = vcmp.lt.s32.totalorder %v1329, 500
          %vm1362 = vcmp.lt.s32.totalorder %v1330, 500
          %vm1363 = vcmp.lt.s32.totalorder %v1331, 500
          %vm1364 = vcmp.lt.s32.totalorder %v1332, 500
          %vm1365 = vcmp.lt.s32.totalorder %v1333, 500
          %vm1366 = vcmp.lt.s32.totalorder %v1334, 500
          %vm1367 = vcmp.lt.s32.totalorder %v1335, 500
          %vm1368 = vcmp.lt.s32.totalorder %v1336, 500
          %vm1369 = vcmp.lt.s32.totalorder %v1337, 500
          %vm1370 = vcmp.lt.s32.totalorder %v1338, 500
          %vm1371 = vcmp.lt.s32.totalorder %v1339, 500
          %vm1372 = vcmp.lt.s32.totalorder %v1340, 500
          %vm1373 = vcmp.lt.s32.totalorder %v1341, 500
          %vm1374 = vcmp.lt.s32.totalorder %v1342, 500
          %vm1375 = vcmp.lt.s32.totalorder %v1343, 500
          %vm1376 = vcmp.lt.s32.totalorder %v1344, 500
          %vm1377 = vcmp.lt.s32.totalorder %v1345, 500
          %vm1378 = vcmp.lt.s32.totalorder %v1346, 500
          %vm1379 = vcmp.lt.s32.totalorder %v1347, 500
          %vm1380 = vcmp.lt.s32.totalorder %v1348, 500
          %vm1381 = vcmp.lt.s32.totalorder %v1349, 500
          %vm1382 = vcmp.lt.s32.totalorder %v1350, 500
          %vm1383 = vcmp.lt.s32.totalorder %v1351, 500
          %vm1384 = vcmp.lt.s32.totalorder %v1352, 500
          %vm1385 = vcmp.lt.s32.totalorder %v1353, 500
          %vm1386 = vcmp.lt.s32.totalorder %v1354, 500
          %vm1387 = vcmp.lt.s32.totalorder %v1355, 500
          %vm1388 = vcmp.lt.s32.totalorder %v1356, 500
          %v1389 = vsel %vm1357, %v1258, 0.0
          %v1390 = vsel %vm1358, %v1259, 0.0
          %v1391 = vsel %vm1359, %v1260, 0.0
          %v1392 = vsel %vm1360, %v1261, 0.0
          %v1393 = vsel %vm1361, %v1262, 0.0
          %v1394 = vsel %vm1362, %v1263, 0.0
          %v1395 = vsel %vm1363, %v1264, 0.0
          %v1396 = vsel %vm1364, %v1265, 0.0
          %v1397 = vsel %vm1365, %v1266, 0.0
          %v1398 = vsel %vm1366, %v1267, 0.0
          %v1399 = vsel %vm1367, %v1268, 0.0
          %v1400 = vsel %vm1368, %v1269, 0.0
          %v1401 = vsel %vm1369, %v1270, 0.0
          %v1402 = vsel %vm1370, %v1271, 0.0
          %v1403 = vsel %vm1371, %v1272, 0.0
          %v1404 = vsel %vm1372, %v1273, 0.0
          %v1405 = vsel %vm1373, %v1274, 0.0
          %v1406 = vsel %vm1374, %v1275, 0.0
          %v1407 = vsel %vm1375, %v1276, 0.0
          %v1408 = vsel %vm1376, %v1277, 0.0
          %v1409 = vsel %vm1377, %v1278, 0.0
          %v1410 = vsel %vm1378, %v1279, 0.0
          %v1411 = vsel %vm1379, %v1280, 0.0
          %v1412 = vsel %vm1380, %v1281, 0.0
          %v1413 = vsel %vm1381, %v1282, 0.0
          %v1414 = vsel %vm1382, %v1283, 0.0
          %v1415 = vsel %vm1383, %v1284, 0.0
          %v1416 = vsel %vm1384, %v1285, 0.0
          %v1417 = vsel %vm1385, %v1286, 0.0
          %v1418 = vsel %vm1386, %v1287, 0.0
          %v1419 = vsel %vm1387, %v1288, 0.0
          %v1420 = vsel %vm1388, %v1289, 0.0
          %1421 = vst [vmem:[%s531] sm:$0xff] %v1389
          %1422 = vst [vmem:[%s531 + $0x8] sm:$0xff] %v1390
          %1423 = vst [vmem:[%s531 + $0x10] sm:$0xff] %v1391
          %1424 = vst [vmem:[%s531 + $0x18] sm:$0xff] %v1392
          %1425 = vst [vmem:[%s531 + $0x20] sm:$0xff] %v1393
          %1426 = vst [vmem:[%s531 + $0x28] sm:$0xff] %v1394
          %1427 = vst [vmem:[%s531 + $0x30] sm:$0xff] %v1395
          %1428 = vst [vmem:[%s531 + $0x38] sm:$0xff] %v1396
          %1429 = vst [vmem:[%s531 + $0x40] sm:$0xff] %v1397
          %1430 = vst [vmem:[%s531 + $0x48] sm:$0xff] %v1398
          %1431 = vst [vmem:[%s531 + $0x50] sm:$0xff] %v1399
          %1432 = vst [vmem:[%s531 + $0x58] sm:$0xff] %v1400
          %1433 = vst [vmem:[%s531 + $0x60] sm:$0xff] %v1401
          %1434 = vst [vmem:[%s531 + $0x68] sm:$0xff] %v1402
          %1435 = vst [vmem:[%s531 + $0x70] sm:$0xff] %v1403
          %1436 = vst [vmem:[%s531 + $0x78] sm:$0xff] %v1404
          %1437 = vst [vmem:[%s531 + $0x80] sm:$0xff] %v1405
          %1438 = vst [vmem:[%s531 + $0x88] sm:$0xff] %v1406
          %1439 = vst [vmem:[%s531 + $0x90] sm:$0xff] %v1407
          %1440 = vst [vmem:[%s531 + $0x98] sm:$0xff] %v1408
          %1441 = vst [vmem:[%s531 + $0xa0] sm:$0xff] %v1409
          %1442 = vst [vmem:[%s531 + $0xa8] sm:$0xff] %v1410
          %1443 = vst [vmem:[%s531 + $0xb0] sm:$0xff] %v1411
          %1444 = vst [vmem:[%s531 + $0xb8] sm:$0xff] %v1412
          %1445 = vst [vmem:[%s531 + $0xc0] sm:$0xff] %v1413
          %1446 = vst [vmem:[%s531 + $0xc8] sm:$0xff] %v1414
          %1447 = vst [vmem:[%s531 + $0xd0] sm:$0xff] %v1415
          %1448 = vst [vmem:[%s531 + $0xd8] sm:$0xff] %v1416
          %1449 = vst [vmem:[%s531 + $0xe0] sm:$0xff] %v1417
          %1450 = vst [vmem:[%s531 + $0xe8] sm:$0xff] %v1418
          %1451 = vst [vmem:[%s531 + $0xf0] sm:$0xff] %v1419
          %1452 = vst [vmem:[%s531 + $0xf8] sm:$0xff] %v1420
          %v1453 = vadd.f32 %v1389, %v1390
          %v1454 = vadd.f32 %v1453, %v1391
          %v1455 = vadd.f32 %v1454, %v1392
          %v1456 = vadd.f32 %v1455, %v1393
          %v1457 = vadd.f32 %v1456, %v1394
          %v1458 = vadd.f32 %v1457, %v1395
          %v1459 = vadd.f32 %v1458, %v1396
          %v1460 = vadd.f32 %v1459, %v1397
          %v1461 = vadd.f32 %v1460, %v1398
          %v1462 = vadd.f32 %v1461, %v1399
          %v1463 = vadd.f32 %v1462, %v1400
          %v1464 = vadd.f32 %v1463, %v1401
          %v1465 = vadd.f32 %v1464, %v1402
          %v1466 = vadd.f32 %v1465, %v1403
          %v1467 = vadd.f32 %v1466, %v1404
          %v1468 = vadd.f32 %v1467, %v1405
          %v1469 = vadd.f32 %v1468, %v1406
          %v1470 = vadd.f32 %v1469, %v1407
          %v1471 = vadd.f32 %v1470, %v1408
          %v1472 = vadd.f32 %v1471, %v1409
          %v1473 = vadd.f32 %v1472, %v1410
          %v1474 = vadd.f32 %v1473, %v1411
          %v1475 = vadd.f32 %v1474, %v1412
          %v1476 = vadd.f32 %v1475, %v1413
          %v1477 = vadd.f32 %v1476, %v1414
          %v1478 = vadd.f32 %v1477, %v1415
          %v1479 = vadd.f32 %v1478, %v1416
          %v1480 = vadd.f32 %v1479, %v1417
          %v1481 = vadd.f32 %v1480, %v1418
          %v1482 = vadd.f32 %v1481, %v1419
          %v1483 = vadd.f32 %v1482, %v1420
          %v1484 = vrot.slane %v1483, 4
          %v1485 = vadd.f32 %v1483, %v1484
          %v1486 = vrot.slane %v1485, 2
          %v1487 = vadd.f32 %v1485, %v1486
          %v1488 = vrot.slane %v1487, 1
          %v1489 = vadd.f32 %v1487, %v1488
          %1490 = vst [vmem:[%s536] sm:$0x1] %v1489
          %v1491 = vmul.f32 %v1389, %v1389
          %v1492 = vmul.f32 %v1390, %v1390
          %v1493 = vmul.f32 %v1391, %v1391
          %v1494 = vmul.f32 %v1392, %v1392
          %v1495 = vmul.f32 %v1393, %v1393
          %v1496 = vmul.f32 %v1394, %v1394
          %v1497 = vmul.f32 %v1395, %v1395
          %v1498 = vmul.f32 %v1396, %v1396
          %v1499 = vmul.f32 %v1397, %v1397
          %v1500 = vmul.f32 %v1398, %v1398
          %v1501 = vmul.f32 %v1399, %v1399
          %v1502 = vmul.f32 %v1400, %v1400
          %v1503 = vmul.f32 %v1401, %v1401
          %v1504 = vmul.f32 %v1402, %v1402
          %v1505 = vmul.f32 %v1403, %v1403
          %v1506 = vmul.f32 %v1404, %v1404
          %v1507 = vmul.f32 %v1405, %v1405
          %v1508 = vmul.f32 %v1406, %v1406
          %v1509 = vmul.f32 %v1407, %v1407
          %v1510 = vmul.f32 %v1408, %v1408
          %v1511 = vmul.f32 %v1409, %v1409
          %v1512 = vmul.f32 %v1410, %v1410
          %v1513 = vmul.f32 %v1411, %v1411
          %v1514 = vmul.f32 %v1412, %v1412
          %v1515 = vmul.f32 %v1413, %v1413
          %v1516 = vmul.f32 %v1414, %v1414
          %v1517 = vmul.f32 %v1415, %v1415
          %v1518 = vmul.f32 %v1416, %v1416
          %v1519 = vmul.f32 %v1417, %v1417
          %v1520 = vmul.f32 %v1418, %v1418
          %v1521 = vmul.f32 %v1419, %v1419
          %v1522 = vmul.f32 %v1420, %v1420
          %v1523 = vadd.f32 %v1491, %v1492
          %v1524 = vadd.f32 %v1523, %v1493
          %v1525 = vadd.f32 %v1524, %v1494
          %v1526 = vadd.f32 %v1525, %v1495
          %v1527 = vadd.f32 %v1526, %v1496
          %v1528 = vadd.f32 %v1527, %v1497
          %v1529 = vadd.f32 %v1528, %v1498
          %v1530 = vadd.f32 %v1529, %v1499
          %v1531 = vadd.f32 %v1530, %v1500
          %v1532 = vadd.f32 %v1531, %v1501
          %v1533 = vadd.f32 %v1532, %v1502
          %v1534 = vadd.f32 %v1533, %v1503
          %v1535 = vadd.f32 %v1534, %v1504
          %v1536 = vadd.f32 %v1535, %v1505
          %v1537 = vadd.f32 %v1536, %v1506
          %v1538 = vadd.f32 %v1537, %v1507
          %v1539 = vadd.f32 %v1538, %v1508
          %v1540 = vadd.f32 %v1539, %v1509
          %v1541 = vadd.f32 %v1540, %v1510
          %v1542 = vadd.f32 %v1541, %v1511
          %v1543 = vadd.f32 %v1542, %v1512
          %v1544 = vadd.f32 %v1543, %v1513
          %v1545 = vadd.f32 %v1544, %v1514
          %v1546 = vadd.f32 %v1545, %v1515
          %v1547 = vadd.f32 %v1546, %v1516
          %v1548 = vadd.f32 %v1547, %v1517
          %v1549 = vadd.f32 %v1548, %v1518
          %v1550 = vadd.f32 %v1549, %v1519
          %v1551 = vadd.f32 %v1550, %v1520
          %v1552 = vadd.f32 %v1551, %v1521
          %v1553 = vadd.f32 %v1552, %v1522
          %v1554 = vrot.slane %v1553, 4
          %v1555 = vadd.f32 %v1553, %v1554
          %v1556 = vrot.slane %v1555, 2
          %v1557 = vadd.f32 %v1555, %v1556
          %v1558 = vrot.slane %v1557, 1
          %v1559 = vadd.f32 %v1557, %v1558
          %1560 = vst [vmem:[%s536 + $0x1] sm:$0x1] %v1559
          %v1561 = vld [vmem:[%s525] sm:$0xff]
          %v1562 = vld [vmem:[%s525 + $0x8] sm:$0xff]
          %1563 = vmatpush.msra.mxu0 %v1404
          %1564 = vmatpush.msra.mxu0 %v1403
          %1565 = vmatpush.msra.mxu0 %v1402
          %1566 = vmatpush.msra.mxu0 %v1401
          %1567 = vmatpush.msra.mxu0 %v1400
          %1568 = vmatpush.msra.mxu0 %v1399
          %1569 = vmatpush.msra.mxu0 %v1398
          %1570 = vmatpush.msra.mxu0 %v1397
          %1571 = vmatpush.msra.mxu0 %v1396
          %1572 = vmatpush.msra.mxu0 %v1395
          %1573 = vmatpush.msra.mxu0 %v1394
          %1574 = vmatpush.msra.mxu0 %v1393
          %1575 = vmatpush.msra.mxu0 %v1392
          %1576 = vmatpush.msra.mxu0 %v1391
          %1577 = vmatpush.msra.mxu0 %v1390
          %1578 = vmatpush.msra.mxu0 %v1389
          %1579 = vmatmul.f32.gmra.mxu0 %v1561
          %v1580 = vpop.f32.mrf.mxu0
          %v1581 = vadd.f32 0.0, %v1580
          %1582 = vdwg.mxu0
          %1583 = vmatpush.msra.mxu0 %v1420
          %1584 = vmatpush.msra.mxu0 %v1419
          %1585 = vmatpush.msra.mxu0 %v1418
          %1586 = vmatpush.msra.mxu0 %v1417
          %1587 = vmatpush.msra.mxu0 %v1416
          %1588 = vmatpush.msra.mxu0 %v1415
          %1589 = vmatpush.msra.mxu0 %v1414
          %1590 = vmatpush.msra.mxu0 %v1413
          %1591 = vmatpush.msra.mxu0 %v1412
          %1592 = vmatpush.msra.mxu0 %v1411
          %1593 = vmatpush.msra.mxu0 %v1410
          %1594 = vmatpush.msra.mxu0 %v1409
          %1595 = vmatpush.msra.mxu0 %v1408
          %1596 = vmatpush.msra.mxu0 %v1407
          %1597 = vmatpush.msra.mxu0 %v1406
          %1598 = vmatpush.msra.mxu0 %v1405
          %1599 = vmatmul.f32.gmra.mxu0 %v1562
          %v1600 = vpop.f32.mrf.mxu0
          %v1601 = vadd.f32 %v1581, %v1600
          %1602 = vdwg.mxu0
          %1603 = vst [vmem:[%s512] sm:$0xff] %v1601
        $region75: #{fwd.8} parent=62 // pred_fallthru
          _
        %s1604 = smul.u32 32, %s27
        %p1605 = scmp.lt.s32.totalorder %s1604, 63
        %s1606 = scalar_select %p1605, %s1604, 63
        %s1607 = smul.addr %s1606, 8
        %s1608 = scalar_lea.vmem %s6, %s1607
        %p1609 = scmp.lt.s32.totalorder %s27, 1
        %s1610 = scalar_select %p1609, %s27, 1
        %s1611 = smul.addr %s1610, 2
        %s1612 = scalar_lea.vmem %s7, %s1611
        %s1613 = sand.u32 %s238, 1
        %s1614 = scalar_lea.sflag [#allocation5], %s1613
        %s1615 = sand.u32 %s238, 1
        %s1616 = smul.addr %s1615, 8
        %s1617 = scalar_lea.vmem [#allocation4], %s1616
        // Predicated region
        $region76: #{fwd.8} parent=62 // pred_check
          %p1618 = pneg %p196
        $region77: #{fwd.8} parent=62 // pred_check_branch
          %1620 = sbr.rel (%p1618) target = $region79
        $region78: #{fwd.8} parent=62 // pred_region
          %s1621 = smul.u32 32, %s27
        $region79: #{fwd.8} parent=62 // pred_fallthru
          _
        // Predicated region
        $region80: #{fwd.8} parent=62 // pred_check
          %p1622 = pneg %p222
        $region81: #{fwd.8} parent=62 // pred_check_branch
          %1624 = sbr.rel (%p1622) target = $region83
        $region82: #{fwd.8} parent=62 // pred_region
          _
        $region83: #{fwd.8} parent=62 // pred_fallthru
          _
        // Predicated region
        $region84: #{fwd.8} parent=62 // pred_check
          %p1625 = pneg %p248
        $region85: #{fwd.8} parent=62 // pred_check_branch
          %1627 = sbr.rel (%p1625) target = $region87
        $region86: #{fwd.8} parent=62 // pred_region
          %1629 = vsyncadd %s1614, 0
          %s1630 = smul.addr %s27, 8
          %s1631 = scalar_lea.hbm %s8, %s1630
          %s1633 = sshll.u32 %s1617, 4
          %s1634 = int_to_ptr.vmem [resolvable:$true] %s1633
          %s1635 = sshll.u32 %s1631, 4
          %s1636 = int_to_ptr.hbm [resolvable:$true] %s1635
          %1638 = dma.vmem_to_hbm [thread:$0]  %s1634, 128, %s1636, %s1614
        $region87: #{fwd.8} parent=62 // pred_fallthru
          _
      $region63: #{fwd.8} parent=5 // pred_fallthru
        _
      %p1639 = scmp.le.s32.totalorder 2, %s18
      // Predicated region
      $region88: #{fwd.8} parent=5 // pred_check
        %p1640 = pneg %p1639
      $region89: #{fwd.8} parent=5 // pred_check_branch
        %1642 = sbr.rel (%p1640) target = $region91
      $region90: #{fwd.8} parent=5 // pred_region
        %s1643 = ssub.s32 %s18, 2
        // Predicated region
        $region92: #{fwd.8} parent=90 // pred_check
          %p1644 = pneg %p202
        $region93: #{fwd.8} parent=90 // pred_check_branch
          %1646 = sbr.rel (%p1644) target = $region95
        $region94: #{fwd.8} parent=90 // pred_region
          %s1647 = smul.u32 32, %s29
          %p1648 = scmp.lt.s32.totalorder %s1647, 63
          %s1649 = scalar_select %p1648, %s1647, 63
          %s1650 = smul.addr %s1649, 8
          %s1651 = scalar_lea.vmem %s6, %s1650
        $region95: #{fwd.8} parent=90 // pred_fallthru
          _
        // Predicated region
        $region96: #{fwd.8} parent=90 // pred_check
          %p1652 = pneg %p228
        $region97: #{fwd.8} parent=90 // pred_check_branch
          %1654 = sbr.rel (%p1652) target = $region99
        $region98: #{fwd.8} parent=90 // pred_region
          %p1655 = scmp.lt.s32.totalorder %s29, 1
          %s1656 = scalar_select %p1655, %s29, 1
          %s1657 = smul.addr %s1656, 2
          %s1658 = scalar_lea.vmem %s7, %s1657
        $region99: #{fwd.8} parent=90 // pred_fallthru
          _
        // Predicated region
        $region100: #{fwd.8} parent=90 // pred_check
          %p1659 = pneg %p254
        $region101: #{fwd.8} parent=90 // pred_check_branch
          %1661 = sbr.rel (%p1659) target = $region103
        $region102: #{fwd.8} parent=90 // pred_region
          %s1662 = sand.u32 %s239, 1
          %s1663 = scalar_lea.sflag [#allocation5], %s1662
          %s1664 = sand.u32 %s239, 1
          %s1665 = smul.addr %s1664, 8
          %s1666 = scalar_lea.vmem [#allocation4], %s1665
          %1668 = dma.done %s1663, 128
        $region103: #{fwd.8} parent=90 // pred_fallthru
          _
      $region91: #{fwd.8} parent=5 // pred_fallthru
        _
    $region6: #{fwd.8} parent=1 // loop_footer
      %s22 = sadd.s32 1, %s18
    $region7: #{fwd.8} parent=1 // loop_footer_branch
      %17 = sbr.rel target = $region3
    $region8: #{fwd.8} parent=1 // loop_exit
      _
    %1669 = vsyncpa [#allocation5], 1
    %s1670 = scalar_lea.sflag [#allocation5], 1
    %1671 = vsyncpa %s1670, 1

// kernel: fwd.11
$region0: #{fwd.11}
  #allocation0 [shape = 'u32[]', space=smem, size = 0x4, offset = 0x4, fixed_abs, tag = 'smem constant byte address 0x4 - core index']
  #allocation1 [shape = 'u32[72,128]{1,0:T(1,128)}', space=vmem, size = 0x9000, scoped, tag = 'internal scratch']
  %s0 = inlined_call_operand.vmem [shape: f32[2,8,128], index: 0, kind: input, shape index: {}]
  %s1 = inlined_call_operand.vmem [shape: f32[8,128], index: 1, kind: input, shape index: {}]
  %s2 = inlined_call_operand.vmem [shape: f32[128,128], index: 2, kind: input, shape index: {}]
  %s3 = inlined_call_operand.vmem [shape: f32[128,128], index: 3, kind: input, shape index: {}]
  %s4 = inlined_call_operand.vmem [shape: f32[8,128], index: 4, kind: output, shape index: {}]
  %s5 = sld [smem:[#allocation0]]
  $region26: #{fwd.11} parent=0
    _
  %s7 = ssub.s32 1, %s5
  %s8 = scalar_select 0, %s7, %s5
  // Predicated region
  $region2: #{fwd.11} parent=0 // pred_check
    _
  $region3: #{fwd.11} parent=0 // pred_check_branch
    %10 = sbr.rel (0) target = $region5
  $region4: #{fwd.11} parent=0 // pred_region
    _
  $region5: #{fwd.11} parent=0 // pred_fallthru
    _
  // Predicated region
  $region6: #{fwd.11} parent=0 // pred_check
    _
  $region7: #{fwd.11} parent=0 // pred_check_branch
    %12 = sbr.rel (0) target = $region9
  $region8: #{fwd.11} parent=0 // pred_region
    _
  $region9: #{fwd.11} parent=0 // pred_fallthru
    _
  // Predicated region
  $region10: #{fwd.11} parent=0 // pred_check
    _
  $region11: #{fwd.11} parent=0 // pred_check_branch
    %14 = sbr.rel (0) target = $region13
  $region12: #{fwd.11} parent=0 // pred_region
    _
  $region13: #{fwd.11} parent=0 // pred_fallthru
    _
  // Predicated region
  $region14: #{fwd.11} parent=0 // pred_check
    _
  $region15: #{fwd.11} parent=0 // pred_check_branch
    %16 = sbr.rel (0) target = $region17
  $region16: #{fwd.11} parent=0 // pred_region
    _
  $region17: #{fwd.11} parent=0 // pred_fallthru
    _
  %v17 = vld [vmem:[%s0] sm:$0xff]
  %v18 = vld [vmem:[%s0 + $0x8] sm:$0xff]
  %v19 = vadd.f32 %v17, %v18
  %v20 = vlaneseq
  %v21 = vshrl.u32 %v20, 7
  %vm22 = vcmp.lt.s32.totalorder %v21, 2
  %v23 = vld [vmem:[%s1] sm:$0x1]
  %v24 = vld [vmem:[%s1 + $0x1] sm:$0x1]
  %v25 = vsel %vm22, %v19, 0.0
  %v26 = vrot.slane %v25, 4
  %v27 = vadd.f32 %v25, %v26
  %v28 = vrot.slane %v27, 2
  %v29 = vadd.f32 %v27, %v28
  %v30 = vrot.slane %v29, 1
  %v31 = vadd.f32 %v29, %v30
  %v32 = vmul.f32 %v31, 0.5
  %v33 = vmul.f32 %v25, %v25
  %v34 = vrot.slane %v33, 4
  %v35 = vadd.f32 %v33, %v34
  %v36 = vrot.slane %v35, 2
  %v37 = vadd.f32 %v35, %v36
  %v38 = vrot.slane %v37, 1
  %v39 = vadd.f32 %v37, %v38
  %v40 = vmul.f32 %v39, 0.5
  %v41 = vmul.f32 %v32, %v32
  %v42 = vsub.f32 %v40, %v41
  %v43 = vadd.f32 %v42, 1e-05
  %v44 = vrsqrt.pop %v43
  %v45 = vmul.f32 %v44, %v43
  %v46 = vmul.f32 %v45, %v44
  %v47 = vmul.f32 0.5, %v46
  %v48 = vsub.f32 1.5, %v47
  %v49 = vmul.f32 %v44, %v48
  %vm50 = vweird.f32 %v43
  %vm51 = vweird.f32 %v44
  %vm52 = vmor %vm50, %vm51
  %v53 = vsel %vm52, %v44, %v49
  %v54 = vmul.f32 %v53, %v23
  %v55 = vperm.slane %v54, 0
  %v56 = vmul.f32 %v19, %v55
  %v57 = vmul.f32 %v32, %v54
  %v58 = vsub.f32 %v24, %v57
  %v59 = vperm.slane %v58, 0
  %v60 = vadd.f32 %v56, %v59
  %v61 = vld [vmem:[%s2] sm:$0xff]
  %v62 = vld [vmem:[%s2 + $0x8] sm:$0xff]
  %v63 = vld [vmem:[%s2 + $0x10] sm:$0xff]
  %v64 = vld [vmem:[%s2 + $0x18] sm:$0xff]
  %v65 = vld [vmem:[%s2 + $0x20] sm:$0xff]
  %v66 = vld [vmem:[%s2 + $0x28] sm:$0xff]
  %v67 = vld [vmem:[%s2 + $0x30] sm:$0xff]
  %v68 = vld [vmem:[%s2 + $0x38] sm:$0xff]
  %v69 = vld [vmem:[%s2 + $0x40] sm:$0xff]
  %v70 = vld [vmem:[%s2 + $0x48] sm:$0xff]
  %v71 = vld [vmem:[%s2 + $0x50] sm:$0xff]
  %v72 = vld [vmem:[%s2 + $0x58] sm:$0xff]
  %v73 = vld [vmem:[%s2 + $0x60] sm:$0xff]
  %v74 = vld [vmem:[%s2 + $0x68] sm:$0xff]
  %v75 = vld [vmem:[%s2 + $0x70] sm:$0xff]
  %v76 = vld [vmem:[%s2 + $0x78] sm:$0xff]
  %v77 = vld [vmem:[%s1 + $0x2] sm:$0x1]
  %v78 = vperm.slane %v77, 0
  %79 = vmatpush.msra.mxu0 %v76
  %80 = vmatpush.msra.mxu0 %v75
  %81 = vmatpush.msra.mxu0 %v74
  %82 = vmatpush.msra.mxu0 %v73
  %83 = vmatpush.msra.mxu0 %v72
  %84 = vmatpush.msra.mxu0 %v71
  %85 = vmatpush.msra.mxu0 %v70
  %86 = vmatpush.msra.mxu0 %v69
  %87 = vmatpush.msra.mxu0 %v68
  %88 = vmatpush.msra.mxu0 %v67
  %89 = vmatpush.msra.mxu0 %v66
  %90 = vmatpush.msra.mxu0 %v65
  %91 = vmatpush.msra.mxu0 %v64
  %92 = vmatpush.msra.mxu0 %v63
  %93 = vmatpush.msra.mxu0 %v62
  %94 = vmatpush.msra.mxu0 %v61
  %95 = vmatmul.f32.gmra.mxu0 %v60
  %v96 = vpop.f32.mrf.mxu0
  %v97 = vadd.f32 %v78, %v96
  %98 = vdwg.mxu0
  %v99 = vmax.f32 %v97, 0.0
  %v100 = vld [vmem:[%s1 + $0x3] sm:$0x1]
  %v101 = vld [vmem:[%s1 + $0x4] sm:$0x1]
  %v102 = vsel %vm22, %v99, 0.0
  %v103 = vrot.slane %v102, 4
  %v104 = vadd.f32 %v102, %v103
  %v105 = vrot.slane %v104, 2
  %v106 = vadd.f32 %v104, %v105
  %v107 = vrot.slane %v106, 1
  %v108 = vadd.f32 %v106, %v107
  %v109 = vmul.f32 %v108, 0.5
  %v110 = vmul.f32 %v102, %v102
  %v111 = vrot.slane %v110, 4
  %v112 = vadd.f32 %v110, %v111
  %v113 = vrot.slane %v112, 2
  %v114 = vadd.f32 %v112, %v113
  %v115 = vrot.slane %v114, 1
  %v116 = vadd.f32 %v114, %v115
  %v117 = vmul.f32 %v116, 0.5
  %v118 = vmul.f32 %v109, %v109
  %v119 = vsub.f32 %v117, %v118
  %v120 = vadd.f32 %v119, 1e-05
  %v121 = vrsqrt.pop %v120
  %v122 = vmul.f32 %v121, %v120
  %v123 = vmul.f32 %v122, %v121
  %v124 = vmul.f32 0.5, %v123
  %v125 = vsub.f32 1.5, %v124
  %v126 = vmul.f32 %v121, %v125
  %vm127 = vweird.f32 %v120
  %vm128 = vweird.f32 %v121
  %vm129 = vmor %vm127, %vm128
  %v130 = vsel %vm129, %v121, %v126
  %v131 = vmul.f32 %v130, %v100
  %v132 = vperm.slane %v131, 0
  %v133 = vmul.f32 %v99, %v132
  %v134 = vmul.f32 %v109, %v131
  %v135 = vsub.f32 %v101, %v134
  %v136 = vperm.slane %v135, 0
  %v137 = vadd.f32 %v133, %v136
  %v138 = vld [vmem:[%s3] sm:$0xff]
  %v139 = vld [vmem:[%s3 + $0x8] sm:$0xff]
  %v140 = vld [vmem:[%s3 + $0x10] sm:$0xff]
  %v141 = vld [vmem:[%s3 + $0x18] sm:$0xff]
  %v142 = vld [vmem:[%s3 + $0x20] sm:$0xff]
  %v143 = vld [vmem:[%s3 + $0x28] sm:$0xff]
  %v144 = vld [vmem:[%s3 + $0x30] sm:$0xff]
  %v145 = vld [vmem:[%s3 + $0x38] sm:$0xff]
  %v146 = vld [vmem:[%s3 + $0x40] sm:$0xff]
  %v147 = vld [vmem:[%s3 + $0x48] sm:$0xff]
  %v148 = vld [vmem:[%s3 + $0x50] sm:$0xff]
  %v149 = vld [vmem:[%s3 + $0x58] sm:$0xff]
  %v150 = vld [vmem:[%s3 + $0x60] sm:$0xff]
  %v151 = vld [vmem:[%s3 + $0x68] sm:$0xff]
  %v152 = vld [vmem:[%s3 + $0x70] sm:$0xff]
  %v153 = vld [vmem:[%s3 + $0x78] sm:$0xff]
  %v154 = vld [vmem:[%s1 + $0x5] sm:$0x1]
  %v155 = vperm.slane %v154, 0
  %156 = vmatpush.msra.mxu0 %v153
  %157 = vmatpush.msra.mxu0 %v152
  %158 = vmatpush.msra.mxu0 %v151
  %159 = vmatpush.msra.mxu0 %v150
  %160 = vmatpush.msra.mxu0 %v149
  %161 = vmatpush.msra.mxu0 %v148
  %162 = vmatpush.msra.mxu0 %v147
  %163 = vmatpush.msra.mxu0 %v146
  %164 = vmatpush.msra.mxu0 %v145
  %165 = vmatpush.msra.mxu0 %v144
  %166 = vmatpush.msra.mxu0 %v143
  %167 = vmatpush.msra.mxu0 %v142
  %168 = vmatpush.msra.mxu0 %v141
  %169 = vmatpush.msra.mxu0 %v140
  %170 = vmatpush.msra.mxu0 %v139
  %171 = vmatpush.msra.mxu0 %v138
  %172 = vmatmul.f32.gmra.mxu0 %v137
  %v173 = vpop.f32.mrf.mxu0
  %v174 = vadd.f32 %v155, %v173
  %175 = vdwg.mxu0
  %v176 = vlaneseq
  %v177 = vand.u32 %v176, 127
  %vm178 = vcmp.lt.s32.totalorder %v177, 4
  %v179 = vsel %vm178, %v174, -1e+30
  %180 = vmax.xlane.f32.xlu0 %v179
  %v181 = vpop.xlane.xlu0 %180
  %v182 = vsub.f32 %v179, %v181
  %v183 = vmul.f32 %v182, 1.442695
  %v184 = vpow.pop %v183
  %185 = vadd.xlane.f32.xlu0 %v184
  %v186 = vpop.xlane.xlu0 %185
  %v187 = vlog2.pop %v186
  %v188 = vmul.f32 %v187, 0.6931472
  %v189 = vadd.f32 %v181, %v188
  %v190 = vsub.f32 %v179, %v189
  %191 = vst [vmem:[%s4] sm:$0xff] %v190
  // Predicated region
  $region18: #{fwd.11} parent=0 // pred_check
    _
  $region19: #{fwd.11} parent=0 // pred_check_branch
    %193 = sbr.rel (0) target = $region21
  $region20: #{fwd.11} parent=0 // pred_region
    _
  $region21: #{fwd.11} parent=0 // pred_fallthru
    _
  // Predicated region
  $region22: #{fwd.11} parent=0 // pred_check
    _
  $region23: #{fwd.11} parent=0 // pred_check_branch
    %195 = sbr.rel (0) target = $region25
  $region24: #{fwd.11} parent=0 // pred_region
    _
  $region25: #{fwd.11} parent=0 // pred_fallthru
    _

// kernel: fwd.10
$region0: #{fwd.10}
  #allocation0 [shape = 'u32[]', space=smem, size = 0x4, offset = 0x4, fixed_abs, tag = 'smem constant byte address 0x4 - core index']
  #allocation1 [shape = 'u32[72,128]{1,0:T(1,128)}', space=vmem, size = 0x9000, scoped, tag = 'internal scratch']
  #allocation2 [shape = 'f32[256,128]{1,0:T(8,128)}', space=vmem, size = 0x20000, scoped, tag = 'scratch operand']
  %s0 = inlined_call_operand.vmem [shape: f32[2,2,128], index: 0, kind: input, shape index: {}]
  %s1 = inlined_call_operand.vmem [shape: f32[512,128], index: 1, kind: input, shape index: {}]
  %s2 = inlined_call_operand.vmem [shape: f32[512,512], index: 2, kind: input, shape index: {}]
  %s3 = inlined_call_operand.vmem [shape: f32[8,128], index: 3, kind: input, shape index: {}]
  %s4 = inlined_call_operand.vmem [shape: f32[128,128], index: 4, kind: input, shape index: {}]
  %s5 = inlined_call_operand.vmem [shape: f32[8,512], index: 5, kind: input, shape index: {}]
  %s6 = inlined_call_operand.hbm [shape: f32[512,128], index: 6, kind: output, shape index: {0}]
  %s7 = inlined_call_operand.hbm [shape: f32[2,2,128], index: 7, kind: output, shape index: {1}]
  %s8 = inlined_call_operand.vmem [shape: f32[2,8,128], index: 8, kind: output, shape index: {2}]
  %9 = xla_tuple %s6, %s7, %s8
  %s10 = sld [smem:[#allocation0]]
  $region104: #{fwd.10} parent=0
    _
  %s12 = ssub.s32 1, %s10
  %s13 = scalar_select 0, %s12, %s10
  $region1: #{fwd.10} parent=0
    #allocation3 [shape = 'u8[524288]{0}', space=vmem, size = 0x80000, scoped, tag = 'input window, operand 2']
    #allocation4 [shape = 'u8[262144]{0}', space=vmem, size = 0x40000, scoped, tag = 'output window, operand 0']
    #allocation5 [shape = 's32[2]{0}', space=sflag, size = 0x8, scoped, tag = 'scoped memory for fwd.10']
    #allocation6 [shape = 'u8[2048]{0}', space=vmem, size = 0x800, scoped, tag = 'output window, operand 1']
    #allocation7 [shape = 's32[2]{0}', space=sflag, size = 0x8, scoped, tag = 'scoped memory for fwd.10']
    %14 = vsyncpa [#allocation5], 0
    %s15 = scalar_lea.sflag [#allocation5], 1
    %16 = vsyncpa %s15, 0
    %17 = vsyncpa [#allocation7], 0
    %s18 = scalar_lea.sflag [#allocation7], 1
    %19 = vsyncpa %s18, 0
    loop: start=0, step=1, limit=6
    $region2: #{fwd.10} parent=1 // loop_pre_header
      _
    $region3: #{fwd.10} parent=1 // loop_header
      %s21 = sphi 0, %s25
      %p22 = scmp.ge.s32.totalorder %s21, 6
      %s28 = sphi 0, %s40
      %s29 = sphi 0, %s36
      %s30 = sphi 0, %s28
      %s31 = sphi 0, %s29
      %s32 = sphi 0, %s30
      %s33 = sphi 0, %s31
      %s41 = sphi 0, %s41
      %s43 = sphi 0, %s41
      %s44 = sphi 0, %s43
      %s58 = sphi 0, %s44
      %s64 = sphi 0, %s66
      %s67 = sphi 0, %s64
      %s68 = sphi 0, %s67
      %s84 = sphi 0, %s68
      %s92 = sphi 0, %s94
      %s95 = sphi 0, %s92
      %s96 = sphi 0, %s95
      %s112 = sphi 0, %s96
      %s116 = sphi 0, %s116
      %s118 = sphi 0, %s116
      %s119 = sphi 0, %s118
      %s133 = sphi 0, %s119
      %s137 = sphi 0, %s137
      %s139 = sphi 0, %s137
      %s140 = sphi 0, %s139
      %s154 = sphi 0, %s140
      %s160 = sphi 0, %s162
      %s163 = sphi 0, %s160
      %s164 = sphi 0, %s163
      %s180 = sphi 0, %s164
      %s186 = sphi 0, %s188
      %s189 = sphi 0, %s186
      %s190 = sphi 0, %s189
      %s206 = sphi 0, %s190
      %s212 = sphi 0, %s214
      %s215 = sphi 0, %s212
      %s216 = sphi 0, %s215
      %s232 = sphi 0, %s216
      %s238 = sphi 0, %s240
      %s241 = sphi 0, %s238
      %s242 = sphi 0, %s241
      %s258 = sphi 0, %s242
    $region4: #{fwd.10} parent=1 // loop_header_branch
      %24 = sbr.rel (%p22) target = $region8
    $region5: #{fwd.10} parent=1 // loop_body
      %s26 = ssub.s32 %s21, 1
      %s27 = ssub.s32 %s21, 2
      %s34 = sadd.s32 1, %s29
      %p35 = scmp.ge.s32.totalorder %s34, 2
      %s36 = scalar_select %p35, 0, %s34
      %s37 = sadd.s32 1, %s28
      %s38 = scalar_select %p35, %s37, %s28
      %p39 = scmp.ge.s32.totalorder %s38, 2
      %s40 = scalar_select %p39, 0, %s38
      %s42 = sadd.s32 %s41, 1
      %p45 = scmp.eq.s32.totalorder %s21, 3
      %p46 = scmp.ne.s32.totalorder %s41, %s43
      %p47 = scmp.eq.s32.totalorder %s21, 0
      %p48 = por %p46, %p47
      %p49 = scmp.ne.s32.totalorder %s41, %s43
      %p50 = scmp.eq.s32.totalorder %s26, 3
      %p51 = por %p49, %p50
      %p52 = scmp.ne.s32.totalorder %s43, %s44
      %p53 = scmp.eq.s32.totalorder %s26, 0
      %p54 = por %p52, %p53
      %p55 = scmp.ne.s32.totalorder %s43, %s44
      %p56 = scmp.eq.s32.totalorder %s27, 3
      %p57 = por %p55, %p56
      %p59 = scmp.ne.s32.totalorder %s44, %s58
      %p60 = scmp.eq.s32.totalorder %s27, 0
      %p61 = por %p59, %p60
      %s62 = ssub.s32 %s29, %s36
      %p63 = scmp.eq.s32.totalorder %s62, 0
      %s65 = sadd.s32 %s64, 1
      %s66 = scalar_select %p63, %s64, %s65
      %p69 = pneg %p63
      %p70 = scmp.eq.s32.totalorder %s21, 3
      %p71 = por %p69, %p70
      %p72 = scmp.ne.s32.totalorder %s64, %s67
      %p73 = scmp.eq.s32.totalorder %s21, 0
      %p74 = por %p72, %p73
      %p75 = scmp.ne.s32.totalorder %s64, %s67
      %p76 = scmp.eq.s32.totalorder %s26, 3
      %p77 = por %p75, %p76
      %p78 = scmp.ne.s32.totalorder %s67, %s68
      %p79 = scmp.eq.s32.totalorder %s26, 0
      %p80 = por %p78, %p79
      %p81 = scmp.ne.s32.totalorder %s67, %s68
      %p82 = scmp.eq.s32.totalorder %s27, 3
      %p83 = por %p81, %p82
      %p85 = scmp.ne.s32.totalorder %s68, %s84
      %p86 = scmp.eq.s32.totalorder %s27, 0
      %p87 = por %p85, %p86
      %s88 = ssub.s32 %s28, %s40
      %s89 = ssub.s32 %s29, %s36
      %s90 = sor.u32 %s88, %s89
      %p91 = scmp.eq.s32.totalorder %s90, 0
      %s93 = sadd.s32 %s92, 1
      %s94 = scalar_select %p91, %s92, %s93
      %p97 = pneg %p91
      %p98 = scmp.eq.s32.totalorder %s21, 3
      %p99 = por %p97, %p98
      %p100 = scmp.ne.s32.totalorder %s92, %s95
      %p101 = scmp.eq.s32.totalorder %s21, 0
      %p102 = por %p100, %p101
      %p103 = scmp.ne.s32.totalorder %s92, %s95
      %p104 = scmp.eq.s32.totalorder %s26, 3
      %p105 = por %p103, %p104
      %p106 = scmp.ne.s32.totalorder %s95, %s96
      %p107 = scmp.eq.s32.totalorder %s26, 0
      %p108 = por %p106, %p107
      %p109 = scmp.ne.s32.totalorder %s95, %s96
      %p110 = scmp.eq.s32.totalorder %s27, 3
      %p111 = por %p109, %p110
      %p113 = scmp.ne.s32.totalorder %s96, %s112
      %p114 = scmp.eq.s32.totalorder %s27, 0
      %p115 = por %p113, %p114
      %s117 = sadd.s32 %s116, 1
      %p120 = scmp.eq.s32.totalorder %s21, 3
      %p121 = scmp.ne.s32.totalorder %s116, %s118
      %p122 = scmp.eq.s32.totalorder %s21, 0
      %p123 = por %p121, %p122
      %p124 = scmp.ne.s32.totalorder %s116, %s118
      %p125 = scmp.eq.s32.totalorder %s26, 3
      %p126 = por %p124, %p125
      %p127 = scmp.ne.s32.totalorder %s118, %s119
      %p128 = scmp.eq.s32.totalorder %s26, 0
      %p129 = por %p127, %p128
      %p130 = scmp.ne.s32.totalorder %s118, %s119
      %p131 = scmp.eq.s32.totalorder %s27, 3
      %p132 = por %p130, %p131
      %p134 = scmp.ne.s32.totalorder %s119, %s133
      %p135 = scmp.eq.s32.totalorder %s27, 0
      %p136 = por %p134, %p135
      %s138 = sadd.s32 %s137, 1
      %p141 = scmp.eq.s32.totalorder %s21, 3
      %p142 = scmp.ne.s32.totalorder %s137, %s139
      %p143 = scmp.eq.s32.totalorder %s21, 0
      %p144 = por %p142, %p143
      %p145 = scmp.ne.s32.totalorder %s137, %s139
      %p146 = scmp.eq.s32.totalorder %s26, 3
      %p147 = por %p145, %p146
      %p148 = scmp.ne.s32.totalorder %s139, %s140
      %p149 = scmp.eq.s32.totalorder %s26, 0
      %p150 = por %p148, %p149
      %p151 = scmp.ne.s32.totalorder %s139, %s140
      %p152 = scmp.eq.s32.totalorder %s27, 3
      %p153 = por %p151, %p152
      %p155 = scmp.ne.s32.totalorder %s140, %s154
      %p156 = scmp.eq.s32.totalorder %s27, 0
      %p157 = por %p155, %p156
      %s158 = ssub.s32 %s28, %s40
      %p159 = scmp.eq.s32.totalorder %s158, 0
      %s161 = sadd.s32 %s160, 1
      %s162 = scalar_select %p159, %s160, %s161
      %p165 = pneg %p159
      %p166 = scmp.eq.s32.totalorder %s21, 3
      %p167 = por %p165, %p166
      %p168 = scmp.ne.s32.totalorder %s160, %s163
      %p169 = scmp.eq.s32.totalorder %s21, 0
      %p170 = por %p168, %p169
      %p171 = scmp.ne.s32.totalorder %s160, %s163
      %p172 = scmp.eq.s32.totalorder %s26, 3
      %p173 = por %p171, %p172
      %p174 = scmp.ne.s32.totalorder %s163, %s164
      %p175 = scmp.eq.s32.totalorder %s26, 0
      %p176 = por %p174, %p175
      %p177 = scmp.ne.s32.totalorder %s163, %s164
      %p178 = scmp.eq.s32.totalorder %s27, 3
      %p179 = por %p177, %p178
      %p181 = scmp.ne.s32.totalorder %s164, %s180
      %p182 = scmp.eq.s32.totalorder %s27, 0
      %p183 = por %p181, %p182
      %s184 = ssub.s32 %s28, %s40
      %p185 = scmp.eq.s32.totalorder %s184, 0
      %s187 = sadd.s32 %s186, 1
      %s188 = scalar_select %p185, %s186, %s187
      %p191 = pneg %p185
      %p192 = scmp.eq.s32.totalorder %s21, 3
      %p193 = por %p191, %p192
      %p194 = scmp.ne.s32.totalorder %s186, %s189
      %p195 = scmp.eq.s32.totalorder %s21, 0
      %p196 = por %p194, %p195
      %p197 = scmp.ne.s32.totalorder %s186, %s189
      %p198 = scmp.eq.s32.totalorder %s26, 3
      %p199 = por %p197, %p198
      %p200 = scmp.ne.s32.totalorder %s189, %s190
      %p201 = scmp.eq.s32.totalorder %s26, 0
      %p202 = por %p200, %p201
      %p203 = scmp.ne.s32.totalorder %s189, %s190
      %p204 = scmp.eq.s32.totalorder %s27, 3
      %p205 = por %p203, %p204
      %p207 = scmp.ne.s32.totalorder %s190, %s206
      %p208 = scmp.eq.s32.totalorder %s27, 0
      %p209 = por %p207, %p208
      %s210 = ssub.s32 %s28, %s40
      %p211 = scmp.eq.s32.totalorder %s210, 0
      %s213 = sadd.s32 %s212, 1
      %s214 = scalar_select %p211, %s212, %s213
      %p217 = pneg %p211
      %p218 = scmp.eq.s32.totalorder %s21, 3
      %p219 = por %p217, %p218
      %p220 = scmp.ne.s32.totalorder %s212, %s215
      %p221 = scmp.eq.s32.totalorder %s21, 0
      %p222 = por %p220, %p221
      %p223 = scmp.ne.s32.totalorder %s212, %s215
      %p224 = scmp.eq.s32.totalorder %s26, 3
      %p225 = por %p223, %p224
      %p226 = scmp.ne.s32.totalorder %s215, %s216
      %p227 = scmp.eq.s32.totalorder %s26, 0
      %p228 = por %p226, %p227
      %p229 = scmp.ne.s32.totalorder %s215, %s216
      %p230 = scmp.eq.s32.totalorder %s27, 3
      %p231 = por %p229, %p230
      %p233 = scmp.ne.s32.totalorder %s216, %s232
      %p234 = scmp.eq.s32.totalorder %s27, 0
      %p235 = por %p233, %p234
      %s236 = ssub.s32 %s28, %s40
      %p237 = scmp.eq.s32.totalorder %s236, 0
      %s239 = sadd.s32 %s238, 1
      %s240 = scalar_select %p237, %s238, %s239
      %p243 = pneg %p237
      %p244 = scmp.eq.s32.totalorder %s21, 3
      %p245 = por %p243, %p244
      %p246 = scmp.ne.s32.totalorder %s238, %s241
      %p247 = scmp.eq.s32.totalorder %s21, 0
      %p248 = por %p246, %p247
      %p249 = scmp.ne.s32.totalorder %s238, %s241
      %p250 = scmp.eq.s32.totalorder %s26, 3
      %p251 = por %p249, %p250
      %p252 = scmp.ne.s32.totalorder %s241, %s242
      %p253 = scmp.eq.s32.totalorder %s26, 0
      %p254 = por %p252, %p253
      %p255 = scmp.ne.s32.totalorder %s241, %s242
      %p256 = scmp.eq.s32.totalorder %s27, 3
      %p257 = por %p255, %p256
      %p259 = scmp.ne.s32.totalorder %s242, %s258
      %p260 = scmp.eq.s32.totalorder %s27, 0
      %p261 = por %p259, %p260
      %p262 = scmp.le.s32.totalorder 1, %s21
      %p263 = scmp.lt.s32.totalorder %s21, 5
      %p264 = pnand %p262, %p263
      %p265 = pneg %p264
      // Predicated region
      $region9: #{fwd.10} parent=5 // pred_check
        _
      $region10: #{fwd.10} parent=5 // pred_check_branch
        %267 = sbr.rel (%p264) target = $region12
      $region11: #{fwd.10} parent=5 // pred_region
        %s268 = ssub.s32 %s21, 1
        // Predicated region
        $region13: #{fwd.10} parent=11 // pred_check
          %p269 = pneg %p54
        $region14: #{fwd.10} parent=11 // pred_check_branch
          %271 = sbr.rel (%p269) target = $region16
        $region15: #{fwd.10} parent=11 // pred_region
          _
        $region16: #{fwd.10} parent=11 // pred_fallthru
          _
        // Predicated region
        $region17: #{fwd.10} parent=11 // pred_check
          %p272 = pneg %p129
        $region18: #{fwd.10} parent=11 // pred_check_branch
          %274 = sbr.rel (%p272) target = $region20
        $region19: #{fwd.10} parent=11 // pred_region
          _
        $region20: #{fwd.10} parent=11 // pred_fallthru
          _
        // Predicated region
        $region21: #{fwd.10} parent=11 // pred_check
          %p275 = pneg %p150
        $region22: #{fwd.10} parent=11 // pred_check_branch
          %277 = sbr.rel (%p275) target = $region24
        $region23: #{fwd.10} parent=11 // pred_region
          _
        $region24: #{fwd.10} parent=11 // pred_fallthru
          _
      $region12: #{fwd.10} parent=5 // pred_fallthru
        _
      %p278 = scmp.lt.s32.totalorder %s21, 4
      // Predicated region
      $region25: #{fwd.10} parent=5 // pred_check
        %p279 = pneg %p278
      $region26: #{fwd.10} parent=5 // pred_check_branch
        %281 = sbr.rel (%p279) target = $region28
      $region27: #{fwd.10} parent=5 // pred_region
        // Predicated region
        $region29: #{fwd.10} parent=27 // pred_check
          %p282 = pneg %p74
        $region30: #{fwd.10} parent=27 // pred_check_branch
          %284 = sbr.rel (%p282) target = $region32
        $region31: #{fwd.10} parent=27 // pred_region
          %s285 = smul.u32 32, %s29
          %p286 = scmp.lt.s32.totalorder %s285, 63
          %s287 = scalar_select %p286, %s285, 63
          %s288 = smul.addr %s287, 8
          %s289 = scalar_lea.vmem %s1, %s288
          %s290 = smul.u32 32, %s29
        $region32: #{fwd.10} parent=27 // pred_fallthru
          _
        // Predicated region
        $region33: #{fwd.10} parent=27 // pred_check
          %p291 = pneg %p102
        $region34: #{fwd.10} parent=27 // pred_check_branch
          %293 = sbr.rel (%p291) target = $region36
        $region35: #{fwd.10} parent=27 // pred_region
          %s294 = sand.u32 %s92, 1
          %s295 = sand.u32 %s92, 1
          %s296 = smul.addr %s295, 512
          %s297 = scalar_lea.vmem [#allocation3], %s296
          %s298 = smul.u32 32, %s28
          %s299 = smul.u32 2, %s29
          %s300 = smul.addr %s298, 4
          %s301 = sadd.s32 %s299, %s300
          %s302 = smul.addr %s301, 8
          %s303 = scalar_lea.vmem %s2, %s302
          // Predicated region
          $region37: #{fwd.10} parent=35 // pred_check
            _
          $region38: #{fwd.10} parent=35 // pred_check_branch
            %305 = sbr.rel (0) target = $region40
          $region39: #{fwd.10} parent=35 // pred_region
            // Predicated region
            $region41: #{fwd.10} parent=39 // pred_check
              _
            $region42: #{fwd.10} parent=39 // pred_check_branch
              %307 = sbr.rel (0) target = $region44
            $region43: #{fwd.10} parent=39 // pred_region
              loop: start=0, step=1, limit=1
              $region45: #{fwd.10} parent=43 // loop_pre_header
                _
              $region46: #{fwd.10} parent=43 // loop_header
                %s309 = sphi 0, %s313
                %p310 = scmp.ge.s32.totalorder %s309, 1
                %s314 = sphi %s303, %s303
                %s315 = sphi %s297, %s297
              $region47: #{fwd.10} parent=43 // loop_header_branch
                %312 = sbr.rel (%p310) target = $region51
              $region48: #{fwd.10} parent=43 // loop_body
                %v316 = vld [vmem:[%s314] sm:$0xff]
                %317 = vst [vmem:[%s315] sm:$0xff] %v316
                %v318 = vld [vmem:[%s314 + $0x8] sm:$0xff]
                %319 = vst [vmem:[%s315 + $0x8] sm:$0xff] %v318
                %v320 = vld [vmem:[%s314 + $0x20] sm:$0xff]
                %321 = vst [vmem:[%s315 + $0x10] sm:$0xff] %v320
                %v322 = vld [vmem:[%s314 + $0x28] sm:$0xff]
                %323 = vst [vmem:[%s315 + $0x18] sm:$0xff] %v322
                %v324 = vld [vmem:[%s314 + $0x40] sm:$0xff]
                %325 = vst [vmem:[%s315 + $0x20] sm:$0xff] %v324
                %v326 = vld [vmem:[%s314 + $0x48] sm:$0xff]
                %327 = vst [vmem:[%s315 + $0x28] sm:$0xff] %v326
                %v328 = vld [vmem:[%s314 + $0x60] sm:$0xff]
                %329 = vst [vmem:[%s315 + $0x30] sm:$0xff] %v328
                %v330 = vld [vmem:[%s314 + $0x68] sm:$0xff]
                %331 = vst [vmem:[%s315 + $0x38] sm:$0xff] %v330
                %v332 = vld [vmem:[%s314 + $0x80] sm:$0xff]
                %333 = vst [vmem:[%s315 + $0x40] sm:$0xff] %v332
                %v334 = vld [vmem:[%s314 + $0x88] sm:$0xff]
                %335 = vst [vmem:[%s315 + $0x48] sm:$0xff] %v334
                %v336 = vld [vmem:[%s314 + $0xa0] sm:$0xff]
                %337 = vst [vmem:[%s315 + $0x50] sm:$0xff] %v336
                %v338 = vld [vmem:[%s314 + $0xa8] sm:$0xff]
                %339 = vst [vmem:[%s315 + $0x58] sm:$0xff] %v338
                %v340 = vld [vmem:[%s314 + $0xc0] sm:$0xff]
                %341 = vst [vmem:[%s315 + $0x60] sm:$0xff] %v340
                %v342 = vld [vmem:[%s314 + $0xc8] sm:$0xff]
                %343 = vst [vmem:[%s315 + $0x68] sm:$0xff] %v342
                %v344 = vld [vmem:[%s314 + $0xe0] sm:$0xff]
                %345 = vst [vmem:[%s315 + $0x70] sm:$0xff] %v344
                %v346 = vld [vmem:[%s314 + $0xe8] sm:$0xff]
                %347 = vst [vmem:[%s315 + $0x78] sm:$0xff] %v346
                %v348 = vld [vmem:[%s314 + $0x100] sm:$0xff]
                %349 = vst [vmem:[%s315 + $0x80] sm:$0xff] %v348
                %v350 = vld [vmem:[%s314 + $0x108] sm:$0xff]
                %351 = vst [vmem:[%s315 + $0x88] sm:$0xff] %v350
                %v352 = vld [vmem:[%s314 + $0x120] sm:$0xff]
                %353 = vst [vmem:[%s315 + $0x90] sm:$0xff] %v352
                %v354 = vld [vmem:[%s314 + $0x128] sm:$0xff]
                %355 = vst [vmem:[%s315 + $0x98] sm:$0xff] %v354
                %v356 = vld [vmem:[%s314 + $0x140] sm:$0xff]
                %357 = vst [vmem:[%s315 + $0xa0] sm:$0xff] %v356
                %v358 = vld [vmem:[%s314 + $0x148] sm:$0xff]
                %359 = vst [vmem:[%s315 + $0xa8] sm:$0xff] %v358
                %v360 = vld [vmem:[%s314 + $0x160] sm:$0xff]
                %361 = vst [vmem:[%s315 + $0xb0] sm:$0xff] %v360
                %v362 = vld [vmem:[%s314 + $0x168] sm:$0xff]
                %363 = vst [vmem:[%s315 + $0xb8] sm:$0xff] %v362
                %v364 = vld [vmem:[%s314 + $0x180] sm:$0xff]
                %365 = vst [vmem:[%s315 + $0xc0] sm:$0xff] %v364
                %v366 = vld [vmem:[%s314 + $0x188] sm:$0xff]
                %367 = vst [vmem:[%s315 + $0xc8] sm:$0xff] %v366
                %v368 = vld [vmem:[%s314 + $0x1a0] sm:$0xff]
                %369 = vst [vmem:[%s315 + $0xd0] sm:$0xff] %v368
                %v370 = vld [vmem:[%s314 + $0x1a8] sm:$0xff]
                %371 = vst [vmem:[%s315 + $0xd8] sm:$0xff] %v370
                %v372 = vld [vmem:[%s314 + $0x1c0] sm:$0xff]
                %373 = vst [vmem:[%s315 + $0xe0] sm:$0xff] %v372
                %v374 = vld [vmem:[%s314 + $0x1c8] sm:$0xff]
                %375 = vst [vmem:[%s315 + $0xe8] sm:$0xff] %v374
                %v376 = vld [vmem:[%s314 + $0x1e0] sm:$0xff]
                %377 = vst [vmem:[%s315 + $0xf0] sm:$0xff] %v376
                %v378 = vld [vmem:[%s314 + $0x1e8] sm:$0xff]
                %379 = vst [vmem:[%s315 + $0xf8] sm:$0xff] %v378
                %v380 = vld [vmem:[%s314 + $0x200] sm:$0xff]
                %381 = vst [vmem:[%s315 + $0x100] sm:$0xff] %v380
                %v382 = vld [vmem:[%s314 + $0x208] sm:$0xff]
                %383 = vst [vmem:[%s315 + $0x108] sm:$0xff] %v382
                %v384 = vld [vmem:[%s314 + $0x220] sm:$0xff]
                %385 = vst [vmem:[%s315 + $0x110] sm:$0xff] %v384
                %v386 = vld [vmem:[%s314 + $0x228] sm:$0xff]
                %387 = vst [vmem:[%s315 + $0x118] sm:$0xff] %v386
                %v388 = vld [vmem:[%s314 + $0x240] sm:$0xff]
                %389 = vst [vmem:[%s315 + $0x120] sm:$0xff] %v388
                %v390 = vld [vmem:[%s314 + $0x248] sm:$0xff]
                %391 = vst [vmem:[%s315 + $0x128] sm:$0xff] %v390
                %v392 = vld [vmem:[%s314 + $0x260] sm:$0xff]
                %393 = vst [vmem:[%s315 + $0x130] sm:$0xff] %v392
                %v394 = vld [vmem:[%s314 + $0x268] sm:$0xff]
                %395 = vst [vmem:[%s315 + $0x138] sm:$0xff] %v394
                %v396 = vld [vmem:[%s314 + $0x280] sm:$0xff]
                %397 = vst [vmem:[%s315 + $0x140] sm:$0xff] %v396
                %v398 = vld [vmem:[%s314 + $0x288] sm:$0xff]
                %399 = vst [vmem:[%s315 + $0x148] sm:$0xff] %v398
                %v400 = vld [vmem:[%s314 + $0x2a0] sm:$0xff]
                %401 = vst [vmem:[%s315 + $0x150] sm:$0xff] %v400
                %v402 = vld [vmem:[%s314 + $0x2a8] sm:$0xff]
                %403 = vst [vmem:[%s315 + $0x158] sm:$0xff] %v402
                %v404 = vld [vmem:[%s314 + $0x2c0] sm:$0xff]
                %405 = vst [vmem:[%s315 + $0x160] sm:$0xff] %v404
                %v406 = vld [vmem:[%s314 + $0x2c8] sm:$0xff]
                %407 = vst [vmem:[%s315 + $0x168] sm:$0xff] %v406
                %v408 = vld [vmem:[%s314 + $0x2e0] sm:$0xff]
                %409 = vst [vmem:[%s315 + $0x170] sm:$0xff] %v408
                %v410 = vld [vmem:[%s314 + $0x2e8] sm:$0xff]
                %411 = vst [vmem:[%s315 + $0x178] sm:$0xff] %v410
                %v412 = vld [vmem:[%s314 + $0x300] sm:$0xff]
                %413 = vst [vmem:[%s315 + $0x180] sm:$0xff] %v412
                %v414 = vld [vmem:[%s314 + $0x308] sm:$0xff]
                %415 = vst [vmem:[%s315 + $0x188] sm:$0xff] %v414
                %v416 = vld [vmem:[%s314 + $0x320] sm:$0xff]
                %417 = vst [vmem:[%s315 + $0x190] sm:$0xff] %v416
                %v418 = vld [vmem:[%s314 + $0x328] sm:$0xff]
                %419 = vst [vmem:[%s315 + $0x198] sm:$0xff] %v418
                %v420 = vld [vmem:[%s314 + $0x340] sm:$0xff]
                %421 = vst [vmem:[%s315 + $0x1a0] sm:$0xff] %v420
                %v422 = vld [vmem:[%s314 + $0x348] sm:$0xff]
                %423 = vst [vmem:[%s315 + $0x1a8] sm:$0xff] %v422
                %v424 = vld [vmem:[%s314 + $0x360] sm:$0xff]
                %425 = vst [vmem:[%s315 + $0x1b0] sm:$0xff] %v424
                %v426 = vld [vmem:[%s314 + $0x368] sm:$0xff]
                %427 = vst [vmem:[%s315 + $0x1b8] sm:$0xff] %v426
                %v428 = vld [vmem:[%s314 + $0x380] sm:$0xff]
                %429 = vst [vmem:[%s315 + $0x1c0] sm:$0xff] %v428
                %v430 = vld [vmem:[%s314 + $0x388] sm:$0xff]
                %431 = vst [vmem:[%s315 + $0x1c8] sm:$0xff] %v430
                %v432 = vld [vmem:[%s314 + $0x3a0] sm:$0xff]
                %433 = vst [vmem:[%s315 + $0x1d0] sm:$0xff] %v432
                %v434 = vld [vmem:[%s314 + $0x3a8] sm:$0xff]
                %435 = vst [vmem:[%s315 + $0x1d8] sm:$0xff] %v434
                %v436 = vld [vmem:[%s314 + $0x3c0] sm:$0xff]
                %437 = vst [vmem:[%s315 + $0x1e0] sm:$0xff] %v436
                %v438 = vld [vmem:[%s314 + $0x3c8] sm:$0xff]
                %439 = vst [vmem:[%s315 + $0x1e8] sm:$0xff] %v438
                %v440 = vld [vmem:[%s314 + $0x3e0] sm:$0xff]
                %441 = vst [vmem:[%s315 + $0x1f0] sm:$0xff] %v440
                %v442 = vld [vmem:[%s314 + $0x3e8] sm:$0xff]
                %443 = vst [vmem:[%s315 + $0x1f8] sm:$0xff] %v442
              $region49: #{fwd.10} parent=43 // loop_footer
                %s313 = sadd.s32 1, %s309
              $region50: #{fwd.10} parent=43 // loop_footer_branch
                %308 = sbr.rel target = $region46
              $region51: #{fwd.10} parent=43 // loop_exit
                _
            $region44: #{fwd.10} parent=39 // pred_fallthru
              _
            // Predicated region
            $region52: #{fwd.10} parent=39 // pred_check
              _
            $region53: #{fwd.10} parent=39 // pred_check_branch
              %445 = sbr.rel target = $region55
            $region54: #{fwd.10} parent=39 // pred_region
              _
            $region55: #{fwd.10} parent=39 // pred_fallthru
              _
          $region40: #{fwd.10} parent=35 // pred_fallthru
            _
          %446 = vnop
        $region36: #{fwd.10} parent=27 // pred_fallthru
          _
        // Predicated region
        $region56: #{fwd.10} parent=27 // pred_check
          %p447 = pneg %p170
        $region57: #{fwd.10} parent=27 // pred_check_branch
          %449 = sbr.rel (%p447) target = $region59
        $region58: #{fwd.10} parent=27 // pred_region
          %s450 = smul.u32 2, %s28
          %p451 = scmp.lt.s32.totalorder %s450, 3
          %s452 = scalar_select %p451, %s450, 3
          %s453 = smul.addr %s452, 8
          %s454 = scalar_lea.vmem %s5, %s453
          %s455 = smul.u32 2, %s28
        $region59: #{fwd.10} parent=27 // pred_fallthru
          _
      $region28: #{fwd.10} parent=5 // pred_fallthru
        _
      %p456 = scmp.le.s32.totalorder 1, %s21
      %p457 = scmp.lt.s32.totalorder %s21, 5
      %p458 = pnand %p456, %p457
      %p459 = pneg %p458
      // Predicated region
      $region60: #{fwd.10} parent=5 // pred_check
        _
      $region61: #{fwd.10} parent=5 // pred_check_branch
        %461 = sbr.rel (%p458) target = $region63
      $region62: #{fwd.10} parent=5 // pred_region
        %s462 = ssub.s32 %s21, 1
        %s463 = sand.u32 %s95, 1
        %s464 = sand.u32 %s95, 1
        %s465 = smul.addr %s464, 512
        %s466 = scalar_lea.vmem [#allocation3], %s465
        // Predicated region
        $region64: #{fwd.10} parent=62 // pred_check
          %p467 = pneg %p108
        $region65: #{fwd.10} parent=62 // pred_check_branch
          %469 = sbr.rel (%p467) target = $region67
        $region66: #{fwd.10} parent=62 // pred_region
          _
        $region67: #{fwd.10} parent=62 // pred_fallthru
          _
        %p470 = pneg %p54
        %p471 = pneg %p51
        %s472 = smul.u32 32, %s31
        %p473 = scmp.lt.s32.totalorder %s472, 63
        %s474 = scalar_select %p473, %s472, 63
        %s475 = smul.addr %s474, 8
        %s476 = scalar_lea.vmem %s1, %s475
        %p477 = pneg %p80
        %p478 = pneg %p77
        %s479 = sand.u32 %s95, 1
        %s480 = sand.u32 %s95, 1
        %s481 = smul.addr %s480, 512
        %s482 = scalar_lea.vmem [#allocation3], %s481
        %p483 = pneg %p108
        %p484 = pneg %p105
        %p485 = pneg %p129
        %p486 = pneg %p126
        %p487 = pneg %p150
        %p488 = pneg %p147
        %s489 = smul.u32 2, %s30
        %p490 = scmp.lt.s32.totalorder %s489, 3
        %s491 = scalar_select %p490, %s489, 3
        %s492 = smul.addr %s491, 8
        %s493 = scalar_lea.vmem %s5, %s492
        %p494 = pneg %p176
        %p495 = pneg %p173
        %p496 = pneg %p202
        %p497 = pneg %p199
        %s498 = sand.u32 %s189, 1
        %s499 = scalar_lea.sflag [#allocation5], %s498
        %s500 = sand.u32 %s189, 1
        %s501 = smul.addr %s500, 256
        %s502 = scalar_lea.vmem [#allocation4], %s501
        %p503 = pneg %p228
        %p504 = pneg %p225
        %s505 = sand.u32 %s215, 1
        %s506 = scalar_lea.sflag [#allocation7], %s505
        %s507 = sand.u32 %s215, 1
        %s508 = smul.addr %s507, 2
        %s509 = scalar_lea.vmem [#allocation6], %s508
        %p510 = pneg %p254
        %p511 = pneg %p251
        %p512 = scmp.lt.s32.totalorder %s30, 1
        %s513 = scalar_select %p512, %s30, 1
        %s514 = smul.addr %s513, 8
        %s515 = scalar_lea.vmem %s8, %s514
        %s516 = smul.u32 32, %s31
        %p517 = scmp.lt.s32.totalorder %s516, 63
        %s518 = scalar_select %p517, %s516, 63
        %s519 = smul.addr %s518, 8
        %s520 = scalar_lea.vmem %s1, %s519
        %s521 = smul.u32 32, %s31
        %s522 = smul.u32 32, %s30
        %s523 = smul.u32 2, %s31
        %s524 = smul.u32 2, %s30
        %p525 = scmp.lt.s32.totalorder %s524, 3
        %s526 = scalar_select %p525, %s524, 3
        %s527 = smul.addr %s526, 8
        %s528 = scalar_lea.vmem %s5, %s527
        %s529 = smul.u32 2, %s30
        %s530 = smul.u32 32, %s30
        %p531 = scmp.lt.s32.totalorder %s30, 1
        %s532 = scalar_select %p531, %s30, 1
        %s533 = smul.addr %s532, 8
        %s534 = scalar_lea.vmem %s8, %s533
        %p535 = scmp.eq.s32.totalorder %s31, 0
        // Predicated region
        $region68: #{fwd.10} parent=62 // pred_check
          %p536 = pneg %p535
        $region69: #{fwd.10} parent=62 // pred_check_branch
          %538 = sbr.rel (%p536) target = $region71
        $region70: #{fwd.10} parent=62 // pred_region
          %539 = vst [vmem:[#allocation2] sm:$0xff] 0.0
          %540 = vst [vmem:[#allocation2 + $0x8] sm:$0xff] 0.0
          %541 = vst [vmem:[#allocation2 + $0x10] sm:$0xff] 0.0
          %542 = vst [vmem:[#allocation2 + $0x18] sm:$0xff] 0.0
          %543 = vst [vmem:[#allocation2 + $0x20] sm:$0xff] 0.0
          %544 = vst [vmem:[#allocation2 + $0x28] sm:$0xff] 0.0
          %545 = vst [vmem:[#allocation2 + $0x30] sm:$0xff] 0.0
          %546 = vst [vmem:[#allocation2 + $0x38] sm:$0xff] 0.0
          %547 = vst [vmem:[#allocation2 + $0x40] sm:$0xff] 0.0
          %548 = vst [vmem:[#allocation2 + $0x48] sm:$0xff] 0.0
          %549 = vst [vmem:[#allocation2 + $0x50] sm:$0xff] 0.0
          %550 = vst [vmem:[#allocation2 + $0x58] sm:$0xff] 0.0
          %551 = vst [vmem:[#allocation2 + $0x60] sm:$0xff] 0.0
          %552 = vst [vmem:[#allocation2 + $0x68] sm:$0xff] 0.0
          %553 = vst [vmem:[#allocation2 + $0x70] sm:$0xff] 0.0
          %554 = vst [vmem:[#allocation2 + $0x78] sm:$0xff] 0.0
          %555 = vst [vmem:[#allocation2 + $0x80] sm:$0xff] 0.0
          %556 = vst [vmem:[#allocation2 + $0x88] sm:$0xff] 0.0
          %557 = vst [vmem:[#allocation2 + $0x90] sm:$0xff] 0.0
          %558 = vst [vmem:[#allocation2 + $0x98] sm:$0xff] 0.0
          %559 = vst [vmem:[#allocation2 + $0xa0] sm:$0xff] 0.0
          %560 = vst [vmem:[#allocation2 + $0xa8] sm:$0xff] 0.0
          %561 = vst [vmem:[#allocation2 + $0xb0] sm:$0xff] 0.0
          %562 = vst [vmem:[#allocation2 + $0xb8] sm:$0xff] 0.0
          %563 = vst [vmem:[#allocation2 + $0xc0] sm:$0xff] 0.0
          %564 = vst [vmem:[#allocation2 + $0xc8] sm:$0xff] 0.0
          %565 = vst [vmem:[#allocation2 + $0xd0] sm:$0xff] 0.0
          %566 = vst [vmem:[#allocation2 + $0xd8] sm:$0xff] 0.0
          %567 = vst [vmem:[#allocation2 + $0xe0] sm:$0xff] 0.0
          %568 = vst [vmem:[#allocation2 + $0xe8] sm:$0xff] 0.0
          %569 = vst [vmem:[#allocation2 + $0xf0] sm:$0xff] 0.0
          %570 = vst [vmem:[#allocation2 + $0xf8] sm:$0xff] 0.0
        $region71: #{fwd.10} parent=62 // pred_fallthru
          _
        %v571 = vld [vmem:[%s0] sm:$0x3]
        %v572 = vld [vmem:[%s0 + $0x2] sm:$0x3]
        %vm573 = vcmask 1041408
        %v574 = vsel %vm573, %v571, 0.0
        %v575 = vsel %vm573, %v572, 0.0
        %v576 = vadd.f32 %v574, %v575
        %v577 = vmul.f32 %v576, 0.002
        %v578 = vmul.f32 %v577, %v577
        %v580 = vrot.slane %v578, 7
        %v582 = vsub.f32 %v577, %v580
        %v583 = vadd.f32 %v582, 1e-05
        %v584 = vrsqrt.pop %v583
        %v585 = vmul.f32 %v584, %v583
        %v586 = vmul.f32 %v585, %v584
        %v587 = vmul.f32 0.5, %v586
        %v588 = vsub.f32 1.5, %v587
        %v589 = vmul.f32 %v584, %v588
        %vm590 = vweird.f32 %v583
        %vm591 = vweird.f32 %v584
        %vm592 = vmor %vm590, %vm591
        %v593 = vsel %vm592, %v584, %v589
        %v594 = vld [vmem:[%s3] sm:$0x1]
        %v596 = vrot.slane %v594, 7
        %v598 = vmul.f32 %v593, %v596
        %v599 = vld [vmem:[%s3 + $0x1] sm:$0x1]
        %v601 = vrot.slane %v598, 1
        %v603 = vmul.f32 %v577, %v601
        %v604 = vsub.f32 %v599, %v603
        %v605 = vld [vmem:[%s520] sm:$0xff]
        %v606 = vld [vmem:[%s520 + $0x8] sm:$0xff]
        %v607 = vld [vmem:[%s520 + $0x10] sm:$0xff]
        %v608 = vld [vmem:[%s520 + $0x18] sm:$0xff]
        %v609 = vld [vmem:[%s520 + $0x20] sm:$0xff]
        %v610 = vld [vmem:[%s520 + $0x28] sm:$0xff]
        %v611 = vld [vmem:[%s520 + $0x30] sm:$0xff]
        %v612 = vld [vmem:[%s520 + $0x38] sm:$0xff]
        %v613 = vld [vmem:[%s520 + $0x40] sm:$0xff]
        %v614 = vld [vmem:[%s520 + $0x48] sm:$0xff]
        %v615 = vld [vmem:[%s520 + $0x50] sm:$0xff]
        %v616 = vld [vmem:[%s520 + $0x58] sm:$0xff]
        %v617 = vld [vmem:[%s520 + $0x60] sm:$0xff]
        %v618 = vld [vmem:[%s520 + $0x68] sm:$0xff]
        %v619 = vld [vmem:[%s520 + $0x70] sm:$0xff]
        %v620 = vld [vmem:[%s520 + $0x78] sm:$0xff]
        %v621 = vld [vmem:[%s520 + $0x80] sm:$0xff]
        %v622 = vld [vmem:[%s520 + $0x88] sm:$0xff]
        %v623 = vld [vmem:[%s520 + $0x90] sm:$0xff]
        %v624 = vld [vmem:[%s520 + $0x98] sm:$0xff]
        %v625 = vld [vmem:[%s520 + $0xa0] sm:$0xff]
        %v626 = vld [vmem:[%s520 + $0xa8] sm:$0xff]
        %v627 = vld [vmem:[%s520 + $0xb0] sm:$0xff]
        %v628 = vld [vmem:[%s520 + $0xb8] sm:$0xff]
        %v629 = vld [vmem:[%s520 + $0xc0] sm:$0xff]
        %v630 = vld [vmem:[%s520 + $0xc8] sm:$0xff]
        %v631 = vld [vmem:[%s520 + $0xd0] sm:$0xff]
        %v632 = vld [vmem:[%s520 + $0xd8] sm:$0xff]
        %v633 = vld [vmem:[%s520 + $0xe0] sm:$0xff]
        %v634 = vld [vmem:[%s520 + $0xe8] sm:$0xff]
        %v635 = vld [vmem:[%s520 + $0xf0] sm:$0xff]
        %v636 = vld [vmem:[%s520 + $0xf8] sm:$0xff]
        %v637 = vperm.slane %v598, 1
        %v638 = vmul.f32 %v605, %v637
        %v639 = vmul.f32 %v606, %v637
        %v640 = vmul.f32 %v607, %v637
        %v641 = vmul.f32 %v608, %v637
        %v642 = vmul.f32 %v609, %v637
        %v643 = vmul.f32 %v610, %v637
        %v644 = vmul.f32 %v611, %v637
        %v645 = vmul.f32 %v612, %v637
        %v646 = vmul.f32 %v613, %v637
        %v647 = vmul.f32 %v614, %v637
        %v648 = vmul.f32 %v615, %v637
        %v649 = vmul.f32 %v616, %v637
        %v650 = vmul.f32 %v617, %v637
        %v651 = vmul.f32 %v618, %v637
        %v652 = vmul.f32 %v619, %v637
        %v653 = vmul.f32 %v620, %v637
        %v654 = vmul.f32 %v621, %v637
        %v655 = vmul.f32 %v622, %v637
        %v656 = vmul.f32 %v623, %v637
        %v657 = vmul.f32 %v624, %v637
        %v658 = vmul.f32 %v625, %v637
        %v659 = vmul.f32 %v626, %v637
        %v660 = vmul.f32 %v627, %v637
        %v661 = vmul.f32 %v628, %v637
        %v662 = vmul.f32 %v629, %v637
        %v663 = vmul.f32 %v630, %v637
        %v664 = vmul.f32 %v631, %v637
        %v665 = vmul.f32 %v632, %v637
        %v666 = vmul.f32 %v633, %v637
        %v667 = vmul.f32 %v634, %v637
        %v668 = vmul.f32 %v635, %v637
        %v669 = vmul.f32 %v636, %v637
        %v670 = vperm.slane %v604, 0
        %v671 = vadd.f32 %v638, %v670
        %v672 = vadd.f32 %v639, %v670
        %v673 = vadd.f32 %v640, %v670
        %v674 = vadd.f32 %v641, %v670
        %v675 = vadd.f32 %v642, %v670
        %v676 = vadd.f32 %v643, %v670
        %v677 = vadd.f32 %v644, %v670
        %v678 = vadd.f32 %v645, %v670
        %v679 = vadd.f32 %v646, %v670
        %v680 = vadd.f32 %v647, %v670
        %v681 = vadd.f32 %v648, %v670
        %v682 = vadd.f32 %v649, %v670
        %v683 = vadd.f32 %v650, %v670
        %v684 = vadd.f32 %v651, %v670
        %v685 = vadd.f32 %v652, %v670
        %v686 = vadd.f32 %v653, %v670
        %v687 = vadd.f32 %v654, %v670
        %v688 = vadd.f32 %v655, %v670
        %v689 = vadd.f32 %v656, %v670
        %v690 = vadd.f32 %v657, %v670
        %v691 = vadd.f32 %v658, %v670
        %v692 = vadd.f32 %v659, %v670
        %v693 = vadd.f32 %v660, %v670
        %v694 = vadd.f32 %v661, %v670
        %v695 = vadd.f32 %v662, %v670
        %v696 = vadd.f32 %v663, %v670
        %v697 = vadd.f32 %v664, %v670
        %v698 = vadd.f32 %v665, %v670
        %v699 = vadd.f32 %v666, %v670
        %v700 = vadd.f32 %v667, %v670
        %v701 = vadd.f32 %v668, %v670
        %v702 = vadd.f32 %v669, %v670
        %v703 = vld [vmem:[#allocation2] sm:$0xff]
        %v704 = vld [vmem:[#allocation2 + $0x8] sm:$0xff]
        %v705 = vld [vmem:[#allocation2 + $0x10] sm:$0xff]
        %v706 = vld [vmem:[#allocation2 + $0x18] sm:$0xff]
        %v707 = vld [vmem:[#allocation2 + $0x20] sm:$0xff]
        %v708 = vld [vmem:[#allocation2 + $0x28] sm:$0xff]
        %v709 = vld [vmem:[#allocation2 + $0x30] sm:$0xff]
        %v710 = vld [vmem:[#allocation2 + $0x38] sm:$0xff]
        %v711 = vld [vmem:[#allocation2 + $0x40] sm:$0xff]
        %v712 = vld [vmem:[#allocation2 + $0x48] sm:$0xff]
        %v713 = vld [vmem:[#allocation2 + $0x50] sm:$0xff]
        %v714 = vld [vmem:[#allocation2 + $0x58] sm:$0xff]
        %v715 = vld [vmem:[#allocation2 + $0x60] sm:$0xff]
        %v716 = vld [vmem:[#allocation2 + $0x68] sm:$0xff]
        %v717 = vld [vmem:[#allocation2 + $0x70] sm:$0xff]
        %v718 = vld [vmem:[#allocation2 + $0x78] sm:$0xff]
        %v719 = vld [vmem:[#allocation2 + $0x80] sm:$0xff]
        %v720 = vld [vmem:[#allocation2 + $0x88] sm:$0xff]
        %v721 = vld [vmem:[#allocation2 + $0x90] sm:$0xff]
        %v722 = vld [vmem:[#allocation2 + $0x98] sm:$0xff]
        %v723 = vld [vmem:[#allocation2 + $0xa0] sm:$0xff]
        %v724 = vld [vmem:[#allocation2 + $0xa8] sm:$0xff]
        %v725 = vld [vmem:[#allocation2 + $0xb0] sm:$0xff]
        %v726 = vld [vmem:[#allocation2 + $0xb8] sm:$0xff]
        %v727 = vld [vmem:[#allocation2 + $0xc0] sm:$0xff]
        %v728 = vld [vmem:[#allocation2 + $0xc8] sm:$0xff]
        %v729 = vld [vmem:[#allocation2 + $0xd0] sm:$0xff]
        %v730 = vld [vmem:[#allocation2 + $0xd8] sm:$0xff]
        %v731 = vld [vmem:[#allocation2 + $0xe0] sm:$0xff]
        %v732 = vld [vmem:[#allocation2 + $0xe8] sm:$0xff]
        %v733 = vld [vmem:[#allocation2 + $0xf0] sm:$0xff]
        %v734 = vld [vmem:[#allocation2 + $0xf8] sm:$0xff]
        %v735 = vld [vmem:[%s466] sm:$0xff]
        %v736 = vld [vmem:[%s466 + $0x8] sm:$0xff]
        %v737 = vld [vmem:[%s466 + $0x10] sm:$0xff]
        %v738 = vld [vmem:[%s466 + $0x18] sm:$0xff]
        %v739 = vld [vmem:[%s466 + $0x20] sm:$0xff]
        %v740 = vld [vmem:[%s466 + $0x28] sm:$0xff]
        %v741 = vld [vmem:[%s466 + $0x30] sm:$0xff]
        %v742 = vld [vmem:[%s466 + $0x38] sm:$0xff]
        %v743 = vld [vmem:[%s466 + $0x40] sm:$0xff]
        %v744 = vld [vmem:[%s466 + $0x48] sm:$0xff]
        %v745 = vld [vmem:[%s466 + $0x50] sm:$0xff]
        %v746 = vld [vmem:[%s466 + $0x58] sm:$0xff]
        %v747 = vld [vmem:[%s466 + $0x60] sm:$0xff]
        %v748 = vld [vmem:[%s466 + $0x68] sm:$0xff]
        %v749 = vld [vmem:[%s466 + $0x70] sm:$0xff]
        %v750 = vld [vmem:[%s466 + $0x78] sm:$0xff]
        %v751 = vld [vmem:[%s466 + $0x80] sm:$0xff]
        %v752 = vld [vmem:[%s466 + $0x88] sm:$0xff]
        %v753 = vld [vmem:[%s466 + $0x90] sm:$0xff]
        %v754 = vld [vmem:[%s466 + $0x98] sm:$0xff]
        %v755 = vld [vmem:[%s466 + $0xa0] sm:$0xff]
        %v756 = vld [vmem:[%s466 + $0xa8] sm:$0xff]
        %v757 = vld [vmem:[%s466 + $0xb0] sm:$0xff]
        %v758 = vld [vmem:[%s466 + $0xb8] sm:$0xff]
        %v759 = vld [vmem:[%s466 + $0xc0] sm:$0xff]
        %v760 = vld [vmem:[%s466 + $0xc8] sm:$0xff]
        %v761 = vld [vmem:[%s466 + $0xd0] sm:$0xff]
        %v762 = vld [vmem:[%s466 + $0xd8] sm:$0xff]
        %v763 = vld [vmem:[%s466 + $0xe0] sm:$0xff]
        %v764 = vld [vmem:[%s466 + $0xe8] sm:$0xff]
        %v765 = vld [vmem:[%s466 + $0xf0] sm:$0xff]
        %v766 = vld [vmem:[%s466 + $0xf8] sm:$0xff]
        %v767 = vld [vmem:[%s466 + $0x100] sm:$0xff]
        %v768 = vld [vmem:[%s466 + $0x108] sm:$0xff]
        %v769 = vld [vmem:[%s466 + $0x110] sm:$0xff]
        %v770 = vld [vmem:[%s466 + $0x118] sm:$0xff]
        %v771 = vld [vmem:[%s466 + $0x120] sm:$0xff]
        %v772 = vld [vmem:[%s466 + $0x128] sm:$0xff]
        %v773 = vld [vmem:[%s466 + $0x130] sm:$0xff]
        %v774 = vld [vmem:[%s466 + $0x138] sm:$0xff]
        %v775 = vld [vmem:[%s466 + $0x140] sm:$0xff]
        %v776 = vld [vmem:[%s466 + $0x148] sm:$0xff]
        %v777 = vld [vmem:[%s466 + $0x150] sm:$0xff]
        %v778 = vld [vmem:[%s466 + $0x158] sm:$0xff]
        %v779 = vld [vmem:[%s466 + $0x160] sm:$0xff]
        %v780 = vld [vmem:[%s466 + $0x168] sm:$0xff]
        %v781 = vld [vmem:[%s466 + $0x170] sm:$0xff]
        %v782 = vld [vmem:[%s466 + $0x178] sm:$0xff]
        %v783 = vld [vmem:[%s466 + $0x180] sm:$0xff]
        %v784 = vld [vmem:[%s466 + $0x188] sm:$0xff]
        %v785 = vld [vmem:[%s466 + $0x190] sm:$0xff]
        %v786 = vld [vmem:[%s466 + $0x198] sm:$0xff]
        %v787 = vld [vmem:[%s466 + $0x1a0] sm:$0xff]
        %v788 = vld [vmem:[%s466 + $0x1a8] sm:$0xff]
        %v789 = vld [vmem:[%s466 + $0x1b0] sm:$0xff]
        %v790 = vld [vmem:[%s466 + $0x1b8] sm:$0xff]
        %v791 = vld [vmem:[%s466 + $0x1c0] sm:$0xff]
        %v792 = vld [vmem:[%s466 + $0x1c8] sm:$0xff]
        %v793 = vld [vmem:[%s466 + $0x1d0] sm:$0xff]
        %v794 = vld [vmem:[%s466 + $0x1d8] sm:$0xff]
        %v795 = vld [vmem:[%s466 + $0x1e0] sm:$0xff]
        %v796 = vld [vmem:[%s466 + $0x1e8] sm:$0xff]
        %v797 = vld [vmem:[%s466 + $0x1f0] sm:$0xff]
        %v798 = vld [vmem:[%s466 + $0x1f8] sm:$0xff]
        %799 = vmatpush.msra.mxu0 %v686
        %800 = vmatpush.msra.mxu0 %v685
        %801 = vmatpush.msra.mxu0 %v684
        %802 = vmatpush.msra.mxu0 %v683
        %803 = vmatpush.msra.mxu0 %v682
        %804 = vmatpush.msra.mxu0 %v681
        %805 = vmatpush.msra.mxu0 %v680
        %806 = vmatpush.msra.mxu0 %v679
        %807 = vmatpush.msra.mxu0 %v678
        %808 = vmatpush.msra.mxu0 %v677
        %809 = vmatpush.msra.mxu0 %v676
        %810 = vmatpush.msra.mxu0 %v675
        %811 = vmatpush.msra.mxu0 %v674
        %812 = vmatpush.msra.mxu0 %v673
        %813 = vmatpush.msra.mxu0 %v672
        %814 = vmatpush.msra.mxu0 %v671
        %815 = vmatmul.f32.gmra.mxu0 %v735
        %v816 = vpop.f32.mrf.mxu0
        %v817 = vadd.f32 0.0, %v816
        %818 = vmatmul.f32.gmra.mxu0 %v737
        %v819 = vpop.f32.mrf.mxu0
        %v820 = vadd.f32 0.0, %v819
        %821 = vmatmul.f32.gmra.mxu0 %v739
        %v822 = vpop.f32.mrf.mxu0
        %v823 = vadd.f32 0.0, %v822
        %824 = vmatmul.f32.gmra.mxu0 %v741
        %v825 = vpop.f32.mrf.mxu0
        %v826 = vadd.f32 0.0, %v825
        %827 = vmatmul.f32.gmra.mxu0 %v743
        %v828 = vpop.f32.mrf.mxu0
        %v829 = vadd.f32 0.0, %v828
        %830 = vmatmul.f32.gmra.mxu0 %v745
        %v831 = vpop.f32.mrf.mxu0
        %v832 = vadd.f32 0.0, %v831
        %833 = vmatmul.f32.gmra.mxu0 %v747
        %v834 = vpop.f32.mrf.mxu0
        %v835 = vadd.f32 0.0, %v834
        %836 = vmatmul.f32.gmra.mxu0 %v749
        %v837 = vpop.f32.mrf.mxu0
        %v838 = vadd.f32 0.0, %v837
        %839 = vmatmul.f32.gmra.mxu0 %v751
        %v840 = vpop.f32.mrf.mxu0
        %v841 = vadd.f32 0.0, %v840
        %842 = vmatmul.f32.gmra.mxu0 %v753
        %v843 = vpop.f32.mrf.mxu0
        %v844 = vadd.f32 0.0, %v843
        %845 = vmatmul.f32.gmra.mxu0 %v755
        %v846 = vpop.f32.mrf.mxu0
        %v847 = vadd.f32 0.0, %v846
        %848 = vmatmul.f32.gmra.mxu0 %v757
        %v849 = vpop.f32.mrf.mxu0
        %v850 = vadd.f32 0.0, %v849
        %851 = vmatmul.f32.gmra.mxu0 %v759
        %v852 = vpop.f32.mrf.mxu0
        %v853 = vadd.f32 0.0, %v852
        %854 = vmatmul.f32.gmra.mxu0 %v761
        %v855 = vpop.f32.mrf.mxu0
        %v856 = vadd.f32 0.0, %v855
        %857 = vmatmul.f32.gmra.mxu0 %v763
        %v858 = vpop.f32.mrf.mxu0
        %v859 = vadd.f32 0.0, %v858
        %860 = vmatmul.f32.gmra.mxu0 %v765
        %v861 = vpop.f32.mrf.mxu0
        %v862 = vadd.f32 0.0, %v861
        %863 = vmatmul.f32.gmra.mxu0 %v767
        %v864 = vpop.f32.mrf.mxu0
        %v865 = vadd.f32 0.0, %v864
        %866 = vmatmul.f32.gmra.mxu0 %v769
        %v867 = vpop.f32.mrf.mxu0
        %v868 = vadd.f32 0.0, %v867
        %869 = vmatmul.f32.gmra.mxu0 %v771
        %v870 = vpop.f32.mrf.mxu0
        %v871 = vadd.f32 0.0, %v870
        %872 = vmatmul.f32.gmra.mxu0 %v773
        %v873 = vpop.f32.mrf.mxu0
        %v874 = vadd.f32 0.0, %v873
        %875 = vmatmul.f32.gmra.mxu0 %v775
        %v876 = vpop.f32.mrf.mxu0
        %v877 = vadd.f32 0.0, %v876
        %878 = vmatmul.f32.gmra.mxu0 %v777
        %v879 = vpop.f32.mrf.mxu0
        %v880 = vadd.f32 0.0, %v879
        %881 = vmatmul.f32.gmra.mxu0 %v779
        %v882 = vpop.f32.mrf.mxu0
        %v883 = vadd.f32 0.0, %v882
        %884 = vmatmul.f32.gmra.mxu0 %v781
        %v885 = vpop.f32.mrf.mxu0
        %v886 = vadd.f32 0.0, %v885
        %887 = vmatmul.f32.gmra.mxu0 %v783
        %v888 = vpop.f32.mrf.mxu0
        %v889 = vadd.f32 0.0, %v888
        %890 = vmatmul.f32.gmra.mxu0 %v785
        %v891 = vpop.f32.mrf.mxu0
        %v892 = vadd.f32 0.0, %v891
        %893 = vmatmul.f32.gmra.mxu0 %v787
        %v894 = vpop.f32.mrf.mxu0
        %v895 = vadd.f32 0.0, %v894
        %896 = vmatmul.f32.gmra.mxu0 %v789
        %v897 = vpop.f32.mrf.mxu0
        %v898 = vadd.f32 0.0, %v897
        %899 = vmatmul.f32.gmra.mxu0 %v791
        %v900 = vpop.f32.mrf.mxu0
        %v901 = vadd.f32 0.0, %v900
        %902 = vmatmul.f32.gmra.mxu0 %v793
        %v903 = vpop.f32.mrf.mxu0
        %v904 = vadd.f32 0.0, %v903
        %905 = vmatmul.f32.gmra.mxu0 %v795
        %v906 = vpop.f32.mrf.mxu0
        %v907 = vadd.f32 0.0, %v906
        %908 = vmatmul.f32.gmra.mxu0 %v797
        %v909 = vpop.f32.mrf.mxu0
        %v910 = vadd.f32 0.0, %v909
        %911 = vdwg.mxu0
        %912 = vmatpush.msra.mxu0 %v702
        %913 = vmatpush.msra.mxu0 %v701
        %914 = vmatpush.msra.mxu0 %v700
        %915 = vmatpush.msra.mxu0 %v699
        %916 = vmatpush.msra.mxu0 %v698
        %917 = vmatpush.msra.mxu0 %v697
        %918 = vmatpush.msra.mxu0 %v696
        %919 = vmatpush.msra.mxu0 %v695
        %920 = vmatpush.msra.mxu0 %v694
        %921 = vmatpush.msra.mxu0 %v693
        %922 = vmatpush.msra.mxu0 %v692
        %923 = vmatpush.msra.mxu0 %v691
        %924 = vmatpush.msra.mxu0 %v690
        %925 = vmatpush.msra.mxu0 %v689
        %926 = vmatpush.msra.mxu0 %v688
        %927 = vmatpush.msra.mxu0 %v687
        %928 = vmatmul.f32.gmra.mxu0 %v736
        %v929 = vpop.f32.mrf.mxu0
        %v930 = vadd.f32 %v817, %v929
        %931 = vmatmul.f32.gmra.mxu0 %v738
        %v932 = vpop.f32.mrf.mxu0
        %v933 = vadd.f32 %v820, %v932
        %934 = vmatmul.f32.gmra.mxu0 %v740
        %v935 = vpop.f32.mrf.mxu0
        %v936 = vadd.f32 %v823, %v935
        %937 = vmatmul.f32.gmra.mxu0 %v742
        %v938 = vpop.f32.mrf.mxu0
        %v939 = vadd.f32 %v826, %v938
        %940 = vmatmul.f32.gmra.mxu0 %v744
        %v941 = vpop.f32.mrf.mxu0
        %v942 = vadd.f32 %v829, %v941
        %943 = vmatmul.f32.gmra.mxu0 %v746
        %v944 = vpop.f32.mrf.mxu0
        %v945 = vadd.f32 %v832, %v944
        %946 = vmatmul.f32.gmra.mxu0 %v748
        %v947 = vpop.f32.mrf.mxu0
        %v948 = vadd.f32 %v835, %v947
        %949 = vmatmul.f32.gmra.mxu0 %v750
        %v950 = vpop.f32.mrf.mxu0
        %v951 = vadd.f32 %v838, %v950
        %952 = vmatmul.f32.gmra.mxu0 %v752
        %v953 = vpop.f32.mrf.mxu0
        %v954 = vadd.f32 %v841, %v953
        %955 = vmatmul.f32.gmra.mxu0 %v754
        %v956 = vpop.f32.mrf.mxu0
        %v957 = vadd.f32 %v844, %v956
        %958 = vmatmul.f32.gmra.mxu0 %v756
        %v959 = vpop.f32.mrf.mxu0
        %v960 = vadd.f32 %v847, %v959
        %961 = vmatmul.f32.gmra.mxu0 %v758
        %v962 = vpop.f32.mrf.mxu0
        %v963 = vadd.f32 %v850, %v962
        %964 = vmatmul.f32.gmra.mxu0 %v760
        %v965 = vpop.f32.mrf.mxu0
        %v966 = vadd.f32 %v853, %v965
        %967 = vmatmul.f32.gmra.mxu0 %v762
        %v968 = vpop.f32.mrf.mxu0
        %v969 = vadd.f32 %v856, %v968
        %970 = vmatmul.f32.gmra.mxu0 %v764
        %v971 = vpop.f32.mrf.mxu0
        %v972 = vadd.f32 %v859, %v971
        %973 = vmatmul.f32.gmra.mxu0 %v766
        %v974 = vpop.f32.mrf.mxu0
        %v975 = vadd.f32 %v862, %v974
        %976 = vmatmul.f32.gmra.mxu0 %v768
        %v977 = vpop.f32.mrf.mxu0
        %v978 = vadd.f32 %v865, %v977
        %979 = vmatmul.f32.gmra.mxu0 %v770
        %v980 = vpop.f32.mrf.mxu0
        %v981 = vadd.f32 %v868, %v980
        %982 = vmatmul.f32.gmra.mxu0 %v772
        %v983 = vpop.f32.mrf.mxu0
        %v984 = vadd.f32 %v871, %v983
        %985 = vmatmul.f32.gmra.mxu0 %v774
        %v986 = vpop.f32.mrf.mxu0
        %v987 = vadd.f32 %v874, %v986
        %988 = vmatmul.f32.gmra.mxu0 %v776
        %v989 = vpop.f32.mrf.mxu0
        %v990 = vadd.f32 %v877, %v989
        %991 = vmatmul.f32.gmra.mxu0 %v778
        %v992 = vpop.f32.mrf.mxu0
        %v993 = vadd.f32 %v880, %v992
        %994 = vmatmul.f32.gmra.mxu0 %v780
        %v995 = vpop.f32.mrf.mxu0
        %v996 = vadd.f32 %v883, %v995
        %997 = vmatmul.f32.gmra.mxu0 %v782
        %v998 = vpop.f32.mrf.mxu0
        %v999 = vadd.f32 %v886, %v998
        %1000 = vmatmul.f32.gmra.mxu0 %v784
        %v1001 = vpop.f32.mrf.mxu0
        %v1002 = vadd.f32 %v889, %v1001
        %1003 = vmatmul.f32.gmra.mxu0 %v786
        %v1004 = vpop.f32.mrf.mxu0
        %v1005 = vadd.f32 %v892, %v1004
        %1006 = vmatmul.f32.gmra.mxu0 %v788
        %v1007 = vpop.f32.mrf.mxu0
        %v1008 = vadd.f32 %v895, %v1007
        %1009 = vmatmul.f32.gmra.mxu0 %v790
        %v1010 = vpop.f32.mrf.mxu0
        %v1011 = vadd.f32 %v898, %v1010
        %1012 = vmatmul.f32.gmra.mxu0 %v792
        %v1013 = vpop.f32.mrf.mxu0
        %v1014 = vadd.f32 %v901, %v1013
        %1015 = vmatmul.f32.gmra.mxu0 %v794
        %v1016 = vpop.f32.mrf.mxu0
        %v1017 = vadd.f32 %v904, %v1016
        %1018 = vmatmul.f32.gmra.mxu0 %v796
        %v1019 = vpop.f32.mrf.mxu0
        %v1020 = vadd.f32 %v907, %v1019
        %1021 = vmatmul.f32.gmra.mxu0 %v798
        %v1022 = vpop.f32.mrf.mxu0
        %v1023 = vadd.f32 %v910, %v1022
        %1024 = vdwg.mxu0
        %v1025 = vadd.f32 %v703, %v930
        %v1026 = vadd.f32 %v704, %v933
        %v1027 = vadd.f32 %v705, %v936
        %v1028 = vadd.f32 %v706, %v939
        %v1029 = vadd.f32 %v707, %v942
        %v1030 = vadd.f32 %v708, %v945
        %v1031 = vadd.f32 %v709, %v948
        %v1032 = vadd.f32 %v710, %v951
        %v1033 = vadd.f32 %v711, %v954
        %v1034 = vadd.f32 %v712, %v957
        %v1035 = vadd.f32 %v713, %v960
        %v1036 = vadd.f32 %v714, %v963
        %v1037 = vadd.f32 %v715, %v966
        %v1038 = vadd.f32 %v716, %v969
        %v1039 = vadd.f32 %v717, %v972
        %v1040 = vadd.f32 %v718, %v975
        %v1041 = vadd.f32 %v719, %v978
        %v1042 = vadd.f32 %v720, %v981
        %v1043 = vadd.f32 %v721, %v984
        %v1044 = vadd.f32 %v722, %v987
        %v1045 = vadd.f32 %v723, %v990
        %v1046 = vadd.f32 %v724, %v993
        %v1047 = vadd.f32 %v725, %v996
        %v1048 = vadd.f32 %v726, %v999
        %v1049 = vadd.f32 %v727, %v1002
        %v1050 = vadd.f32 %v728, %v1005
        %v1051 = vadd.f32 %v729, %v1008
        %v1052 = vadd.f32 %v730, %v1011
        %v1053 = vadd.f32 %v731, %v1014
        %v1054 = vadd.f32 %v732, %v1017
        %v1055 = vadd.f32 %v733, %v1020
        %v1056 = vadd.f32 %v734, %v1023
        %1057 = vst [vmem:[#allocation2] sm:$0xff] %v1025
        %1058 = vst [vmem:[#allocation2 + $0x8] sm:$0xff] %v1026
        %1059 = vst [vmem:[#allocation2 + $0x10] sm:$0xff] %v1027
        %1060 = vst [vmem:[#allocation2 + $0x18] sm:$0xff] %v1028
        %1061 = vst [vmem:[#allocation2 + $0x20] sm:$0xff] %v1029
        %1062 = vst [vmem:[#allocation2 + $0x28] sm:$0xff] %v1030
        %1063 = vst [vmem:[#allocation2 + $0x30] sm:$0xff] %v1031
        %1064 = vst [vmem:[#allocation2 + $0x38] sm:$0xff] %v1032
        %1065 = vst [vmem:[#allocation2 + $0x40] sm:$0xff] %v1033
        %1066 = vst [vmem:[#allocation2 + $0x48] sm:$0xff] %v1034
        %1067 = vst [vmem:[#allocation2 + $0x50] sm:$0xff] %v1035
        %1068 = vst [vmem:[#allocation2 + $0x58] sm:$0xff] %v1036
        %1069 = vst [vmem:[#allocation2 + $0x60] sm:$0xff] %v1037
        %1070 = vst [vmem:[#allocation2 + $0x68] sm:$0xff] %v1038
        %1071 = vst [vmem:[#allocation2 + $0x70] sm:$0xff] %v1039
        %1072 = vst [vmem:[#allocation2 + $0x78] sm:$0xff] %v1040
        %1073 = vst [vmem:[#allocation2 + $0x80] sm:$0xff] %v1041
        %1074 = vst [vmem:[#allocation2 + $0x88] sm:$0xff] %v1042
        %1075 = vst [vmem:[#allocation2 + $0x90] sm:$0xff] %v1043
        %1076 = vst [vmem:[#allocation2 + $0x98] sm:$0xff] %v1044
        %1077 = vst [vmem:[#allocation2 + $0xa0] sm:$0xff] %v1045
        %1078 = vst [vmem:[#allocation2 + $0xa8] sm:$0xff] %v1046
        %1079 = vst [vmem:[#allocation2 + $0xb0] sm:$0xff] %v1047
        %1080 = vst [vmem:[#allocation2 + $0xb8] sm:$0xff] %v1048
        %1081 = vst [vmem:[#allocation2 + $0xc0] sm:$0xff] %v1049
        %1082 = vst [vmem:[#allocation2 + $0xc8] sm:$0xff] %v1050
        %1083 = vst [vmem:[#allocation2 + $0xd0] sm:$0xff] %v1051
        %1084 = vst [vmem:[#allocation2 + $0xd8] sm:$0xff] %v1052
        %1085 = vst [vmem:[#allocation2 + $0xe0] sm:$0xff] %v1053
        %1086 = vst [vmem:[#allocation2 + $0xe8] sm:$0xff] %v1054
        %1087 = vst [vmem:[#allocation2 + $0xf0] sm:$0xff] %v1055
        %1088 = vst [vmem:[#allocation2 + $0xf8] sm:$0xff] %v1056
        %p1089 = scmp.eq.s32.totalorder %s31, 1
        // Predicated region
        $region72: #{fwd.10} parent=62 // pred_check
          %p1090 = pneg %p1089
        $region73: #{fwd.10} parent=62 // pred_check_branch
          %1092 = sbr.rel (%p1090) target = $region75
        $region74: #{fwd.10} parent=62 // pred_region
          %v1093 = vld [vmem:[#allocation2] sm:$0xff]
          %v1094 = vld [vmem:[#allocation2 + $0x8] sm:$0xff]
          %v1095 = vld [vmem:[#allocation2 + $0x10] sm:$0xff]
          %v1096 = vld [vmem:[#allocation2 + $0x18] sm:$0xff]
          %v1097 = vld [vmem:[#allocation2 + $0x20] sm:$0xff]
          %v1098 = vld [vmem:[#allocation2 + $0x28] sm:$0xff]
          %v1099 = vld [vmem:[#allocation2 + $0x30] sm:$0xff]
          %v1100 = vld [vmem:[#allocation2 + $0x38] sm:$0xff]
          %v1101 = vld [vmem:[#allocation2 + $0x40] sm:$0xff]
          %v1102 = vld [vmem:[#allocation2 + $0x48] sm:$0xff]
          %v1103 = vld [vmem:[#allocation2 + $0x50] sm:$0xff]
          %v1104 = vld [vmem:[#allocation2 + $0x58] sm:$0xff]
          %v1105 = vld [vmem:[#allocation2 + $0x60] sm:$0xff]
          %v1106 = vld [vmem:[#allocation2 + $0x68] sm:$0xff]
          %v1107 = vld [vmem:[#allocation2 + $0x70] sm:$0xff]
          %v1108 = vld [vmem:[#allocation2 + $0x78] sm:$0xff]
          %v1109 = vld [vmem:[#allocation2 + $0x80] sm:$0xff]
          %v1110 = vld [vmem:[#allocation2 + $0x88] sm:$0xff]
          %v1111 = vld [vmem:[#allocation2 + $0x90] sm:$0xff]
          %v1112 = vld [vmem:[#allocation2 + $0x98] sm:$0xff]
          %v1113 = vld [vmem:[#allocation2 + $0xa0] sm:$0xff]
          %v1114 = vld [vmem:[#allocation2 + $0xa8] sm:$0xff]
          %v1115 = vld [vmem:[#allocation2 + $0xb0] sm:$0xff]
          %v1116 = vld [vmem:[#allocation2 + $0xb8] sm:$0xff]
          %v1117 = vld [vmem:[#allocation2 + $0xc0] sm:$0xff]
          %v1118 = vld [vmem:[#allocation2 + $0xc8] sm:$0xff]
          %v1119 = vld [vmem:[#allocation2 + $0xd0] sm:$0xff]
          %v1120 = vld [vmem:[#allocation2 + $0xd8] sm:$0xff]
          %v1121 = vld [vmem:[#allocation2 + $0xe0] sm:$0xff]
          %v1122 = vld [vmem:[#allocation2 + $0xe8] sm:$0xff]
          %v1123 = vld [vmem:[#allocation2 + $0xf0] sm:$0xff]
          %v1124 = vld [vmem:[#allocation2 + $0xf8] sm:$0xff]
          %v1125 = vld [vmem:[%s4] sm:$0xff]
          %v1126 = vld [vmem:[%s4 + $0x8] sm:$0xff]
          %v1127 = vld [vmem:[%s4 + $0x10] sm:$0xff]
          %v1128 = vld [vmem:[%s4 + $0x18] sm:$0xff]
          %v1129 = vld [vmem:[%s4 + $0x20] sm:$0xff]
          %v1130 = vld [vmem:[%s4 + $0x28] sm:$0xff]
          %v1131 = vld [vmem:[%s4 + $0x30] sm:$0xff]
          %v1132 = vld [vmem:[%s4 + $0x38] sm:$0xff]
          %v1133 = vld [vmem:[%s4 + $0x40] sm:$0xff]
          %v1134 = vld [vmem:[%s4 + $0x48] sm:$0xff]
          %v1135 = vld [vmem:[%s4 + $0x50] sm:$0xff]
          %v1136 = vld [vmem:[%s4 + $0x58] sm:$0xff]
          %v1137 = vld [vmem:[%s4 + $0x60] sm:$0xff]
          %v1138 = vld [vmem:[%s4 + $0x68] sm:$0xff]
          %v1139 = vld [vmem:[%s4 + $0x70] sm:$0xff]
          %v1140 = vld [vmem:[%s4 + $0x78] sm:$0xff]
          %v1141 = vld [vmem:[%s3 + $0x2] sm:$0x1]
          %v1142 = vperm.slane %v1141, 0
          %1143 = vmatpush.msra.mxu0 %v1140
          %1144 = vmatpush.msra.mxu0 %v1139
          %1145 = vmatpush.msra.mxu0 %v1138
          %1146 = vmatpush.msra.mxu0 %v1137
          %1147 = vmatpush.msra.mxu0 %v1136
          %1148 = vmatpush.msra.mxu0 %v1135
          %1149 = vmatpush.msra.mxu0 %v1134
          %1150 = vmatpush.msra.mxu0 %v1133
          %1151 = vmatpush.msra.mxu0 %v1132
          %1152 = vmatpush.msra.mxu0 %v1131
          %1153 = vmatpush.msra.mxu0 %v1130
          %1154 = vmatpush.msra.mxu0 %v1129
          %1155 = vmatpush.msra.mxu0 %v1128
          %1156 = vmatpush.msra.mxu0 %v1127
          %1157 = vmatpush.msra.mxu0 %v1126
          %1158 = vmatpush.msra.mxu0 %v1125
          %1159 = vmatmul.f32.gmra.mxu0 %v1093
          %v1160 = vpop.f32.mrf.mxu0
          %v1161 = vadd.f32 %v1142, %v1160
          %1162 = vmatmul.f32.gmra.mxu0 %v1094
          %v1163 = vpop.f32.mrf.mxu0
          %v1164 = vadd.f32 %v1142, %v1163
          %1165 = vmatmul.f32.gmra.mxu0 %v1095
          %v1166 = vpop.f32.mrf.mxu0
          %v1167 = vadd.f32 %v1142, %v1166
          %1168 = vmatmul.f32.gmra.mxu0 %v1096
          %v1169 = vpop.f32.mrf.mxu0
          %v1170 = vadd.f32 %v1142, %v1169
          %1171 = vmatmul.f32.gmra.mxu0 %v1097
          %v1172 = vpop.f32.mrf.mxu0
          %v1173 = vadd.f32 %v1142, %v1172
          %1174 = vmatmul.f32.gmra.mxu0 %v1098
          %v1175 = vpop.f32.mrf.mxu0
          %v1176 = vadd.f32 %v1142, %v1175
          %1177 = vmatmul.f32.gmra.mxu0 %v1099
          %v1178 = vpop.f32.mrf.mxu0
          %v1179 = vadd.f32 %v1142, %v1178
          %1180 = vmatmul.f32.gmra.mxu0 %v1100
          %v1181 = vpop.f32.mrf.mxu0
          %v1182 = vadd.f32 %v1142, %v1181
          %1183 = vmatmul.f32.gmra.mxu0 %v1101
          %v1184 = vpop.f32.mrf.mxu0
          %v1185 = vadd.f32 %v1142, %v1184
          %1186 = vmatmul.f32.gmra.mxu0 %v1102
          %v1187 = vpop.f32.mrf.mxu0
          %v1188 = vadd.f32 %v1142, %v1187
          %1189 = vmatmul.f32.gmra.mxu0 %v1103
          %v1190 = vpop.f32.mrf.mxu0
          %v1191 = vadd.f32 %v1142, %v1190
          %1192 = vmatmul.f32.gmra.mxu0 %v1104
          %v1193 = vpop.f32.mrf.mxu0
          %v1194 = vadd.f32 %v1142, %v1193
          %1195 = vmatmul.f32.gmra.mxu0 %v1105
          %v1196 = vpop.f32.mrf.mxu0
          %v1197 = vadd.f32 %v1142, %v1196
          %1198 = vmatmul.f32.gmra.mxu0 %v1106
          %v1199 = vpop.f32.mrf.mxu0
          %v1200 = vadd.f32 %v1142, %v1199
          %1201 = vmatmul.f32.gmra.mxu0 %v1107
          %v1202 = vpop.f32.mrf.mxu0
          %v1203 = vadd.f32 %v1142, %v1202
          %1204 = vmatmul.f32.gmra.mxu0 %v1108
          %v1205 = vpop.f32.mrf.mxu0
          %v1206 = vadd.f32 %v1142, %v1205
          %1207 = vmatmul.f32.gmra.mxu0 %v1109
          %v1208 = vpop.f32.mrf.mxu0
          %v1209 = vadd.f32 %v1142, %v1208
          %1210 = vmatmul.f32.gmra.mxu0 %v1110
          %v1211 = vpop.f32.mrf.mxu0
          %v1212 = vadd.f32 %v1142, %v1211
          %1213 = vmatmul.f32.gmra.mxu0 %v1111
          %v1214 = vpop.f32.mrf.mxu0
          %v1215 = vadd.f32 %v1142, %v1214
          %1216 = vmatmul.f32.gmra.mxu0 %v1112
          %v1217 = vpop.f32.mrf.mxu0
          %v1218 = vadd.f32 %v1142, %v1217
          %1219 = vmatmul.f32.gmra.mxu0 %v1113
          %v1220 = vpop.f32.mrf.mxu0
          %v1221 = vadd.f32 %v1142, %v1220
          %1222 = vmatmul.f32.gmra.mxu0 %v1114
          %v1223 = vpop.f32.mrf.mxu0
          %v1224 = vadd.f32 %v1142, %v1223
          %1225 = vmatmul.f32.gmra.mxu0 %v1115
          %v1226 = vpop.f32.mrf.mxu0
          %v1227 = vadd.f32 %v1142, %v1226
          %1228 = vmatmul.f32.gmra.mxu0 %v1116
          %v1229 = vpop.f32.mrf.mxu0
          %v1230 = vadd.f32 %v1142, %v1229
          %1231 = vmatmul.f32.gmra.mxu0 %v1117
          %v1232 = vpop.f32.mrf.mxu0
          %v1233 = vadd.f32 %v1142, %v1232
          %1234 = vmatmul.f32.gmra.mxu0 %v1118
          %v1235 = vpop.f32.mrf.mxu0
          %v1236 = vadd.f32 %v1142, %v1235
          %1237 = vmatmul.f32.gmra.mxu0 %v1119
          %v1238 = vpop.f32.mrf.mxu0
          %v1239 = vadd.f32 %v1142, %v1238
          %1240 = vmatmul.f32.gmra.mxu0 %v1120
          %v1241 = vpop.f32.mrf.mxu0
          %v1242 = vadd.f32 %v1142, %v1241
          %1243 = vmatmul.f32.gmra.mxu0 %v1121
          %v1244 = vpop.f32.mrf.mxu0
          %v1245 = vadd.f32 %v1142, %v1244
          %1246 = vmatmul.f32.gmra.mxu0 %v1122
          %v1247 = vpop.f32.mrf.mxu0
          %v1248 = vadd.f32 %v1142, %v1247
          %1249 = vmatmul.f32.gmra.mxu0 %v1123
          %v1250 = vpop.f32.mrf.mxu0
          %v1251 = vadd.f32 %v1142, %v1250
          %1252 = vmatmul.f32.gmra.mxu0 %v1124
          %v1253 = vpop.f32.mrf.mxu0
          %v1254 = vadd.f32 %v1142, %v1253
          %1255 = vdwg.mxu0
          %v1256 = vmax.f32 %v1161, 0.0
          %v1257 = vmax.f32 %v1164, 0.0
          %v1258 = vmax.f32 %v1167, 0.0
          %v1259 = vmax.f32 %v1170, 0.0
          %v1260 = vmax.f32 %v1173, 0.0
          %v1261 = vmax.f32 %v1176, 0.0
          %v1262 = vmax.f32 %v1179, 0.0
          %v1263 = vmax.f32 %v1182, 0.0
          %v1264 = vmax.f32 %v1185, 0.0
          %v1265 = vmax.f32 %v1188, 0.0
          %v1266 = vmax.f32 %v1191, 0.0
          %v1267 = vmax.f32 %v1194, 0.0
          %v1268 = vmax.f32 %v1197, 0.0
          %v1269 = vmax.f32 %v1200, 0.0
          %v1270 = vmax.f32 %v1203, 0.0
          %v1271 = vmax.f32 %v1206, 0.0
          %v1272 = vmax.f32 %v1209, 0.0
          %v1273 = vmax.f32 %v1212, 0.0
          %v1274 = vmax.f32 %v1215, 0.0
          %v1275 = vmax.f32 %v1218, 0.0
          %v1276 = vmax.f32 %v1221, 0.0
          %v1277 = vmax.f32 %v1224, 0.0
          %v1278 = vmax.f32 %v1227, 0.0
          %v1279 = vmax.f32 %v1230, 0.0
          %v1280 = vmax.f32 %v1233, 0.0
          %v1281 = vmax.f32 %v1236, 0.0
          %v1282 = vmax.f32 %v1239, 0.0
          %v1283 = vmax.f32 %v1242, 0.0
          %v1284 = vmax.f32 %v1245, 0.0
          %v1285 = vmax.f32 %v1248, 0.0
          %v1286 = vmax.f32 %v1251, 0.0
          %v1287 = vmax.f32 %v1254, 0.0
          %v1288 = vlaneseq
          %v1289 = vshrl.u32 %v1288, 7
          %v1290 = vadd.s32 %v1289, 8
          %v1291 = vadd.s32 %v1289, 16
          %v1292 = vadd.s32 %v1289, 24
          %v1293 = vadd.s32 %v1289, 32
          %v1294 = vadd.s32 %v1289, 40
          %v1295 = vadd.s32 %v1289, 48
          %v1296 = vadd.s32 %v1289, 56
          %v1297 = vadd.s32 %v1289, 64
          %v1298 = vadd.s32 %v1289, 72
          %v1299 = vadd.s32 %v1289, 80
          %v1300 = vadd.s32 %v1289, 88
          %v1301 = vadd.s32 %v1289, 96
          %v1302 = vadd.s32 %v1289, 104
          %v1303 = vadd.s32 %v1289, 112
          %v1304 = vadd.s32 %v1289, 120
          %v1305 = vadd.s32 %v1289, 128
          %v1306 = vadd.s32 %v1289, 136
          %v1307 = vadd.s32 %v1289, 144
          %v1308 = vadd.s32 %v1289, 152
          %v1309 = vadd.s32 %v1289, 160
          %v1310 = vadd.s32 %v1289, 168
          %v1311 = vadd.s32 %v1289, 176
          %v1312 = vadd.s32 %v1289, 184
          %v1313 = vadd.s32 %v1289, 192
          %v1314 = vadd.s32 %v1289, 200
          %v1315 = vadd.s32 %v1289, 208
          %v1316 = vadd.s32 %v1289, 216
          %v1317 = vadd.s32 %v1289, 224
          %v1318 = vadd.s32 %v1289, 232
          %v1319 = vadd.s32 %v1289, 240
          %v1320 = vadd.s32 %v1289, 248
          %s1321 = smul.u32 %s30, 256
          %v1322 = vstv %s1321
          %v1323 = vadd.s32 %v1289, %v1322
          %v1324 = vadd.s32 %v1290, %v1322
          %v1325 = vadd.s32 %v1291, %v1322
          %v1326 = vadd.s32 %v1292, %v1322
          %v1327 = vadd.s32 %v1293, %v1322
          %v1328 = vadd.s32 %v1294, %v1322
          %v1329 = vadd.s32 %v1295, %v1322
          %v1330 = vadd.s32 %v1296, %v1322
          %v1331 = vadd.s32 %v1297, %v1322
          %v1332 = vadd.s32 %v1298, %v1322
          %v1333 = vadd.s32 %v1299, %v1322
          %v1334 = vadd.s32 %v1300, %v1322
          %v1335 = vadd.s32 %v1301, %v1322
          %v1336 = vadd.s32 %v1302, %v1322
          %v1337 = vadd.s32 %v1303, %v1322
          %v1338 = vadd.s32 %v1304, %v1322
          %v1339 = vadd.s32 %v1305, %v1322
          %v1340 = vadd.s32 %v1306, %v1322
          %v1341 = vadd.s32 %v1307, %v1322
          %v1342 = vadd.s32 %v1308, %v1322
          %v1343 = vadd.s32 %v1309, %v1322
          %v1344 = vadd.s32 %v1310, %v1322
          %v1345 = vadd.s32 %v1311, %v1322
          %v1346 = vadd.s32 %v1312, %v1322
          %v1347 = vadd.s32 %v1313, %v1322
          %v1348 = vadd.s32 %v1314, %v1322
          %v1349 = vadd.s32 %v1315, %v1322
          %v1350 = vadd.s32 %v1316, %v1322
          %v1351 = vadd.s32 %v1317, %v1322
          %v1352 = vadd.s32 %v1318, %v1322
          %v1353 = vadd.s32 %v1319, %v1322
          %v1354 = vadd.s32 %v1320, %v1322
          %vm1355 = vcmp.lt.s32.totalorder %v1323, 500
          %vm1356 = vcmp.lt.s32.totalorder %v1324, 500
          %vm1357 = vcmp.lt.s32.totalorder %v1325, 500
          %vm1358 = vcmp.lt.s32.totalorder %v1326, 500
          %vm1359 = vcmp.lt.s32.totalorder %v1327, 500
          %vm1360 = vcmp.lt.s32.totalorder %v1328, 500
          %vm1361 = vcmp.lt.s32.totalorder %v1329, 500
          %vm1362 = vcmp.lt.s32.totalorder %v1330, 500
          %vm1363 = vcmp.lt.s32.totalorder %v1331, 500
          %vm1364 = vcmp.lt.s32.totalorder %v1332, 500
          %vm1365 = vcmp.lt.s32.totalorder %v1333, 500
          %vm1366 = vcmp.lt.s32.totalorder %v1334, 500
          %vm1367 = vcmp.lt.s32.totalorder %v1335, 500
          %vm1368 = vcmp.lt.s32.totalorder %v1336, 500
          %vm1369 = vcmp.lt.s32.totalorder %v1337, 500
          %vm1370 = vcmp.lt.s32.totalorder %v1338, 500
          %vm1371 = vcmp.lt.s32.totalorder %v1339, 500
          %vm1372 = vcmp.lt.s32.totalorder %v1340, 500
          %vm1373 = vcmp.lt.s32.totalorder %v1341, 500
          %vm1374 = vcmp.lt.s32.totalorder %v1342, 500
          %vm1375 = vcmp.lt.s32.totalorder %v1343, 500
          %vm1376 = vcmp.lt.s32.totalorder %v1344, 500
          %vm1377 = vcmp.lt.s32.totalorder %v1345, 500
          %vm1378 = vcmp.lt.s32.totalorder %v1346, 500
          %vm1379 = vcmp.lt.s32.totalorder %v1347, 500
          %vm1380 = vcmp.lt.s32.totalorder %v1348, 500
          %vm1381 = vcmp.lt.s32.totalorder %v1349, 500
          %vm1382 = vcmp.lt.s32.totalorder %v1350, 500
          %vm1383 = vcmp.lt.s32.totalorder %v1351, 500
          %vm1384 = vcmp.lt.s32.totalorder %v1352, 500
          %vm1385 = vcmp.lt.s32.totalorder %v1353, 500
          %vm1386 = vcmp.lt.s32.totalorder %v1354, 500
          %v1387 = vsel %vm1355, %v1256, 0.0
          %v1388 = vsel %vm1356, %v1257, 0.0
          %v1389 = vsel %vm1357, %v1258, 0.0
          %v1390 = vsel %vm1358, %v1259, 0.0
          %v1391 = vsel %vm1359, %v1260, 0.0
          %v1392 = vsel %vm1360, %v1261, 0.0
          %v1393 = vsel %vm1361, %v1262, 0.0
          %v1394 = vsel %vm1362, %v1263, 0.0
          %v1395 = vsel %vm1363, %v1264, 0.0
          %v1396 = vsel %vm1364, %v1265, 0.0
          %v1397 = vsel %vm1365, %v1266, 0.0
          %v1398 = vsel %vm1366, %v1267, 0.0
          %v1399 = vsel %vm1367, %v1268, 0.0
          %v1400 = vsel %vm1368, %v1269, 0.0
          %v1401 = vsel %vm1369, %v1270, 0.0
          %v1402 = vsel %vm1370, %v1271, 0.0
          %v1403 = vsel %vm1371, %v1272, 0.0
          %v1404 = vsel %vm1372, %v1273, 0.0
          %v1405 = vsel %vm1373, %v1274, 0.0
          %v1406 = vsel %vm1374, %v1275, 0.0
          %v1407 = vsel %vm1375, %v1276, 0.0
          %v1408 = vsel %vm1376, %v1277, 0.0
          %v1409 = vsel %vm1377, %v1278, 0.0
          %v1410 = vsel %vm1378, %v1279, 0.0
          %v1411 = vsel %vm1379, %v1280, 0.0
          %v1412 = vsel %vm1380, %v1281, 0.0
          %v1413 = vsel %vm1381, %v1282, 0.0
          %v1414 = vsel %vm1382, %v1283, 0.0
          %v1415 = vsel %vm1383, %v1284, 0.0
          %v1416 = vsel %vm1384, %v1285, 0.0
          %v1417 = vsel %vm1385, %v1286, 0.0
          %v1418 = vsel %vm1386, %v1287, 0.0
          %1419 = vst [vmem:[%s502] sm:$0xff] %v1387
          %1420 = vst [vmem:[%s502 + $0x8] sm:$0xff] %v1388
          %1421 = vst [vmem:[%s502 + $0x10] sm:$0xff] %v1389
          %1422 = vst [vmem:[%s502 + $0x18] sm:$0xff] %v1390
          %1423 = vst [vmem:[%s502 + $0x20] sm:$0xff] %v1391
          %1424 = vst [vmem:[%s502 + $0x28] sm:$0xff] %v1392
          %1425 = vst [vmem:[%s502 + $0x30] sm:$0xff] %v1393
          %1426 = vst [vmem:[%s502 + $0x38] sm:$0xff] %v1394
          %1427 = vst [vmem:[%s502 + $0x40] sm:$0xff] %v1395
          %1428 = vst [vmem:[%s502 + $0x48] sm:$0xff] %v1396
          %1429 = vst [vmem:[%s502 + $0x50] sm:$0xff] %v1397
          %1430 = vst [vmem:[%s502 + $0x58] sm:$0xff] %v1398
          %1431 = vst [vmem:[%s502 + $0x60] sm:$0xff] %v1399
          %1432 = vst [vmem:[%s502 + $0x68] sm:$0xff] %v1400
          %1433 = vst [vmem:[%s502 + $0x70] sm:$0xff] %v1401
          %1434 = vst [vmem:[%s502 + $0x78] sm:$0xff] %v1402
          %1435 = vst [vmem:[%s502 + $0x80] sm:$0xff] %v1403
          %1436 = vst [vmem:[%s502 + $0x88] sm:$0xff] %v1404
          %1437 = vst [vmem:[%s502 + $0x90] sm:$0xff] %v1405
          %1438 = vst [vmem:[%s502 + $0x98] sm:$0xff] %v1406
          %1439 = vst [vmem:[%s502 + $0xa0] sm:$0xff] %v1407
          %1440 = vst [vmem:[%s502 + $0xa8] sm:$0xff] %v1408
          %1441 = vst [vmem:[%s502 + $0xb0] sm:$0xff] %v1409
          %1442 = vst [vmem:[%s502 + $0xb8] sm:$0xff] %v1410
          %1443 = vst [vmem:[%s502 + $0xc0] sm:$0xff] %v1411
          %1444 = vst [vmem:[%s502 + $0xc8] sm:$0xff] %v1412
          %1445 = vst [vmem:[%s502 + $0xd0] sm:$0xff] %v1413
          %1446 = vst [vmem:[%s502 + $0xd8] sm:$0xff] %v1414
          %1447 = vst [vmem:[%s502 + $0xe0] sm:$0xff] %v1415
          %1448 = vst [vmem:[%s502 + $0xe8] sm:$0xff] %v1416
          %1449 = vst [vmem:[%s502 + $0xf0] sm:$0xff] %v1417
          %1450 = vst [vmem:[%s502 + $0xf8] sm:$0xff] %v1418
          %v1451 = vadd.f32 %v1387, %v1388
          %v1452 = vadd.f32 %v1451, %v1389
          %v1453 = vadd.f32 %v1452, %v1390
          %v1454 = vadd.f32 %v1453, %v1391
          %v1455 = vadd.f32 %v1454, %v1392
          %v1456 = vadd.f32 %v1455, %v1393
          %v1457 = vadd.f32 %v1456, %v1394
          %v1458 = vadd.f32 %v1457, %v1395
          %v1459 = vadd.f32 %v1458, %v1396
          %v1460 = vadd.f32 %v1459, %v1397
          %v1461 = vadd.f32 %v1460, %v1398
          %v1462 = vadd.f32 %v1461, %v1399
          %v1463 = vadd.f32 %v1462, %v1400
          %v1464 = vadd.f32 %v1463, %v1401
          %v1465 = vadd.f32 %v1464, %v1402
          %v1466 = vadd.f32 %v1465, %v1403
          %v1467 = vadd.f32 %v1466, %v1404
          %v1468 = vadd.f32 %v1467, %v1405
          %v1469 = vadd.f32 %v1468, %v1406
          %v1470 = vadd.f32 %v1469, %v1407
          %v1471 = vadd.f32 %v1470, %v1408
          %v1472 = vadd.f32 %v1471, %v1409
          %v1473 = vadd.f32 %v1472, %v1410
          %v1474 = vadd.f32 %v1473, %v1411
          %v1475 = vadd.f32 %v1474, %v1412
          %v1476 = vadd.f32 %v1475, %v1413
          %v1477 = vadd.f32 %v1476, %v1414
          %v1478 = vadd.f32 %v1477, %v1415
          %v1479 = vadd.f32 %v1478, %v1416
          %v1480 = vadd.f32 %v1479, %v1417
          %v1481 = vadd.f32 %v1480, %v1418
          %v1482 = vrot.slane %v1481, 4
          %v1483 = vadd.f32 %v1481, %v1482
          %v1484 = vrot.slane %v1483, 2
          %v1485 = vadd.f32 %v1483, %v1484
          %v1486 = vrot.slane %v1485, 1
          %v1487 = vadd.f32 %v1485, %v1486
          %1488 = vst [vmem:[%s509] sm:$0x1] %v1487
          %v1489 = vmul.f32 %v1387, %v1387
          %v1490 = vmul.f32 %v1388, %v1388
          %v1491 = vmul.f32 %v1389, %v1389
          %v1492 = vmul.f32 %v1390, %v1390
          %v1493 = vmul.f32 %v1391, %v1391
          %v1494 = vmul.f32 %v1392, %v1392
          %v1495 = vmul.f32 %v1393, %v1393
          %v1496 = vmul.f32 %v1394, %v1394
          %v1497 = vmul.f32 %v1395, %v1395
          %v1498 = vmul.f32 %v1396, %v1396
          %v1499 = vmul.f32 %v1397, %v1397
          %v1500 = vmul.f32 %v1398, %v1398
          %v1501 = vmul.f32 %v1399, %v1399
          %v1502 = vmul.f32 %v1400, %v1400
          %v1503 = vmul.f32 %v1401, %v1401
          %v1504 = vmul.f32 %v1402, %v1402
          %v1505 = vmul.f32 %v1403, %v1403
          %v1506 = vmul.f32 %v1404, %v1404
          %v1507 = vmul.f32 %v1405, %v1405
          %v1508 = vmul.f32 %v1406, %v1406
          %v1509 = vmul.f32 %v1407, %v1407
          %v1510 = vmul.f32 %v1408, %v1408
          %v1511 = vmul.f32 %v1409, %v1409
          %v1512 = vmul.f32 %v1410, %v1410
          %v1513 = vmul.f32 %v1411, %v1411
          %v1514 = vmul.f32 %v1412, %v1412
          %v1515 = vmul.f32 %v1413, %v1413
          %v1516 = vmul.f32 %v1414, %v1414
          %v1517 = vmul.f32 %v1415, %v1415
          %v1518 = vmul.f32 %v1416, %v1416
          %v1519 = vmul.f32 %v1417, %v1417
          %v1520 = vmul.f32 %v1418, %v1418
          %v1521 = vadd.f32 %v1489, %v1490
          %v1522 = vadd.f32 %v1521, %v1491
          %v1523 = vadd.f32 %v1522, %v1492
          %v1524 = vadd.f32 %v1523, %v1493
          %v1525 = vadd.f32 %v1524, %v1494
          %v1526 = vadd.f32 %v1525, %v1495
          %v1527 = vadd.f32 %v1526, %v1496
          %v1528 = vadd.f32 %v1527, %v1497
          %v1529 = vadd.f32 %v1528, %v1498
          %v1530 = vadd.f32 %v1529, %v1499
          %v1531 = vadd.f32 %v1530, %v1500
          %v1532 = vadd.f32 %v1531, %v1501
          %v1533 = vadd.f32 %v1532, %v1502
          %v1534 = vadd.f32 %v1533, %v1503
          %v1535 = vadd.f32 %v1534, %v1504
          %v1536 = vadd.f32 %v1535, %v1505
          %v1537 = vadd.f32 %v1536, %v1506
          %v1538 = vadd.f32 %v1537, %v1507
          %v1539 = vadd.f32 %v1538, %v1508
          %v1540 = vadd.f32 %v1539, %v1509
          %v1541 = vadd.f32 %v1540, %v1510
          %v1542 = vadd.f32 %v1541, %v1511
          %v1543 = vadd.f32 %v1542, %v1512
          %v1544 = vadd.f32 %v1543, %v1513
          %v1545 = vadd.f32 %v1544, %v1514
          %v1546 = vadd.f32 %v1545, %v1515
          %v1547 = vadd.f32 %v1546, %v1516
          %v1548 = vadd.f32 %v1547, %v1517
          %v1549 = vadd.f32 %v1548, %v1518
          %v1550 = vadd.f32 %v1549, %v1519
          %v1551 = vadd.f32 %v1550, %v1520
          %v1552 = vrot.slane %v1551, 4
          %v1553 = vadd.f32 %v1551, %v1552
          %v1554 = vrot.slane %v1553, 2
          %v1555 = vadd.f32 %v1553, %v1554
          %v1556 = vrot.slane %v1555, 1
          %v1557 = vadd.f32 %v1555, %v1556
          %1558 = vst [vmem:[%s509 + $0x1] sm:$0x1] %v1557
          %v1559 = vld [vmem:[%s528] sm:$0xff]
          %v1560 = vld [vmem:[%s528 + $0x8] sm:$0xff]
          %1561 = vmatpush.msra.mxu0 %v1402
          %1562 = vmatpush.msra.mxu0 %v1401
          %1563 = vmatpush.msra.mxu0 %v1400
          %1564 = vmatpush.msra.mxu0 %v1399
          %1565 = vmatpush.msra.mxu0 %v1398
          %1566 = vmatpush.msra.mxu0 %v1397
          %1567 = vmatpush.msra.mxu0 %v1396
          %1568 = vmatpush.msra.mxu0 %v1395
          %1569 = vmatpush.msra.mxu0 %v1394
          %1570 = vmatpush.msra.mxu0 %v1393
          %1571 = vmatpush.msra.mxu0 %v1392
          %1572 = vmatpush.msra.mxu0 %v1391
          %1573 = vmatpush.msra.mxu0 %v1390
          %1574 = vmatpush.msra.mxu0 %v1389
          %1575 = vmatpush.msra.mxu0 %v1388
          %1576 = vmatpush.msra.mxu0 %v1387
          %1577 = vmatmul.f32.gmra.mxu0 %v1559
          %v1578 = vpop.f32.mrf.mxu0
          %v1579 = vadd.f32 0.0, %v1578
          %1580 = vdwg.mxu0
          %1581 = vmatpush.msra.mxu0 %v1418
          %1582 = vmatpush.msra.mxu0 %v1417
          %1583 = vmatpush.msra.mxu0 %v1416
          %1584 = vmatpush.msra.mxu0 %v1415
          %1585 = vmatpush.msra.mxu0 %v1414
          %1586 = vmatpush.msra.mxu0 %v1413
          %1587 = vmatpush.msra.mxu0 %v1412
          %1588 = vmatpush.msra.mxu0 %v1411
          %1589 = vmatpush.msra.mxu0 %v1410
          %1590 = vmatpush.msra.mxu0 %v1409
          %1591 = vmatpush.msra.mxu0 %v1408
          %1592 = vmatpush.msra.mxu0 %v1407
          %1593 = vmatpush.msra.mxu0 %v1406
          %1594 = vmatpush.msra.mxu0 %v1405
          %1595 = vmatpush.msra.mxu0 %v1404
          %1596 = vmatpush.msra.mxu0 %v1403
          %1597 = vmatmul.f32.gmra.mxu0 %v1560
          %v1598 = vpop.f32.mrf.mxu0
          %v1599 = vadd.f32 %v1579, %v1598
          %1600 = vdwg.mxu0
          %1601 = vst [vmem:[%s534] sm:$0xff] %v1599
        $region75: #{fwd.10} parent=62 // pred_fallthru
          _
        %s1602 = sand.u32 %s189, 1
        %s1603 = scalar_lea.sflag [#allocation5], %s1602
        %s1604 = sand.u32 %s189, 1
        %s1605 = smul.addr %s1604, 256
        %s1606 = scalar_lea.vmem [#allocation4], %s1605
        %s1607 = sand.u32 %s215, 1
        %s1608 = scalar_lea.sflag [#allocation7], %s1607
        %s1609 = sand.u32 %s215, 1
        %s1610 = smul.addr %s1609, 2
        %s1611 = scalar_lea.vmem [#allocation6], %s1610
        %p1612 = scmp.lt.s32.totalorder %s30, 1
        %s1613 = scalar_select %p1612, %s30, 1
        %s1614 = smul.addr %s1613, 8
        %s1615 = scalar_lea.vmem %s8, %s1614
        // Predicated region
        $region76: #{fwd.10} parent=62 // pred_check
          %p1616 = pneg %p199
        $region77: #{fwd.10} parent=62 // pred_check_branch
          %1618 = sbr.rel (%p1616) target = $region79
        $region78: #{fwd.10} parent=62 // pred_region
          %s1619 = smul.u32 32, %s30
          %1621 = vsyncadd %s1603, 0
          %s1622 = smul.addr %s1619, 8
          %s1623 = scalar_lea.hbm %s6, %s1622
          %s1624 = sshll.u32 %s1606, 4
          %s1625 = int_to_ptr.vmem [resolvable:$true] %s1624
          %s1626 = sshll.u32 %s1623, 4
          %s1627 = int_to_ptr.hbm [resolvable:$true] %s1626
          %1632 = dma.vmem_to_hbm [thread:$0]  %s1625, 4096, %s1627, %s1603, 128, 128, 8
        $region79: #{fwd.10} parent=62 // pred_fallthru
          _
        // Predicated region
        $region80: #{fwd.10} parent=62 // pred_check
          %p1633 = pneg %p225
        $region81: #{fwd.10} parent=62 // pred_check_branch
          %1635 = sbr.rel (%p1633) target = $region83
        $region82: #{fwd.10} parent=62 // pred_region
          %1637 = vsyncadd %s1608, 0
          %s1638 = smul.addr %s30, 2
          %s1639 = scalar_lea.hbm %s7, %s1638
          %s1641 = sshll.u32 %s1611, 4
          %s1642 = int_to_ptr.vmem [resolvable:$true] %s1641
          %s1643 = sshll.u32 %s1639, 4
          %s1644 = int_to_ptr.hbm [resolvable:$true] %s1643
          %1646 = dma.vmem_to_hbm [thread:$0]  %s1642, 32, %s1644, %s1608
        $region83: #{fwd.10} parent=62 // pred_fallthru
          _
        // Predicated region
        $region84: #{fwd.10} parent=62 // pred_check
          %p1647 = pneg %p251
        $region85: #{fwd.10} parent=62 // pred_check_branch
          %1649 = sbr.rel (%p1647) target = $region87
        $region86: #{fwd.10} parent=62 // pred_region
          _
        $region87: #{fwd.10} parent=62 // pred_fallthru
          _
      $region63: #{fwd.10} parent=5 // pred_fallthru
        _
      %p1650 = scmp.le.s32.totalorder 2, %s21
      // Predicated region
      $region88: #{fwd.10} parent=5 // pred_check
        %p1651 = pneg %p1650
      $region89: #{fwd.10} parent=5 // pred_check_branch
        %1653 = sbr.rel (%p1651) target = $region91
      $region90: #{fwd.10} parent=5 // pred_region
        %s1654 = ssub.s32 %s21, 2
        // Predicated region
        $region92: #{fwd.10} parent=90 // pred_check
          %p1655 = pneg %p205
        $region93: #{fwd.10} parent=90 // pred_check_branch
          %1657 = sbr.rel (%p1655) target = $region95
        $region94: #{fwd.10} parent=90 // pred_region
          %s1658 = sand.u32 %s190, 1
          %s1659 = scalar_lea.sflag [#allocation5], %s1658
          %s1660 = sand.u32 %s190, 1
          %s1661 = smul.addr %s1660, 256
          %s1662 = scalar_lea.vmem [#allocation4], %s1661
          %1664 = dma.done %s1659, 4096
        $region95: #{fwd.10} parent=90 // pred_fallthru
          _
        // Predicated region
        $region96: #{fwd.10} parent=90 // pred_check
          %p1665 = pneg %p231
        $region97: #{fwd.10} parent=90 // pred_check_branch
          %1667 = sbr.rel (%p1665) target = $region99
        $region98: #{fwd.10} parent=90 // pred_region
          %s1668 = sand.u32 %s216, 1
          %s1669 = scalar_lea.sflag [#allocation7], %s1668
          %s1670 = sand.u32 %s216, 1
          %s1671 = smul.addr %s1670, 2
          %s1672 = scalar_lea.vmem [#allocation6], %s1671
          %1674 = dma.done %s1669, 32
        $region99: #{fwd.10} parent=90 // pred_fallthru
          _
        // Predicated region
        $region100: #{fwd.10} parent=90 // pred_check
          %p1675 = pneg %p257
        $region101: #{fwd.10} parent=90 // pred_check_branch
          %1677 = sbr.rel (%p1675) target = $region103
        $region102: #{fwd.10} parent=90 // pred_region
          %p1678 = scmp.lt.s32.totalorder %s32, 1
          %s1679 = scalar_select %p1678, %s32, 1
          %s1680 = smul.addr %s1679, 8
          %s1681 = scalar_lea.vmem %s8, %s1680
        $region103: #{fwd.10} parent=90 // pred_fallthru
          _
      $region91: #{fwd.10} parent=5 // pred_fallthru
        _
    $region6: #{fwd.10} parent=1 // loop_footer
      %s25 = sadd.s32 1, %s21
    $region7: #{fwd.10} parent=1 // loop_footer_branch
      %20 = sbr.rel target = $region3
    $region8: #{fwd.10} parent=1 // loop_exit
      _
    %1682 = vsyncpa [#allocation5], 1
    %s1683 = scalar_lea.sflag [#allocation5], 1
    %1684 = vsyncpa %s1683, 1
    %1685 = vsyncpa [#allocation7], 1
    %s1686 = scalar_lea.sflag [#allocation7], 1
    %1687 = vsyncpa %s1686, 1

</llo_original>
